<compile_context>
chip_gen: v5e
topology: v5e:2x2
jax: 0.10.0
libtpu: 0.0.40
codegen_flags: <defaults>
</compile_context>

<pallas_src>
import functools

import jax
import jax.numpy as jnp
from jax.experimental import pallas as pl
from jax.experimental.pallas import tpu as pltpu


RESIDUAL_CH = 32
DILATION_CH = 32
SKIP_CH = 128
BLOCKS = 1
LAYERS = 2
KERNEL_SIZE = 2
ORDER = 2
RECEPTIVE_FIELD = 4          # blocks=1, layers=2, kernel_size=2
BN_EPS = 1e-5
IN_DIM = 5                   # forward indexes history channels 0..4


# ----------------------------------------------------------------------------
# The single fused Pallas kernel
# ----------------------------------------------------------------------------
def _gwnet_kernel(y_ref, wm_ref, bm_ref, w0_ref, b0_ref, w1_ref, b1_ref,
                  wc_ref, bc_ref, e2t_ref, e1t_ref, supt_ref,
                  wf_ref, bf_ref, wg_ref, bg_ref, ws_ref, bs_ref,
                  wgc_ref, bgc_ref, gam_ref, bet_ref,
                  out_ref, *, T, B, N, n_fixed):
    """Whole GraphWaveNet forward; all intermediates stay in VMEM."""
    f32 = jnp.float32
    BN = B * N                                         # rows per timestep
    M = T * BN
    C = RESIDUAL_CH

    # ---- start block: 3 'same' 1x3 convs + sigmoid gates + cat0 + residual -
    y = y_ref[...]                                     # [T*BN, in_dim]
    cin = y.shape[1]
    zc = jnp.zeros((BN, cin), f32)
    yp = jnp.concatenate([zc, y, zc], axis=0)          # 'same' time padding

    def same_conv3(w_ref, b_ref):
        acc = b_ref[...]                               # [1, 32] -> broadcast
        for k in range(3):
            acc = acc + jnp.dot(yp[k * BN:k * BN + M], w_ref[k],
                                preferred_element_type=f32)
        return acc

    x_main = same_conv3(wm_ref, bm_ref)                # [M, 32]
    x_0 = jax.nn.sigmoid(same_conv3(w0_ref, b0_ref)) * x_main
    x_1 = jax.nn.sigmoid(same_conv3(w1_ref, b1_ref)) * x_main

    # cat0: 1x3 'same' conv over channel-concat([x_0, x_1]); implemented as
    # two 32-channel matmuls per tap (top / bottom half of the 64x32 weight).
    z32 = jnp.zeros((BN, C), f32)
    x0p = jnp.concatenate([z32, x_0, z32], axis=0)
    x1p = jnp.concatenate([z32, x_1, z32], axis=0)
    xc = bc_ref[...]
    for k in range(3):
        wck = wc_ref[k]                                # [64, 32]
        xc = xc + jnp.dot(x0p[k * BN:k * BN + M], wck[:C],
                          preferred_element_type=f32)
        xc = xc + jnp.dot(x1p[k * BN:k * BN + M], wck[C:],
                          preferred_element_type=f32)
    x = xc + x_main                                    # [M, 32]

    # ---- adaptive adjacency, built directly in transposed form -------------
    # adp = softmax(relu(E1 @ E2), dim=1).  The diffusion needs adp^T, so we
    # compute relu(E2^T @ E1^T) = relu(E1 @ E2)^T and softmax over axis 0
    # (avoids an in-kernel transpose).
    mt = jnp.maximum(jnp.dot(e2t_ref[...], e1t_ref[...],
                             preferred_element_type=f32), 0.0)
    emt = jnp.exp(mt - jnp.max(mt, axis=0, keepdims=True))
    adp_t = emt / jnp.sum(emt, axis=0, keepdims=True)
    supports_t = [supt_ref[s] for s in range(n_fixed)] + [adp_t]

    # ---- layers (statically unrolled) ---------------------------------------
    n_layers = BLOCKS * LAYERS
    skip = None
    Tcur = T
    li = 0
    for _block in range(BLOCKS):
        dilation = 1
        for _layer in range(LAYERS):
            last = li == n_layers - 1
            To = Tcur - dilation
            Mo = To * BN
            xa = x[:Mo]                                # taps at time t
            xb = x[dilation * BN:dilation * BN + Mo]   # taps at time t+dil

            filt = jnp.tanh(
                jnp.dot(xa, wf_ref[li, 0], preferred_element_type=f32)
                + jnp.dot(xb, wf_ref[li, 1], preferred_element_type=f32)
                + bf_ref[li])
            gate = jax.nn.sigmoid(
                jnp.dot(xa, wg_ref[li, 0], preferred_element_type=f32)
                + jnp.dot(xb, wg_ref[li, 1], preferred_element_type=f32)
                + bg_ref[li])
            xg = filt * gate                           # [Mo, 32]

            # skip branch: 1x1 conv to 128 ch + accumulate previous skip
            s = jnp.dot(xg, ws_ref[li], preferred_element_type=f32) + bs_ref[li]
            if skip is not None:
                s = s + skip[skip.shape[0] - Mo:]      # last To timesteps
            skip = s

            if not last:
                # Graph conv + residual + BatchNorm.  In the reference forward
                # the LAST layer's x is dead (output is relu(skip)), so this
                # whole block is elided there.
                wgc = wgc_ref[li]                      # [(2S+1)*32, 32]
                acc = jnp.dot(xg, wgc[:C], preferred_element_type=f32)
                x3 = xg.reshape(To * B, N, C)          # [slab, node, ch]
                col = C
                for a_t in supports_t:
                    # a_t holds A^T: out[m,w,c] = sum_v A[v,w] * h[m,v,c]
                    a_b = jnp.broadcast_to(a_t, (To * B, N, N))
                    h = x3
                    for _ in range(ORDER):
                        h = jax.lax.dot_general(
                            a_b, h,
                            dimension_numbers=(((2,), (1,)), ((0,), (0,))),
                            preferred_element_type=f32)
                        acc = acc + jnp.dot(h.reshape(Mo, C), wgc[col:col + C],
                                            preferred_element_type=f32)
                        col += C
                acc = acc + bgc_ref[li]

                # residual add + training-mode BatchNorm2d (biased batch stats)
                xr = acc + x[dilation * BN:]
                mean = jnp.mean(xr, axis=0, keepdims=True)
                var = jnp.mean(jnp.square(xr - mean), axis=0, keepdims=True)
                x = ((xr - mean) * jax.lax.rsqrt(var + BN_EPS)
                     * gam_ref[li] + bet_ref[li])

            Tcur = To
            dilation *= 2
            li += 1

    out_ref[...] = jnp.maximum(skip, 0.0)              # final ReLU (lane-dense)


# ----------------------------------------------------------------------------
# pallas_call wrapper
# ----------------------------------------------------------------------------
def _full_specs(arrays):
    return [pl.BlockSpec(a.shape, lambda i, nd=a.ndim: (0,) * nd)
            for a in arrays]


def graphwavenet_forward(history, params, supports):
    """history: [B, L, N, C>=5]; returns NCHW [B, skip_ch, N, T_out] (torch)."""
    B, L, N, Cin = history.shape
    # time-major, node-fastest rows: row = (t*B + b)*N + n
    x = jnp.transpose(history, (1, 0, 2, 3)).astype(jnp.float32)   # [L,B,N,C]
    if L < RECEPTIVE_FIELD:
        x = jnp.pad(x, ((RECEPTIVE_FIELD - L, 0), (0, 0), (0, 0), (0, 0)))
    T = max(L, RECEPTIVE_FIELD)
    BN = B * N
    M = T * BN
    y2d = x.reshape(M, Cin)

    sup_t = jnp.swapaxes(jnp.stack(list(supports), axis=0), 1, 2)  # A^T [S,N,N]
    n_fixed = int(sup_t.shape[0])
    S = n_fixed + 1
    e2t = jnp.transpose(params["nodevec2"])            # [N, 10]
    e1t = jnp.transpose(params["nodevec1"])            # [10, N]

    # output time length after all dilated convs
    Tout, d = T, 1
    for _ in range(BLOCKS * LAYERS):
        Tout -= d
        d *= 2
    Mo_final = Tout * BN

    inputs = [y2d,
              params["w_main"], params["b_main"],
              params["w_con0"], params["b_con0"],
              params["w_con1"], params["b_con1"],
              params["w_cat0"], params["b_cat0"],
              e2t, e1t, sup_t,
              params["w_filter"], params["b_filter"],
              params["w_gate"], params["b_gate"],
              params["w_skip"], params["b_skip"],
              params["w_gconv"], params["b_gconv"],
              params["bn_gamma"], params["bn_beta"]]

    # advisory cost estimate
    flops = 2 * M * (3 * 3 * Cin * RESIDUAL_CH
                     + 3 * 2 * RESIDUAL_CH * RESIDUAL_CH) + 2 * N * 10 * N
    trans = 2 * M * RESIDUAL_CH + N * N
    Tc, d = T, 1
    for li in range(BLOCKS * LAYERS):
        To = Tc - d
        Mo = To * BN
        flops += 2 * Mo * (4 * RESIDUAL_CH * DILATION_CH
                           + DILATION_CH * SKIP_CH)
        trans += 2 * Mo * DILATION_CH
        if li != BLOCKS * LAYERS - 1:
            flops += 2 * Mo * (S * ORDER * N
                               + (S * ORDER + 1) * RESIDUAL_CH) * DILATION_CH
        Tc = To
        d *= 2
    bytes_accessed = (sum(int(a.size) * 4 for a in inputs)
                      + Mo_final * SKIP_CH * 4)

    kernel = functools.partial(_gwnet_kernel, T=T, B=B, N=N, n_fixed=n_fixed)
    skip = pl.pallas_call(
        kernel,
        grid=(1,),
        in_specs=_full_specs(inputs),
        out_specs=pl.BlockSpec((Mo_final, SKIP_CH), lambda i: (0, 0)),
        out_shape=jax.ShapeDtypeStruct((Mo_final, SKIP_CH), jnp.float32),
        compiler_params=pltpu.CompilerParams(dimension_semantics=("arbitrary",)),
        cost_estimate=pl.CostEstimate(flops=flops, transcendentals=trans,
                                      bytes_accessed=bytes_accessed),
    )(*inputs)

    out = skip.reshape(Tout, B, N, SKIP_CH)
    return jnp.transpose(out, (1, 3, 2, 0))            # [B, 128, N, T_out]


# ----------------------------------------------------------------------------
# Pure-JAX reference (for numerical verification)
# ----------------------------------------------------------------------------
def _reference_forward(history, params, supports):
    hi = jax.lax.Precision.HIGHEST
    B, L, N, Cin = history.shape
    x = jnp.transpose(history, (1, 0, 2, 3)).astype(jnp.float32)
    if L < RECEPTIVE_FIELD:
        x = jnp.pad(x, ((RECEPTIVE_FIELD - L, 0), (0, 0), (0, 0), (0, 0)))
    T = x.shape[0]

    def ch_mm(a, w):
        return jnp.einsum('tbnc,cd->tbnd', a, w, precision=hi)

    def conv1x3_same(inp, w, b):
        xp = jnp.pad(inp, ((1, 1), (0, 0), (0, 0), (0, 0)))
        return sum(ch_mm(xp[k:k + T], w[k]) for k in range(3)) + b

    main = conv1x3_same(x, params["w_main"], params["b_main"][0])
    g0 = jax.nn.sigmoid(conv1x3_same(x, params["w_con0"], params["b_con0"][0]))
    g1 = jax.nn.sigmoid(conv1x3_same(x, params["w_con1"], params["b_con1"][0]))
    cat_in = jnp.concatenate([g0 * main, g1 * main], axis=-1)
    xcur = conv1x3_same(cat_in, params["w_cat0"], params["b_cat0"][0]) + main

    m = jax.nn.relu(jnp.matmul(params["nodevec1"], params["nodevec2"],
                               precision=hi))
    adp = jax.nn.softmax(m, axis=1)
    a_all = list(supports) + [adp]

    skip = None
    li = 0
    for _b in range(BLOCKS):
        dilation = 1
        for _l in range(LAYERS):
            To = xcur.shape[0] - dilation
            xa, xb = xcur[:To], xcur[dilation:]
            filt = jnp.tanh(ch_mm(xa, params["w_filter"][li][0])
                            + ch_mm(xb, params["w_filter"][li][1])
                            + params["b_filter"][li][0])
            gate = jax.nn.sigmoid(ch_mm(xa, params["w_gate"][li][0])
                                  + ch_mm(xb, params["w_gate"][li][1])
                                  + params["b_gate"][li][0])
            xg = filt * gate
            s = ch_mm(xg, params["w_skip"][li]) + params["b_skip"][li][0]
            skip = s if skip is None else s + skip[skip.shape[0] - To:]
            hops = [xg]
            for A in a_all:
                h = xg
                for _ in range(ORDER):
                    h = jnp.einsum('vw,tbvc->tbwc', A, h, precision=hi)
                    hops.append(h)
            hcat = jnp.concatenate(hops, axis=-1)
            gout = ch_mm(hcat, params["w_gconv"][li]) + params["b_gconv"][li][0]
            xr = gout + xcur[dilation:]
            mean = jnp.mean(xr, axis=(0, 1, 2), keepdims=True)
            var = jnp.mean(jnp.square(xr - mean), axis=(0, 1, 2), keepdims=True)
            xcur = ((xr - mean) * jax.lax.rsqrt(var + BN_EPS)
                    * params["bn_gamma"][li][0] + params["bn_beta"][li][0])
            dilation *= 2
            li += 1
    out = jax.nn.relu(skip)
    return jnp.transpose(out, (1, 3, 2, 0))


# ----------------------------------------------------------------------------
# Deterministic parameter construction (kernel-ready, per-layer-stacked shapes)
# ----------------------------------------------------------------------------
def make_params(key, num_nodes, supports_len):
    ks = iter(jax.random.split(key, 64))

    def w(shape, scale=0.1):
        return scale * jax.random.normal(next(ks), shape, dtype=jnp.float32)

    def start_conv_w(chs):
        # Conv sees only channels `chs`; embed into a [tap, in_dim, out] weight
        # with zero rows for unused input channels.
        core = w((3, len(chs), RESIDUAL_CH))
        full = jnp.zeros((3, IN_DIM, RESIDUAL_CH), jnp.float32)
        for j, c in enumerate(chs):
            full = full.at[:, c, :].set(core[:, j, :])
        return full

    L = BLOCKS * LAYERS
    gcn_in = (ORDER * supports_len + 1) * DILATION_CH
    return {
        "w_main": start_conv_w((0, 3, 4)), "b_main": w((1, RESIDUAL_CH)),
        "w_con0": start_conv_w((1, 3, 4)), "b_con0": w((1, RESIDUAL_CH)),
        "w_con1": start_conv_w((2, 3, 4)), "b_con1": w((1, RESIDUAL_CH)),
        "w_cat0": w((3, 2 * RESIDUAL_CH, RESIDUAL_CH)),
        "b_cat0": w((1, RESIDUAL_CH)),
        "nodevec1": jax.random.normal(next(ks), (num_nodes, 10), jnp.float32),
        "nodevec2": jax.random.normal(next(ks), (10, num_nodes), jnp.float32),
        "w_filter": w((L, KERNEL_SIZE, RESIDUAL_CH, DILATION_CH)),
        "b_filter": w((L, 1, DILATION_CH)),
        "w_gate": w((L, KERNEL_SIZE, RESIDUAL_CH, DILATION_CH)),
        "b_gate": w((L, 1, DILATION_CH)),
        "w_skip": w((L, DILATION_CH, SKIP_CH)),
        "b_skip": w((L, 1, SKIP_CH)),
        "w_gconv": w((L, gcn_in, RESIDUAL_CH)),
        "b_gconv": w((L, 1, RESIDUAL_CH)),
        "bn_gamma": 1.0 + w((L, 1, RESIDUAL_CH)),
        "bn_beta": w((L, 1, RESIDUAL_CH)),
    }


if __name__ == "__main__":
    key = jax.random.PRNGKey(0)
    k_in, k_par, k_a1, k_a2 = jax.random.split(key, 4)

    B, L, N, C_IN = 2, 8, 16, 5
    history = jax.random.normal(k_in, (B, L, N, C_IN), dtype=jnp.float32)

    # two fixed (row-normalized) supports + 1 adaptive => supports_len = 3
    A1 = jax.nn.softmax(jax.random.normal(k_a1, (N, N), jnp.float32), axis=1)
    A2 = jax.nn.softmax(jax.random.normal(k_a2, (N, N), jnp.float32), axis=1)
    supports = [A1, A2]

    params = make_params(k_par, num_nodes=N, supports_len=len(supports) + 1)

    fwd = jax.jit(graphwavenet_forward)
    out = jax.block_until_ready(fwd(history, params, supports))

    # expected: [B, skip_channels, N, L - 3] = [2, 128, 16, 5]
    assert out.shape == (B, SKIP_CH, N, L - 3), out.shape

    ref = jax.block_until_ready(_reference_forward(history, params, supports))
    max_err = float(jnp.max(jnp.abs(out - ref)))
    assert jnp.allclose(out, ref, rtol=2e-2, atol=2e-2), max_err

    print("KERNEL_OK")
</pallas_src>

<mosaic_0001>
module attributes {stable_mosaic.version = 11 : i64} {
  func.func @_gwnet_kernel(%arg0: i32, %arg1: memref<256x5xf32, #tpu.memory_space<vmem>>, %arg2: memref<3x5x32xf32, #tpu.memory_space<vmem>>, %arg3: memref<1x32xf32, #tpu.memory_space<vmem>>, %arg4: memref<3x5x32xf32, #tpu.memory_space<vmem>>, %arg5: memref<1x32xf32, #tpu.memory_space<vmem>>, %arg6: memref<3x5x32xf32, #tpu.memory_space<vmem>>, %arg7: memref<1x32xf32, #tpu.memory_space<vmem>>, %arg8: memref<3x64x32xf32, #tpu.memory_space<vmem>>, %arg9: memref<1x32xf32, #tpu.memory_space<vmem>>, %arg10: memref<16x10xf32, #tpu.memory_space<vmem>>, %arg11: memref<10x16xf32, #tpu.memory_space<vmem>>, %arg12: memref<2x16x16xf32, #tpu.memory_space<vmem>>, %arg13: memref<2x2x32x32xf32, #tpu.memory_space<vmem>>, %arg14: memref<2x1x32xf32, #tpu.memory_space<vmem>>, %arg15: memref<2x2x32x32xf32, #tpu.memory_space<vmem>>, %arg16: memref<2x1x32xf32, #tpu.memory_space<vmem>>, %arg17: memref<2x32x128xf32, #tpu.memory_space<vmem>>, %arg18: memref<2x1x128xf32, #tpu.memory_space<vmem>>, %arg19: memref<2x224x32xf32, #tpu.memory_space<vmem>>, %arg20: memref<2x1x32xf32, #tpu.memory_space<vmem>>, %arg21: memref<2x1x32xf32, #tpu.memory_space<vmem>>, %arg22: memref<2x1x32xf32, #tpu.memory_space<vmem>>, %arg23: memref<160x128xf32, #tpu.memory_space<vmem>>) attributes {dimension_semantics = [#tpu.dimension_semantics<arbitrary>], iteration_bounds = array<i64: 1>, scalar_prefetch = 0 : i64, scratch_operands = 0 : i64, tpu.core_type = #tpu.core_type<tc>, window_params = [{pipeline_mode = #tpu.pipeline_mode<synchronous>, transform_indices = @transform_0, window_bounds = array<i64: 256, 5>}, {pipeline_mode = #tpu.pipeline_mode<synchronous>, transform_indices = @transform_1, window_bounds = array<i64: 3, 5, 32>}, {pipeline_mode = #tpu.pipeline_mode<synchronous>, transform_indices = @transform_2, window_bounds = array<i64: 1, 32>}, {pipeline_mode = #tpu.pipeline_mode<synchronous>, transform_indices = @transform_3, window_bounds = array<i64: 3, 5, 32>}, {pipeline_mode = #tpu.pipeline_mode<synchronous>, transform_indices = @transform_4, window_bounds = array<i64: 1, 32>}, {pipeline_mode = #tpu.pipeline_mode<synchronous>, transform_indices = @transform_5, window_bounds = array<i64: 3, 5, 32>}, {pipeline_mode = #tpu.pipeline_mode<synchronous>, transform_indices = @transform_6, window_bounds = array<i64: 1, 32>}, {pipeline_mode = #tpu.pipeline_mode<synchronous>, transform_indices = @transform_7, window_bounds = array<i64: 3, 64, 32>}, {pipeline_mode = #tpu.pipeline_mode<synchronous>, transform_indices = @transform_8, window_bounds = array<i64: 1, 32>}, {pipeline_mode = #tpu.pipeline_mode<synchronous>, transform_indices = @transform_9, window_bounds = array<i64: 16, 10>}, {pipeline_mode = #tpu.pipeline_mode<synchronous>, transform_indices = @transform_10, window_bounds = array<i64: 10, 16>}, {pipeline_mode = #tpu.pipeline_mode<synchronous>, transform_indices = @transform_11, window_bounds = array<i64: 2, 16, 16>}, {pipeline_mode = #tpu.pipeline_mode<synchronous>, transform_indices = @transform_12, window_bounds = array<i64: 2, 2, 32, 32>}, {pipeline_mode = #tpu.pipeline_mode<synchronous>, transform_indices = @transform_13, window_bounds = array<i64: 2, 1, 32>}, {pipeline_mode = #tpu.pipeline_mode<synchronous>, transform_indices = @transform_14, window_bounds = array<i64: 2, 2, 32, 32>}, {pipeline_mode = #tpu.pipeline_mode<synchronous>, transform_indices = @transform_15, window_bounds = array<i64: 2, 1, 32>}, {pipeline_mode = #tpu.pipeline_mode<synchronous>, transform_indices = @transform_16, window_bounds = array<i64: 2, 32, 128>}, {pipeline_mode = #tpu.pipeline_mode<synchronous>, transform_indices = @transform_17, window_bounds = array<i64: 2, 1, 128>}, {pipeline_mode = #tpu.pipeline_mode<synchronous>, transform_indices = @transform_18, window_bounds = array<i64: 2, 224, 32>}, {pipeline_mode = #tpu.pipeline_mode<synchronous>, transform_indices = @transform_19, window_bounds = array<i64: 2, 1, 32>}, {pipeline_mode = #tpu.pipeline_mode<synchronous>, transform_indices = @transform_20, window_bounds = array<i64: 2, 1, 32>}, {pipeline_mode = #tpu.pipeline_mode<synchronous>, transform_indices = @transform_21, window_bounds = array<i64: 2, 1, 32>}, {pipeline_mode = #tpu.pipeline_mode<synchronous>, transform_indices = @transform_22, window_bounds = array<i64: 160, 128>}]} {
    %c0 = arith.constant 0 : index
    %c0_0 = arith.constant 0 : index
    %0 = vector.load %arg1[%c0, %c0_0] : memref<256x5xf32, #tpu.memory_space<vmem>>, vector<256x5xf32>
    %cst = arith.constant 0.000000e+00 : f32
    %1 = vector.broadcast %cst : f32 to vector<32x5xf32>
    %2 = tpu.concatenate %1, %0, %1 in 0 : vector<32x5xf32>, vector<256x5xf32>, vector<32x5xf32> -> vector<320x5xf32>
    %c0_1 = arith.constant 0 : index
    %c0_2 = arith.constant 0 : index
    %3 = vector.load %arg3[%c0_1, %c0_2] : memref<1x32xf32, #tpu.memory_space<vmem>>, vector<1x32xf32>
    %4 = vector.extract_strided_slice %2 {offsets = [0, 0], sizes = [256, 5], strides = [1, 1]} : vector<320x5xf32> to vector<256x5xf32>
    %c0_3 = arith.constant 0 : index
    %c0_4 = arith.constant 0 : index
    %c0_5 = arith.constant 0 : index
    %5 = vector.load %arg2[%c0_3, %c0_4, %c0_5] : memref<3x5x32xf32, #tpu.memory_space<vmem>>, vector<1x5x32xf32>
    %6 = vector.shape_cast %5 : vector<1x5x32xf32> to vector<5x32xf32>
    %cst_6 = arith.constant dense<0.000000e+00> : vector<256x32xf32>
    %7 = tpu.matmul %4, %6, %cst_6 {dimension_numbers = #tpu.dot_dimension_numbers<[1], [0], [0], [1], [0, 0, 1, 1], [], []>} : vector<256x5xf32>, vector<5x32xf32>, vector<256x32xf32> -> vector<256x32xf32>
    %8 = vector.broadcast %3 : vector<1x32xf32> to vector<256x32xf32>
    %9 = arith.addf %8, %7 : vector<256x32xf32>
    %10 = vector.extract_strided_slice %2 {offsets = [32, 0], sizes = [256, 5], strides = [1, 1]} : vector<320x5xf32> to vector<256x5xf32>
    %c1 = arith.constant 1 : index
    %c0_7 = arith.constant 0 : index
    %c0_8 = arith.constant 0 : index
    %11 = vector.load %arg2[%c1, %c0_7, %c0_8] : memref<3x5x32xf32, #tpu.memory_space<vmem>>, vector<1x5x32xf32>
    %12 = vector.shape_cast %11 : vector<1x5x32xf32> to vector<5x32xf32>
    %cst_9 = arith.constant dense<0.000000e+00> : vector<256x32xf32>
    %13 = tpu.matmul %10, %12, %cst_9 {dimension_numbers = #tpu.dot_dimension_numbers<[1], [0], [0], [1], [0, 0, 1, 1], [], []>} : vector<256x5xf32>, vector<5x32xf32>, vector<256x32xf32> -> vector<256x32xf32>
    %14 = arith.addf %9, %13 : vector<256x32xf32>
    %15 = vector.extract_strided_slice %2 {offsets = [64, 0], sizes = [256, 5], strides = [1, 1]} : vector<320x5xf32> to vector<256x5xf32>
    %c2 = arith.constant 2 : index
    %c0_10 = arith.constant 0 : index
    %c0_11 = arith.constant 0 : index
    %16 = vector.load %arg2[%c2, %c0_10, %c0_11] : memref<3x5x32xf32, #tpu.memory_space<vmem>>, vector<1x5x32xf32>
    %17 = vector.shape_cast %16 : vector<1x5x32xf32> to vector<5x32xf32>
    %cst_12 = arith.constant dense<0.000000e+00> : vector<256x32xf32>
    %18 = tpu.matmul %15, %17, %cst_12 {dimension_numbers = #tpu.dot_dimension_numbers<[1], [0], [0], [1], [0, 0, 1, 1], [], []>} : vector<256x5xf32>, vector<5x32xf32>, vector<256x32xf32> -> vector<256x32xf32>
    %19 = arith.addf %14, %18 : vector<256x32xf32>
    %c0_13 = arith.constant 0 : index
    %c0_14 = arith.constant 0 : index
    %20 = vector.load %arg5[%c0_13, %c0_14] : memref<1x32xf32, #tpu.memory_space<vmem>>, vector<1x32xf32>
    %21 = vector.extract_strided_slice %2 {offsets = [0, 0], sizes = [256, 5], strides = [1, 1]} : vector<320x5xf32> to vector<256x5xf32>
    %c0_15 = arith.constant 0 : index
    %c0_16 = arith.constant 0 : index
    %c0_17 = arith.constant 0 : index
    %22 = vector.load %arg4[%c0_15, %c0_16, %c0_17] : memref<3x5x32xf32, #tpu.memory_space<vmem>>, vector<1x5x32xf32>
    %23 = vector.shape_cast %22 : vector<1x5x32xf32> to vector<5x32xf32>
    %cst_18 = arith.constant dense<0.000000e+00> : vector<256x32xf32>
    %24 = tpu.matmul %21, %23, %cst_18 {dimension_numbers = #tpu.dot_dimension_numbers<[1], [0], [0], [1], [0, 0, 1, 1], [], []>} : vector<256x5xf32>, vector<5x32xf32>, vector<256x32xf32> -> vector<256x32xf32>
    %25 = vector.broadcast %20 : vector<1x32xf32> to vector<256x32xf32>
    %26 = arith.addf %25, %24 : vector<256x32xf32>
    %27 = vector.extract_strided_slice %2 {offsets = [32, 0], sizes = [256, 5], strides = [1, 1]} : vector<320x5xf32> to vector<256x5xf32>
    %c1_19 = arith.constant 1 : index
    %c0_20 = arith.constant 0 : index
    %c0_21 = arith.constant 0 : index
    %28 = vector.load %arg4[%c1_19, %c0_20, %c0_21] : memref<3x5x32xf32, #tpu.memory_space<vmem>>, vector<1x5x32xf32>
    %29 = vector.shape_cast %28 : vector<1x5x32xf32> to vector<5x32xf32>
    %cst_22 = arith.constant dense<0.000000e+00> : vector<256x32xf32>
    %30 = tpu.matmul %27, %29, %cst_22 {dimension_numbers = #tpu.dot_dimension_numbers<[1], [0], [0], [1], [0, 0, 1, 1], [], []>} : vector<256x5xf32>, vector<5x32xf32>, vector<256x32xf32> -> vector<256x32xf32>
    %31 = arith.addf %26, %30 : vector<256x32xf32>
    %32 = vector.extract_strided_slice %2 {offsets = [64, 0], sizes = [256, 5], strides = [1, 1]} : vector<320x5xf32> to vector<256x5xf32>
    %c2_23 = arith.constant 2 : index
    %c0_24 = arith.constant 0 : index
    %c0_25 = arith.constant 0 : index
    %33 = vector.load %arg4[%c2_23, %c0_24, %c0_25] : memref<3x5x32xf32, #tpu.memory_space<vmem>>, vector<1x5x32xf32>
    %34 = vector.shape_cast %33 : vector<1x5x32xf32> to vector<5x32xf32>
    %cst_26 = arith.constant dense<0.000000e+00> : vector<256x32xf32>
    %35 = tpu.matmul %32, %34, %cst_26 {dimension_numbers = #tpu.dot_dimension_numbers<[1], [0], [0], [1], [0, 0, 1, 1], [], []>} : vector<256x5xf32>, vector<5x32xf32>, vector<256x32xf32> -> vector<256x32xf32>
    %36 = arith.addf %31, %35 : vector<256x32xf32>
    %37 = arith.negf %36 : vector<256x32xf32>
    %38 = math.exp %37 : vector<256x32xf32>
    %cst_27 = arith.constant 1.000000e+00 : f32
    %39 = vector.broadcast %cst_27 : f32 to vector<256x32xf32>
    %40 = arith.addf %39, %38 : vector<256x32xf32>
    %41 = arith.divf %39, %40 : vector<256x32xf32>
    %42 = arith.mulf %41, %19 : vector<256x32xf32>
    %c0_28 = arith.constant 0 : index
    %c0_29 = arith.constant 0 : index
    %43 = vector.load %arg7[%c0_28, %c0_29] : memref<1x32xf32, #tpu.memory_space<vmem>>, vector<1x32xf32>
    %44 = vector.extract_strided_slice %2 {offsets = [0, 0], sizes = [256, 5], strides = [1, 1]} : vector<320x5xf32> to vector<256x5xf32>
    %c0_30 = arith.constant 0 : index
    %c0_31 = arith.constant 0 : index
    %c0_32 = arith.constant 0 : index
    %45 = vector.load %arg6[%c0_30, %c0_31, %c0_32] : memref<3x5x32xf32, #tpu.memory_space<vmem>>, vector<1x5x32xf32>
    %46 = vector.shape_cast %45 : vector<1x5x32xf32> to vector<5x32xf32>
    %cst_33 = arith.constant dense<0.000000e+00> : vector<256x32xf32>
    %47 = tpu.matmul %44, %46, %cst_33 {dimension_numbers = #tpu.dot_dimension_numbers<[1], [0], [0], [1], [0, 0, 1, 1], [], []>} : vector<256x5xf32>, vector<5x32xf32>, vector<256x32xf32> -> vector<256x32xf32>
    %48 = vector.broadcast %43 : vector<1x32xf32> to vector<256x32xf32>
    %49 = arith.addf %48, %47 : vector<256x32xf32>
    %50 = vector.extract_strided_slice %2 {offsets = [32, 0], sizes = [256, 5], strides = [1, 1]} : vector<320x5xf32> to vector<256x5xf32>
    %c1_34 = arith.constant 1 : index
    %c0_35 = arith.constant 0 : index
    %c0_36 = arith.constant 0 : index
    %51 = vector.load %arg6[%c1_34, %c0_35, %c0_36] : memref<3x5x32xf32, #tpu.memory_space<vmem>>, vector<1x5x32xf32>
    %52 = vector.shape_cast %51 : vector<1x5x32xf32> to vector<5x32xf32>
    %cst_37 = arith.constant dense<0.000000e+00> : vector<256x32xf32>
    %53 = tpu.matmul %50, %52, %cst_37 {dimension_numbers = #tpu.dot_dimension_numbers<[1], [0], [0], [1], [0, 0, 1, 1], [], []>} : vector<256x5xf32>, vector<5x32xf32>, vector<256x32xf32> -> vector<256x32xf32>
    %54 = arith.addf %49, %53 : vector<256x32xf32>
    %55 = vector.extract_strided_slice %2 {offsets = [64, 0], sizes = [256, 5], strides = [1, 1]} : vector<320x5xf32> to vector<256x5xf32>
    %c2_38 = arith.constant 2 : index
    %c0_39 = arith.constant 0 : index
    %c0_40 = arith.constant 0 : index
    %56 = vector.load %arg6[%c2_38, %c0_39, %c0_40] : memref<3x5x32xf32, #tpu.memory_space<vmem>>, vector<1x5x32xf32>
    %57 = vector.shape_cast %56 : vector<1x5x32xf32> to vector<5x32xf32>
    %cst_41 = arith.constant dense<0.000000e+00> : vector<256x32xf32>
    %58 = tpu.matmul %55, %57, %cst_41 {dimension_numbers = #tpu.dot_dimension_numbers<[1], [0], [0], [1], [0, 0, 1, 1], [], []>} : vector<256x5xf32>, vector<5x32xf32>, vector<256x32xf32> -> vector<256x32xf32>
    %59 = arith.addf %54, %58 : vector<256x32xf32>
    %60 = arith.negf %59 : vector<256x32xf32>
    %61 = math.exp %60 : vector<256x32xf32>
    %cst_42 = arith.constant 1.000000e+00 : f32
    %62 = vector.broadcast %cst_42 : f32 to vector<256x32xf32>
    %63 = arith.addf %62, %61 : vector<256x32xf32>
    %64 = arith.divf %62, %63 : vector<256x32xf32>
    %65 = arith.mulf %64, %19 : vector<256x32xf32>
    %cst_43 = arith.constant 0.000000e+00 : f32
    %66 = vector.broadcast %cst_43 : f32 to vector<32x32xf32>
    %67 = tpu.concatenate %66, %42, %66 in 0 : vector<32x32xf32>, vector<256x32xf32>, vector<32x32xf32> -> vector<320x32xf32>
    %68 = tpu.concatenate %66, %65, %66 in 0 : vector<32x32xf32>, vector<256x32xf32>, vector<32x32xf32> -> vector<320x32xf32>
    %c0_44 = arith.constant 0 : index
    %c0_45 = arith.constant 0 : index
    %69 = vector.load %arg9[%c0_44, %c0_45] : memref<1x32xf32, #tpu.memory_space<vmem>>, vector<1x32xf32>
    %c0_46 = arith.constant 0 : index
    %c0_47 = arith.constant 0 : index
    %c0_48 = arith.constant 0 : index
    %70 = vector.load %arg8[%c0_46, %c0_47, %c0_48] : memref<3x64x32xf32, #tpu.memory_space<vmem>>, vector<1x64x32xf32>
    %71 = vector.shape_cast %70 : vector<1x64x32xf32> to vector<64x32xf32>
    %72 = vector.extract_strided_slice %67 {offsets = [0, 0], sizes = [256, 32], strides = [1, 1]} : vector<320x32xf32> to vector<256x32xf32>
    %73 = vector.extract_strided_slice %71 {offsets = [0, 0], sizes = [32, 32], strides = [1, 1]} : vector<64x32xf32> to vector<32x32xf32>
    %cst_49 = arith.constant dense<0.000000e+00> : vector<256x32xf32>
    %74 = tpu.matmul %72, %73, %cst_49 {dimension_numbers = #tpu.dot_dimension_numbers<[1], [0], [0], [1], [0, 0, 1, 1], [], []>} : vector<256x32xf32>, vector<32x32xf32>, vector<256x32xf32> -> vector<256x32xf32>
    %75 = vector.broadcast %69 : vector<1x32xf32> to vector<256x32xf32>
    %76 = arith.addf %75, %74 : vector<256x32xf32>
    %77 = vector.extract_strided_slice %68 {offsets = [0, 0], sizes = [256, 32], strides = [1, 1]} : vector<320x32xf32> to vector<256x32xf32>
    %78 = vector.extract_strided_slice %71 {offsets = [32, 0], sizes = [32, 32], strides = [1, 1]} : vector<64x32xf32> to vector<32x32xf32>
    %cst_50 = arith.constant dense<0.000000e+00> : vector<256x32xf32>
    %79 = tpu.matmul %77, %78, %cst_50 {dimension_numbers = #tpu.dot_dimension_numbers<[1], [0], [0], [1], [0, 0, 1, 1], [], []>} : vector<256x32xf32>, vector<32x32xf32>, vector<256x32xf32> -> vector<256x32xf32>
    %80 = arith.addf %76, %79 : vector<256x32xf32>
    %c1_51 = arith.constant 1 : index
    %c0_52 = arith.constant 0 : index
    %c0_53 = arith.constant 0 : index
    %81 = vector.load %arg8[%c1_51, %c0_52, %c0_53] : memref<3x64x32xf32, #tpu.memory_space<vmem>>, vector<1x64x32xf32>
    %82 = vector.shape_cast %81 : vector<1x64x32xf32> to vector<64x32xf32>
    %83 = vector.extract_strided_slice %67 {offsets = [32, 0], sizes = [256, 32], strides = [1, 1]} : vector<320x32xf32> to vector<256x32xf32>
    %84 = vector.extract_strided_slice %82 {offsets = [0, 0], sizes = [32, 32], strides = [1, 1]} : vector<64x32xf32> to vector<32x32xf32>
    %cst_54 = arith.constant dense<0.000000e+00> : vector<256x32xf32>
    %85 = tpu.matmul %83, %84, %cst_54 {dimension_numbers = #tpu.dot_dimension_numbers<[1], [0], [0], [1], [0, 0, 1, 1], [], []>} : vector<256x32xf32>, vector<32x32xf32>, vector<256x32xf32> -> vector<256x32xf32>
    %86 = arith.addf %80, %85 : vector<256x32xf32>
    %87 = vector.extract_strided_slice %68 {offsets = [32, 0], sizes = [256, 32], strides = [1, 1]} : vector<320x32xf32> to vector<256x32xf32>
    %88 = vector.extract_strided_slice %82 {offsets = [32, 0], sizes = [32, 32], strides = [1, 1]} : vector<64x32xf32> to vector<32x32xf32>
    %cst_55 = arith.constant dense<0.000000e+00> : vector<256x32xf32>
    %89 = tpu.matmul %87, %88, %cst_55 {dimension_numbers = #tpu.dot_dimension_numbers<[1], [0], [0], [1], [0, 0, 1, 1], [], []>} : vector<256x32xf32>, vector<32x32xf32>, vector<256x32xf32> -> vector<256x32xf32>
    %90 = arith.addf %86, %89 : vector<256x32xf32>
    %c2_56 = arith.constant 2 : index
    %c0_57 = arith.constant 0 : index
    %c0_58 = arith.constant 0 : index
    %91 = vector.load %arg8[%c2_56, %c0_57, %c0_58] : memref<3x64x32xf32, #tpu.memory_space<vmem>>, vector<1x64x32xf32>
    %92 = vector.shape_cast %91 : vector<1x64x32xf32> to vector<64x32xf32>
    %93 = vector.extract_strided_slice %67 {offsets = [64, 0], sizes = [256, 32], strides = [1, 1]} : vector<320x32xf32> to vector<256x32xf32>
    %94 = vector.extract_strided_slice %92 {offsets = [0, 0], sizes = [32, 32], strides = [1, 1]} : vector<64x32xf32> to vector<32x32xf32>
    %cst_59 = arith.constant dense<0.000000e+00> : vector<256x32xf32>
    %95 = tpu.matmul %93, %94, %cst_59 {dimension_numbers = #tpu.dot_dimension_numbers<[1], [0], [0], [1], [0, 0, 1, 1], [], []>} : vector<256x32xf32>, vector<32x32xf32>, vector<256x32xf32> -> vector<256x32xf32>
    %96 = arith.addf %90, %95 : vector<256x32xf32>
    %97 = vector.extract_strided_slice %68 {offsets = [64, 0], sizes = [256, 32], strides = [1, 1]} : vector<320x32xf32> to vector<256x32xf32>
    %98 = vector.extract_strided_slice %92 {offsets = [32, 0], sizes = [32, 32], strides = [1, 1]} : vector<64x32xf32> to vector<32x32xf32>
    %cst_60 = arith.constant dense<0.000000e+00> : vector<256x32xf32>
    %99 = tpu.matmul %97, %98, %cst_60 {dimension_numbers = #tpu.dot_dimension_numbers<[1], [0], [0], [1], [0, 0, 1, 1], [], []>} : vector<256x32xf32>, vector<32x32xf32>, vector<256x32xf32> -> vector<256x32xf32>
    %100 = arith.addf %96, %99 : vector<256x32xf32>
    %101 = arith.addf %100, %19 : vector<256x32xf32>
    %c0_61 = arith.constant 0 : index
    %c0_62 = arith.constant 0 : index
    %102 = vector.load %arg10[%c0_61, %c0_62] : memref<16x10xf32, #tpu.memory_space<vmem>>, vector<16x10xf32>
    %c0_63 = arith.constant 0 : index
    %c0_64 = arith.constant 0 : index
    %103 = vector.load %arg11[%c0_63, %c0_64] : memref<10x16xf32, #tpu.memory_space<vmem>>, vector<10x16xf32>
    %cst_65 = arith.constant dense<0.000000e+00> : vector<16x16xf32>
    %104 = tpu.matmul %102, %103, %cst_65 {dimension_numbers = #tpu.dot_dimension_numbers<[1], [0], [0], [1], [0, 0, 1, 1], [], []>} : vector<16x10xf32>, vector<10x16xf32>, vector<16x16xf32> -> vector<16x16xf32>
    %cst_66 = arith.constant 0.000000e+00 : f32
    %105 = vector.broadcast %cst_66 : f32 to vector<16x16xf32>
    %106 = arith.maximumf %104, %105 : vector<16x16xf32>
    %cst_67 = arith.constant dense<0xFF800000> : vector<16xf32>
    %107 = vector.multi_reduction <maximumf>, %106, %cst_67 [0] : vector<16x16xf32> to vector<16xf32>
    %108 = vector.shape_cast %107 : vector<16xf32> to vector<1x16xf32>
    %109 = vector.broadcast %108 : vector<1x16xf32> to vector<16x16xf32>
    %110 = arith.subf %106, %109 : vector<16x16xf32>
    %111 = math.exp %110 : vector<16x16xf32>
    %cst_68 = arith.constant dense<0.000000e+00> : vector<16xf32>
    %112 = vector.multi_reduction <add>, %111, %cst_68 [0] : vector<16x16xf32> to vector<16xf32>
    %113 = vector.shape_cast %112 : vector<16xf32> to vector<1x16xf32>
    %114 = vector.broadcast %113 : vector<1x16xf32> to vector<16x16xf32>
    %115 = arith.divf %111, %114 : vector<16x16xf32>
    %c0_69 = arith.constant 0 : index
    %c0_70 = arith.constant 0 : index
    %c0_71 = arith.constant 0 : index
    %116 = vector.load %arg12[%c0_69, %c0_70, %c0_71] : memref<2x16x16xf32, #tpu.memory_space<vmem>>, vector<1x16x16xf32>
    %117 = vector.shape_cast %116 : vector<1x16x16xf32> to vector<16x16xf32>
    %c1_72 = arith.constant 1 : index
    %c0_73 = arith.constant 0 : index
    %c0_74 = arith.constant 0 : index
    %118 = vector.load %arg12[%c1_72, %c0_73, %c0_74] : memref<2x16x16xf32, #tpu.memory_space<vmem>>, vector<1x16x16xf32>
    %119 = vector.shape_cast %118 : vector<1x16x16xf32> to vector<16x16xf32>
    %120 = vector.extract_strided_slice %101 {offsets = [0, 0], sizes = [224, 32], strides = [1, 1]} : vector<256x32xf32> to vector<224x32xf32>
    %121 = vector.extract_strided_slice %101 {offsets = [32, 0], sizes = [224, 32], strides = [1, 1]} : vector<256x32xf32> to vector<224x32xf32>
    %c0_75 = arith.constant 0 : index
    %c0_76 = arith.constant 0 : index
    %c0_77 = arith.constant 0 : index
    %c0_78 = arith.constant 0 : index
    %122 = vector.load %arg13[%c0_75, %c0_76, %c0_77, %c0_78] : memref<2x2x32x32xf32, #tpu.memory_space<vmem>>, vector<1x1x32x32xf32>
    %123 = vector.shape_cast %122 : vector<1x1x32x32xf32> to vector<32x32xf32>
    %cst_79 = arith.constant dense<0.000000e+00> : vector<224x32xf32>
    %124 = tpu.matmul %120, %123, %cst_79 {dimension_numbers = #tpu.dot_dimension_numbers<[1], [0], [0], [1], [0, 0, 1, 1], [], []>} : vector<224x32xf32>, vector<32x32xf32>, vector<224x32xf32> -> vector<224x32xf32>
    %c0_80 = arith.constant 0 : index
    %c1_81 = arith.constant 1 : index
    %c0_82 = arith.constant 0 : index
    %c0_83 = arith.constant 0 : index
    %125 = vector.load %arg13[%c0_80, %c1_81, %c0_82, %c0_83] : memref<2x2x32x32xf32, #tpu.memory_space<vmem>>, vector<1x1x32x32xf32>
    %126 = vector.shape_cast %125 : vector<1x1x32x32xf32> to vector<32x32xf32>
    %cst_84 = arith.constant dense<0.000000e+00> : vector<224x32xf32>
    %127 = tpu.matmul %121, %126, %cst_84 {dimension_numbers = #tpu.dot_dimension_numbers<[1], [0], [0], [1], [0, 0, 1, 1], [], []>} : vector<224x32xf32>, vector<32x32xf32>, vector<224x32xf32> -> vector<224x32xf32>
    %128 = arith.addf %124, %127 : vector<224x32xf32>
    %c0_85 = arith.constant 0 : index
    %c0_86 = arith.constant 0 : index
    %c0_87 = arith.constant 0 : index
    %129 = vector.load %arg14[%c0_85, %c0_86, %c0_87] : memref<2x1x32xf32, #tpu.memory_space<vmem>>, vector<1x1x32xf32>
    %130 = vector.shape_cast %129 : vector<1x1x32xf32> to vector<1x32xf32>
    %131 = vector.broadcast %130 : vector<1x32xf32> to vector<224x32xf32>
    %132 = arith.addf %128, %131 : vector<224x32xf32>
    %133 = math.tanh %132 : vector<224x32xf32>
    %c0_88 = arith.constant 0 : index
    %c0_89 = arith.constant 0 : index
    %c0_90 = arith.constant 0 : index
    %c0_91 = arith.constant 0 : index
    %134 = vector.load %arg15[%c0_88, %c0_89, %c0_90, %c0_91] : memref<2x2x32x32xf32, #tpu.memory_space<vmem>>, vector<1x1x32x32xf32>
    %135 = vector.shape_cast %134 : vector<1x1x32x32xf32> to vector<32x32xf32>
    %cst_92 = arith.constant dense<0.000000e+00> : vector<224x32xf32>
    %136 = tpu.matmul %120, %135, %cst_92 {dimension_numbers = #tpu.dot_dimension_numbers<[1], [0], [0], [1], [0, 0, 1, 1], [], []>} : vector<224x32xf32>, vector<32x32xf32>, vector<224x32xf32> -> vector<224x32xf32>
    %c0_93 = arith.constant 0 : index
    %c1_94 = arith.constant 1 : index
    %c0_95 = arith.constant 0 : index
    %c0_96 = arith.constant 0 : index
    %137 = vector.load %arg15[%c0_93, %c1_94, %c0_95, %c0_96] : memref<2x2x32x32xf32, #tpu.memory_space<vmem>>, vector<1x1x32x32xf32>
    %138 = vector.shape_cast %137 : vector<1x1x32x32xf32> to vector<32x32xf32>
    %cst_97 = arith.constant dense<0.000000e+00> : vector<224x32xf32>
    %139 = tpu.matmul %121, %138, %cst_97 {dimension_numbers = #tpu.dot_dimension_numbers<[1], [0], [0], [1], [0, 0, 1, 1], [], []>} : vector<224x32xf32>, vector<32x32xf32>, vector<224x32xf32> -> vector<224x32xf32>
    %140 = arith.addf %136, %139 : vector<224x32xf32>
    %c0_98 = arith.constant 0 : index
    %c0_99 = arith.constant 0 : index
    %c0_100 = arith.constant 0 : index
    %141 = vector.load %arg16[%c0_98, %c0_99, %c0_100] : memref<2x1x32xf32, #tpu.memory_space<vmem>>, vector<1x1x32xf32>
    %142 = vector.shape_cast %141 : vector<1x1x32xf32> to vector<1x32xf32>
    %143 = vector.broadcast %142 : vector<1x32xf32> to vector<224x32xf32>
    %144 = arith.addf %140, %143 : vector<224x32xf32>
    %145 = arith.negf %144 : vector<224x32xf32>
    %146 = math.exp %145 : vector<224x32xf32>
    %cst_101 = arith.constant 1.000000e+00 : f32
    %147 = vector.broadcast %cst_101 : f32 to vector<224x32xf32>
    %148 = arith.addf %147, %146 : vector<224x32xf32>
    %149 = arith.divf %147, %148 : vector<224x32xf32>
    %150 = arith.mulf %133, %149 : vector<224x32xf32>
    %c0_102 = arith.constant 0 : index
    %c0_103 = arith.constant 0 : index
    %c0_104 = arith.constant 0 : index
    %151 = vector.load %arg17[%c0_102, %c0_103, %c0_104] : memref<2x32x128xf32, #tpu.memory_space<vmem>>, vector<1x32x128xf32>
    %152 = vector.shape_cast %151 : vector<1x32x128xf32> to vector<32x128xf32>
    %cst_105 = arith.constant dense<0.000000e+00> : vector<224x128xf32>
    %153 = tpu.matmul %150, %152, %cst_105 {dimension_numbers = #tpu.dot_dimension_numbers<[1], [0], [0], [1], [0, 0, 1, 1], [], []>} : vector<224x32xf32>, vector<32x128xf32>, vector<224x128xf32> -> vector<224x128xf32>
    %c0_106 = arith.constant 0 : index
    %c0_107 = arith.constant 0 : index
    %c0_108 = arith.constant 0 : index
    %154 = vector.load %arg18[%c0_106, %c0_107, %c0_108] : memref<2x1x128xf32, #tpu.memory_space<vmem>>, vector<1x1x128xf32>
    %155 = vector.shape_cast %154 : vector<1x1x128xf32> to vector<1x128xf32>
    %156 = vector.broadcast %155 : vector<1x128xf32> to vector<224x128xf32>
    %157 = arith.addf %153, %156 : vector<224x128xf32>
    %c0_109 = arith.constant 0 : index
    %c0_110 = arith.constant 0 : index
    %c0_111 = arith.constant 0 : index
    %158 = vector.load %arg19[%c0_109, %c0_110, %c0_111] : memref<2x224x32xf32, #tpu.memory_space<vmem>>, vector<1x224x32xf32>
    %159 = vector.shape_cast %158 : vector<1x224x32xf32> to vector<224x32xf32>
    %160 = vector.extract_strided_slice %159 {offsets = [0, 0], sizes = [32, 32], strides = [1, 1]} : vector<224x32xf32> to vector<32x32xf32>
    %cst_112 = arith.constant dense<0.000000e+00> : vector<224x32xf32>
    %161 = tpu.matmul %150, %160, %cst_112 {dimension_numbers = #tpu.dot_dimension_numbers<[1], [0], [0], [1], [0, 0, 1, 1], [], []>} : vector<224x32xf32>, vector<32x32xf32>, vector<224x32xf32> -> vector<224x32xf32>
    %162 = vector.shape_cast %150 : vector<224x32xf32> to vector<14x16x32xf32>
    %163 = vector.shape_cast %117 : vector<16x16xf32> to vector<1x16x16xf32>
    %164 = vector.broadcast %163 : vector<1x16x16xf32> to vector<14x16x16xf32>
    %cst_113 = arith.constant dense<0.000000e+00> : vector<14x16x32xf32>
    %165 = tpu.matmul %164, %162, %cst_113 {dimension_numbers = #tpu.dot_dimension_numbers<[2], [1], [1], [2], [0, 0, 0, 1, 1, 2], [0], [0]>} : vector<14x16x16xf32>, vector<14x16x32xf32>, vector<14x16x32xf32> -> vector<14x16x32xf32>
    %166 = vector.shape_cast %165 : vector<14x16x32xf32> to vector<224x32xf32>
    %167 = vector.extract_strided_slice %159 {offsets = [32, 0], sizes = [32, 32], strides = [1, 1]} : vector<224x32xf32> to vector<32x32xf32>
    %cst_114 = arith.constant dense<0.000000e+00> : vector<224x32xf32>
    %168 = tpu.matmul %166, %167, %cst_114 {dimension_numbers = #tpu.dot_dimension_numbers<[1], [0], [0], [1], [0, 0, 1, 1], [], []>} : vector<224x32xf32>, vector<32x32xf32>, vector<224x32xf32> -> vector<224x32xf32>
    %169 = arith.addf %161, %168 : vector<224x32xf32>
    %cst_115 = arith.constant dense<0.000000e+00> : vector<14x16x32xf32>
    %170 = tpu.matmul %164, %165, %cst_115 {dimension_numbers = #tpu.dot_dimension_numbers<[2], [1], [1], [2], [0, 0, 0, 1, 1, 2], [0], [0]>} : vector<14x16x16xf32>, vector<14x16x32xf32>, vector<14x16x32xf32> -> vector<14x16x32xf32>
    %171 = vector.shape_cast %170 : vector<14x16x32xf32> to vector<224x32xf32>
    %172 = vector.extract_strided_slice %159 {offsets = [64, 0], sizes = [32, 32], strides = [1, 1]} : vector<224x32xf32> to vector<32x32xf32>
    %cst_116 = arith.constant dense<0.000000e+00> : vector<224x32xf32>
    %173 = tpu.matmul %171, %172, %cst_116 {dimension_numbers = #tpu.dot_dimension_numbers<[1], [0], [0], [1], [0, 0, 1, 1], [], []>} : vector<224x32xf32>, vector<32x32xf32>, vector<224x32xf32> -> vector<224x32xf32>
    %174 = arith.addf %169, %173 : vector<224x32xf32>
    %175 = vector.shape_cast %119 : vector<16x16xf32> to vector<1x16x16xf32>
    %176 = vector.broadcast %175 : vector<1x16x16xf32> to vector<14x16x16xf32>
    %cst_117 = arith.constant dense<0.000000e+00> : vector<14x16x32xf32>
    %177 = tpu.matmul %176, %162, %cst_117 {dimension_numbers = #tpu.dot_dimension_numbers<[2], [1], [1], [2], [0, 0, 0, 1, 1, 2], [0], [0]>} : vector<14x16x16xf32>, vector<14x16x32xf32>, vector<14x16x32xf32> -> vector<14x16x32xf32>
    %178 = vector.shape_cast %177 : vector<14x16x32xf32> to vector<224x32xf32>
    %179 = vector.extract_strided_slice %159 {offsets = [96, 0], sizes = [32, 32], strides = [1, 1]} : vector<224x32xf32> to vector<32x32xf32>
    %cst_118 = arith.constant dense<0.000000e+00> : vector<224x32xf32>
    %180 = tpu.matmul %178, %179, %cst_118 {dimension_numbers = #tpu.dot_dimension_numbers<[1], [0], [0], [1], [0, 0, 1, 1], [], []>} : vector<224x32xf32>, vector<32x32xf32>, vector<224x32xf32> -> vector<224x32xf32>
    %181 = arith.addf %174, %180 : vector<224x32xf32>
    %cst_119 = arith.constant dense<0.000000e+00> : vector<14x16x32xf32>
    %182 = tpu.matmul %176, %177, %cst_119 {dimension_numbers = #tpu.dot_dimension_numbers<[2], [1], [1], [2], [0, 0, 0, 1, 1, 2], [0], [0]>} : vector<14x16x16xf32>, vector<14x16x32xf32>, vector<14x16x32xf32> -> vector<14x16x32xf32>
    %183 = vector.shape_cast %182 : vector<14x16x32xf32> to vector<224x32xf32>
    %184 = vector.extract_strided_slice %159 {offsets = [128, 0], sizes = [32, 32], strides = [1, 1]} : vector<224x32xf32> to vector<32x32xf32>
    %cst_120 = arith.constant dense<0.000000e+00> : vector<224x32xf32>
    %185 = tpu.matmul %183, %184, %cst_120 {dimension_numbers = #tpu.dot_dimension_numbers<[1], [0], [0], [1], [0, 0, 1, 1], [], []>} : vector<224x32xf32>, vector<32x32xf32>, vector<224x32xf32> -> vector<224x32xf32>
    %186 = arith.addf %181, %185 : vector<224x32xf32>
    %187 = vector.shape_cast %115 : vector<16x16xf32> to vector<1x16x16xf32>
    %188 = vector.broadcast %187 : vector<1x16x16xf32> to vector<14x16x16xf32>
    %cst_121 = arith.constant dense<0.000000e+00> : vector<14x16x32xf32>
    %189 = tpu.matmul %188, %162, %cst_121 {dimension_numbers = #tpu.dot_dimension_numbers<[2], [1], [1], [2], [0, 0, 0, 1, 1, 2], [0], [0]>} : vector<14x16x16xf32>, vector<14x16x32xf32>, vector<14x16x32xf32> -> vector<14x16x32xf32>
    %190 = vector.shape_cast %189 : vector<14x16x32xf32> to vector<224x32xf32>
    %191 = vector.extract_strided_slice %159 {offsets = [160, 0], sizes = [32, 32], strides = [1, 1]} : vector<224x32xf32> to vector<32x32xf32>
    %cst_122 = arith.constant dense<0.000000e+00> : vector<224x32xf32>
    %192 = tpu.matmul %190, %191, %cst_122 {dimension_numbers = #tpu.dot_dimension_numbers<[1], [0], [0], [1], [0, 0, 1, 1], [], []>} : vector<224x32xf32>, vector<32x32xf32>, vector<224x32xf32> -> vector<224x32xf32>
    %193 = arith.addf %186, %192 : vector<224x32xf32>
    %cst_123 = arith.constant dense<0.000000e+00> : vector<14x16x32xf32>
    %194 = tpu.matmul %188, %189, %cst_123 {dimension_numbers = #tpu.dot_dimension_numbers<[2], [1], [1], [2], [0, 0, 0, 1, 1, 2], [0], [0]>} : vector<14x16x16xf32>, vector<14x16x32xf32>, vector<14x16x32xf32> -> vector<14x16x32xf32>
    %195 = vector.shape_cast %194 : vector<14x16x32xf32> to vector<224x32xf32>
    %196 = vector.extract_strided_slice %159 {offsets = [192, 0], sizes = [32, 32], strides = [1, 1]} : vector<224x32xf32> to vector<32x32xf32>
    %cst_124 = arith.constant dense<0.000000e+00> : vector<224x32xf32>
    %197 = tpu.matmul %195, %196, %cst_124 {dimension_numbers = #tpu.dot_dimension_numbers<[1], [0], [0], [1], [0, 0, 1, 1], [], []>} : vector<224x32xf32>, vector<32x32xf32>, vector<224x32xf32> -> vector<224x32xf32>
    %198 = arith.addf %193, %197 : vector<224x32xf32>
    %c0_125 = arith.constant 0 : index
    %c0_126 = arith.constant 0 : index
    %c0_127 = arith.constant 0 : index
    %199 = vector.load %arg20[%c0_125, %c0_126, %c0_127] : memref<2x1x32xf32, #tpu.memory_space<vmem>>, vector<1x1x32xf32>
    %200 = vector.shape_cast %199 : vector<1x1x32xf32> to vector<1x32xf32>
    %201 = vector.broadcast %200 : vector<1x32xf32> to vector<224x32xf32>
    %202 = arith.addf %198, %201 : vector<224x32xf32>
    %203 = vector.extract_strided_slice %101 {offsets = [32, 0], sizes = [224, 32], strides = [1, 1]} : vector<256x32xf32> to vector<224x32xf32>
    %204 = arith.addf %202, %203 : vector<224x32xf32>
    %cst_128 = arith.constant dense<0.000000e+00> : vector<32xf32>
    %205 = vector.multi_reduction <add>, %204, %cst_128 [0] : vector<224x32xf32> to vector<32xf32>
    %206 = vector.shape_cast %205 : vector<32xf32> to vector<1x32xf32>
    %cst_129 = arith.constant 2.240000e+02 : f32
    %207 = vector.broadcast %cst_129 : f32 to vector<1x32xf32>
    %208 = arith.divf %206, %207 : vector<1x32xf32>
    %209 = vector.broadcast %208 : vector<1x32xf32> to vector<224x32xf32>
    %210 = arith.subf %204, %209 : vector<224x32xf32>
    %211 = arith.mulf %210, %210 : vector<224x32xf32>
    %cst_130 = arith.constant dense<0.000000e+00> : vector<32xf32>
    %212 = vector.multi_reduction <add>, %211, %cst_130 [0] : vector<224x32xf32> to vector<32xf32>
    %213 = vector.shape_cast %212 : vector<32xf32> to vector<1x32xf32>
    %cst_131 = arith.constant 2.240000e+02 : f32
    %214 = vector.broadcast %cst_131 : f32 to vector<1x32xf32>
    %215 = arith.divf %213, %214 : vector<1x32xf32>
    %216 = vector.broadcast %208 : vector<1x32xf32> to vector<224x32xf32>
    %217 = arith.subf %204, %216 : vector<224x32xf32>
    %cst_132 = arith.constant 9.99999974E-6 : f32
    %218 = vector.broadcast %cst_132 : f32 to vector<1x32xf32>
    %219 = arith.addf %215, %218 : vector<1x32xf32>
    %220 = math.rsqrt %219 : vector<1x32xf32>
    %221 = vector.broadcast %220 : vector<1x32xf32> to vector<224x32xf32>
    %222 = arith.mulf %217, %221 : vector<224x32xf32>
    %c0_133 = arith.constant 0 : index
    %c0_134 = arith.constant 0 : index
    %c0_135 = arith.constant 0 : index
    %223 = vector.load %arg21[%c0_133, %c0_134, %c0_135] : memref<2x1x32xf32, #tpu.memory_space<vmem>>, vector<1x1x32xf32>
    %224 = vector.shape_cast %223 : vector<1x1x32xf32> to vector<1x32xf32>
    %225 = vector.broadcast %224 : vector<1x32xf32> to vector<224x32xf32>
    %226 = arith.mulf %222, %225 : vector<224x32xf32>
    %c0_136 = arith.constant 0 : index
    %c0_137 = arith.constant 0 : index
    %c0_138 = arith.constant 0 : index
    %227 = vector.load %arg22[%c0_136, %c0_137, %c0_138] : memref<2x1x32xf32, #tpu.memory_space<vmem>>, vector<1x1x32xf32>
    %228 = vector.shape_cast %227 : vector<1x1x32xf32> to vector<1x32xf32>
    %229 = vector.broadcast %228 : vector<1x32xf32> to vector<224x32xf32>
    %230 = arith.addf %226, %229 : vector<224x32xf32>
    %231 = vector.extract_strided_slice %230 {offsets = [0, 0], sizes = [160, 32], strides = [1, 1]} : vector<224x32xf32> to vector<160x32xf32>
    %232 = vector.extract_strided_slice %230 {offsets = [64, 0], sizes = [160, 32], strides = [1, 1]} : vector<224x32xf32> to vector<160x32xf32>
    %c1_139 = arith.constant 1 : index
    %c0_140 = arith.constant 0 : index
    %c0_141 = arith.constant 0 : index
    %c0_142 = arith.constant 0 : index
    %233 = vector.load %arg13[%c1_139, %c0_140, %c0_141, %c0_142] : memref<2x2x32x32xf32, #tpu.memory_space<vmem>>, vector<1x1x32x32xf32>
    %234 = vector.shape_cast %233 : vector<1x1x32x32xf32> to vector<32x32xf32>
    %cst_143 = arith.constant dense<0.000000e+00> : vector<160x32xf32>
    %235 = tpu.matmul %231, %234, %cst_143 {dimension_numbers = #tpu.dot_dimension_numbers<[1], [0], [0], [1], [0, 0, 1, 1], [], []>} : vector<160x32xf32>, vector<32x32xf32>, vector<160x32xf32> -> vector<160x32xf32>
    %c1_144 = arith.constant 1 : index
    %c1_145 = arith.constant 1 : index
    %c0_146 = arith.constant 0 : index
    %c0_147 = arith.constant 0 : index
    %236 = vector.load %arg13[%c1_144, %c1_145, %c0_146, %c0_147] : memref<2x2x32x32xf32, #tpu.memory_space<vmem>>, vector<1x1x32x32xf32>
    %237 = vector.shape_cast %236 : vector<1x1x32x32xf32> to vector<32x32xf32>
    %cst_148 = arith.constant dense<0.000000e+00> : vector<160x32xf32>
    %238 = tpu.matmul %232, %237, %cst_148 {dimension_numbers = #tpu.dot_dimension_numbers<[1], [0], [0], [1], [0, 0, 1, 1], [], []>} : vector<160x32xf32>, vector<32x32xf32>, vector<160x32xf32> -> vector<160x32xf32>
    %239 = arith.addf %235, %238 : vector<160x32xf32>
    %c1_149 = arith.constant 1 : index
    %c0_150 = arith.constant 0 : index
    %c0_151 = arith.constant 0 : index
    %240 = vector.load %arg14[%c1_149, %c0_150, %c0_151] : memref<2x1x32xf32, #tpu.memory_space<vmem>>, vector<1x1x32xf32>
    %241 = vector.shape_cast %240 : vector<1x1x32xf32> to vector<1x32xf32>
    %242 = vector.broadcast %241 : vector<1x32xf32> to vector<160x32xf32>
    %243 = arith.addf %239, %242 : vector<160x32xf32>
    %244 = math.tanh %243 : vector<160x32xf32>
    %c1_152 = arith.constant 1 : index
    %c0_153 = arith.constant 0 : index
    %c0_154 = arith.constant 0 : index
    %c0_155 = arith.constant 0 : index
    %245 = vector.load %arg15[%c1_152, %c0_153, %c0_154, %c0_155] : memref<2x2x32x32xf32, #tpu.memory_space<vmem>>, vector<1x1x32x32xf32>
    %246 = vector.shape_cast %245 : vector<1x1x32x32xf32> to vector<32x32xf32>
    %cst_156 = arith.constant dense<0.000000e+00> : vector<160x32xf32>
    %247 = tpu.matmul %231, %246, %cst_156 {dimension_numbers = #tpu.dot_dimension_numbers<[1], [0], [0], [1], [0, 0, 1, 1], [], []>} : vector<160x32xf32>, vector<32x32xf32>, vector<160x32xf32> -> vector<160x32xf32>
    %c1_157 = arith.constant 1 : index
    %c1_158 = arith.constant 1 : index
    %c0_159 = arith.constant 0 : index
    %c0_160 = arith.constant 0 : index
    %248 = vector.load %arg15[%c1_157, %c1_158, %c0_159, %c0_160] : memref<2x2x32x32xf32, #tpu.memory_space<vmem>>, vector<1x1x32x32xf32>
    %249 = vector.shape_cast %248 : vector<1x1x32x32xf32> to vector<32x32xf32>
    %cst_161 = arith.constant dense<0.000000e+00> : vector<160x32xf32>
    %250 = tpu.matmul %232, %249, %cst_161 {dimension_numbers = #tpu.dot_dimension_numbers<[1], [0], [0], [1], [0, 0, 1, 1], [], []>} : vector<160x32xf32>, vector<32x32xf32>, vector<160x32xf32> -> vector<160x32xf32>
    %251 = arith.addf %247, %250 : vector<160x32xf32>
    %c1_162 = arith.constant 1 : index
    %c0_163 = arith.constant 0 : index
    %c0_164 = arith.constant 0 : index
    %252 = vector.load %arg16[%c1_162, %c0_163, %c0_164] : memref<2x1x32xf32, #tpu.memory_space<vmem>>, vector<1x1x32xf32>
    %253 = vector.shape_cast %252 : vector<1x1x32xf32> to vector<1x32xf32>
    %254 = vector.broadcast %253 : vector<1x32xf32> to vector<160x32xf32>
    %255 = arith.addf %251, %254 : vector<160x32xf32>
    %256 = arith.negf %255 : vector<160x32xf32>
    %257 = math.exp %256 : vector<160x32xf32>
    %cst_165 = arith.constant 1.000000e+00 : f32
    %258 = vector.broadcast %cst_165 : f32 to vector<160x32xf32>
    %259 = arith.addf %258, %257 : vector<160x32xf32>
    %260 = arith.divf %258, %259 : vector<160x32xf32>
    %261 = arith.mulf %244, %260 : vector<160x32xf32>
    %c1_166 = arith.constant 1 : index
    %c0_167 = arith.constant 0 : index
    %c0_168 = arith.constant 0 : index
    %262 = vector.load %arg17[%c1_166, %c0_167, %c0_168] : memref<2x32x128xf32, #tpu.memory_space<vmem>>, vector<1x32x128xf32>
    %263 = vector.shape_cast %262 : vector<1x32x128xf32> to vector<32x128xf32>
    %cst_169 = arith.constant dense<0.000000e+00> : vector<160x128xf32>
    %264 = tpu.matmul %261, %263, %cst_169 {dimension_numbers = #tpu.dot_dimension_numbers<[1], [0], [0], [1], [0, 0, 1, 1], [], []>} : vector<160x32xf32>, vector<32x128xf32>, vector<160x128xf32> -> vector<160x128xf32>
    %c1_170 = arith.constant 1 : index
    %c0_171 = arith.constant 0 : index
    %c0_172 = arith.constant 0 : index
    %265 = vector.load %arg18[%c1_170, %c0_171, %c0_172] : memref<2x1x128xf32, #tpu.memory_space<vmem>>, vector<1x1x128xf32>
    %266 = vector.shape_cast %265 : vector<1x1x128xf32> to vector<1x128xf32>
    %267 = vector.broadcast %266 : vector<1x128xf32> to vector<160x128xf32>
    %268 = arith.addf %264, %267 : vector<160x128xf32>
    %269 = vector.extract_strided_slice %157 {offsets = [64, 0], sizes = [160, 128], strides = [1, 1]} : vector<224x128xf32> to vector<160x128xf32>
    %270 = arith.addf %268, %269 : vector<160x128xf32>
    %cst_173 = arith.constant 0.000000e+00 : f32
    %271 = vector.broadcast %cst_173 : f32 to vector<160x128xf32>
    %272 = arith.maximumf %270, %271 : vector<160x128xf32>
    %c0_174 = arith.constant 0 : index
    %c0_175 = arith.constant 0 : index
    %273 = vector.load %arg23[%c0_174, %c0_175] : memref<160x128xf32, #tpu.memory_space<vmem>>, vector<160x128xf32>
    tpu.vector_store %arg23[%c0_174, %c0_175], %272 {strides = array<i32>} : memref<160x128xf32, #tpu.memory_space<vmem>>, vector<160x128xf32>,
    return
  }
  func.func @transform_0(%arg0: i32) -> (i32, i32) {
    %c0_i32 = arith.constant 0 : i32
    %c0_i32_0 = arith.constant 0 : i32
    %c0_i32_1 = arith.constant 0 : i32
    return %c0_i32, %c0_i32_0 : i32, i32
  }
  func.func @transform_1(%arg0: i32) -> (i32, i32, i32) {
    %c0_i32 = arith.constant 0 : i32
    %c0_i32_0 = arith.constant 0 : i32
    %c0_i32_1 = arith.constant 0 : i32
    %c0_i32_2 = arith.constant 0 : i32
    return %c0_i32, %c0_i32_0, %c0_i32_1 : i32, i32, i32
  }
  func.func @transform_2(%arg0: i32) -> (i32, i32) {
    %c0_i32 = arith.constant 0 : i32
    %c0_i32_0 = arith.constant 0 : i32
    %c0_i32_1 = arith.constant 0 : i32
    return %c0_i32, %c0_i32_0 : i32, i32
  }
  func.func @transform_3(%arg0: i32) -> (i32, i32, i32) {
    %c0_i32 = arith.constant 0 : i32
    %c0_i32_0 = arith.constant 0 : i32
    %c0_i32_1 = arith.constant 0 : i32
    %c0_i32_2 = arith.constant 0 : i32
    return %c0_i32, %c0_i32_0, %c0_i32_1 : i32, i32, i32
  }
  func.func @transform_4(%arg0: i32) -> (i32, i32) {
    %c0_i32 = arith.constant 0 : i32
    %c0_i32_0 = arith.constant 0 : i32
    %c0_i32_1 = arith.constant 0 : i32
    return %c0_i32, %c0_i32_0 : i32, i32
  }
  func.func @transform_5(%arg0: i32) -> (i32, i32, i32) {
    %c0_i32 = arith.constant 0 : i32
    %c0_i32_0 = arith.constant 0 : i32
    %c0_i32_1 = arith.constant 0 : i32
    %c0_i32_2 = arith.constant 0 : i32
    return %c0_i32, %c0_i32_0, %c0_i32_1 : i32, i32, i32
  }
  func.func @transform_6(%arg0: i32) -> (i32, i32) {
    %c0_i32 = arith.constant 0 : i32
    %c0_i32_0 = arith.constant 0 : i32
    %c0_i32_1 = arith.constant 0 : i32
    return %c0_i32, %c0_i32_0 : i32, i32
  }
  func.func @transform_7(%arg0: i32) -> (i32, i32, i32) {
    %c0_i32 = arith.constant 0 : i32
    %c0_i32_0 = arith.constant 0 : i32
    %c0_i32_1 = arith.constant 0 : i32
    %c0_i32_2 = arith.constant 0 : i32
    return %c0_i32, %c0_i32_0, %c0_i32_1 : i32, i32, i32
  }
  func.func @transform_8(%arg0: i32) -> (i32, i32) {
    %c0_i32 = arith.constant 0 : i32
    %c0_i32_0 = arith.constant 0 : i32
    %c0_i32_1 = arith.constant 0 : i32
    return %c0_i32, %c0_i32_0 : i32, i32
  }
  func.func @transform_9(%arg0: i32) -> (i32, i32) {
    %c0_i32 = arith.constant 0 : i32
    %c0_i32_0 = arith.constant 0 : i32
    %c0_i32_1 = arith.constant 0 : i32
    return %c0_i32, %c0_i32_0 : i32, i32
  }
  func.func @transform_10(%arg0: i32) -> (i32, i32) {
    %c0_i32 = arith.constant 0 : i32
    %c0_i32_0 = arith.constant 0 : i32
    %c0_i32_1 = arith.constant 0 : i32
    return %c0_i32, %c0_i32_0 : i32, i32
  }
  func.func @transform_11(%arg0: i32) -> (i32, i32, i32) {
    %c0_i32 = arith.constant 0 : i32
    %c0_i32_0 = arith.constant 0 : i32
    %c0_i32_1 = arith.constant 0 : i32
    %c0_i32_2 = arith.constant 0 : i32
    return %c0_i32, %c0_i32_0, %c0_i32_1 : i32, i32, i32
  }
  func.func @transform_12(%arg0: i32) -> (i32, i32, i32, i32) {
    %c0_i32 = arith.constant 0 : i32
    %c0_i32_0 = arith.constant 0 : i32
    %c0_i32_1 = arith.constant 0 : i32
    %c0_i32_2 = arith.constant 0 : i32
    %c0_i32_3 = arith.constant 0 : i32
    return %c0_i32, %c0_i32_0, %c0_i32_1, %c0_i32_2 : i32, i32, i32, i32
  }
  func.func @transform_13(%arg0: i32) -> (i32, i32, i32) {
    %c0_i32 = arith.constant 0 : i32
    %c0_i32_0 = arith.constant 0 : i32
    %c0_i32_1 = arith.constant 0 : i32
    %c0_i32_2 = arith.constant 0 : i32
    return %c0_i32, %c0_i32_0, %c0_i32_1 : i32, i32, i32
  }
  func.func @transform_14(%arg0: i32) -> (i32, i32, i32, i32) {
    %c0_i32 = arith.constant 0 : i32
    %c0_i32_0 = arith.constant 0 : i32
    %c0_i32_1 = arith.constant 0 : i32
    %c0_i32_2 = arith.constant 0 : i32
    %c0_i32_3 = arith.constant 0 : i32
    return %c0_i32, %c0_i32_0, %c0_i32_1, %c0_i32_2 : i32, i32, i32, i32
  }
  func.func @transform_15(%arg0: i32) -> (i32, i32, i32) {
    %c0_i32 = arith.constant 0 : i32
    %c0_i32_0 = arith.constant 0 : i32
    %c0_i32_1 = arith.constant 0 : i32
    %c0_i32_2 = arith.constant 0 : i32
    return %c0_i32, %c0_i32_0, %c0_i32_1 : i32, i32, i32
  }
  func.func @transform_16(%arg0: i32) -> (i32, i32, i32) {
    %c0_i32 = arith.constant 0 : i32
    %c0_i32_0 = arith.constant 0 : i32
    %c0_i32_1 = arith.constant 0 : i32
    %c0_i32_2 = arith.constant 0 : i32
    return %c0_i32, %c0_i32_0, %c0_i32_1 : i32, i32, i32
  }
  func.func @transform_17(%arg0: i32) -> (i32, i32, i32) {
    %c0_i32 = arith.constant 0 : i32
    %c0_i32_0 = arith.constant 0 : i32
    %c0_i32_1 = arith.constant 0 : i32
    %c0_i32_2 = arith.constant 0 : i32
    return %c0_i32, %c0_i32_0, %c0_i32_1 : i32, i32, i32
  }
  func.func @transform_18(%arg0: i32) -> (i32, i32, i32) {
    %c0_i32 = arith.constant 0 : i32
    %c0_i32_0 = arith.constant 0 : i32
    %c0_i32_1 = arith.constant 0 : i32
    %c0_i32_2 = arith.constant 0 : i32
    return %c0_i32, %c0_i32_0, %c0_i32_1 : i32, i32, i32
  }
  func.func @transform_19(%arg0: i32) -> (i32, i32, i32) {
    %c0_i32 = arith.constant 0 : i32
    %c0_i32_0 = arith.constant 0 : i32
    %c0_i32_1 = arith.constant 0 : i32
    %c0_i32_2 = arith.constant 0 : i32
    return %c0_i32, %c0_i32_0, %c0_i32_1 : i32, i32, i32
  }
  func.func @transform_20(%arg0: i32) -> (i32, i32, i32) {
    %c0_i32 = arith.constant 0 : i32
    %c0_i32_0 = arith.constant 0 : i32
    %c0_i32_1 = arith.constant 0 : i32
    %c0_i32_2 = arith.constant 0 : i32
    return %c0_i32, %c0_i32_0, %c0_i32_1 : i32, i32, i32
  }
  func.func @transform_21(%arg0: i32) -> (i32, i32, i32) {
    %c0_i32 = arith.constant 0 : i32
    %c0_i32_0 = arith.constant 0 : i32
    %c0_i32_1 = arith.constant 0 : i32
    %c0_i32_2 = arith.constant 0 : i32
    return %c0_i32, %c0_i32_0, %c0_i32_1 : i32, i32, i32
  }
  func.func @transform_22(%arg0: i32) -> (i32, i32) {
    %c0_i32 = arith.constant 0 : i32
    %c0_i32_0 = arith.constant 0 : i32
    %c0_i32_1 = arith.constant 0 : i32
    return %c0_i32, %c0_i32_0 : i32, i32
  }
}

</mosaic_0001>

<llo_original>
// kernel: graphwavenet_forward.1
$region0: #{graphwavenet_forward.1}
  #allocation0 [shape = 'u32[]', space=smem, size = 0x4, offset = 0x4, fixed_abs, tag = 'smem constant byte address 0x4 - core index']
  #allocation1 [shape = 'u32[72,128]{1,0:T(1,128)}', space=vmem, size = 0x9000, scoped, tag = 'internal scratch']
  %s0 = inlined_call_operand.vmem [shape: f32[256,5], index: 0, kind: input, shape index: {}]
  %s1 = inlined_call_operand.vmem [shape: f32[3,5,32], index: 1, kind: input, shape index: {}]
  %s2 = inlined_call_operand.vmem [shape: f32[1,32], index: 2, kind: input, shape index: {}]
  %s3 = inlined_call_operand.vmem [shape: f32[3,5,32], index: 3, kind: input, shape index: {}]
  %s4 = inlined_call_operand.vmem [shape: f32[1,32], index: 4, kind: input, shape index: {}]
  %s5 = inlined_call_operand.vmem [shape: f32[3,5,32], index: 5, kind: input, shape index: {}]
  %s6 = inlined_call_operand.vmem [shape: f32[1,32], index: 6, kind: input, shape index: {}]
  %s7 = inlined_call_operand.vmem [shape: f32[3,64,32], index: 7, kind: input, shape index: {}]
  %s8 = inlined_call_operand.vmem [shape: f32[1,32], index: 8, kind: input, shape index: {}]
  %s9 = inlined_call_operand.vmem [shape: f32[16,10], index: 9, kind: input, shape index: {}]
  %s10 = inlined_call_operand.vmem [shape: f32[10,16], index: 10, kind: input, shape index: {}]
  %s11 = inlined_call_operand.vmem [shape: f32[2,16,16], index: 11, kind: input, shape index: {}]
  %s12 = inlined_call_operand.vmem [shape: f32[2,2,32,32], index: 12, kind: input, shape index: {}]
  %s13 = inlined_call_operand.vmem [shape: f32[2,1,32], index: 13, kind: input, shape index: {}]
  %s14 = inlined_call_operand.vmem [shape: f32[2,2,32,32], index: 14, kind: input, shape index: {}]
  %s15 = inlined_call_operand.vmem [shape: f32[2,1,32], index: 15, kind: input, shape index: {}]
  %s16 = inlined_call_operand.vmem [shape: f32[2,32,128], index: 16, kind: input, shape index: {}]
  %s17 = inlined_call_operand.vmem [shape: f32[2,1,128], index: 17, kind: input, shape index: {}]
  %s18 = inlined_call_operand.vmem [shape: f32[2,224,32], index: 18, kind: input, shape index: {}]
  %s19 = inlined_call_operand.vmem [shape: f32[2,1,32], index: 19, kind: input, shape index: {}]
  %s20 = inlined_call_operand.vmem [shape: f32[2,1,32], index: 20, kind: input, shape index: {}]
  %s21 = inlined_call_operand.vmem [shape: f32[2,1,32], index: 21, kind: input, shape index: {}]
  %s22 = inlined_call_operand.vmem [shape: f32[160,128], index: 22, kind: output, shape index: {}]
  %s23 = sld [smem:[#allocation0]]
  $region98: #{graphwavenet_forward.1} parent=0
    _
  %s25 = ssub.s32 1, %s23
  %s26 = scalar_select 0, %s25, %s23
  // Predicated region
  $region2: #{graphwavenet_forward.1} parent=0 // pred_check
    _
  $region3: #{graphwavenet_forward.1} parent=0 // pred_check_branch
    %28 = sbr.rel (0) target = $region5
  $region4: #{graphwavenet_forward.1} parent=0 // pred_region
    _
  $region5: #{graphwavenet_forward.1} parent=0 // pred_fallthru
    _
  // Predicated region
  $region6: #{graphwavenet_forward.1} parent=0 // pred_check
    _
  $region7: #{graphwavenet_forward.1} parent=0 // pred_check_branch
    %30 = sbr.rel (0) target = $region9
  $region8: #{graphwavenet_forward.1} parent=0 // pred_region
    _
  $region9: #{graphwavenet_forward.1} parent=0 // pred_fallthru
    _
  // Predicated region
  $region10: #{graphwavenet_forward.1} parent=0 // pred_check
    _
  $region11: #{graphwavenet_forward.1} parent=0 // pred_check_branch
    %32 = sbr.rel (0) target = $region13
  $region12: #{graphwavenet_forward.1} parent=0 // pred_region
    _
  $region13: #{graphwavenet_forward.1} parent=0 // pred_fallthru
    _
  // Predicated region
  $region14: #{graphwavenet_forward.1} parent=0 // pred_check
    _
  $region15: #{graphwavenet_forward.1} parent=0 // pred_check_branch
    %34 = sbr.rel (0) target = $region17
  $region16: #{graphwavenet_forward.1} parent=0 // pred_region
    _
  $region17: #{graphwavenet_forward.1} parent=0 // pred_fallthru
    _
  // Predicated region
  $region18: #{graphwavenet_forward.1} parent=0 // pred_check
    _
  $region19: #{graphwavenet_forward.1} parent=0 // pred_check_branch
    %36 = sbr.rel (0) target = $region21
  $region20: #{graphwavenet_forward.1} parent=0 // pred_region
    _
  $region21: #{graphwavenet_forward.1} parent=0 // pred_fallthru
    _
  // Predicated region
  $region22: #{graphwavenet_forward.1} parent=0 // pred_check
    _
  $region23: #{graphwavenet_forward.1} parent=0 // pred_check_branch
    %38 = sbr.rel (0) target = $region25
  $region24: #{graphwavenet_forward.1} parent=0 // pred_region
    _
  $region25: #{graphwavenet_forward.1} parent=0 // pred_fallthru
    _
  // Predicated region
  $region26: #{graphwavenet_forward.1} parent=0 // pred_check
    _
  $region27: #{graphwavenet_forward.1} parent=0 // pred_check_branch
    %40 = sbr.rel (0) target = $region29
  $region28: #{graphwavenet_forward.1} parent=0 // pred_region
    _
  $region29: #{graphwavenet_forward.1} parent=0 // pred_fallthru
    _
  // Predicated region
  $region30: #{graphwavenet_forward.1} parent=0 // pred_check
    _
  $region31: #{graphwavenet_forward.1} parent=0 // pred_check_branch
    %42 = sbr.rel (0) target = $region33
  $region32: #{graphwavenet_forward.1} parent=0 // pred_region
    _
  $region33: #{graphwavenet_forward.1} parent=0 // pred_fallthru
    _
  // Predicated region
  $region34: #{graphwavenet_forward.1} parent=0 // pred_check
    _
  $region35: #{graphwavenet_forward.1} parent=0 // pred_check_branch
    %44 = sbr.rel (0) target = $region37
  $region36: #{graphwavenet_forward.1} parent=0 // pred_region
    _
  $region37: #{graphwavenet_forward.1} parent=0 // pred_fallthru
    _
  // Predicated region
  $region38: #{graphwavenet_forward.1} parent=0 // pred_check
    _
  $region39: #{graphwavenet_forward.1} parent=0 // pred_check_branch
    %46 = sbr.rel (0) target = $region41
  $region40: #{graphwavenet_forward.1} parent=0 // pred_region
    _
  $region41: #{graphwavenet_forward.1} parent=0 // pred_fallthru
    _
  // Predicated region
  $region42: #{graphwavenet_forward.1} parent=0 // pred_check
    _
  $region43: #{graphwavenet_forward.1} parent=0 // pred_check_branch
    %48 = sbr.rel (0) target = $region45
  $region44: #{graphwavenet_forward.1} parent=0 // pred_region
    _
  $region45: #{graphwavenet_forward.1} parent=0 // pred_fallthru
    _
  // Predicated region
  $region46: #{graphwavenet_forward.1} parent=0 // pred_check
    _
  $region47: #{graphwavenet_forward.1} parent=0 // pred_check_branch
    %50 = sbr.rel (0) target = $region49
  $region48: #{graphwavenet_forward.1} parent=0 // pred_region
    _
  $region49: #{graphwavenet_forward.1} parent=0 // pred_fallthru
    _
  // Predicated region
  $region50: #{graphwavenet_forward.1} parent=0 // pred_check
    _
  $region51: #{graphwavenet_forward.1} parent=0 // pred_check_branch
    %52 = sbr.rel (0) target = $region53
  $region52: #{graphwavenet_forward.1} parent=0 // pred_region
    _
  $region53: #{graphwavenet_forward.1} parent=0 // pred_fallthru
    _
  // Predicated region
  $region54: #{graphwavenet_forward.1} parent=0 // pred_check
    _
  $region55: #{graphwavenet_forward.1} parent=0 // pred_check_branch
    %54 = sbr.rel (0) target = $region57
  $region56: #{graphwavenet_forward.1} parent=0 // pred_region
    _
  $region57: #{graphwavenet_forward.1} parent=0 // pred_fallthru
    _
  // Predicated region
  $region58: #{graphwavenet_forward.1} parent=0 // pred_check
    _
  $region59: #{graphwavenet_forward.1} parent=0 // pred_check_branch
    %56 = sbr.rel (0) target = $region61
  $region60: #{graphwavenet_forward.1} parent=0 // pred_region
    _
  $region61: #{graphwavenet_forward.1} parent=0 // pred_fallthru
    _
  // Predicated region
  $region62: #{graphwavenet_forward.1} parent=0 // pred_check
    _
  $region63: #{graphwavenet_forward.1} parent=0 // pred_check_branch
    %58 = sbr.rel (0) target = $region65
  $region64: #{graphwavenet_forward.1} parent=0 // pred_region
    _
  $region65: #{graphwavenet_forward.1} parent=0 // pred_fallthru
    _
  // Predicated region
  $region66: #{graphwavenet_forward.1} parent=0 // pred_check
    _
  $region67: #{graphwavenet_forward.1} parent=0 // pred_check_branch
    %60 = sbr.rel (0) target = $region69
  $region68: #{graphwavenet_forward.1} parent=0 // pred_region
    _
  $region69: #{graphwavenet_forward.1} parent=0 // pred_fallthru
    _
  // Predicated region
  $region70: #{graphwavenet_forward.1} parent=0 // pred_check
    _
  $region71: #{graphwavenet_forward.1} parent=0 // pred_check_branch
    %62 = sbr.rel (0) target = $region73
  $region72: #{graphwavenet_forward.1} parent=0 // pred_region
    _
  $region73: #{graphwavenet_forward.1} parent=0 // pred_fallthru
    _
  // Predicated region
  $region74: #{graphwavenet_forward.1} parent=0 // pred_check
    _
  $region75: #{graphwavenet_forward.1} parent=0 // pred_check_branch
    %64 = sbr.rel (0) target = $region77
  $region76: #{graphwavenet_forward.1} parent=0 // pred_region
    _
  $region77: #{graphwavenet_forward.1} parent=0 // pred_fallthru
    _
  // Predicated region
  $region78: #{graphwavenet_forward.1} parent=0 // pred_check
    _
  $region79: #{graphwavenet_forward.1} parent=0 // pred_check_branch
    %66 = sbr.rel (0) target = $region81
  $region80: #{graphwavenet_forward.1} parent=0 // pred_region
    _
  $region81: #{graphwavenet_forward.1} parent=0 // pred_fallthru
    _
  // Predicated region
  $region82: #{graphwavenet_forward.1} parent=0 // pred_check
    _
  $region83: #{graphwavenet_forward.1} parent=0 // pred_check_branch
    %68 = sbr.rel (0) target = $region85
  $region84: #{graphwavenet_forward.1} parent=0 // pred_region
    _
  $region85: #{graphwavenet_forward.1} parent=0 // pred_fallthru
    _
  // Predicated region
  $region86: #{graphwavenet_forward.1} parent=0 // pred_check
    _
  $region87: #{graphwavenet_forward.1} parent=0 // pred_check_branch
    %70 = sbr.rel (0) target = $region89
  $region88: #{graphwavenet_forward.1} parent=0 // pred_region
    _
  $region89: #{graphwavenet_forward.1} parent=0 // pred_fallthru
    _
  %v71 = vld [vmem:[%s0] sm:$0xff]
  %v72 = vld [vmem:[%s0 + $0x8] sm:$0xff]
  %v73 = vld [vmem:[%s0 + $0x10] sm:$0xff]
  %v74 = vld [vmem:[%s0 + $0x18] sm:$0xff]
  %v75 = vld [vmem:[%s0 + $0x20] sm:$0xff]
  %v76 = vld [vmem:[%s0 + $0x28] sm:$0xff]
  %v77 = vld [vmem:[%s0 + $0x30] sm:$0xff]
  %v78 = vld [vmem:[%s0 + $0x38] sm:$0xff]
  %v79 = vld [vmem:[%s0 + $0x40] sm:$0xff]
  %v80 = vld [vmem:[%s0 + $0x48] sm:$0xff]
  %v81 = vld [vmem:[%s0 + $0x50] sm:$0xff]
  %v82 = vld [vmem:[%s0 + $0x58] sm:$0xff]
  %v83 = vld [vmem:[%s0 + $0x60] sm:$0xff]
  %v84 = vld [vmem:[%s0 + $0x68] sm:$0xff]
  %v85 = vld [vmem:[%s0 + $0x70] sm:$0xff]
  %v86 = vld [vmem:[%s0 + $0x78] sm:$0xff]
  %v87 = vld [vmem:[%s0 + $0x80] sm:$0xff]
  %v88 = vld [vmem:[%s0 + $0x88] sm:$0xff]
  %v89 = vld [vmem:[%s0 + $0x90] sm:$0xff]
  %v90 = vld [vmem:[%s0 + $0x98] sm:$0xff]
  %v91 = vld [vmem:[%s0 + $0xa0] sm:$0xff]
  %v92 = vld [vmem:[%s0 + $0xa8] sm:$0xff]
  %v93 = vld [vmem:[%s0 + $0xb0] sm:$0xff]
  %v94 = vld [vmem:[%s0 + $0xb8] sm:$0xff]
  %v95 = vld [vmem:[%s0 + $0xc0] sm:$0xff]
  %v96 = vld [vmem:[%s0 + $0xc8] sm:$0xff]
  %v97 = vld [vmem:[%s0 + $0xd0] sm:$0xff]
  %v98 = vld [vmem:[%s0 + $0xd8] sm:$0xff]
  %v99 = vld [vmem:[%s0 + $0xe0] sm:$0xff]
  %v100 = vld [vmem:[%s0 + $0xe8] sm:$0xff]
  %v101 = vld [vmem:[%s0 + $0xf0] sm:$0xff]
  %v102 = vld [vmem:[%s0 + $0xf8] sm:$0xff]
  %v103 = vld [vmem:[%s2] sm:$0x1]
  %v104 = vld [vmem:[%s1] sm:$0x1f]
  %vm105 = vcmask 39936
  %v107 = vsel %vm105, 0.0, 0
  %v110 = vsel %vm105, %v71, 0
  %v113 = vsel %vm105, %v72, 0
  %v116 = vsel %vm105, %v73, 0
  %v119 = vsel %vm105, %v74, 0
  %v122 = vsel %vm105, %v75, 0
  %v125 = vsel %vm105, %v76, 0
  %v128 = vsel %vm105, %v77, 0
  %v131 = vsel %vm105, %v78, 0
  %v134 = vsel %vm105, %v79, 0
  %v137 = vsel %vm105, %v80, 0
  %v140 = vsel %vm105, %v81, 0
  %v143 = vsel %vm105, %v82, 0
  %v146 = vsel %vm105, %v83, 0
  %v149 = vsel %vm105, %v84, 0
  %v152 = vsel %vm105, %v85, 0
  %v155 = vsel %vm105, %v86, 0
  %v158 = vsel %vm105, %v87, 0
  %v161 = vsel %vm105, %v88, 0
  %v164 = vsel %vm105, %v89, 0
  %v167 = vsel %vm105, %v90, 0
  %v170 = vsel %vm105, %v91, 0
  %v173 = vsel %vm105, %v92, 0
  %v176 = vsel %vm105, %v93, 0
  %v179 = vsel %vm105, %v94, 0
  %v182 = vsel %vm105, %v95, 0
  %v185 = vsel %vm105, %v96, 0
  %v188 = vsel %vm105, %v97, 0
  %v191 = vsel %vm105, %v98, 0
  %vm193 = vcmask 1044480
  %v195 = vsel %vm193, %v104, 0
  %197 = vmatpush.msra.mxu0 0.0
  %198 = vmatpush.msra.mxu0 0.0
  %199 = vmatpush.msra.mxu0 0.0
  %200 = vmatpush.msra.mxu0 0.0
  %201 = vmatpush.msra.mxu0 0.0
  %202 = vmatpush.msra.mxu0 0.0
  %203 = vmatpush.msra.mxu0 0.0
  %204 = vmatpush.msra.mxu0 0.0
  %205 = vmatpush.msra.mxu0 0.0
  %206 = vmatpush.msra.mxu0 0.0
  %207 = vmatpush.msra.mxu0 0.0
  %208 = vmatpush.msra.mxu0 0.0
  %209 = vmatpush.msra.mxu0 0.0
  %210 = vmatpush.msra.mxu0 0.0
  %211 = vmatpush.msra.mxu0 0.0
  %212 = vmatpush.msra.mxu0 %v195
  %213 = vmatmul.f32.gmra.mxu0 %v107
  %v214 = vpop.f32.mrf.mxu0
  %v215 = vadd.f32 0.0, %v214
  %216 = vmatmul.f32.gmra.mxu0 %v107
  %v217 = vpop.f32.mrf.mxu0
  %v218 = vadd.f32 0.0, %v217
  %219 = vmatmul.f32.gmra.mxu0 %v107
  %v220 = vpop.f32.mrf.mxu0
  %v221 = vadd.f32 0.0, %v220
  %222 = vmatmul.f32.gmra.mxu0 %v107
  %v223 = vpop.f32.mrf.mxu0
  %v224 = vadd.f32 0.0, %v223
  %225 = vmatmul.f32.gmra.mxu0 %v110
  %v226 = vpop.f32.mrf.mxu0
  %v227 = vadd.f32 0.0, %v226
  %228 = vmatmul.f32.gmra.mxu0 %v113
  %v229 = vpop.f32.mrf.mxu0
  %v230 = vadd.f32 0.0, %v229
  %231 = vmatmul.f32.gmra.mxu0 %v116
  %v232 = vpop.f32.mrf.mxu0
  %v233 = vadd.f32 0.0, %v232
  %234 = vmatmul.f32.gmra.mxu0 %v119
  %v235 = vpop.f32.mrf.mxu0
  %v236 = vadd.f32 0.0, %v235
  %237 = vmatmul.f32.gmra.mxu0 %v122
  %v238 = vpop.f32.mrf.mxu0
  %v239 = vadd.f32 0.0, %v238
  %240 = vmatmul.f32.gmra.mxu0 %v125
  %v241 = vpop.f32.mrf.mxu0
  %v242 = vadd.f32 0.0, %v241
  %243 = vmatmul.f32.gmra.mxu0 %v128
  %v244 = vpop.f32.mrf.mxu0
  %v245 = vadd.f32 0.0, %v244
  %246 = vmatmul.f32.gmra.mxu0 %v131
  %v247 = vpop.f32.mrf.mxu0
  %v248 = vadd.f32 0.0, %v247
  %249 = vmatmul.f32.gmra.mxu0 %v134
  %v250 = vpop.f32.mrf.mxu0
  %v251 = vadd.f32 0.0, %v250
  %252 = vmatmul.f32.gmra.mxu0 %v137
  %v253 = vpop.f32.mrf.mxu0
  %v254 = vadd.f32 0.0, %v253
  %255 = vmatmul.f32.gmra.mxu0 %v140
  %v256 = vpop.f32.mrf.mxu0
  %v257 = vadd.f32 0.0, %v256
  %258 = vmatmul.f32.gmra.mxu0 %v143
  %v259 = vpop.f32.mrf.mxu0
  %v260 = vadd.f32 0.0, %v259
  %261 = vmatmul.f32.gmra.mxu0 %v146
  %v262 = vpop.f32.mrf.mxu0
  %v263 = vadd.f32 0.0, %v262
  %264 = vmatmul.f32.gmra.mxu0 %v149
  %v265 = vpop.f32.mrf.mxu0
  %v266 = vadd.f32 0.0, %v265
  %267 = vmatmul.f32.gmra.mxu0 %v152
  %v268 = vpop.f32.mrf.mxu0
  %v269 = vadd.f32 0.0, %v268
  %270 = vmatmul.f32.gmra.mxu0 %v155
  %v271 = vpop.f32.mrf.mxu0
  %v272 = vadd.f32 0.0, %v271
  %273 = vmatmul.f32.gmra.mxu0 %v158
  %v274 = vpop.f32.mrf.mxu0
  %v275 = vadd.f32 0.0, %v274
  %276 = vmatmul.f32.gmra.mxu0 %v161
  %v277 = vpop.f32.mrf.mxu0
  %v278 = vadd.f32 0.0, %v277
  %279 = vmatmul.f32.gmra.mxu0 %v164
  %v280 = vpop.f32.mrf.mxu0
  %v281 = vadd.f32 0.0, %v280
  %282 = vmatmul.f32.gmra.mxu0 %v167
  %v283 = vpop.f32.mrf.mxu0
  %v284 = vadd.f32 0.0, %v283
  %285 = vmatmul.f32.gmra.mxu0 %v170
  %v286 = vpop.f32.mrf.mxu0
  %v287 = vadd.f32 0.0, %v286
  %288 = vmatmul.f32.gmra.mxu0 %v173
  %v289 = vpop.f32.mrf.mxu0
  %v290 = vadd.f32 0.0, %v289
  %291 = vmatmul.f32.gmra.mxu0 %v176
  %v292 = vpop.f32.mrf.mxu0
  %v293 = vadd.f32 0.0, %v292
  %294 = vmatmul.f32.gmra.mxu0 %v179
  %v295 = vpop.f32.mrf.mxu0
  %v296 = vadd.f32 0.0, %v295
  %297 = vmatmul.f32.gmra.mxu0 %v182
  %v298 = vpop.f32.mrf.mxu0
  %v299 = vadd.f32 0.0, %v298
  %300 = vmatmul.f32.gmra.mxu0 %v185
  %v301 = vpop.f32.mrf.mxu0
  %v302 = vadd.f32 0.0, %v301
  %303 = vmatmul.f32.gmra.mxu0 %v188
  %v304 = vpop.f32.mrf.mxu0
  %v305 = vadd.f32 0.0, %v304
  %306 = vmatmul.f32.gmra.mxu0 %v191
  %v307 = vpop.f32.mrf.mxu0
  %v308 = vadd.f32 0.0, %v307
  %309 = vdwg.mxu0
  %v311 = vperm.slane %v103, 0
  %v313 = vadd.f32 %v311, %v215
  %v314 = vadd.f32 %v311, %v218
  %v315 = vadd.f32 %v311, %v221
  %v316 = vadd.f32 %v311, %v224
  %v317 = vadd.f32 %v311, %v227
  %v318 = vadd.f32 %v311, %v230
  %v319 = vadd.f32 %v311, %v233
  %v320 = vadd.f32 %v311, %v236
  %v321 = vadd.f32 %v311, %v239
  %v322 = vadd.f32 %v311, %v242
  %v323 = vadd.f32 %v311, %v245
  %v324 = vadd.f32 %v311, %v248
  %v325 = vadd.f32 %v311, %v251
  %v326 = vadd.f32 %v311, %v254
  %v327 = vadd.f32 %v311, %v257
  %v328 = vadd.f32 %v311, %v260
  %v329 = vadd.f32 %v311, %v263
  %v330 = vadd.f32 %v311, %v266
  %v331 = vadd.f32 %v311, %v269
  %v332 = vadd.f32 %v311, %v272
  %v333 = vadd.f32 %v311, %v275
  %v334 = vadd.f32 %v311, %v278
  %v335 = vadd.f32 %v311, %v281
  %v336 = vadd.f32 %v311, %v284
  %v337 = vadd.f32 %v311, %v287
  %v338 = vadd.f32 %v311, %v290
  %v339 = vadd.f32 %v311, %v293
  %v340 = vadd.f32 %v311, %v296
  %v341 = vadd.f32 %v311, %v299
  %v342 = vadd.f32 %v311, %v302
  %v343 = vadd.f32 %v311, %v305
  %v344 = vadd.f32 %v311, %v308
  %s345 = scalar_lea.vmem %s1, 8
  %v346 = vld [vmem:[%s345] sm:$0x1f]
  %v348 = vsel %vm105, %v99, 0
  %v351 = vsel %vm105, %v100, 0
  %v354 = vsel %vm105, %v101, 0
  %v357 = vsel %vm105, %v102, 0
  %v360 = vsel %vm193, %v346, 0
  %362 = vmatpush.msra.mxu0 0.0
  %363 = vmatpush.msra.mxu0 0.0
  %364 = vmatpush.msra.mxu0 0.0
  %365 = vmatpush.msra.mxu0 0.0
  %366 = vmatpush.msra.mxu0 0.0
  %367 = vmatpush.msra.mxu0 0.0
  %368 = vmatpush.msra.mxu0 0.0
  %369 = vmatpush.msra.mxu0 0.0
  %370 = vmatpush.msra.mxu0 0.0
  %371 = vmatpush.msra.mxu0 0.0
  %372 = vmatpush.msra.mxu0 0.0
  %373 = vmatpush.msra.mxu0 0.0
  %374 = vmatpush.msra.mxu0 0.0
  %375 = vmatpush.msra.mxu0 0.0
  %376 = vmatpush.msra.mxu0 0.0
  %377 = vmatpush.msra.mxu0 %v360
  %378 = vmatmul.f32.gmra.mxu0 %v110
  %v379 = vpop.f32.mrf.mxu0
  %v380 = vadd.f32 0.0, %v379
  %381 = vmatmul.f32.gmra.mxu0 %v113
  %v382 = vpop.f32.mrf.mxu0
  %v383 = vadd.f32 0.0, %v382
  %384 = vmatmul.f32.gmra.mxu0 %v116
  %v385 = vpop.f32.mrf.mxu0
  %v386 = vadd.f32 0.0, %v385
  %387 = vmatmul.f32.gmra.mxu0 %v119
  %v388 = vpop.f32.mrf.mxu0
  %v389 = vadd.f32 0.0, %v388
  %390 = vmatmul.f32.gmra.mxu0 %v122
  %v391 = vpop.f32.mrf.mxu0
  %v392 = vadd.f32 0.0, %v391
  %393 = vmatmul.f32.gmra.mxu0 %v125
  %v394 = vpop.f32.mrf.mxu0
  %v395 = vadd.f32 0.0, %v394
  %396 = vmatmul.f32.gmra.mxu0 %v128
  %v397 = vpop.f32.mrf.mxu0
  %v398 = vadd.f32 0.0, %v397
  %399 = vmatmul.f32.gmra.mxu0 %v131
  %v400 = vpop.f32.mrf.mxu0
  %v401 = vadd.f32 0.0, %v400
  %402 = vmatmul.f32.gmra.mxu0 %v134
  %v403 = vpop.f32.mrf.mxu0
  %v404 = vadd.f32 0.0, %v403
  %405 = vmatmul.f32.gmra.mxu0 %v137
  %v406 = vpop.f32.mrf.mxu0
  %v407 = vadd.f32 0.0, %v406
  %408 = vmatmul.f32.gmra.mxu0 %v140
  %v409 = vpop.f32.mrf.mxu0
  %v410 = vadd.f32 0.0, %v409
  %411 = vmatmul.f32.gmra.mxu0 %v143
  %v412 = vpop.f32.mrf.mxu0
  %v413 = vadd.f32 0.0, %v412
  %414 = vmatmul.f32.gmra.mxu0 %v146
  %v415 = vpop.f32.mrf.mxu0
  %v416 = vadd.f32 0.0, %v415
  %417 = vmatmul.f32.gmra.mxu0 %v149
  %v418 = vpop.f32.mrf.mxu0
  %v419 = vadd.f32 0.0, %v418
  %420 = vmatmul.f32.gmra.mxu0 %v152
  %v421 = vpop.f32.mrf.mxu0
  %v422 = vadd.f32 0.0, %v421
  %423 = vmatmul.f32.gmra.mxu0 %v155
  %v424 = vpop.f32.mrf.mxu0
  %v425 = vadd.f32 0.0, %v424
  %426 = vmatmul.f32.gmra.mxu0 %v158
  %v427 = vpop.f32.mrf.mxu0
  %v428 = vadd.f32 0.0, %v427
  %429 = vmatmul.f32.gmra.mxu0 %v161
  %v430 = vpop.f32.mrf.mxu0
  %v431 = vadd.f32 0.0, %v430
  %432 = vmatmul.f32.gmra.mxu0 %v164
  %v433 = vpop.f32.mrf.mxu0
  %v434 = vadd.f32 0.0, %v433
  %435 = vmatmul.f32.gmra.mxu0 %v167
  %v436 = vpop.f32.mrf.mxu0
  %v437 = vadd.f32 0.0, %v436
  %438 = vmatmul.f32.gmra.mxu0 %v170
  %v439 = vpop.f32.mrf.mxu0
  %v440 = vadd.f32 0.0, %v439
  %441 = vmatmul.f32.gmra.mxu0 %v173
  %v442 = vpop.f32.mrf.mxu0
  %v443 = vadd.f32 0.0, %v442
  %444 = vmatmul.f32.gmra.mxu0 %v176
  %v445 = vpop.f32.mrf.mxu0
  %v446 = vadd.f32 0.0, %v445
  %447 = vmatmul.f32.gmra.mxu0 %v179
  %v448 = vpop.f32.mrf.mxu0
  %v449 = vadd.f32 0.0, %v448
  %450 = vmatmul.f32.gmra.mxu0 %v182
  %v451 = vpop.f32.mrf.mxu0
  %v452 = vadd.f32 0.0, %v451
  %453 = vmatmul.f32.gmra.mxu0 %v185
  %v454 = vpop.f32.mrf.mxu0
  %v455 = vadd.f32 0.0, %v454
  %456 = vmatmul.f32.gmra.mxu0 %v188
  %v457 = vpop.f32.mrf.mxu0
  %v458 = vadd.f32 0.0, %v457
  %459 = vmatmul.f32.gmra.mxu0 %v191
  %v460 = vpop.f32.mrf.mxu0
  %v461 = vadd.f32 0.0, %v460
  %462 = vmatmul.f32.gmra.mxu0 %v348
  %v463 = vpop.f32.mrf.mxu0
  %v464 = vadd.f32 0.0, %v463
  %465 = vmatmul.f32.gmra.mxu0 %v351
  %v466 = vpop.f32.mrf.mxu0
  %v467 = vadd.f32 0.0, %v466
  %468 = vmatmul.f32.gmra.mxu0 %v354
  %v469 = vpop.f32.mrf.mxu0
  %v470 = vadd.f32 0.0, %v469
  %471 = vmatmul.f32.gmra.mxu0 %v357
  %v472 = vpop.f32.mrf.mxu0
  %v473 = vadd.f32 0.0, %v472
  %474 = vdwg.mxu0
  %v475 = vadd.f32 %v313, %v380
  %v476 = vadd.f32 %v314, %v383
  %v477 = vadd.f32 %v315, %v386
  %v478 = vadd.f32 %v316, %v389
  %v479 = vadd.f32 %v317, %v392
  %v480 = vadd.f32 %v318, %v395
  %v481 = vadd.f32 %v319, %v398
  %v482 = vadd.f32 %v320, %v401
  %v483 = vadd.f32 %v321, %v404
  %v484 = vadd.f32 %v322, %v407
  %v485 = vadd.f32 %v323, %v410
  %v486 = vadd.f32 %v324, %v413
  %v487 = vadd.f32 %v325, %v416
  %v488 = vadd.f32 %v326, %v419
  %v489 = vadd.f32 %v327, %v422
  %v490 = vadd.f32 %v328, %v425
  %v491 = vadd.f32 %v329, %v428
  %v492 = vadd.f32 %v330, %v431
  %v493 = vadd.f32 %v331, %v434
  %v494 = vadd.f32 %v332, %v437
  %v495 = vadd.f32 %v333, %v440
  %v496 = vadd.f32 %v334, %v443
  %v497 = vadd.f32 %v335, %v446
  %v498 = vadd.f32 %v336, %v449
  %v499 = vadd.f32 %v337, %v452
  %v500 = vadd.f32 %v338, %v455
  %v501 = vadd.f32 %v339, %v458
  %v502 = vadd.f32 %v340, %v461
  %v503 = vadd.f32 %v341, %v464
  %v504 = vadd.f32 %v342, %v467
  %v505 = vadd.f32 %v343, %v470
  %v506 = vadd.f32 %v344, %v473
  %s507 = scalar_lea.vmem %s1, 16
  %v508 = vld [vmem:[%s507] sm:$0x1f]
  %v510 = vsel %vm193, %v508, 0
  %512 = vmatpush.msra.mxu0 0.0
  %513 = vmatpush.msra.mxu0 0.0
  %514 = vmatpush.msra.mxu0 0.0
  %515 = vmatpush.msra.mxu0 0.0
  %516 = vmatpush.msra.mxu0 0.0
  %517 = vmatpush.msra.mxu0 0.0
  %518 = vmatpush.msra.mxu0 0.0
  %519 = vmatpush.msra.mxu0 0.0
  %520 = vmatpush.msra.mxu0 0.0
  %521 = vmatpush.msra.mxu0 0.0
  %522 = vmatpush.msra.mxu0 0.0
  %523 = vmatpush.msra.mxu0 0.0
  %524 = vmatpush.msra.mxu0 0.0
  %525 = vmatpush.msra.mxu0 0.0
  %526 = vmatpush.msra.mxu0 0.0
  %527 = vmatpush.msra.mxu0 %v510
  %528 = vmatmul.f32.gmra.mxu0 %v122
  %v529 = vpop.f32.mrf.mxu0
  %v530 = vadd.f32 0.0, %v529
  %531 = vmatmul.f32.gmra.mxu0 %v125
  %v532 = vpop.f32.mrf.mxu0
  %v533 = vadd.f32 0.0, %v532
  %534 = vmatmul.f32.gmra.mxu0 %v128
  %v535 = vpop.f32.mrf.mxu0
  %v536 = vadd.f32 0.0, %v535
  %537 = vmatmul.f32.gmra.mxu0 %v131
  %v538 = vpop.f32.mrf.mxu0
  %v539 = vadd.f32 0.0, %v538
  %540 = vmatmul.f32.gmra.mxu0 %v134
  %v541 = vpop.f32.mrf.mxu0
  %v542 = vadd.f32 0.0, %v541
  %543 = vmatmul.f32.gmra.mxu0 %v137
  %v544 = vpop.f32.mrf.mxu0
  %v545 = vadd.f32 0.0, %v544
  %546 = vmatmul.f32.gmra.mxu0 %v140
  %v547 = vpop.f32.mrf.mxu0
  %v548 = vadd.f32 0.0, %v547
  %549 = vmatmul.f32.gmra.mxu0 %v143
  %v550 = vpop.f32.mrf.mxu0
  %v551 = vadd.f32 0.0, %v550
  %552 = vmatmul.f32.gmra.mxu0 %v146
  %v553 = vpop.f32.mrf.mxu0
  %v554 = vadd.f32 0.0, %v553
  %555 = vmatmul.f32.gmra.mxu0 %v149
  %v556 = vpop.f32.mrf.mxu0
  %v557 = vadd.f32 0.0, %v556
  %558 = vmatmul.f32.gmra.mxu0 %v152
  %v559 = vpop.f32.mrf.mxu0
  %v560 = vadd.f32 0.0, %v559
  %561 = vmatmul.f32.gmra.mxu0 %v155
  %v562 = vpop.f32.mrf.mxu0
  %v563 = vadd.f32 0.0, %v562
  %564 = vmatmul.f32.gmra.mxu0 %v158
  %v565 = vpop.f32.mrf.mxu0
  %v566 = vadd.f32 0.0, %v565
  %567 = vmatmul.f32.gmra.mxu0 %v161
  %v568 = vpop.f32.mrf.mxu0
  %v569 = vadd.f32 0.0, %v568
  %570 = vmatmul.f32.gmra.mxu0 %v164
  %v571 = vpop.f32.mrf.mxu0
  %v572 = vadd.f32 0.0, %v571
  %573 = vmatmul.f32.gmra.mxu0 %v167
  %v574 = vpop.f32.mrf.mxu0
  %v575 = vadd.f32 0.0, %v574
  %576 = vmatmul.f32.gmra.mxu0 %v170
  %v577 = vpop.f32.mrf.mxu0
  %v578 = vadd.f32 0.0, %v577
  %579 = vmatmul.f32.gmra.mxu0 %v173
  %v580 = vpop.f32.mrf.mxu0
  %v581 = vadd.f32 0.0, %v580
  %582 = vmatmul.f32.gmra.mxu0 %v176
  %v583 = vpop.f32.mrf.mxu0
  %v584 = vadd.f32 0.0, %v583
  %585 = vmatmul.f32.gmra.mxu0 %v179
  %v586 = vpop.f32.mrf.mxu0
  %v587 = vadd.f32 0.0, %v586
  %588 = vmatmul.f32.gmra.mxu0 %v182
  %v589 = vpop.f32.mrf.mxu0
  %v590 = vadd.f32 0.0, %v589
  %591 = vmatmul.f32.gmra.mxu0 %v185
  %v592 = vpop.f32.mrf.mxu0
  %v593 = vadd.f32 0.0, %v592
  %594 = vmatmul.f32.gmra.mxu0 %v188
  %v595 = vpop.f32.mrf.mxu0
  %v596 = vadd.f32 0.0, %v595
  %597 = vmatmul.f32.gmra.mxu0 %v191
  %v598 = vpop.f32.mrf.mxu0
  %v599 = vadd.f32 0.0, %v598
  %600 = vmatmul.f32.gmra.mxu0 %v348
  %v601 = vpop.f32.mrf.mxu0
  %v602 = vadd.f32 0.0, %v601
  %603 = vmatmul.f32.gmra.mxu0 %v351
  %v604 = vpop.f32.mrf.mxu0
  %v605 = vadd.f32 0.0, %v604
  %606 = vmatmul.f32.gmra.mxu0 %v354
  %v607 = vpop.f32.mrf.mxu0
  %v608 = vadd.f32 0.0, %v607
  %609 = vmatmul.f32.gmra.mxu0 %v357
  %v610 = vpop.f32.mrf.mxu0
  %v611 = vadd.f32 0.0, %v610
  %612 = vmatmul.f32.gmra.mxu0 %v107
  %v613 = vpop.f32.mrf.mxu0
  %v614 = vadd.f32 0.0, %v613
  %615 = vmatmul.f32.gmra.mxu0 %v107
  %v616 = vpop.f32.mrf.mxu0
  %v617 = vadd.f32 0.0, %v616
  %618 = vmatmul.f32.gmra.mxu0 %v107
  %v619 = vpop.f32.mrf.mxu0
  %v620 = vadd.f32 0.0, %v619
  %621 = vmatmul.f32.gmra.mxu0 %v107
  %v622 = vpop.f32.mrf.mxu0
  %v623 = vadd.f32 0.0, %v622
  %624 = vdwg.mxu0
  %v625 = vadd.f32 %v475, %v530
  %v626 = vadd.f32 %v476, %v533
  %v627 = vadd.f32 %v477, %v536
  %v628 = vadd.f32 %v478, %v539
  %v629 = vadd.f32 %v479, %v542
  %v630 = vadd.f32 %v480, %v545
  %v631 = vadd.f32 %v481, %v548
  %v632 = vadd.f32 %v482, %v551
  %v633 = vadd.f32 %v483, %v554
  %v634 = vadd.f32 %v484, %v557
  %v635 = vadd.f32 %v485, %v560
  %v636 = vadd.f32 %v486, %v563
  %v637 = vadd.f32 %v487, %v566
  %v638 = vadd.f32 %v488, %v569
  %v639 = vadd.f32 %v489, %v572
  %v640 = vadd.f32 %v490, %v575
  %v641 = vadd.f32 %v491, %v578
  %v642 = vadd.f32 %v492, %v581
  %v643 = vadd.f32 %v493, %v584
  %v644 = vadd.f32 %v494, %v587
  %v645 = vadd.f32 %v495, %v590
  %v646 = vadd.f32 %v496, %v593
  %v647 = vadd.f32 %v497, %v596
  %v648 = vadd.f32 %v498, %v599
  %v649 = vadd.f32 %v499, %v602
  %v650 = vadd.f32 %v500, %v605
  %v651 = vadd.f32 %v501, %v608
  %v652 = vadd.f32 %v502, %v611
  %v653 = vadd.f32 %v503, %v614
  %v654 = vadd.f32 %v504, %v617
  %v655 = vadd.f32 %v505, %v620
  %v656 = vadd.f32 %v506, %v623
  %v657 = vld [vmem:[%s4] sm:$0x1]
  %v658 = vld [vmem:[%s3] sm:$0x1f]
  %v660 = vsel %vm193, %v658, 0
  %662 = vmatpush.msra.mxu0 0.0
  %663 = vmatpush.msra.mxu0 0.0
  %664 = vmatpush.msra.mxu0 0.0
  %665 = vmatpush.msra.mxu0 0.0
  %666 = vmatpush.msra.mxu0 0.0
  %667 = vmatpush.msra.mxu0 0.0
  %668 = vmatpush.msra.mxu0 0.0
  %669 = vmatpush.msra.mxu0 0.0
  %670 = vmatpush.msra.mxu0 0.0
  %671 = vmatpush.msra.mxu0 0.0
  %672 = vmatpush.msra.mxu0 0.0
  %673 = vmatpush.msra.mxu0 0.0
  %674 = vmatpush.msra.mxu0 0.0
  %675 = vmatpush.msra.mxu0 0.0
  %676 = vmatpush.msra.mxu0 0.0
  %677 = vmatpush.msra.mxu0 %v660
  %678 = vmatmul.f32.gmra.mxu0 %v107
  %v679 = vpop.f32.mrf.mxu0
  %v680 = vadd.f32 0.0, %v679
  %681 = vmatmul.f32.gmra.mxu0 %v107
  %v682 = vpop.f32.mrf.mxu0
  %v683 = vadd.f32 0.0, %v682
  %684 = vmatmul.f32.gmra.mxu0 %v107
  %v685 = vpop.f32.mrf.mxu0
  %v686 = vadd.f32 0.0, %v685
  %687 = vmatmul.f32.gmra.mxu0 %v107
  %v688 = vpop.f32.mrf.mxu0
  %v689 = vadd.f32 0.0, %v688
  %690 = vmatmul.f32.gmra.mxu0 %v110
  %v691 = vpop.f32.mrf.mxu0
  %v692 = vadd.f32 0.0, %v691
  %693 = vmatmul.f32.gmra.mxu0 %v113
  %v694 = vpop.f32.mrf.mxu0
  %v695 = vadd.f32 0.0, %v694
  %696 = vmatmul.f32.gmra.mxu0 %v116
  %v697 = vpop.f32.mrf.mxu0
  %v698 = vadd.f32 0.0, %v697
  %699 = vmatmul.f32.gmra.mxu0 %v119
  %v700 = vpop.f32.mrf.mxu0
  %v701 = vadd.f32 0.0, %v700
  %702 = vmatmul.f32.gmra.mxu0 %v122
  %v703 = vpop.f32.mrf.mxu0
  %v704 = vadd.f32 0.0, %v703
  %705 = vmatmul.f32.gmra.mxu0 %v125
  %v706 = vpop.f32.mrf.mxu0
  %v707 = vadd.f32 0.0, %v706
  %708 = vmatmul.f32.gmra.mxu0 %v128
  %v709 = vpop.f32.mrf.mxu0
  %v710 = vadd.f32 0.0, %v709
  %711 = vmatmul.f32.gmra.mxu0 %v131
  %v712 = vpop.f32.mrf.mxu0
  %v713 = vadd.f32 0.0, %v712
  %714 = vmatmul.f32.gmra.mxu0 %v134
  %v715 = vpop.f32.mrf.mxu0
  %v716 = vadd.f32 0.0, %v715
  %717 = vmatmul.f32.gmra.mxu0 %v137
  %v718 = vpop.f32.mrf.mxu0
  %v719 = vadd.f32 0.0, %v718
  %720 = vmatmul.f32.gmra.mxu0 %v140
  %v721 = vpop.f32.mrf.mxu0
  %v722 = vadd.f32 0.0, %v721
  %723 = vmatmul.f32.gmra.mxu0 %v143
  %v724 = vpop.f32.mrf.mxu0
  %v725 = vadd.f32 0.0, %v724
  %726 = vmatmul.f32.gmra.mxu0 %v146
  %v727 = vpop.f32.mrf.mxu0
  %v728 = vadd.f32 0.0, %v727
  %729 = vmatmul.f32.gmra.mxu0 %v149
  %v730 = vpop.f32.mrf.mxu0
  %v731 = vadd.f32 0.0, %v730
  %732 = vmatmul.f32.gmra.mxu0 %v152
  %v733 = vpop.f32.mrf.mxu0
  %v734 = vadd.f32 0.0, %v733
  %735 = vmatmul.f32.gmra.mxu0 %v155
  %v736 = vpop.f32.mrf.mxu0
  %v737 = vadd.f32 0.0, %v736
  %738 = vmatmul.f32.gmra.mxu0 %v158
  %v739 = vpop.f32.mrf.mxu0
  %v740 = vadd.f32 0.0, %v739
  %741 = vmatmul.f32.gmra.mxu0 %v161
  %v742 = vpop.f32.mrf.mxu0
  %v743 = vadd.f32 0.0, %v742
  %744 = vmatmul.f32.gmra.mxu0 %v164
  %v745 = vpop.f32.mrf.mxu0
  %v746 = vadd.f32 0.0, %v745
  %747 = vmatmul.f32.gmra.mxu0 %v167
  %v748 = vpop.f32.mrf.mxu0
  %v749 = vadd.f32 0.0, %v748
  %750 = vmatmul.f32.gmra.mxu0 %v170
  %v751 = vpop.f32.mrf.mxu0
  %v752 = vadd.f32 0.0, %v751
  %753 = vmatmul.f32.gmra.mxu0 %v173
  %v754 = vpop.f32.mrf.mxu0
  %v755 = vadd.f32 0.0, %v754
  %756 = vmatmul.f32.gmra.mxu0 %v176
  %v757 = vpop.f32.mrf.mxu0
  %v758 = vadd.f32 0.0, %v757
  %759 = vmatmul.f32.gmra.mxu0 %v179
  %v760 = vpop.f32.mrf.mxu0
  %v761 = vadd.f32 0.0, %v760
  %762 = vmatmul.f32.gmra.mxu0 %v182
  %v763 = vpop.f32.mrf.mxu0
  %v764 = vadd.f32 0.0, %v763
  %765 = vmatmul.f32.gmra.mxu0 %v185
  %v766 = vpop.f32.mrf.mxu0
  %v767 = vadd.f32 0.0, %v766
  %768 = vmatmul.f32.gmra.mxu0 %v188
  %v769 = vpop.f32.mrf.mxu0
  %v770 = vadd.f32 0.0, %v769
  %771 = vmatmul.f32.gmra.mxu0 %v191
  %v772 = vpop.f32.mrf.mxu0
  %v773 = vadd.f32 0.0, %v772
  %774 = vdwg.mxu0
  %v776 = vperm.slane %v657, 0
  %v778 = vadd.f32 %v776, %v680
  %v779 = vadd.f32 %v776, %v683
  %v780 = vadd.f32 %v776, %v686
  %v781 = vadd.f32 %v776, %v689
  %v782 = vadd.f32 %v776, %v692
  %v783 = vadd.f32 %v776, %v695
  %v784 = vadd.f32 %v776, %v698
  %v785 = vadd.f32 %v776, %v701
  %v786 = vadd.f32 %v776, %v704
  %v787 = vadd.f32 %v776, %v707
  %v788 = vadd.f32 %v776, %v710
  %v789 = vadd.f32 %v776, %v713
  %v790 = vadd.f32 %v776, %v716
  %v791 = vadd.f32 %v776, %v719
  %v792 = vadd.f32 %v776, %v722
  %v793 = vadd.f32 %v776, %v725
  %v794 = vadd.f32 %v776, %v728
  %v795 = vadd.f32 %v776, %v731
  %v796 = vadd.f32 %v776, %v734
  %v797 = vadd.f32 %v776, %v737
  %v798 = vadd.f32 %v776, %v740
  %v799 = vadd.f32 %v776, %v743
  %v800 = vadd.f32 %v776, %v746
  %v801 = vadd.f32 %v776, %v749
  %v802 = vadd.f32 %v776, %v752
  %v803 = vadd.f32 %v776, %v755
  %v804 = vadd.f32 %v776, %v758
  %v805 = vadd.f32 %v776, %v761
  %v806 = vadd.f32 %v776, %v764
  %v807 = vadd.f32 %v776, %v767
  %v808 = vadd.f32 %v776, %v770
  %v809 = vadd.f32 %v776, %v773
  %s810 = scalar_lea.vmem %s3, 8
  %v811 = vld [vmem:[%s810] sm:$0x1f]
  %v813 = vsel %vm193, %v811, 0
  %815 = vmatpush.msra.mxu0 0.0
  %816 = vmatpush.msra.mxu0 0.0
  %817 = vmatpush.msra.mxu0 0.0
  %818 = vmatpush.msra.mxu0 0.0
  %819 = vmatpush.msra.mxu0 0.0
  %820 = vmatpush.msra.mxu0 0.0
  %821 = vmatpush.msra.mxu0 0.0
  %822 = vmatpush.msra.mxu0 0.0
  %823 = vmatpush.msra.mxu0 0.0
  %824 = vmatpush.msra.mxu0 0.0
  %825 = vmatpush.msra.mxu0 0.0
  %826 = vmatpush.msra.mxu0 0.0
  %827 = vmatpush.msra.mxu0 0.0
  %828 = vmatpush.msra.mxu0 0.0
  %829 = vmatpush.msra.mxu0 0.0
  %830 = vmatpush.msra.mxu0 %v813
  %831 = vmatmul.f32.gmra.mxu0 %v110
  %v832 = vpop.f32.mrf.mxu0
  %v833 = vadd.f32 0.0, %v832
  %834 = vmatmul.f32.gmra.mxu0 %v113
  %v835 = vpop.f32.mrf.mxu0
  %v836 = vadd.f32 0.0, %v835
  %837 = vmatmul.f32.gmra.mxu0 %v116
  %v838 = vpop.f32.mrf.mxu0
  %v839 = vadd.f32 0.0, %v838
  %840 = vmatmul.f32.gmra.mxu0 %v119
  %v841 = vpop.f32.mrf.mxu0
  %v842 = vadd.f32 0.0, %v841
  %843 = vmatmul.f32.gmra.mxu0 %v122
  %v844 = vpop.f32.mrf.mxu0
  %v845 = vadd.f32 0.0, %v844
  %846 = vmatmul.f32.gmra.mxu0 %v125
  %v847 = vpop.f32.mrf.mxu0
  %v848 = vadd.f32 0.0, %v847
  %849 = vmatmul.f32.gmra.mxu0 %v128
  %v850 = vpop.f32.mrf.mxu0
  %v851 = vadd.f32 0.0, %v850
  %852 = vmatmul.f32.gmra.mxu0 %v131
  %v853 = vpop.f32.mrf.mxu0
  %v854 = vadd.f32 0.0, %v853
  %855 = vmatmul.f32.gmra.mxu0 %v134
  %v856 = vpop.f32.mrf.mxu0
  %v857 = vadd.f32 0.0, %v856
  %858 = vmatmul.f32.gmra.mxu0 %v137
  %v859 = vpop.f32.mrf.mxu0
  %v860 = vadd.f32 0.0, %v859
  %861 = vmatmul.f32.gmra.mxu0 %v140
  %v862 = vpop.f32.mrf.mxu0
  %v863 = vadd.f32 0.0, %v862
  %864 = vmatmul.f32.gmra.mxu0 %v143
  %v865 = vpop.f32.mrf.mxu0
  %v866 = vadd.f32 0.0, %v865
  %867 = vmatmul.f32.gmra.mxu0 %v146
  %v868 = vpop.f32.mrf.mxu0
  %v869 = vadd.f32 0.0, %v868
  %870 = vmatmul.f32.gmra.mxu0 %v149
  %v871 = vpop.f32.mrf.mxu0
  %v872 = vadd.f32 0.0, %v871
  %873 = vmatmul.f32.gmra.mxu0 %v152
  %v874 = vpop.f32.mrf.mxu0
  %v875 = vadd.f32 0.0, %v874
  %876 = vmatmul.f32.gmra.mxu0 %v155
  %v877 = vpop.f32.mrf.mxu0
  %v878 = vadd.f32 0.0, %v877
  %879 = vmatmul.f32.gmra.mxu0 %v158
  %v880 = vpop.f32.mrf.mxu0
  %v881 = vadd.f32 0.0, %v880
  %882 = vmatmul.f32.gmra.mxu0 %v161
  %v883 = vpop.f32.mrf.mxu0
  %v884 = vadd.f32 0.0, %v883
  %885 = vmatmul.f32.gmra.mxu0 %v164
  %v886 = vpop.f32.mrf.mxu0
  %v887 = vadd.f32 0.0, %v886
  %888 = vmatmul.f32.gmra.mxu0 %v167
  %v889 = vpop.f32.mrf.mxu0
  %v890 = vadd.f32 0.0, %v889
  %891 = vmatmul.f32.gmra.mxu0 %v170
  %v892 = vpop.f32.mrf.mxu0
  %v893 = vadd.f32 0.0, %v892
  %894 = vmatmul.f32.gmra.mxu0 %v173
  %v895 = vpop.f32.mrf.mxu0
  %v896 = vadd.f32 0.0, %v895
  %897 = vmatmul.f32.gmra.mxu0 %v176
  %v898 = vpop.f32.mrf.mxu0
  %v899 = vadd.f32 0.0, %v898
  %900 = vmatmul.f32.gmra.mxu0 %v179
  %v901 = vpop.f32.mrf.mxu0
  %v902 = vadd.f32 0.0, %v901
  %903 = vmatmul.f32.gmra.mxu0 %v182
  %v904 = vpop.f32.mrf.mxu0
  %v905 = vadd.f32 0.0, %v904
  %906 = vmatmul.f32.gmra.mxu0 %v185
  %v907 = vpop.f32.mrf.mxu0
  %v908 = vadd.f32 0.0, %v907
  %909 = vmatmul.f32.gmra.mxu0 %v188
  %v910 = vpop.f32.mrf.mxu0
  %v911 = vadd.f32 0.0, %v910
  %912 = vmatmul.f32.gmra.mxu0 %v191
  %v913 = vpop.f32.mrf.mxu0
  %v914 = vadd.f32 0.0, %v913
  %915 = vmatmul.f32.gmra.mxu0 %v348
  %v916 = vpop.f32.mrf.mxu0
  %v917 = vadd.f32 0.0, %v916
  %918 = vmatmul.f32.gmra.mxu0 %v351
  %v919 = vpop.f32.mrf.mxu0
  %v920 = vadd.f32 0.0, %v919
  %921 = vmatmul.f32.gmra.mxu0 %v354
  %v922 = vpop.f32.mrf.mxu0
  %v923 = vadd.f32 0.0, %v922
  %924 = vmatmul.f32.gmra.mxu0 %v357
  %v925 = vpop.f32.mrf.mxu0
  %v926 = vadd.f32 0.0, %v925
  %927 = vdwg.mxu0
  %v928 = vadd.f32 %v778, %v833
  %v929 = vadd.f32 %v779, %v836
  %v930 = vadd.f32 %v780, %v839
  %v931 = vadd.f32 %v781, %v842
  %v932 = vadd.f32 %v782, %v845
  %v933 = vadd.f32 %v783, %v848
  %v934 = vadd.f32 %v784, %v851
  %v935 = vadd.f32 %v785, %v854
  %v936 = vadd.f32 %v786, %v857
  %v937 = vadd.f32 %v787, %v860
  %v938 = vadd.f32 %v788, %v863
  %v939 = vadd.f32 %v789, %v866
  %v940 = vadd.f32 %v790, %v869
  %v941 = vadd.f32 %v791, %v872
  %v942 = vadd.f32 %v792, %v875
  %v943 = vadd.f32 %v793, %v878
  %v944 = vadd.f32 %v794, %v881
  %v945 = vadd.f32 %v795, %v884
  %v946 = vadd.f32 %v796, %v887
  %v947 = vadd.f32 %v797, %v890
  %v948 = vadd.f32 %v798, %v893
  %v949 = vadd.f32 %v799, %v896
  %v950 = vadd.f32 %v800, %v899
  %v951 = vadd.f32 %v801, %v902
  %v952 = vadd.f32 %v802, %v905
  %v953 = vadd.f32 %v803, %v908
  %v954 = vadd.f32 %v804, %v911
  %v955 = vadd.f32 %v805, %v914
  %v956 = vadd.f32 %v806, %v917
  %v957 = vadd.f32 %v807, %v920
  %v958 = vadd.f32 %v808, %v923
  %v959 = vadd.f32 %v809, %v926
  %s960 = scalar_lea.vmem %s3, 16
  %v961 = vld [vmem:[%s960] sm:$0x1f]
  %v963 = vsel %vm193, %v961, 0
  %965 = vmatpush.msra.mxu0 0.0
  %966 = vmatpush.msra.mxu0 0.0
  %967 = vmatpush.msra.mxu0 0.0
  %968 = vmatpush.msra.mxu0 0.0
  %969 = vmatpush.msra.mxu0 0.0
  %970 = vmatpush.msra.mxu0 0.0
  %971 = vmatpush.msra.mxu0 0.0
  %972 = vmatpush.msra.mxu0 0.0
  %973 = vmatpush.msra.mxu0 0.0
  %974 = vmatpush.msra.mxu0 0.0
  %975 = vmatpush.msra.mxu0 0.0
  %976 = vmatpush.msra.mxu0 0.0
  %977 = vmatpush.msra.mxu0 0.0
  %978 = vmatpush.msra.mxu0 0.0
  %979 = vmatpush.msra.mxu0 0.0
  %980 = vmatpush.msra.mxu0 %v963
  %981 = vmatmul.f32.gmra.mxu0 %v122
  %v982 = vpop.f32.mrf.mxu0
  %v983 = vadd.f32 0.0, %v982
  %984 = vmatmul.f32.gmra.mxu0 %v125
  %v985 = vpop.f32.mrf.mxu0
  %v986 = vadd.f32 0.0, %v985
  %987 = vmatmul.f32.gmra.mxu0 %v128
  %v988 = vpop.f32.mrf.mxu0
  %v989 = vadd.f32 0.0, %v988
  %990 = vmatmul.f32.gmra.mxu0 %v131
  %v991 = vpop.f32.mrf.mxu0
  %v992 = vadd.f32 0.0, %v991
  %993 = vmatmul.f32.gmra.mxu0 %v134
  %v994 = vpop.f32.mrf.mxu0
  %v995 = vadd.f32 0.0, %v994
  %996 = vmatmul.f32.gmra.mxu0 %v137
  %v997 = vpop.f32.mrf.mxu0
  %v998 = vadd.f32 0.0, %v997
  %999 = vmatmul.f32.gmra.mxu0 %v140
  %v1000 = vpop.f32.mrf.mxu0
  %v1001 = vadd.f32 0.0, %v1000
  %1002 = vmatmul.f32.gmra.mxu0 %v143
  %v1003 = vpop.f32.mrf.mxu0
  %v1004 = vadd.f32 0.0, %v1003
  %1005 = vmatmul.f32.gmra.mxu0 %v146
  %v1006 = vpop.f32.mrf.mxu0
  %v1007 = vadd.f32 0.0, %v1006
  %1008 = vmatmul.f32.gmra.mxu0 %v149
  %v1009 = vpop.f32.mrf.mxu0
  %v1010 = vadd.f32 0.0, %v1009
  %1011 = vmatmul.f32.gmra.mxu0 %v152
  %v1012 = vpop.f32.mrf.mxu0
  %v1013 = vadd.f32 0.0, %v1012
  %1014 = vmatmul.f32.gmra.mxu0 %v155
  %v1015 = vpop.f32.mrf.mxu0
  %v1016 = vadd.f32 0.0, %v1015
  %1017 = vmatmul.f32.gmra.mxu0 %v158
  %v1018 = vpop.f32.mrf.mxu0
  %v1019 = vadd.f32 0.0, %v1018
  %1020 = vmatmul.f32.gmra.mxu0 %v161
  %v1021 = vpop.f32.mrf.mxu0
  %v1022 = vadd.f32 0.0, %v1021
  %1023 = vmatmul.f32.gmra.mxu0 %v164
  %v1024 = vpop.f32.mrf.mxu0
  %v1025 = vadd.f32 0.0, %v1024
  %1026 = vmatmul.f32.gmra.mxu0 %v167
  %v1027 = vpop.f32.mrf.mxu0
  %v1028 = vadd.f32 0.0, %v1027
  %1029 = vmatmul.f32.gmra.mxu0 %v170
  %v1030 = vpop.f32.mrf.mxu0
  %v1031 = vadd.f32 0.0, %v1030
  %1032 = vmatmul.f32.gmra.mxu0 %v173
  %v1033 = vpop.f32.mrf.mxu0
  %v1034 = vadd.f32 0.0, %v1033
  %1035 = vmatmul.f32.gmra.mxu0 %v176
  %v1036 = vpop.f32.mrf.mxu0
  %v1037 = vadd.f32 0.0, %v1036
  %1038 = vmatmul.f32.gmra.mxu0 %v179
  %v1039 = vpop.f32.mrf.mxu0
  %v1040 = vadd.f32 0.0, %v1039
  %1041 = vmatmul.f32.gmra.mxu0 %v182
  %v1042 = vpop.f32.mrf.mxu0
  %v1043 = vadd.f32 0.0, %v1042
  %1044 = vmatmul.f32.gmra.mxu0 %v185
  %v1045 = vpop.f32.mrf.mxu0
  %v1046 = vadd.f32 0.0, %v1045
  %1047 = vmatmul.f32.gmra.mxu0 %v188
  %v1048 = vpop.f32.mrf.mxu0
  %v1049 = vadd.f32 0.0, %v1048
  %1050 = vmatmul.f32.gmra.mxu0 %v191
  %v1051 = vpop.f32.mrf.mxu0
  %v1052 = vadd.f32 0.0, %v1051
  %1053 = vmatmul.f32.gmra.mxu0 %v348
  %v1054 = vpop.f32.mrf.mxu0
  %v1055 = vadd.f32 0.0, %v1054
  %1056 = vmatmul.f32.gmra.mxu0 %v351
  %v1057 = vpop.f32.mrf.mxu0
  %v1058 = vadd.f32 0.0, %v1057
  %1059 = vmatmul.f32.gmra.mxu0 %v354
  %v1060 = vpop.f32.mrf.mxu0
  %v1061 = vadd.f32 0.0, %v1060
  %1062 = vmatmul.f32.gmra.mxu0 %v357
  %v1063 = vpop.f32.mrf.mxu0
  %v1064 = vadd.f32 0.0, %v1063
  %1065 = vmatmul.f32.gmra.mxu0 %v107
  %v1066 = vpop.f32.mrf.mxu0
  %v1067 = vadd.f32 0.0, %v1066
  %1068 = vmatmul.f32.gmra.mxu0 %v107
  %v1069 = vpop.f32.mrf.mxu0
  %v1070 = vadd.f32 0.0, %v1069
  %1071 = vmatmul.f32.gmra.mxu0 %v107
  %v1072 = vpop.f32.mrf.mxu0
  %v1073 = vadd.f32 0.0, %v1072
  %1074 = vmatmul.f32.gmra.mxu0 %v107
  %v1075 = vpop.f32.mrf.mxu0
  %v1076 = vadd.f32 0.0, %v1075
  %1077 = vdwg.mxu0
  %v1078 = vadd.f32 %v928, %v983
  %v1079 = vadd.f32 %v929, %v986
  %v1080 = vadd.f32 %v930, %v989
  %v1081 = vadd.f32 %v931, %v992
  %v1082 = vadd.f32 %v932, %v995
  %v1083 = vadd.f32 %v933, %v998
  %v1084 = vadd.f32 %v934, %v1001
  %v1085 = vadd.f32 %v935, %v1004
  %v1086 = vadd.f32 %v936, %v1007
  %v1087 = vadd.f32 %v937, %v1010
  %v1088 = vadd.f32 %v938, %v1013
  %v1089 = vadd.f32 %v939, %v1016
  %v1090 = vadd.f32 %v940, %v1019
  %v1091 = vadd.f32 %v941, %v1022
  %v1092 = vadd.f32 %v942, %v1025
  %v1093 = vadd.f32 %v943, %v1028
  %v1094 = vadd.f32 %v944, %v1031
  %v1095 = vadd.f32 %v945, %v1034
  %v1096 = vadd.f32 %v946, %v1037
  %v1097 = vadd.f32 %v947, %v1040
  %v1098 = vadd.f32 %v948, %v1043
  %v1099 = vadd.f32 %v949, %v1046
  %v1100 = vadd.f32 %v950, %v1049
  %v1101 = vadd.f32 %v951, %v1052
  %v1102 = vadd.f32 %v952, %v1055
  %v1103 = vadd.f32 %v953, %v1058
  %v1104 = vadd.f32 %v954, %v1061
  %v1105 = vadd.f32 %v955, %v1064
  %v1106 = vadd.f32 %v956, %v1067
  %v1107 = vadd.f32 %v957, %v1070
  %v1108 = vadd.f32 %v958, %v1073
  %v1109 = vadd.f32 %v959, %v1076
  %v1110 = vxor.u32 %v1078, 2147483648
  %v1111 = vxor.u32 %v1079, 2147483648
  %v1112 = vxor.u32 %v1080, 2147483648
  %v1113 = vxor.u32 %v1081, 2147483648
  %v1114 = vxor.u32 %v1082, 2147483648
  %v1115 = vxor.u32 %v1083, 2147483648
  %v1116 = vxor.u32 %v1084, 2147483648
  %v1117 = vxor.u32 %v1085, 2147483648
  %v1118 = vxor.u32 %v1086, 2147483648
  %v1119 = vxor.u32 %v1087, 2147483648
  %v1120 = vxor.u32 %v1088, 2147483648
  %v1121 = vxor.u32 %v1089, 2147483648
  %v1122 = vxor.u32 %v1090, 2147483648
  %v1123 = vxor.u32 %v1091, 2147483648
  %v1124 = vxor.u32 %v1092, 2147483648
  %v1125 = vxor.u32 %v1093, 2147483648
  %v1126 = vxor.u32 %v1094, 2147483648
  %v1127 = vxor.u32 %v1095, 2147483648
  %v1128 = vxor.u32 %v1096, 2147483648
  %v1129 = vxor.u32 %v1097, 2147483648
  %v1130 = vxor.u32 %v1098, 2147483648
  %v1131 = vxor.u32 %v1099, 2147483648
  %v1132 = vxor.u32 %v1100, 2147483648
  %v1133 = vxor.u32 %v1101, 2147483648
  %v1134 = vxor.u32 %v1102, 2147483648
  %v1135 = vxor.u32 %v1103, 2147483648
  %v1136 = vxor.u32 %v1104, 2147483648
  %v1137 = vxor.u32 %v1105, 2147483648
  %v1138 = vxor.u32 %v1106, 2147483648
  %v1139 = vxor.u32 %v1107, 2147483648
  %v1140 = vxor.u32 %v1108, 2147483648
  %v1141 = vxor.u32 %v1109, 2147483648
  %v1142 = vmul.f32 %v1110, 1.442695
  %v1143 = vpow.pop %v1142
  %v1144 = vmul.f32 %v1111, 1.442695
  %v1145 = vpow.pop %v1144
  %v1146 = vmul.f32 %v1112, 1.442695
  %v1147 = vpow.pop %v1146
  %v1148 = vmul.f32 %v1113, 1.442695
  %v1149 = vpow.pop %v1148
  %v1150 = vmul.f32 %v1114, 1.442695
  %v1151 = vpow.pop %v1150
  %v1152 = vmul.f32 %v1115, 1.442695
  %v1153 = vpow.pop %v1152
  %v1154 = vmul.f32 %v1116, 1.442695
  %v1155 = vpow.pop %v1154
  %v1156 = vmul.f32 %v1117, 1.442695
  %v1157 = vpow.pop %v1156
  %v1158 = vmul.f32 %v1118, 1.442695
  %v1159 = vpow.pop %v1158
  %v1160 = vmul.f32 %v1119, 1.442695
  %v1161 = vpow.pop %v1160
  %v1162 = vmul.f32 %v1120, 1.442695
  %v1163 = vpow.pop %v1162
  %v1164 = vmul.f32 %v1121, 1.442695
  %v1165 = vpow.pop %v1164
  %v1166 = vmul.f32 %v1122, 1.442695
  %v1167 = vpow.pop %v1166
  %v1168 = vmul.f32 %v1123, 1.442695
  %v1169 = vpow.pop %v1168
  %v1170 = vmul.f32 %v1124, 1.442695
  %v1171 = vpow.pop %v1170
  %v1172 = vmul.f32 %v1125, 1.442695
  %v1173 = vpow.pop %v1172
  %v1174 = vmul.f32 %v1126, 1.442695
  %v1175 = vpow.pop %v1174
  %v1176 = vmul.f32 %v1127, 1.442695
  %v1177 = vpow.pop %v1176
  %v1178 = vmul.f32 %v1128, 1.442695
  %v1179 = vpow.pop %v1178
  %v1180 = vmul.f32 %v1129, 1.442695
  %v1181 = vpow.pop %v1180
  %v1182 = vmul.f32 %v1130, 1.442695
  %v1183 = vpow.pop %v1182
  %v1184 = vmul.f32 %v1131, 1.442695
  %v1185 = vpow.pop %v1184
  %v1186 = vmul.f32 %v1132, 1.442695
  %v1187 = vpow.pop %v1186
  %v1188 = vmul.f32 %v1133, 1.442695
  %v1189 = vpow.pop %v1188
  %v1190 = vmul.f32 %v1134, 1.442695
  %v1191 = vpow.pop %v1190
  %v1192 = vmul.f32 %v1135, 1.442695
  %v1193 = vpow.pop %v1192
  %v1194 = vmul.f32 %v1136, 1.442695
  %v1195 = vpow.pop %v1194
  %v1196 = vmul.f32 %v1137, 1.442695
  %v1197 = vpow.pop %v1196
  %v1198 = vmul.f32 %v1138, 1.442695
  %v1199 = vpow.pop %v1198
  %v1200 = vmul.f32 %v1139, 1.442695
  %v1201 = vpow.pop %v1200
  %v1202 = vmul.f32 %v1140, 1.442695
  %v1203 = vpow.pop %v1202
  %v1204 = vmul.f32 %v1141, 1.442695
  %v1205 = vpow.pop %v1204
  %v1206 = vadd.f32 %v1143, 1.0
  %v1207 = vadd.f32 %v1145, 1.0
  %v1208 = vadd.f32 %v1147, 1.0
  %v1209 = vadd.f32 %v1149, 1.0
  %v1210 = vadd.f32 %v1151, 1.0
  %v1211 = vadd.f32 %v1153, 1.0
  %v1212 = vadd.f32 %v1155, 1.0
  %v1213 = vadd.f32 %v1157, 1.0
  %v1214 = vadd.f32 %v1159, 1.0
  %v1215 = vadd.f32 %v1161, 1.0
  %v1216 = vadd.f32 %v1163, 1.0
  %v1217 = vadd.f32 %v1165, 1.0
  %v1218 = vadd.f32 %v1167, 1.0
  %v1219 = vadd.f32 %v1169, 1.0
  %v1220 = vadd.f32 %v1171, 1.0
  %v1221 = vadd.f32 %v1173, 1.0
  %v1222 = vadd.f32 %v1175, 1.0
  %v1223 = vadd.f32 %v1177, 1.0
  %v1224 = vadd.f32 %v1179, 1.0
  %v1225 = vadd.f32 %v1181, 1.0
  %v1226 = vadd.f32 %v1183, 1.0
  %v1227 = vadd.f32 %v1185, 1.0
  %v1228 = vadd.f32 %v1187, 1.0
  %v1229 = vadd.f32 %v1189, 1.0
  %v1230 = vadd.f32 %v1191, 1.0
  %v1231 = vadd.f32 %v1193, 1.0
  %v1232 = vadd.f32 %v1195, 1.0
  %v1233 = vadd.f32 %v1197, 1.0
  %v1234 = vadd.f32 %v1199, 1.0
  %v1235 = vadd.f32 %v1201, 1.0
  %v1236 = vadd.f32 %v1203, 1.0
  %v1237 = vadd.f32 %v1205, 1.0
  %v1238 = vrcp.pop %v1206
  %v1239 = vmul.f32 %v1206, %v1238
  %v1240 = vsub.f32 1.0, %v1239
  %v1241 = vmul.f32 %v1238, %v1240
  %v1242 = vadd.f32 %v1238, %v1241
  %vm1243 = vweird.f32 %v1206
  %vm1244 = vweird.f32 %v1238
  %vm1245 = vmor %vm1243, %vm1244
  %v1246 = vsel %vm1245, %v1238, %v1242
  %v1247 = vand.u32 2147483647, %v1206
  %vm1248 = vcmp.eq.f32.partialorder %v1247, 8.507059e+37
  %v1249 = vand.u32 %v1206, 2147483648
  %v1250 = vor.u32 1.1754944e-38, %v1249
  %v1251 = vsel %vm1248, %v1250, %v1246
  %v1252 = vmul.f32 1.0, %v1251
  %v1253 = vrcp.pop %v1207
  %v1254 = vmul.f32 %v1207, %v1253
  %v1255 = vsub.f32 1.0, %v1254
  %v1256 = vmul.f32 %v1253, %v1255
  %v1257 = vadd.f32 %v1253, %v1256
  %vm1258 = vweird.f32 %v1207
  %vm1259 = vweird.f32 %v1253
  %vm1260 = vmor %vm1258, %vm1259
  %v1261 = vsel %vm1260, %v1253, %v1257
  %v1262 = vand.u32 2147483647, %v1207
  %vm1263 = vcmp.eq.f32.partialorder %v1262, 8.507059e+37
  %v1264 = vand.u32 %v1207, 2147483648
  %v1265 = vor.u32 1.1754944e-38, %v1264
  %v1266 = vsel %vm1263, %v1265, %v1261
  %v1267 = vmul.f32 1.0, %v1266
  %v1268 = vrcp.pop %v1208
  %v1269 = vmul.f32 %v1208, %v1268
  %v1270 = vsub.f32 1.0, %v1269
  %v1271 = vmul.f32 %v1268, %v1270
  %v1272 = vadd.f32 %v1268, %v1271
  %vm1273 = vweird.f32 %v1208
  %vm1274 = vweird.f32 %v1268
  %vm1275 = vmor %vm1273, %vm1274
  %v1276 = vsel %vm1275, %v1268, %v1272
  %v1277 = vand.u32 2147483647, %v1208
  %vm1278 = vcmp.eq.f32.partialorder %v1277, 8.507059e+37
  %v1279 = vand.u32 %v1208, 2147483648
  %v1280 = vor.u32 1.1754944e-38, %v1279
  %v1281 = vsel %vm1278, %v1280, %v1276
  %v1282 = vmul.f32 1.0, %v1281
  %v1283 = vrcp.pop %v1209
  %v1284 = vmul.f32 %v1209, %v1283
  %v1285 = vsub.f32 1.0, %v1284
  %v1286 = vmul.f32 %v1283, %v1285
  %v1287 = vadd.f32 %v1283, %v1286
  %vm1288 = vweird.f32 %v1209
  %vm1289 = vweird.f32 %v1283
  %vm1290 = vmor %vm1288, %vm1289
  %v1291 = vsel %vm1290, %v1283, %v1287
  %v1292 = vand.u32 2147483647, %v1209
  %vm1293 = vcmp.eq.f32.partialorder %v1292, 8.507059e+37
  %v1294 = vand.u32 %v1209, 2147483648
  %v1295 = vor.u32 1.1754944e-38, %v1294
  %v1296 = vsel %vm1293, %v1295, %v1291
  %v1297 = vmul.f32 1.0, %v1296
  %v1298 = vrcp.pop %v1210
  %v1299 = vmul.f32 %v1210, %v1298
  %v1300 = vsub.f32 1.0, %v1299
  %v1301 = vmul.f32 %v1298, %v1300
  %v1302 = vadd.f32 %v1298, %v1301
  %vm1303 = vweird.f32 %v1210
  %vm1304 = vweird.f32 %v1298
  %vm1305 = vmor %vm1303, %vm1304
  %v1306 = vsel %vm1305, %v1298, %v1302
  %v1307 = vand.u32 2147483647, %v1210
  %vm1308 = vcmp.eq.f32.partialorder %v1307, 8.507059e+37
  %v1309 = vand.u32 %v1210, 2147483648
  %v1310 = vor.u32 1.1754944e-38, %v1309
  %v1311 = vsel %vm1308, %v1310, %v1306
  %v1312 = vmul.f32 1.0, %v1311
  %v1313 = vrcp.pop %v1211
  %v1314 = vmul.f32 %v1211, %v1313
  %v1315 = vsub.f32 1.0, %v1314
  %v1316 = vmul.f32 %v1313, %v1315
  %v1317 = vadd.f32 %v1313, %v1316
  %vm1318 = vweird.f32 %v1211
  %vm1319 = vweird.f32 %v1313
  %vm1320 = vmor %vm1318, %vm1319
  %v1321 = vsel %vm1320, %v1313, %v1317
  %v1322 = vand.u32 2147483647, %v1211
  %vm1323 = vcmp.eq.f32.partialorder %v1322, 8.507059e+37
  %v1324 = vand.u32 %v1211, 2147483648
  %v1325 = vor.u32 1.1754944e-38, %v1324
  %v1326 = vsel %vm1323, %v1325, %v1321
  %v1327 = vmul.f32 1.0, %v1326
  %v1328 = vrcp.pop %v1212
  %v1329 = vmul.f32 %v1212, %v1328
  %v1330 = vsub.f32 1.0, %v1329
  %v1331 = vmul.f32 %v1328, %v1330
  %v1332 = vadd.f32 %v1328, %v1331
  %vm1333 = vweird.f32 %v1212
  %vm1334 = vweird.f32 %v1328
  %vm1335 = vmor %vm1333, %vm1334
  %v1336 = vsel %vm1335, %v1328, %v1332
  %v1337 = vand.u32 2147483647, %v1212
  %vm1338 = vcmp.eq.f32.partialorder %v1337, 8.507059e+37
  %v1339 = vand.u32 %v1212, 2147483648
  %v1340 = vor.u32 1.1754944e-38, %v1339
  %v1341 = vsel %vm1338, %v1340, %v1336
  %v1342 = vmul.f32 1.0, %v1341
  %v1343 = vrcp.pop %v1213
  %v1344 = vmul.f32 %v1213, %v1343
  %v1345 = vsub.f32 1.0, %v1344
  %v1346 = vmul.f32 %v1343, %v1345
  %v1347 = vadd.f32 %v1343, %v1346
  %vm1348 = vweird.f32 %v1213
  %vm1349 = vweird.f32 %v1343
  %vm1350 = vmor %vm1348, %vm1349
  %v1351 = vsel %vm1350, %v1343, %v1347
  %v1352 = vand.u32 2147483647, %v1213
  %vm1353 = vcmp.eq.f32.partialorder %v1352, 8.507059e+37
  %v1354 = vand.u32 %v1213, 2147483648
  %v1355 = vor.u32 1.1754944e-38, %v1354
  %v1356 = vsel %vm1353, %v1355, %v1351
  %v1357 = vmul.f32 1.0, %v1356
  %v1358 = vrcp.pop %v1214
  %v1359 = vmul.f32 %v1214, %v1358
  %v1360 = vsub.f32 1.0, %v1359
  %v1361 = vmul.f32 %v1358, %v1360
  %v1362 = vadd.f32 %v1358, %v1361
  %vm1363 = vweird.f32 %v1214
  %vm1364 = vweird.f32 %v1358
  %vm1365 = vmor %vm1363, %vm1364
  %v1366 = vsel %vm1365, %v1358, %v1362
  %v1367 = vand.u32 2147483647, %v1214
  %vm1368 = vcmp.eq.f32.partialorder %v1367, 8.507059e+37
  %v1369 = vand.u32 %v1214, 2147483648
  %v1370 = vor.u32 1.1754944e-38, %v1369
  %v1371 = vsel %vm1368, %v1370, %v1366
  %v1372 = vmul.f32 1.0, %v1371
  %v1373 = vrcp.pop %v1215
  %v1374 = vmul.f32 %v1215, %v1373
  %v1375 = vsub.f32 1.0, %v1374
  %v1376 = vmul.f32 %v1373, %v1375
  %v1377 = vadd.f32 %v1373, %v1376
  %vm1378 = vweird.f32 %v1215
  %vm1379 = vweird.f32 %v1373
  %vm1380 = vmor %vm1378, %vm1379
  %v1381 = vsel %vm1380, %v1373, %v1377
  %v1382 = vand.u32 2147483647, %v1215
  %vm1383 = vcmp.eq.f32.partialorder %v1382, 8.507059e+37
  %v1384 = vand.u32 %v1215, 2147483648
  %v1385 = vor.u32 1.1754944e-38, %v1384
  %v1386 = vsel %vm1383, %v1385, %v1381
  %v1387 = vmul.f32 1.0, %v1386
  %v1388 = vrcp.pop %v1216
  %v1389 = vmul.f32 %v1216, %v1388
  %v1390 = vsub.f32 1.0, %v1389
  %v1391 = vmul.f32 %v1388, %v1390
  %v1392 = vadd.f32 %v1388, %v1391
  %vm1393 = vweird.f32 %v1216
  %vm1394 = vweird.f32 %v1388
  %vm1395 = vmor %vm1393, %vm1394
  %v1396 = vsel %vm1395, %v1388, %v1392
  %v1397 = vand.u32 2147483647, %v1216
  %vm1398 = vcmp.eq.f32.partialorder %v1397, 8.507059e+37
  %v1399 = vand.u32 %v1216, 2147483648
  %v1400 = vor.u32 1.1754944e-38, %v1399
  %v1401 = vsel %vm1398, %v1400, %v1396
  %v1402 = vmul.f32 1.0, %v1401
  %v1403 = vrcp.pop %v1217
  %v1404 = vmul.f32 %v1217, %v1403
  %v1405 = vsub.f32 1.0, %v1404
  %v1406 = vmul.f32 %v1403, %v1405
  %v1407 = vadd.f32 %v1403, %v1406
  %vm1408 = vweird.f32 %v1217
  %vm1409 = vweird.f32 %v1403
  %vm1410 = vmor %vm1408, %vm1409
  %v1411 = vsel %vm1410, %v1403, %v1407
  %v1412 = vand.u32 2147483647, %v1217
  %vm1413 = vcmp.eq.f32.partialorder %v1412, 8.507059e+37
  %v1414 = vand.u32 %v1217, 2147483648
  %v1415 = vor.u32 1.1754944e-38, %v1414
  %v1416 = vsel %vm1413, %v1415, %v1411
  %v1417 = vmul.f32 1.0, %v1416
  %v1418 = vrcp.pop %v1218
  %v1419 = vmul.f32 %v1218, %v1418
  %v1420 = vsub.f32 1.0, %v1419
  %v1421 = vmul.f32 %v1418, %v1420
  %v1422 = vadd.f32 %v1418, %v1421
  %vm1423 = vweird.f32 %v1218
  %vm1424 = vweird.f32 %v1418
  %vm1425 = vmor %vm1423, %vm1424
  %v1426 = vsel %vm1425, %v1418, %v1422
  %v1427 = vand.u32 2147483647, %v1218
  %vm1428 = vcmp.eq.f32.partialorder %v1427, 8.507059e+37
  %v1429 = vand.u32 %v1218, 2147483648
  %v1430 = vor.u32 1.1754944e-38, %v1429
  %v1431 = vsel %vm1428, %v1430, %v1426
  %v1432 = vmul.f32 1.0, %v1431
  %v1433 = vrcp.pop %v1219
  %v1434 = vmul.f32 %v1219, %v1433
  %v1435 = vsub.f32 1.0, %v1434
  %v1436 = vmul.f32 %v1433, %v1435
  %v1437 = vadd.f32 %v1433, %v1436
  %vm1438 = vweird.f32 %v1219
  %vm1439 = vweird.f32 %v1433
  %vm1440 = vmor %vm1438, %vm1439
  %v1441 = vsel %vm1440, %v1433, %v1437
  %v1442 = vand.u32 2147483647, %v1219
  %vm1443 = vcmp.eq.f32.partialorder %v1442, 8.507059e+37
  %v1444 = vand.u32 %v1219, 2147483648
  %v1445 = vor.u32 1.1754944e-38, %v1444
  %v1446 = vsel %vm1443, %v1445, %v1441
  %v1447 = vmul.f32 1.0, %v1446
  %v1448 = vrcp.pop %v1220
  %v1449 = vmul.f32 %v1220, %v1448
  %v1450 = vsub.f32 1.0, %v1449
  %v1451 = vmul.f32 %v1448, %v1450
  %v1452 = vadd.f32 %v1448, %v1451
  %vm1453 = vweird.f32 %v1220
  %vm1454 = vweird.f32 %v1448
  %vm1455 = vmor %vm1453, %vm1454
  %v1456 = vsel %vm1455, %v1448, %v1452
  %v1457 = vand.u32 2147483647, %v1220
  %vm1458 = vcmp.eq.f32.partialorder %v1457, 8.507059e+37
  %v1459 = vand.u32 %v1220, 2147483648
  %v1460 = vor.u32 1.1754944e-38, %v1459
  %v1461 = vsel %vm1458, %v1460, %v1456
  %v1462 = vmul.f32 1.0, %v1461
  %v1463 = vrcp.pop %v1221
  %v1464 = vmul.f32 %v1221, %v1463
  %v1465 = vsub.f32 1.0, %v1464
  %v1466 = vmul.f32 %v1463, %v1465
  %v1467 = vadd.f32 %v1463, %v1466
  %vm1468 = vweird.f32 %v1221
  %vm1469 = vweird.f32 %v1463
  %vm1470 = vmor %vm1468, %vm1469
  %v1471 = vsel %vm1470, %v1463, %v1467
  %v1472 = vand.u32 2147483647, %v1221
  %vm1473 = vcmp.eq.f32.partialorder %v1472, 8.507059e+37
  %v1474 = vand.u32 %v1221, 2147483648
  %v1475 = vor.u32 1.1754944e-38, %v1474
  %v1476 = vsel %vm1473, %v1475, %v1471
  %v1477 = vmul.f32 1.0, %v1476
  %v1478 = vrcp.pop %v1222
  %v1479 = vmul.f32 %v1222, %v1478
  %v1480 = vsub.f32 1.0, %v1479
  %v1481 = vmul.f32 %v1478, %v1480
  %v1482 = vadd.f32 %v1478, %v1481
  %vm1483 = vweird.f32 %v1222
  %vm1484 = vweird.f32 %v1478
  %vm1485 = vmor %vm1483, %vm1484
  %v1486 = vsel %vm1485, %v1478, %v1482
  %v1487 = vand.u32 2147483647, %v1222
  %vm1488 = vcmp.eq.f32.partialorder %v1487, 8.507059e+37
  %v1489 = vand.u32 %v1222, 2147483648
  %v1490 = vor.u32 1.1754944e-38, %v1489
  %v1491 = vsel %vm1488, %v1490, %v1486
  %v1492 = vmul.f32 1.0, %v1491
  %v1493 = vrcp.pop %v1223
  %v1494 = vmul.f32 %v1223, %v1493
  %v1495 = vsub.f32 1.0, %v1494
  %v1496 = vmul.f32 %v1493, %v1495
  %v1497 = vadd.f32 %v1493, %v1496
  %vm1498 = vweird.f32 %v1223
  %vm1499 = vweird.f32 %v1493
  %vm1500 = vmor %vm1498, %vm1499
  %v1501 = vsel %vm1500, %v1493, %v1497
  %v1502 = vand.u32 2147483647, %v1223
  %vm1503 = vcmp.eq.f32.partialorder %v1502, 8.507059e+37
  %v1504 = vand.u32 %v1223, 2147483648
  %v1505 = vor.u32 1.1754944e-38, %v1504
  %v1506 = vsel %vm1503, %v1505, %v1501
  %v1507 = vmul.f32 1.0, %v1506
  %v1508 = vrcp.pop %v1224
  %v1509 = vmul.f32 %v1224, %v1508
  %v1510 = vsub.f32 1.0, %v1509
  %v1511 = vmul.f32 %v1508, %v1510
  %v1512 = vadd.f32 %v1508, %v1511
  %vm1513 = vweird.f32 %v1224
  %vm1514 = vweird.f32 %v1508
  %vm1515 = vmor %vm1513, %vm1514
  %v1516 = vsel %vm1515, %v1508, %v1512
  %v1517 = vand.u32 2147483647, %v1224
  %vm1518 = vcmp.eq.f32.partialorder %v1517, 8.507059e+37
  %v1519 = vand.u32 %v1224, 2147483648
  %v1520 = vor.u32 1.1754944e-38, %v1519
  %v1521 = vsel %vm1518, %v1520, %v1516
  %v1522 = vmul.f32 1.0, %v1521
  %v1523 = vrcp.pop %v1225
  %v1524 = vmul.f32 %v1225, %v1523
  %v1525 = vsub.f32 1.0, %v1524
  %v1526 = vmul.f32 %v1523, %v1525
  %v1527 = vadd.f32 %v1523, %v1526
  %vm1528 = vweird.f32 %v1225
  %vm1529 = vweird.f32 %v1523
  %vm1530 = vmor %vm1528, %vm1529
  %v1531 = vsel %vm1530, %v1523, %v1527
  %v1532 = vand.u32 2147483647, %v1225
  %vm1533 = vcmp.eq.f32.partialorder %v1532, 8.507059e+37
  %v1534 = vand.u32 %v1225, 2147483648
  %v1535 = vor.u32 1.1754944e-38, %v1534
  %v1536 = vsel %vm1533, %v1535, %v1531
  %v1537 = vmul.f32 1.0, %v1536
  %v1538 = vrcp.pop %v1226
  %v1539 = vmul.f32 %v1226, %v1538
  %v1540 = vsub.f32 1.0, %v1539
  %v1541 = vmul.f32 %v1538, %v1540
  %v1542 = vadd.f32 %v1538, %v1541
  %vm1543 = vweird.f32 %v1226
  %vm1544 = vweird.f32 %v1538
  %vm1545 = vmor %vm1543, %vm1544
  %v1546 = vsel %vm1545, %v1538, %v1542
  %v1547 = vand.u32 2147483647, %v1226
  %vm1548 = vcmp.eq.f32.partialorder %v1547, 8.507059e+37
  %v1549 = vand.u32 %v1226, 2147483648
  %v1550 = vor.u32 1.1754944e-38, %v1549
  %v1551 = vsel %vm1548, %v1550, %v1546
  %v1552 = vmul.f32 1.0, %v1551
  %v1553 = vrcp.pop %v1227
  %v1554 = vmul.f32 %v1227, %v1553
  %v1555 = vsub.f32 1.0, %v1554
  %v1556 = vmul.f32 %v1553, %v1555
  %v1557 = vadd.f32 %v1553, %v1556
  %vm1558 = vweird.f32 %v1227
  %vm1559 = vweird.f32 %v1553
  %vm1560 = vmor %vm1558, %vm1559
  %v1561 = vsel %vm1560, %v1553, %v1557
  %v1562 = vand.u32 2147483647, %v1227
  %vm1563 = vcmp.eq.f32.partialorder %v1562, 8.507059e+37
  %v1564 = vand.u32 %v1227, 2147483648
  %v1565 = vor.u32 1.1754944e-38, %v1564
  %v1566 = vsel %vm1563, %v1565, %v1561
  %v1567 = vmul.f32 1.0, %v1566
  %v1568 = vrcp.pop %v1228
  %v1569 = vmul.f32 %v1228, %v1568
  %v1570 = vsub.f32 1.0, %v1569
  %v1571 = vmul.f32 %v1568, %v1570
  %v1572 = vadd.f32 %v1568, %v1571
  %vm1573 = vweird.f32 %v1228
  %vm1574 = vweird.f32 %v1568
  %vm1575 = vmor %vm1573, %vm1574
  %v1576 = vsel %vm1575, %v1568, %v1572
  %v1577 = vand.u32 2147483647, %v1228
  %vm1578 = vcmp.eq.f32.partialorder %v1577, 8.507059e+37
  %v1579 = vand.u32 %v1228, 2147483648
  %v1580 = vor.u32 1.1754944e-38, %v1579
  %v1581 = vsel %vm1578, %v1580, %v1576
  %v1582 = vmul.f32 1.0, %v1581
  %v1583 = vrcp.pop %v1229
  %v1584 = vmul.f32 %v1229, %v1583
  %v1585 = vsub.f32 1.0, %v1584
  %v1586 = vmul.f32 %v1583, %v1585
  %v1587 = vadd.f32 %v1583, %v1586
  %vm1588 = vweird.f32 %v1229
  %vm1589 = vweird.f32 %v1583
  %vm1590 = vmor %vm1588, %vm1589
  %v1591 = vsel %vm1590, %v1583, %v1587
  %v1592 = vand.u32 2147483647, %v1229
  %vm1593 = vcmp.eq.f32.partialorder %v1592, 8.507059e+37
  %v1594 = vand.u32 %v1229, 2147483648
  %v1595 = vor.u32 1.1754944e-38, %v1594
  %v1596 = vsel %vm1593, %v1595, %v1591
  %v1597 = vmul.f32 1.0, %v1596
  %v1598 = vrcp.pop %v1230
  %v1599 = vmul.f32 %v1230, %v1598
  %v1600 = vsub.f32 1.0, %v1599
  %v1601 = vmul.f32 %v1598, %v1600
  %v1602 = vadd.f32 %v1598, %v1601
  %vm1603 = vweird.f32 %v1230
  %vm1604 = vweird.f32 %v1598
  %vm1605 = vmor %vm1603, %vm1604
  %v1606 = vsel %vm1605, %v1598, %v1602
  %v1607 = vand.u32 2147483647, %v1230
  %vm1608 = vcmp.eq.f32.partialorder %v1607, 8.507059e+37
  %v1609 = vand.u32 %v1230, 2147483648
  %v1610 = vor.u32 1.1754944e-38, %v1609
  %v1611 = vsel %vm1608, %v1610, %v1606
  %v1612 = vmul.f32 1.0, %v1611
  %v1613 = vrcp.pop %v1231
  %v1614 = vmul.f32 %v1231, %v1613
  %v1615 = vsub.f32 1.0, %v1614
  %v1616 = vmul.f32 %v1613, %v1615
  %v1617 = vadd.f32 %v1613, %v1616
  %vm1618 = vweird.f32 %v1231
  %vm1619 = vweird.f32 %v1613
  %vm1620 = vmor %vm1618, %vm1619
  %v1621 = vsel %vm1620, %v1613, %v1617
  %v1622 = vand.u32 2147483647, %v1231
  %vm1623 = vcmp.eq.f32.partialorder %v1622, 8.507059e+37
  %v1624 = vand.u32 %v1231, 2147483648
  %v1625 = vor.u32 1.1754944e-38, %v1624
  %v1626 = vsel %vm1623, %v1625, %v1621
  %v1627 = vmul.f32 1.0, %v1626
  %v1628 = vrcp.pop %v1232
  %v1629 = vmul.f32 %v1232, %v1628
  %v1630 = vsub.f32 1.0, %v1629
  %v1631 = vmul.f32 %v1628, %v1630
  %v1632 = vadd.f32 %v1628, %v1631
  %vm1633 = vweird.f32 %v1232
  %vm1634 = vweird.f32 %v1628
  %vm1635 = vmor %vm1633, %vm1634
  %v1636 = vsel %vm1635, %v1628, %v1632
  %v1637 = vand.u32 2147483647, %v1232
  %vm1638 = vcmp.eq.f32.partialorder %v1637, 8.507059e+37
  %v1639 = vand.u32 %v1232, 2147483648
  %v1640 = vor.u32 1.1754944e-38, %v1639
  %v1641 = vsel %vm1638, %v1640, %v1636
  %v1642 = vmul.f32 1.0, %v1641
  %v1643 = vrcp.pop %v1233
  %v1644 = vmul.f32 %v1233, %v1643
  %v1645 = vsub.f32 1.0, %v1644
  %v1646 = vmul.f32 %v1643, %v1645
  %v1647 = vadd.f32 %v1643, %v1646
  %vm1648 = vweird.f32 %v1233
  %vm1649 = vweird.f32 %v1643
  %vm1650 = vmor %vm1648, %vm1649
  %v1651 = vsel %vm1650, %v1643, %v1647
  %v1652 = vand.u32 2147483647, %v1233
  %vm1653 = vcmp.eq.f32.partialorder %v1652, 8.507059e+37
  %v1654 = vand.u32 %v1233, 2147483648
  %v1655 = vor.u32 1.1754944e-38, %v1654
  %v1656 = vsel %vm1653, %v1655, %v1651
  %v1657 = vmul.f32 1.0, %v1656
  %v1658 = vrcp.pop %v1234
  %v1659 = vmul.f32 %v1234, %v1658
  %v1660 = vsub.f32 1.0, %v1659
  %v1661 = vmul.f32 %v1658, %v1660
  %v1662 = vadd.f32 %v1658, %v1661
  %vm1663 = vweird.f32 %v1234
  %vm1664 = vweird.f32 %v1658
  %vm1665 = vmor %vm1663, %vm1664
  %v1666 = vsel %vm1665, %v1658, %v1662
  %v1667 = vand.u32 2147483647, %v1234
  %vm1668 = vcmp.eq.f32.partialorder %v1667, 8.507059e+37
  %v1669 = vand.u32 %v1234, 2147483648
  %v1670 = vor.u32 1.1754944e-38, %v1669
  %v1671 = vsel %vm1668, %v1670, %v1666
  %v1672 = vmul.f32 1.0, %v1671
  %v1673 = vrcp.pop %v1235
  %v1674 = vmul.f32 %v1235, %v1673
  %v1675 = vsub.f32 1.0, %v1674
  %v1676 = vmul.f32 %v1673, %v1675
  %v1677 = vadd.f32 %v1673, %v1676
  %vm1678 = vweird.f32 %v1235
  %vm1679 = vweird.f32 %v1673
  %vm1680 = vmor %vm1678, %vm1679
  %v1681 = vsel %vm1680, %v1673, %v1677
  %v1682 = vand.u32 2147483647, %v1235
  %vm1683 = vcmp.eq.f32.partialorder %v1682, 8.507059e+37
  %v1684 = vand.u32 %v1235, 2147483648
  %v1685 = vor.u32 1.1754944e-38, %v1684
  %v1686 = vsel %vm1683, %v1685, %v1681
  %v1687 = vmul.f32 1.0, %v1686
  %v1688 = vrcp.pop %v1236
  %v1689 = vmul.f32 %v1236, %v1688
  %v1690 = vsub.f32 1.0, %v1689
  %v1691 = vmul.f32 %v1688, %v1690
  %v1692 = vadd.f32 %v1688, %v1691
  %vm1693 = vweird.f32 %v1236
  %vm1694 = vweird.f32 %v1688
  %vm1695 = vmor %vm1693, %vm1694
  %v1696 = vsel %vm1695, %v1688, %v1692
  %v1697 = vand.u32 2147483647, %v1236
  %vm1698 = vcmp.eq.f32.partialorder %v1697, 8.507059e+37
  %v1699 = vand.u32 %v1236, 2147483648
  %v1700 = vor.u32 1.1754944e-38, %v1699
  %v1701 = vsel %vm1698, %v1700, %v1696
  %v1702 = vmul.f32 1.0, %v1701
  %v1703 = vrcp.pop %v1237
  %v1704 = vmul.f32 %v1237, %v1703
  %v1705 = vsub.f32 1.0, %v1704
  %v1706 = vmul.f32 %v1703, %v1705
  %v1707 = vadd.f32 %v1703, %v1706
  %vm1708 = vweird.f32 %v1237
  %vm1709 = vweird.f32 %v1703
  %vm1710 = vmor %vm1708, %vm1709
  %v1711 = vsel %vm1710, %v1703, %v1707
  %v1712 = vand.u32 2147483647, %v1237
  %vm1713 = vcmp.eq.f32.partialorder %v1712, 8.507059e+37
  %v1714 = vand.u32 %v1237, 2147483648
  %v1715 = vor.u32 1.1754944e-38, %v1714
  %v1716 = vsel %vm1713, %v1715, %v1711
  %v1717 = vmul.f32 1.0, %v1716
  %v1718 = vmul.f32 %v1252, %v625
  %v1719 = vmul.f32 %v1267, %v626
  %v1720 = vmul.f32 %v1282, %v627
  %v1721 = vmul.f32 %v1297, %v628
  %v1722 = vmul.f32 %v1312, %v629
  %v1723 = vmul.f32 %v1327, %v630
  %v1724 = vmul.f32 %v1342, %v631
  %v1725 = vmul.f32 %v1357, %v632
  %v1726 = vmul.f32 %v1372, %v633
  %v1727 = vmul.f32 %v1387, %v634
  %v1728 = vmul.f32 %v1402, %v635
  %v1729 = vmul.f32 %v1417, %v636
  %v1730 = vmul.f32 %v1432, %v637
  %v1731 = vmul.f32 %v1447, %v638
  %v1732 = vmul.f32 %v1462, %v639
  %v1733 = vmul.f32 %v1477, %v640
  %v1734 = vmul.f32 %v1492, %v641
  %v1735 = vmul.f32 %v1507, %v642
  %v1736 = vmul.f32 %v1522, %v643
  %v1737 = vmul.f32 %v1537, %v644
  %v1738 = vmul.f32 %v1552, %v645
  %v1739 = vmul.f32 %v1567, %v646
  %v1740 = vmul.f32 %v1582, %v647
  %v1741 = vmul.f32 %v1597, %v648
  %v1742 = vmul.f32 %v1612, %v649
  %v1743 = vmul.f32 %v1627, %v650
  %v1744 = vmul.f32 %v1642, %v651
  %v1745 = vmul.f32 %v1657, %v652
  %v1746 = vmul.f32 %v1672, %v653
  %v1747 = vmul.f32 %v1687, %v654
  %v1748 = vmul.f32 %v1702, %v655
  %v1749 = vmul.f32 %v1717, %v656
  %v1750 = vld [vmem:[%s6] sm:$0x1]
  %v1751 = vld [vmem:[%s5] sm:$0x1f]
  %v1753 = vsel %vm193, %v1751, 0
  %1755 = vmatpush.msra.mxu0 0.0
  %1756 = vmatpush.msra.mxu0 0.0
  %1757 = vmatpush.msra.mxu0 0.0
  %1758 = vmatpush.msra.mxu0 0.0
  %1759 = vmatpush.msra.mxu0 0.0
  %1760 = vmatpush.msra.mxu0 0.0
  %1761 = vmatpush.msra.mxu0 0.0
  %1762 = vmatpush.msra.mxu0 0.0
  %1763 = vmatpush.msra.mxu0 0.0
  %1764 = vmatpush.msra.mxu0 0.0
  %1765 = vmatpush.msra.mxu0 0.0
  %1766 = vmatpush.msra.mxu0 0.0
  %1767 = vmatpush.msra.mxu0 0.0
  %1768 = vmatpush.msra.mxu0 0.0
  %1769 = vmatpush.msra.mxu0 0.0
  %1770 = vmatpush.msra.mxu0 %v1753
  %1771 = vmatmul.f32.gmra.mxu0 %v107
  %v1772 = vpop.f32.mrf.mxu0
  %v1773 = vadd.f32 0.0, %v1772
  %1774 = vmatmul.f32.gmra.mxu0 %v107
  %v1775 = vpop.f32.mrf.mxu0
  %v1776 = vadd.f32 0.0, %v1775
  %1777 = vmatmul.f32.gmra.mxu0 %v107
  %v1778 = vpop.f32.mrf.mxu0
  %v1779 = vadd.f32 0.0, %v1778
  %1780 = vmatmul.f32.gmra.mxu0 %v107
  %v1781 = vpop.f32.mrf.mxu0
  %v1782 = vadd.f32 0.0, %v1781
  %1783 = vmatmul.f32.gmra.mxu0 %v110
  %v1784 = vpop.f32.mrf.mxu0
  %v1785 = vadd.f32 0.0, %v1784
  %1786 = vmatmul.f32.gmra.mxu0 %v113
  %v1787 = vpop.f32.mrf.mxu0
  %v1788 = vadd.f32 0.0, %v1787
  %1789 = vmatmul.f32.gmra.mxu0 %v116
  %v1790 = vpop.f32.mrf.mxu0
  %v1791 = vadd.f32 0.0, %v1790
  %1792 = vmatmul.f32.gmra.mxu0 %v119
  %v1793 = vpop.f32.mrf.mxu0
  %v1794 = vadd.f32 0.0, %v1793
  %1795 = vmatmul.f32.gmra.mxu0 %v122
  %v1796 = vpop.f32.mrf.mxu0
  %v1797 = vadd.f32 0.0, %v1796
  %1798 = vmatmul.f32.gmra.mxu0 %v125
  %v1799 = vpop.f32.mrf.mxu0
  %v1800 = vadd.f32 0.0, %v1799
  %1801 = vmatmul.f32.gmra.mxu0 %v128
  %v1802 = vpop.f32.mrf.mxu0
  %v1803 = vadd.f32 0.0, %v1802
  %1804 = vmatmul.f32.gmra.mxu0 %v131
  %v1805 = vpop.f32.mrf.mxu0
  %v1806 = vadd.f32 0.0, %v1805
  %1807 = vmatmul.f32.gmra.mxu0 %v134
  %v1808 = vpop.f32.mrf.mxu0
  %v1809 = vadd.f32 0.0, %v1808
  %1810 = vmatmul.f32.gmra.mxu0 %v137
  %v1811 = vpop.f32.mrf.mxu0
  %v1812 = vadd.f32 0.0, %v1811
  %1813 = vmatmul.f32.gmra.mxu0 %v140
  %v1814 = vpop.f32.mrf.mxu0
  %v1815 = vadd.f32 0.0, %v1814
  %1816 = vmatmul.f32.gmra.mxu0 %v143
  %v1817 = vpop.f32.mrf.mxu0
  %v1818 = vadd.f32 0.0, %v1817
  %1819 = vmatmul.f32.gmra.mxu0 %v146
  %v1820 = vpop.f32.mrf.mxu0
  %v1821 = vadd.f32 0.0, %v1820
  %1822 = vmatmul.f32.gmra.mxu0 %v149
  %v1823 = vpop.f32.mrf.mxu0
  %v1824 = vadd.f32 0.0, %v1823
  %1825 = vmatmul.f32.gmra.mxu0 %v152
  %v1826 = vpop.f32.mrf.mxu0
  %v1827 = vadd.f32 0.0, %v1826
  %1828 = vmatmul.f32.gmra.mxu0 %v155
  %v1829 = vpop.f32.mrf.mxu0
  %v1830 = vadd.f32 0.0, %v1829
  %1831 = vmatmul.f32.gmra.mxu0 %v158
  %v1832 = vpop.f32.mrf.mxu0
  %v1833 = vadd.f32 0.0, %v1832
  %1834 = vmatmul.f32.gmra.mxu0 %v161
  %v1835 = vpop.f32.mrf.mxu0
  %v1836 = vadd.f32 0.0, %v1835
  %1837 = vmatmul.f32.gmra.mxu0 %v164
  %v1838 = vpop.f32.mrf.mxu0
  %v1839 = vadd.f32 0.0, %v1838
  %1840 = vmatmul.f32.gmra.mxu0 %v167
  %v1841 = vpop.f32.mrf.mxu0
  %v1842 = vadd.f32 0.0, %v1841
  %1843 = vmatmul.f32.gmra.mxu0 %v170
  %v1844 = vpop.f32.mrf.mxu0
  %v1845 = vadd.f32 0.0, %v1844
  %1846 = vmatmul.f32.gmra.mxu0 %v173
  %v1847 = vpop.f32.mrf.mxu0
  %v1848 = vadd.f32 0.0, %v1847
  %1849 = vmatmul.f32.gmra.mxu0 %v176
  %v1850 = vpop.f32.mrf.mxu0
  %v1851 = vadd.f32 0.0, %v1850
  %1852 = vmatmul.f32.gmra.mxu0 %v179
  %v1853 = vpop.f32.mrf.mxu0
  %v1854 = vadd.f32 0.0, %v1853
  %1855 = vmatmul.f32.gmra.mxu0 %v182
  %v1856 = vpop.f32.mrf.mxu0
  %v1857 = vadd.f32 0.0, %v1856
  %1858 = vmatmul.f32.gmra.mxu0 %v185
  %v1859 = vpop.f32.mrf.mxu0
  %v1860 = vadd.f32 0.0, %v1859
  %1861 = vmatmul.f32.gmra.mxu0 %v188
  %v1862 = vpop.f32.mrf.mxu0
  %v1863 = vadd.f32 0.0, %v1862
  %1864 = vmatmul.f32.gmra.mxu0 %v191
  %v1865 = vpop.f32.mrf.mxu0
  %v1866 = vadd.f32 0.0, %v1865
  %1867 = vdwg.mxu0
  %v1869 = vperm.slane %v1750, 0
  %v1871 = vadd.f32 %v1869, %v1773
  %v1872 = vadd.f32 %v1869, %v1776
  %v1873 = vadd.f32 %v1869, %v1779
  %v1874 = vadd.f32 %v1869, %v1782
  %v1875 = vadd.f32 %v1869, %v1785
  %v1876 = vadd.f32 %v1869, %v1788
  %v1877 = vadd.f32 %v1869, %v1791
  %v1878 = vadd.f32 %v1869, %v1794
  %v1879 = vadd.f32 %v1869, %v1797
  %v1880 = vadd.f32 %v1869, %v1800
  %v1881 = vadd.f32 %v1869, %v1803
  %v1882 = vadd.f32 %v1869, %v1806
  %v1883 = vadd.f32 %v1869, %v1809
  %v1884 = vadd.f32 %v1869, %v1812
  %v1885 = vadd.f32 %v1869, %v1815
  %v1886 = vadd.f32 %v1869, %v1818
  %v1887 = vadd.f32 %v1869, %v1821
  %v1888 = vadd.f32 %v1869, %v1824
  %v1889 = vadd.f32 %v1869, %v1827
  %v1890 = vadd.f32 %v1869, %v1830
  %v1891 = vadd.f32 %v1869, %v1833
  %v1892 = vadd.f32 %v1869, %v1836
  %v1893 = vadd.f32 %v1869, %v1839
  %v1894 = vadd.f32 %v1869, %v1842
  %v1895 = vadd.f32 %v1869, %v1845
  %v1896 = vadd.f32 %v1869, %v1848
  %v1897 = vadd.f32 %v1869, %v1851
  %v1898 = vadd.f32 %v1869, %v1854
  %v1899 = vadd.f32 %v1869, %v1857
  %v1900 = vadd.f32 %v1869, %v1860
  %v1901 = vadd.f32 %v1869, %v1863
  %v1902 = vadd.f32 %v1869, %v1866
  %s1903 = scalar_lea.vmem %s5, 8
  %v1904 = vld [vmem:[%s1903] sm:$0x1f]
  %v1906 = vsel %vm193, %v1904, 0
  %1908 = vmatpush.msra.mxu0 0.0
  %1909 = vmatpush.msra.mxu0 0.0
  %1910 = vmatpush.msra.mxu0 0.0
  %1911 = vmatpush.msra.mxu0 0.0
  %1912 = vmatpush.msra.mxu0 0.0
  %1913 = vmatpush.msra.mxu0 0.0
  %1914 = vmatpush.msra.mxu0 0.0
  %1915 = vmatpush.msra.mxu0 0.0
  %1916 = vmatpush.msra.mxu0 0.0
  %1917 = vmatpush.msra.mxu0 0.0
  %1918 = vmatpush.msra.mxu0 0.0
  %1919 = vmatpush.msra.mxu0 0.0
  %1920 = vmatpush.msra.mxu0 0.0
  %1921 = vmatpush.msra.mxu0 0.0
  %1922 = vmatpush.msra.mxu0 0.0
  %1923 = vmatpush.msra.mxu0 %v1906
  %1924 = vmatmul.f32.gmra.mxu0 %v110
  %v1925 = vpop.f32.mrf.mxu0
  %v1926 = vadd.f32 0.0, %v1925
  %1927 = vmatmul.f32.gmra.mxu0 %v113
  %v1928 = vpop.f32.mrf.mxu0
  %v1929 = vadd.f32 0.0, %v1928
  %1930 = vmatmul.f32.gmra.mxu0 %v116
  %v1931 = vpop.f32.mrf.mxu0
  %v1932 = vadd.f32 0.0, %v1931
  %1933 = vmatmul.f32.gmra.mxu0 %v119
  %v1934 = vpop.f32.mrf.mxu0
  %v1935 = vadd.f32 0.0, %v1934
  %1936 = vmatmul.f32.gmra.mxu0 %v122
  %v1937 = vpop.f32.mrf.mxu0
  %v1938 = vadd.f32 0.0, %v1937
  %1939 = vmatmul.f32.gmra.mxu0 %v125
  %v1940 = vpop.f32.mrf.mxu0
  %v1941 = vadd.f32 0.0, %v1940
  %1942 = vmatmul.f32.gmra.mxu0 %v128
  %v1943 = vpop.f32.mrf.mxu0
  %v1944 = vadd.f32 0.0, %v1943
  %1945 = vmatmul.f32.gmra.mxu0 %v131
  %v1946 = vpop.f32.mrf.mxu0
  %v1947 = vadd.f32 0.0, %v1946
  %1948 = vmatmul.f32.gmra.mxu0 %v134
  %v1949 = vpop.f32.mrf.mxu0
  %v1950 = vadd.f32 0.0, %v1949
  %1951 = vmatmul.f32.gmra.mxu0 %v137
  %v1952 = vpop.f32.mrf.mxu0
  %v1953 = vadd.f32 0.0, %v1952
  %1954 = vmatmul.f32.gmra.mxu0 %v140
  %v1955 = vpop.f32.mrf.mxu0
  %v1956 = vadd.f32 0.0, %v1955
  %1957 = vmatmul.f32.gmra.mxu0 %v143
  %v1958 = vpop.f32.mrf.mxu0
  %v1959 = vadd.f32 0.0, %v1958
  %1960 = vmatmul.f32.gmra.mxu0 %v146
  %v1961 = vpop.f32.mrf.mxu0
  %v1962 = vadd.f32 0.0, %v1961
  %1963 = vmatmul.f32.gmra.mxu0 %v149
  %v1964 = vpop.f32.mrf.mxu0
  %v1965 = vadd.f32 0.0, %v1964
  %1966 = vmatmul.f32.gmra.mxu0 %v152
  %v1967 = vpop.f32.mrf.mxu0
  %v1968 = vadd.f32 0.0, %v1967
  %1969 = vmatmul.f32.gmra.mxu0 %v155
  %v1970 = vpop.f32.mrf.mxu0
  %v1971 = vadd.f32 0.0, %v1970
  %1972 = vmatmul.f32.gmra.mxu0 %v158
  %v1973 = vpop.f32.mrf.mxu0
  %v1974 = vadd.f32 0.0, %v1973
  %1975 = vmatmul.f32.gmra.mxu0 %v161
  %v1976 = vpop.f32.mrf.mxu0
  %v1977 = vadd.f32 0.0, %v1976
  %1978 = vmatmul.f32.gmra.mxu0 %v164
  %v1979 = vpop.f32.mrf.mxu0
  %v1980 = vadd.f32 0.0, %v1979
  %1981 = vmatmul.f32.gmra.mxu0 %v167
  %v1982 = vpop.f32.mrf.mxu0
  %v1983 = vadd.f32 0.0, %v1982
  %1984 = vmatmul.f32.gmra.mxu0 %v170
  %v1985 = vpop.f32.mrf.mxu0
  %v1986 = vadd.f32 0.0, %v1985
  %1987 = vmatmul.f32.gmra.mxu0 %v173
  %v1988 = vpop.f32.mrf.mxu0
  %v1989 = vadd.f32 0.0, %v1988
  %1990 = vmatmul.f32.gmra.mxu0 %v176
  %v1991 = vpop.f32.mrf.mxu0
  %v1992 = vadd.f32 0.0, %v1991
  %1993 = vmatmul.f32.gmra.mxu0 %v179
  %v1994 = vpop.f32.mrf.mxu0
  %v1995 = vadd.f32 0.0, %v1994
  %1996 = vmatmul.f32.gmra.mxu0 %v182
  %v1997 = vpop.f32.mrf.mxu0
  %v1998 = vadd.f32 0.0, %v1997
  %1999 = vmatmul.f32.gmra.mxu0 %v185
  %v2000 = vpop.f32.mrf.mxu0
  %v2001 = vadd.f32 0.0, %v2000
  %2002 = vmatmul.f32.gmra.mxu0 %v188
  %v2003 = vpop.f32.mrf.mxu0
  %v2004 = vadd.f32 0.0, %v2003
  %2005 = vmatmul.f32.gmra.mxu0 %v191
  %v2006 = vpop.f32.mrf.mxu0
  %v2007 = vadd.f32 0.0, %v2006
  %2008 = vmatmul.f32.gmra.mxu0 %v348
  %v2009 = vpop.f32.mrf.mxu0
  %v2010 = vadd.f32 0.0, %v2009
  %2011 = vmatmul.f32.gmra.mxu0 %v351
  %v2012 = vpop.f32.mrf.mxu0
  %v2013 = vadd.f32 0.0, %v2012
  %2014 = vmatmul.f32.gmra.mxu0 %v354
  %v2015 = vpop.f32.mrf.mxu0
  %v2016 = vadd.f32 0.0, %v2015
  %2017 = vmatmul.f32.gmra.mxu0 %v357
  %v2018 = vpop.f32.mrf.mxu0
  %v2019 = vadd.f32 0.0, %v2018
  %2020 = vdwg.mxu0
  %v2021 = vadd.f32 %v1871, %v1926
  %v2022 = vadd.f32 %v1872, %v1929
  %v2023 = vadd.f32 %v1873, %v1932
  %v2024 = vadd.f32 %v1874, %v1935
  %v2025 = vadd.f32 %v1875, %v1938
  %v2026 = vadd.f32 %v1876, %v1941
  %v2027 = vadd.f32 %v1877, %v1944
  %v2028 = vadd.f32 %v1878, %v1947
  %v2029 = vadd.f32 %v1879, %v1950
  %v2030 = vadd.f32 %v1880, %v1953
  %v2031 = vadd.f32 %v1881, %v1956
  %v2032 = vadd.f32 %v1882, %v1959
  %v2033 = vadd.f32 %v1883, %v1962
  %v2034 = vadd.f32 %v1884, %v1965
  %v2035 = vadd.f32 %v1885, %v1968
  %v2036 = vadd.f32 %v1886, %v1971
  %v2037 = vadd.f32 %v1887, %v1974
  %v2038 = vadd.f32 %v1888, %v1977
  %v2039 = vadd.f32 %v1889, %v1980
  %v2040 = vadd.f32 %v1890, %v1983
  %v2041 = vadd.f32 %v1891, %v1986
  %v2042 = vadd.f32 %v1892, %v1989
  %v2043 = vadd.f32 %v1893, %v1992
  %v2044 = vadd.f32 %v1894, %v1995
  %v2045 = vadd.f32 %v1895, %v1998
  %v2046 = vadd.f32 %v1896, %v2001
  %v2047 = vadd.f32 %v1897, %v2004
  %v2048 = vadd.f32 %v1898, %v2007
  %v2049 = vadd.f32 %v1899, %v2010
  %v2050 = vadd.f32 %v1900, %v2013
  %v2051 = vadd.f32 %v1901, %v2016
  %v2052 = vadd.f32 %v1902, %v2019
  %s2053 = scalar_lea.vmem %s5, 16
  %v2054 = vld [vmem:[%s2053] sm:$0x1f]
  %v2056 = vsel %vm193, %v2054, 0
  %2058 = vmatpush.msra.mxu0 0.0
  %2059 = vmatpush.msra.mxu0 0.0
  %2060 = vmatpush.msra.mxu0 0.0
  %2061 = vmatpush.msra.mxu0 0.0
  %2062 = vmatpush.msra.mxu0 0.0
  %2063 = vmatpush.msra.mxu0 0.0
  %2064 = vmatpush.msra.mxu0 0.0
  %2065 = vmatpush.msra.mxu0 0.0
  %2066 = vmatpush.msra.mxu0 0.0
  %2067 = vmatpush.msra.mxu0 0.0
  %2068 = vmatpush.msra.mxu0 0.0
  %2069 = vmatpush.msra.mxu0 0.0
  %2070 = vmatpush.msra.mxu0 0.0
  %2071 = vmatpush.msra.mxu0 0.0
  %2072 = vmatpush.msra.mxu0 0.0
  %2073 = vmatpush.msra.mxu0 %v2056
  %2074 = vmatmul.f32.gmra.mxu0 %v122
  %v2075 = vpop.f32.mrf.mxu0
  %v2076 = vadd.f32 0.0, %v2075
  %2077 = vmatmul.f32.gmra.mxu0 %v125
  %v2078 = vpop.f32.mrf.mxu0
  %v2079 = vadd.f32 0.0, %v2078
  %2080 = vmatmul.f32.gmra.mxu0 %v128
  %v2081 = vpop.f32.mrf.mxu0
  %v2082 = vadd.f32 0.0, %v2081
  %2083 = vmatmul.f32.gmra.mxu0 %v131
  %v2084 = vpop.f32.mrf.mxu0
  %v2085 = vadd.f32 0.0, %v2084
  %2086 = vmatmul.f32.gmra.mxu0 %v134
  %v2087 = vpop.f32.mrf.mxu0
  %v2088 = vadd.f32 0.0, %v2087
  %2089 = vmatmul.f32.gmra.mxu0 %v137
  %v2090 = vpop.f32.mrf.mxu0
  %v2091 = vadd.f32 0.0, %v2090
  %2092 = vmatmul.f32.gmra.mxu0 %v140
  %v2093 = vpop.f32.mrf.mxu0
  %v2094 = vadd.f32 0.0, %v2093
  %2095 = vmatmul.f32.gmra.mxu0 %v143
  %v2096 = vpop.f32.mrf.mxu0
  %v2097 = vadd.f32 0.0, %v2096
  %2098 = vmatmul.f32.gmra.mxu0 %v146
  %v2099 = vpop.f32.mrf.mxu0
  %v2100 = vadd.f32 0.0, %v2099
  %2101 = vmatmul.f32.gmra.mxu0 %v149
  %v2102 = vpop.f32.mrf.mxu0
  %v2103 = vadd.f32 0.0, %v2102
  %2104 = vmatmul.f32.gmra.mxu0 %v152
  %v2105 = vpop.f32.mrf.mxu0
  %v2106 = vadd.f32 0.0, %v2105
  %2107 = vmatmul.f32.gmra.mxu0 %v155
  %v2108 = vpop.f32.mrf.mxu0
  %v2109 = vadd.f32 0.0, %v2108
  %2110 = vmatmul.f32.gmra.mxu0 %v158
  %v2111 = vpop.f32.mrf.mxu0
  %v2112 = vadd.f32 0.0, %v2111
  %2113 = vmatmul.f32.gmra.mxu0 %v161
  %v2114 = vpop.f32.mrf.mxu0
  %v2115 = vadd.f32 0.0, %v2114
  %2116 = vmatmul.f32.gmra.mxu0 %v164
  %v2117 = vpop.f32.mrf.mxu0
  %v2118 = vadd.f32 0.0, %v2117
  %2119 = vmatmul.f32.gmra.mxu0 %v167
  %v2120 = vpop.f32.mrf.mxu0
  %v2121 = vadd.f32 0.0, %v2120
  %2122 = vmatmul.f32.gmra.mxu0 %v170
  %v2123 = vpop.f32.mrf.mxu0
  %v2124 = vadd.f32 0.0, %v2123
  %2125 = vmatmul.f32.gmra.mxu0 %v173
  %v2126 = vpop.f32.mrf.mxu0
  %v2127 = vadd.f32 0.0, %v2126
  %2128 = vmatmul.f32.gmra.mxu0 %v176
  %v2129 = vpop.f32.mrf.mxu0
  %v2130 = vadd.f32 0.0, %v2129
  %2131 = vmatmul.f32.gmra.mxu0 %v179
  %v2132 = vpop.f32.mrf.mxu0
  %v2133 = vadd.f32 0.0, %v2132
  %2134 = vmatmul.f32.gmra.mxu0 %v182
  %v2135 = vpop.f32.mrf.mxu0
  %v2136 = vadd.f32 0.0, %v2135
  %2137 = vmatmul.f32.gmra.mxu0 %v185
  %v2138 = vpop.f32.mrf.mxu0
  %v2139 = vadd.f32 0.0, %v2138
  %2140 = vmatmul.f32.gmra.mxu0 %v188
  %v2141 = vpop.f32.mrf.mxu0
  %v2142 = vadd.f32 0.0, %v2141
  %2143 = vmatmul.f32.gmra.mxu0 %v191
  %v2144 = vpop.f32.mrf.mxu0
  %v2145 = vadd.f32 0.0, %v2144
  %2146 = vmatmul.f32.gmra.mxu0 %v348
  %v2147 = vpop.f32.mrf.mxu0
  %v2148 = vadd.f32 0.0, %v2147
  %2149 = vmatmul.f32.gmra.mxu0 %v351
  %v2150 = vpop.f32.mrf.mxu0
  %v2151 = vadd.f32 0.0, %v2150
  %2152 = vmatmul.f32.gmra.mxu0 %v354
  %v2153 = vpop.f32.mrf.mxu0
  %v2154 = vadd.f32 0.0, %v2153
  %2155 = vmatmul.f32.gmra.mxu0 %v357
  %v2156 = vpop.f32.mrf.mxu0
  %v2157 = vadd.f32 0.0, %v2156
  %2158 = vmatmul.f32.gmra.mxu0 %v107
  %v2159 = vpop.f32.mrf.mxu0
  %v2160 = vadd.f32 0.0, %v2159
  %2161 = vmatmul.f32.gmra.mxu0 %v107
  %v2162 = vpop.f32.mrf.mxu0
  %v2163 = vadd.f32 0.0, %v2162
  %2164 = vmatmul.f32.gmra.mxu0 %v107
  %v2165 = vpop.f32.mrf.mxu0
  %v2166 = vadd.f32 0.0, %v2165
  %2167 = vmatmul.f32.gmra.mxu0 %v107
  %v2168 = vpop.f32.mrf.mxu0
  %v2169 = vadd.f32 0.0, %v2168
  %2170 = vdwg.mxu0
  %v2171 = vadd.f32 %v2021, %v2076
  %v2172 = vadd.f32 %v2022, %v2079
  %v2173 = vadd.f32 %v2023, %v2082
  %v2174 = vadd.f32 %v2024, %v2085
  %v2175 = vadd.f32 %v2025, %v2088
  %v2176 = vadd.f32 %v2026, %v2091
  %v2177 = vadd.f32 %v2027, %v2094
  %v2178 = vadd.f32 %v2028, %v2097
  %v2179 = vadd.f32 %v2029, %v2100
  %v2180 = vadd.f32 %v2030, %v2103
  %v2181 = vadd.f32 %v2031, %v2106
  %v2182 = vadd.f32 %v2032, %v2109
  %v2183 = vadd.f32 %v2033, %v2112
  %v2184 = vadd.f32 %v2034, %v2115
  %v2185 = vadd.f32 %v2035, %v2118
  %v2186 = vadd.f32 %v2036, %v2121
  %v2187 = vadd.f32 %v2037, %v2124
  %v2188 = vadd.f32 %v2038, %v2127
  %v2189 = vadd.f32 %v2039, %v2130
  %v2190 = vadd.f32 %v2040, %v2133
  %v2191 = vadd.f32 %v2041, %v2136
  %v2192 = vadd.f32 %v2042, %v2139
  %v2193 = vadd.f32 %v2043, %v2142
  %v2194 = vadd.f32 %v2044, %v2145
  %v2195 = vadd.f32 %v2045, %v2148
  %v2196 = vadd.f32 %v2046, %v2151
  %v2197 = vadd.f32 %v2047, %v2154
  %v2198 = vadd.f32 %v2048, %v2157
  %v2199 = vadd.f32 %v2049, %v2160
  %v2200 = vadd.f32 %v2050, %v2163
  %v2201 = vadd.f32 %v2051, %v2166
  %v2202 = vadd.f32 %v2052, %v2169
  %v2203 = vxor.u32 %v2171, 2147483648
  %v2204 = vxor.u32 %v2172, 2147483648
  %v2205 = vxor.u32 %v2173, 2147483648
  %v2206 = vxor.u32 %v2174, 2147483648
  %v2207 = vxor.u32 %v2175, 2147483648
  %v2208 = vxor.u32 %v2176, 2147483648
  %v2209 = vxor.u32 %v2177, 2147483648
  %v2210 = vxor.u32 %v2178, 2147483648
  %v2211 = vxor.u32 %v2179, 2147483648
  %v2212 = vxor.u32 %v2180, 2147483648
  %v2213 = vxor.u32 %v2181, 2147483648
  %v2214 = vxor.u32 %v2182, 2147483648
  %v2215 = vxor.u32 %v2183, 2147483648
  %v2216 = vxor.u32 %v2184, 2147483648
  %v2217 = vxor.u32 %v2185, 2147483648
  %v2218 = vxor.u32 %v2186, 2147483648
  %v2219 = vxor.u32 %v2187, 2147483648
  %v2220 = vxor.u32 %v2188, 2147483648
  %v2221 = vxor.u32 %v2189, 2147483648
  %v2222 = vxor.u32 %v2190, 2147483648
  %v2223 = vxor.u32 %v2191, 2147483648
  %v2224 = vxor.u32 %v2192, 2147483648
  %v2225 = vxor.u32 %v2193, 2147483648
  %v2226 = vxor.u32 %v2194, 2147483648
  %v2227 = vxor.u32 %v2195, 2147483648
  %v2228 = vxor.u32 %v2196, 2147483648
  %v2229 = vxor.u32 %v2197, 2147483648
  %v2230 = vxor.u32 %v2198, 2147483648
  %v2231 = vxor.u32 %v2199, 2147483648
  %v2232 = vxor.u32 %v2200, 2147483648
  %v2233 = vxor.u32 %v2201, 2147483648
  %v2234 = vxor.u32 %v2202, 2147483648
  %v2235 = vmul.f32 %v2203, 1.442695
  %v2236 = vpow.pop %v2235
  %v2237 = vmul.f32 %v2204, 1.442695
  %v2238 = vpow.pop %v2237
  %v2239 = vmul.f32 %v2205, 1.442695
  %v2240 = vpow.pop %v2239
  %v2241 = vmul.f32 %v2206, 1.442695
  %v2242 = vpow.pop %v2241
  %v2243 = vmul.f32 %v2207, 1.442695
  %v2244 = vpow.pop %v2243
  %v2245 = vmul.f32 %v2208, 1.442695
  %v2246 = vpow.pop %v2245
  %v2247 = vmul.f32 %v2209, 1.442695
  %v2248 = vpow.pop %v2247
  %v2249 = vmul.f32 %v2210, 1.442695
  %v2250 = vpow.pop %v2249
  %v2251 = vmul.f32 %v2211, 1.442695
  %v2252 = vpow.pop %v2251
  %v2253 = vmul.f32 %v2212, 1.442695
  %v2254 = vpow.pop %v2253
  %v2255 = vmul.f32 %v2213, 1.442695
  %v2256 = vpow.pop %v2255
  %v2257 = vmul.f32 %v2214, 1.442695
  %v2258 = vpow.pop %v2257
  %v2259 = vmul.f32 %v2215, 1.442695
  %v2260 = vpow.pop %v2259
  %v2261 = vmul.f32 %v2216, 1.442695
  %v2262 = vpow.pop %v2261
  %v2263 = vmul.f32 %v2217, 1.442695
  %v2264 = vpow.pop %v2263
  %v2265 = vmul.f32 %v2218, 1.442695
  %v2266 = vpow.pop %v2265
  %v2267 = vmul.f32 %v2219, 1.442695
  %v2268 = vpow.pop %v2267
  %v2269 = vmul.f32 %v2220, 1.442695
  %v2270 = vpow.pop %v2269
  %v2271 = vmul.f32 %v2221, 1.442695
  %v2272 = vpow.pop %v2271
  %v2273 = vmul.f32 %v2222, 1.442695
  %v2274 = vpow.pop %v2273
  %v2275 = vmul.f32 %v2223, 1.442695
  %v2276 = vpow.pop %v2275
  %v2277 = vmul.f32 %v2224, 1.442695
  %v2278 = vpow.pop %v2277
  %v2279 = vmul.f32 %v2225, 1.442695
  %v2280 = vpow.pop %v2279
  %v2281 = vmul.f32 %v2226, 1.442695
  %v2282 = vpow.pop %v2281
  %v2283 = vmul.f32 %v2227, 1.442695
  %v2284 = vpow.pop %v2283
  %v2285 = vmul.f32 %v2228, 1.442695
  %v2286 = vpow.pop %v2285
  %v2287 = vmul.f32 %v2229, 1.442695
  %v2288 = vpow.pop %v2287
  %v2289 = vmul.f32 %v2230, 1.442695
  %v2290 = vpow.pop %v2289
  %v2291 = vmul.f32 %v2231, 1.442695
  %v2292 = vpow.pop %v2291
  %v2293 = vmul.f32 %v2232, 1.442695
  %v2294 = vpow.pop %v2293
  %v2295 = vmul.f32 %v2233, 1.442695
  %v2296 = vpow.pop %v2295
  %v2297 = vmul.f32 %v2234, 1.442695
  %v2298 = vpow.pop %v2297
  %v2299 = vadd.f32 %v2236, 1.0
  %v2300 = vadd.f32 %v2238, 1.0
  %v2301 = vadd.f32 %v2240, 1.0
  %v2302 = vadd.f32 %v2242, 1.0
  %v2303 = vadd.f32 %v2244, 1.0
  %v2304 = vadd.f32 %v2246, 1.0
  %v2305 = vadd.f32 %v2248, 1.0
  %v2306 = vadd.f32 %v2250, 1.0
  %v2307 = vadd.f32 %v2252, 1.0
  %v2308 = vadd.f32 %v2254, 1.0
  %v2309 = vadd.f32 %v2256, 1.0
  %v2310 = vadd.f32 %v2258, 1.0
  %v2311 = vadd.f32 %v2260, 1.0
  %v2312 = vadd.f32 %v2262, 1.0
  %v2313 = vadd.f32 %v2264, 1.0
  %v2314 = vadd.f32 %v2266, 1.0
  %v2315 = vadd.f32 %v2268, 1.0
  %v2316 = vadd.f32 %v2270, 1.0
  %v2317 = vadd.f32 %v2272, 1.0
  %v2318 = vadd.f32 %v2274, 1.0
  %v2319 = vadd.f32 %v2276, 1.0
  %v2320 = vadd.f32 %v2278, 1.0
  %v2321 = vadd.f32 %v2280, 1.0
  %v2322 = vadd.f32 %v2282, 1.0
  %v2323 = vadd.f32 %v2284, 1.0
  %v2324 = vadd.f32 %v2286, 1.0
  %v2325 = vadd.f32 %v2288, 1.0
  %v2326 = vadd.f32 %v2290, 1.0
  %v2327 = vadd.f32 %v2292, 1.0
  %v2328 = vadd.f32 %v2294, 1.0
  %v2329 = vadd.f32 %v2296, 1.0
  %v2330 = vadd.f32 %v2298, 1.0
  %v2331 = vrcp.pop %v2299
  %v2332 = vmul.f32 %v2299, %v2331
  %v2333 = vsub.f32 1.0, %v2332
  %v2334 = vmul.f32 %v2331, %v2333
  %v2335 = vadd.f32 %v2331, %v2334
  %vm2336 = vweird.f32 %v2299
  %vm2337 = vweird.f32 %v2331
  %vm2338 = vmor %vm2336, %vm2337
  %v2339 = vsel %vm2338, %v2331, %v2335
  %v2340 = vand.u32 2147483647, %v2299
  %vm2341 = vcmp.eq.f32.partialorder %v2340, 8.507059e+37
  %v2342 = vand.u32 %v2299, 2147483648
  %v2343 = vor.u32 1.1754944e-38, %v2342
  %v2344 = vsel %vm2341, %v2343, %v2339
  %v2345 = vmul.f32 1.0, %v2344
  %v2346 = vrcp.pop %v2300
  %v2347 = vmul.f32 %v2300, %v2346
  %v2348 = vsub.f32 1.0, %v2347
  %v2349 = vmul.f32 %v2346, %v2348
  %v2350 = vadd.f32 %v2346, %v2349
  %vm2351 = vweird.f32 %v2300
  %vm2352 = vweird.f32 %v2346
  %vm2353 = vmor %vm2351, %vm2352
  %v2354 = vsel %vm2353, %v2346, %v2350
  %v2355 = vand.u32 2147483647, %v2300
  %vm2356 = vcmp.eq.f32.partialorder %v2355, 8.507059e+37
  %v2357 = vand.u32 %v2300, 2147483648
  %v2358 = vor.u32 1.1754944e-38, %v2357
  %v2359 = vsel %vm2356, %v2358, %v2354
  %v2360 = vmul.f32 1.0, %v2359
  %v2361 = vrcp.pop %v2301
  %v2362 = vmul.f32 %v2301, %v2361
  %v2363 = vsub.f32 1.0, %v2362
  %v2364 = vmul.f32 %v2361, %v2363
  %v2365 = vadd.f32 %v2361, %v2364
  %vm2366 = vweird.f32 %v2301
  %vm2367 = vweird.f32 %v2361
  %vm2368 = vmor %vm2366, %vm2367
  %v2369 = vsel %vm2368, %v2361, %v2365
  %v2370 = vand.u32 2147483647, %v2301
  %vm2371 = vcmp.eq.f32.partialorder %v2370, 8.507059e+37
  %v2372 = vand.u32 %v2301, 2147483648
  %v2373 = vor.u32 1.1754944e-38, %v2372
  %v2374 = vsel %vm2371, %v2373, %v2369
  %v2375 = vmul.f32 1.0, %v2374
  %v2376 = vrcp.pop %v2302
  %v2377 = vmul.f32 %v2302, %v2376
  %v2378 = vsub.f32 1.0, %v2377
  %v2379 = vmul.f32 %v2376, %v2378
  %v2380 = vadd.f32 %v2376, %v2379
  %vm2381 = vweird.f32 %v2302
  %vm2382 = vweird.f32 %v2376
  %vm2383 = vmor %vm2381, %vm2382
  %v2384 = vsel %vm2383, %v2376, %v2380
  %v2385 = vand.u32 2147483647, %v2302
  %vm2386 = vcmp.eq.f32.partialorder %v2385, 8.507059e+37
  %v2387 = vand.u32 %v2302, 2147483648
  %v2388 = vor.u32 1.1754944e-38, %v2387
  %v2389 = vsel %vm2386, %v2388, %v2384
  %v2390 = vmul.f32 1.0, %v2389
  %v2391 = vrcp.pop %v2303
  %v2392 = vmul.f32 %v2303, %v2391
  %v2393 = vsub.f32 1.0, %v2392
  %v2394 = vmul.f32 %v2391, %v2393
  %v2395 = vadd.f32 %v2391, %v2394
  %vm2396 = vweird.f32 %v2303
  %vm2397 = vweird.f32 %v2391
  %vm2398 = vmor %vm2396, %vm2397
  %v2399 = vsel %vm2398, %v2391, %v2395
  %v2400 = vand.u32 2147483647, %v2303
  %vm2401 = vcmp.eq.f32.partialorder %v2400, 8.507059e+37
  %v2402 = vand.u32 %v2303, 2147483648
  %v2403 = vor.u32 1.1754944e-38, %v2402
  %v2404 = vsel %vm2401, %v2403, %v2399
  %v2405 = vmul.f32 1.0, %v2404
  %v2406 = vrcp.pop %v2304
  %v2407 = vmul.f32 %v2304, %v2406
  %v2408 = vsub.f32 1.0, %v2407
  %v2409 = vmul.f32 %v2406, %v2408
  %v2410 = vadd.f32 %v2406, %v2409
  %vm2411 = vweird.f32 %v2304
  %vm2412 = vweird.f32 %v2406
  %vm2413 = vmor %vm2411, %vm2412
  %v2414 = vsel %vm2413, %v2406, %v2410
  %v2415 = vand.u32 2147483647, %v2304
  %vm2416 = vcmp.eq.f32.partialorder %v2415, 8.507059e+37
  %v2417 = vand.u32 %v2304, 2147483648
  %v2418 = vor.u32 1.1754944e-38, %v2417
  %v2419 = vsel %vm2416, %v2418, %v2414
  %v2420 = vmul.f32 1.0, %v2419
  %v2421 = vrcp.pop %v2305
  %v2422 = vmul.f32 %v2305, %v2421
  %v2423 = vsub.f32 1.0, %v2422
  %v2424 = vmul.f32 %v2421, %v2423
  %v2425 = vadd.f32 %v2421, %v2424
  %vm2426 = vweird.f32 %v2305
  %vm2427 = vweird.f32 %v2421
  %vm2428 = vmor %vm2426, %vm2427
  %v2429 = vsel %vm2428, %v2421, %v2425
  %v2430 = vand.u32 2147483647, %v2305
  %vm2431 = vcmp.eq.f32.partialorder %v2430, 8.507059e+37
  %v2432 = vand.u32 %v2305, 2147483648
  %v2433 = vor.u32 1.1754944e-38, %v2432
  %v2434 = vsel %vm2431, %v2433, %v2429
  %v2435 = vmul.f32 1.0, %v2434
  %v2436 = vrcp.pop %v2306
  %v2437 = vmul.f32 %v2306, %v2436
  %v2438 = vsub.f32 1.0, %v2437
  %v2439 = vmul.f32 %v2436, %v2438
  %v2440 = vadd.f32 %v2436, %v2439
  %vm2441 = vweird.f32 %v2306
  %vm2442 = vweird.f32 %v2436
  %vm2443 = vmor %vm2441, %vm2442
  %v2444 = vsel %vm2443, %v2436, %v2440
  %v2445 = vand.u32 2147483647, %v2306
  %vm2446 = vcmp.eq.f32.partialorder %v2445, 8.507059e+37
  %v2447 = vand.u32 %v2306, 2147483648
  %v2448 = vor.u32 1.1754944e-38, %v2447
  %v2449 = vsel %vm2446, %v2448, %v2444
  %v2450 = vmul.f32 1.0, %v2449
  %v2451 = vrcp.pop %v2307
  %v2452 = vmul.f32 %v2307, %v2451
  %v2453 = vsub.f32 1.0, %v2452
  %v2454 = vmul.f32 %v2451, %v2453
  %v2455 = vadd.f32 %v2451, %v2454
  %vm2456 = vweird.f32 %v2307
  %vm2457 = vweird.f32 %v2451
  %vm2458 = vmor %vm2456, %vm2457
  %v2459 = vsel %vm2458, %v2451, %v2455
  %v2460 = vand.u32 2147483647, %v2307
  %vm2461 = vcmp.eq.f32.partialorder %v2460, 8.507059e+37
  %v2462 = vand.u32 %v2307, 2147483648
  %v2463 = vor.u32 1.1754944e-38, %v2462
  %v2464 = vsel %vm2461, %v2463, %v2459
  %v2465 = vmul.f32 1.0, %v2464
  %v2466 = vrcp.pop %v2308
  %v2467 = vmul.f32 %v2308, %v2466
  %v2468 = vsub.f32 1.0, %v2467
  %v2469 = vmul.f32 %v2466, %v2468
  %v2470 = vadd.f32 %v2466, %v2469
  %vm2471 = vweird.f32 %v2308
  %vm2472 = vweird.f32 %v2466
  %vm2473 = vmor %vm2471, %vm2472
  %v2474 = vsel %vm2473, %v2466, %v2470
  %v2475 = vand.u32 2147483647, %v2308
  %vm2476 = vcmp.eq.f32.partialorder %v2475, 8.507059e+37
  %v2477 = vand.u32 %v2308, 2147483648
  %v2478 = vor.u32 1.1754944e-38, %v2477
  %v2479 = vsel %vm2476, %v2478, %v2474
  %v2480 = vmul.f32 1.0, %v2479
  %v2481 = vrcp.pop %v2309
  %v2482 = vmul.f32 %v2309, %v2481
  %v2483 = vsub.f32 1.0, %v2482
  %v2484 = vmul.f32 %v2481, %v2483
  %v2485 = vadd.f32 %v2481, %v2484
  %vm2486 = vweird.f32 %v2309
  %vm2487 = vweird.f32 %v2481
  %vm2488 = vmor %vm2486, %vm2487
  %v2489 = vsel %vm2488, %v2481, %v2485
  %v2490 = vand.u32 2147483647, %v2309
  %vm2491 = vcmp.eq.f32.partialorder %v2490, 8.507059e+37
  %v2492 = vand.u32 %v2309, 2147483648
  %v2493 = vor.u32 1.1754944e-38, %v2492
  %v2494 = vsel %vm2491, %v2493, %v2489
  %v2495 = vmul.f32 1.0, %v2494
  %v2496 = vrcp.pop %v2310
  %v2497 = vmul.f32 %v2310, %v2496
  %v2498 = vsub.f32 1.0, %v2497
  %v2499 = vmul.f32 %v2496, %v2498
  %v2500 = vadd.f32 %v2496, %v2499
  %vm2501 = vweird.f32 %v2310
  %vm2502 = vweird.f32 %v2496
  %vm2503 = vmor %vm2501, %vm2502
  %v2504 = vsel %vm2503, %v2496, %v2500
  %v2505 = vand.u32 2147483647, %v2310
  %vm2506 = vcmp.eq.f32.partialorder %v2505, 8.507059e+37
  %v2507 = vand.u32 %v2310, 2147483648
  %v2508 = vor.u32 1.1754944e-38, %v2507
  %v2509 = vsel %vm2506, %v2508, %v2504
  %v2510 = vmul.f32 1.0, %v2509
  %v2511 = vrcp.pop %v2311
  %v2512 = vmul.f32 %v2311, %v2511
  %v2513 = vsub.f32 1.0, %v2512
  %v2514 = vmul.f32 %v2511, %v2513
  %v2515 = vadd.f32 %v2511, %v2514
  %vm2516 = vweird.f32 %v2311
  %vm2517 = vweird.f32 %v2511
  %vm2518 = vmor %vm2516, %vm2517
  %v2519 = vsel %vm2518, %v2511, %v2515
  %v2520 = vand.u32 2147483647, %v2311
  %vm2521 = vcmp.eq.f32.partialorder %v2520, 8.507059e+37
  %v2522 = vand.u32 %v2311, 2147483648
  %v2523 = vor.u32 1.1754944e-38, %v2522
  %v2524 = vsel %vm2521, %v2523, %v2519
  %v2525 = vmul.f32 1.0, %v2524
  %v2526 = vrcp.pop %v2312
  %v2527 = vmul.f32 %v2312, %v2526
  %v2528 = vsub.f32 1.0, %v2527
  %v2529 = vmul.f32 %v2526, %v2528
  %v2530 = vadd.f32 %v2526, %v2529
  %vm2531 = vweird.f32 %v2312
  %vm2532 = vweird.f32 %v2526
  %vm2533 = vmor %vm2531, %vm2532
  %v2534 = vsel %vm2533, %v2526, %v2530
  %v2535 = vand.u32 2147483647, %v2312
  %vm2536 = vcmp.eq.f32.partialorder %v2535, 8.507059e+37
  %v2537 = vand.u32 %v2312, 2147483648
  %v2538 = vor.u32 1.1754944e-38, %v2537
  %v2539 = vsel %vm2536, %v2538, %v2534
  %v2540 = vmul.f32 1.0, %v2539
  %v2541 = vrcp.pop %v2313
  %v2542 = vmul.f32 %v2313, %v2541
  %v2543 = vsub.f32 1.0, %v2542
  %v2544 = vmul.f32 %v2541, %v2543
  %v2545 = vadd.f32 %v2541, %v2544
  %vm2546 = vweird.f32 %v2313
  %vm2547 = vweird.f32 %v2541
  %vm2548 = vmor %vm2546, %vm2547
  %v2549 = vsel %vm2548, %v2541, %v2545
  %v2550 = vand.u32 2147483647, %v2313
  %vm2551 = vcmp.eq.f32.partialorder %v2550, 8.507059e+37
  %v2552 = vand.u32 %v2313, 2147483648
  %v2553 = vor.u32 1.1754944e-38, %v2552
  %v2554 = vsel %vm2551, %v2553, %v2549
  %v2555 = vmul.f32 1.0, %v2554
  %v2556 = vrcp.pop %v2314
  %v2557 = vmul.f32 %v2314, %v2556
  %v2558 = vsub.f32 1.0, %v2557
  %v2559 = vmul.f32 %v2556, %v2558
  %v2560 = vadd.f32 %v2556, %v2559
  %vm2561 = vweird.f32 %v2314
  %vm2562 = vweird.f32 %v2556
  %vm2563 = vmor %vm2561, %vm2562
  %v2564 = vsel %vm2563, %v2556, %v2560
  %v2565 = vand.u32 2147483647, %v2314
  %vm2566 = vcmp.eq.f32.partialorder %v2565, 8.507059e+37
  %v2567 = vand.u32 %v2314, 2147483648
  %v2568 = vor.u32 1.1754944e-38, %v2567
  %v2569 = vsel %vm2566, %v2568, %v2564
  %v2570 = vmul.f32 1.0, %v2569
  %v2571 = vrcp.pop %v2315
  %v2572 = vmul.f32 %v2315, %v2571
  %v2573 = vsub.f32 1.0, %v2572
  %v2574 = vmul.f32 %v2571, %v2573
  %v2575 = vadd.f32 %v2571, %v2574
  %vm2576 = vweird.f32 %v2315
  %vm2577 = vweird.f32 %v2571
  %vm2578 = vmor %vm2576, %vm2577
  %v2579 = vsel %vm2578, %v2571, %v2575
  %v2580 = vand.u32 2147483647, %v2315
  %vm2581 = vcmp.eq.f32.partialorder %v2580, 8.507059e+37
  %v2582 = vand.u32 %v2315, 2147483648
  %v2583 = vor.u32 1.1754944e-38, %v2582
  %v2584 = vsel %vm2581, %v2583, %v2579
  %v2585 = vmul.f32 1.0, %v2584
  %v2586 = vrcp.pop %v2316
  %v2587 = vmul.f32 %v2316, %v2586
  %v2588 = vsub.f32 1.0, %v2587
  %v2589 = vmul.f32 %v2586, %v2588
  %v2590 = vadd.f32 %v2586, %v2589
  %vm2591 = vweird.f32 %v2316
  %vm2592 = vweird.f32 %v2586
  %vm2593 = vmor %vm2591, %vm2592
  %v2594 = vsel %vm2593, %v2586, %v2590
  %v2595 = vand.u32 2147483647, %v2316
  %vm2596 = vcmp.eq.f32.partialorder %v2595, 8.507059e+37
  %v2597 = vand.u32 %v2316, 2147483648
  %v2598 = vor.u32 1.1754944e-38, %v2597
  %v2599 = vsel %vm2596, %v2598, %v2594
  %v2600 = vmul.f32 1.0, %v2599
  %v2601 = vrcp.pop %v2317
  %v2602 = vmul.f32 %v2317, %v2601
  %v2603 = vsub.f32 1.0, %v2602
  %v2604 = vmul.f32 %v2601, %v2603
  %v2605 = vadd.f32 %v2601, %v2604
  %vm2606 = vweird.f32 %v2317
  %vm2607 = vweird.f32 %v2601
  %vm2608 = vmor %vm2606, %vm2607
  %v2609 = vsel %vm2608, %v2601, %v2605
  %v2610 = vand.u32 2147483647, %v2317
  %vm2611 = vcmp.eq.f32.partialorder %v2610, 8.507059e+37
  %v2612 = vand.u32 %v2317, 2147483648
  %v2613 = vor.u32 1.1754944e-38, %v2612
  %v2614 = vsel %vm2611, %v2613, %v2609
  %v2615 = vmul.f32 1.0, %v2614
  %v2616 = vrcp.pop %v2318
  %v2617 = vmul.f32 %v2318, %v2616
  %v2618 = vsub.f32 1.0, %v2617
  %v2619 = vmul.f32 %v2616, %v2618
  %v2620 = vadd.f32 %v2616, %v2619
  %vm2621 = vweird.f32 %v2318
  %vm2622 = vweird.f32 %v2616
  %vm2623 = vmor %vm2621, %vm2622
  %v2624 = vsel %vm2623, %v2616, %v2620
  %v2625 = vand.u32 2147483647, %v2318
  %vm2626 = vcmp.eq.f32.partialorder %v2625, 8.507059e+37
  %v2627 = vand.u32 %v2318, 2147483648
  %v2628 = vor.u32 1.1754944e-38, %v2627
  %v2629 = vsel %vm2626, %v2628, %v2624
  %v2630 = vmul.f32 1.0, %v2629
  %v2631 = vrcp.pop %v2319
  %v2632 = vmul.f32 %v2319, %v2631
  %v2633 = vsub.f32 1.0, %v2632
  %v2634 = vmul.f32 %v2631, %v2633
  %v2635 = vadd.f32 %v2631, %v2634
  %vm2636 = vweird.f32 %v2319
  %vm2637 = vweird.f32 %v2631
  %vm2638 = vmor %vm2636, %vm2637
  %v2639 = vsel %vm2638, %v2631, %v2635
  %v2640 = vand.u32 2147483647, %v2319
  %vm2641 = vcmp.eq.f32.partialorder %v2640, 8.507059e+37
  %v2642 = vand.u32 %v2319, 2147483648
  %v2643 = vor.u32 1.1754944e-38, %v2642
  %v2644 = vsel %vm2641, %v2643, %v2639
  %v2645 = vmul.f32 1.0, %v2644
  %v2646 = vrcp.pop %v2320
  %v2647 = vmul.f32 %v2320, %v2646
  %v2648 = vsub.f32 1.0, %v2647
  %v2649 = vmul.f32 %v2646, %v2648
  %v2650 = vadd.f32 %v2646, %v2649
  %vm2651 = vweird.f32 %v2320
  %vm2652 = vweird.f32 %v2646
  %vm2653 = vmor %vm2651, %vm2652
  %v2654 = vsel %vm2653, %v2646, %v2650
  %v2655 = vand.u32 2147483647, %v2320
  %vm2656 = vcmp.eq.f32.partialorder %v2655, 8.507059e+37
  %v2657 = vand.u32 %v2320, 2147483648
  %v2658 = vor.u32 1.1754944e-38, %v2657
  %v2659 = vsel %vm2656, %v2658, %v2654
  %v2660 = vmul.f32 1.0, %v2659
  %v2661 = vrcp.pop %v2321
  %v2662 = vmul.f32 %v2321, %v2661
  %v2663 = vsub.f32 1.0, %v2662
  %v2664 = vmul.f32 %v2661, %v2663
  %v2665 = vadd.f32 %v2661, %v2664
  %vm2666 = vweird.f32 %v2321
  %vm2667 = vweird.f32 %v2661
  %vm2668 = vmor %vm2666, %vm2667
  %v2669 = vsel %vm2668, %v2661, %v2665
  %v2670 = vand.u32 2147483647, %v2321
  %vm2671 = vcmp.eq.f32.partialorder %v2670, 8.507059e+37
  %v2672 = vand.u32 %v2321, 2147483648
  %v2673 = vor.u32 1.1754944e-38, %v2672
  %v2674 = vsel %vm2671, %v2673, %v2669
  %v2675 = vmul.f32 1.0, %v2674
  %v2676 = vrcp.pop %v2322
  %v2677 = vmul.f32 %v2322, %v2676
  %v2678 = vsub.f32 1.0, %v2677
  %v2679 = vmul.f32 %v2676, %v2678
  %v2680 = vadd.f32 %v2676, %v2679
  %vm2681 = vweird.f32 %v2322
  %vm2682 = vweird.f32 %v2676
  %vm2683 = vmor %vm2681, %vm2682
  %v2684 = vsel %vm2683, %v2676, %v2680
  %v2685 = vand.u32 2147483647, %v2322
  %vm2686 = vcmp.eq.f32.partialorder %v2685, 8.507059e+37
  %v2687 = vand.u32 %v2322, 2147483648
  %v2688 = vor.u32 1.1754944e-38, %v2687
  %v2689 = vsel %vm2686, %v2688, %v2684
  %v2690 = vmul.f32 1.0, %v2689
  %v2691 = vrcp.pop %v2323
  %v2692 = vmul.f32 %v2323, %v2691
  %v2693 = vsub.f32 1.0, %v2692
  %v2694 = vmul.f32 %v2691, %v2693
  %v2695 = vadd.f32 %v2691, %v2694
  %vm2696 = vweird.f32 %v2323
  %vm2697 = vweird.f32 %v2691
  %vm2698 = vmor %vm2696, %vm2697
  %v2699 = vsel %vm2698, %v2691, %v2695
  %v2700 = vand.u32 2147483647, %v2323
  %vm2701 = vcmp.eq.f32.partialorder %v2700, 8.507059e+37
  %v2702 = vand.u32 %v2323, 2147483648
  %v2703 = vor.u32 1.1754944e-38, %v2702
  %v2704 = vsel %vm2701, %v2703, %v2699
  %v2705 = vmul.f32 1.0, %v2704
  %v2706 = vrcp.pop %v2324
  %v2707 = vmul.f32 %v2324, %v2706
  %v2708 = vsub.f32 1.0, %v2707
  %v2709 = vmul.f32 %v2706, %v2708
  %v2710 = vadd.f32 %v2706, %v2709
  %vm2711 = vweird.f32 %v2324
  %vm2712 = vweird.f32 %v2706
  %vm2713 = vmor %vm2711, %vm2712
  %v2714 = vsel %vm2713, %v2706, %v2710
  %v2715 = vand.u32 2147483647, %v2324
  %vm2716 = vcmp.eq.f32.partialorder %v2715, 8.507059e+37
  %v2717 = vand.u32 %v2324, 2147483648
  %v2718 = vor.u32 1.1754944e-38, %v2717
  %v2719 = vsel %vm2716, %v2718, %v2714
  %v2720 = vmul.f32 1.0, %v2719
  %v2721 = vrcp.pop %v2325
  %v2722 = vmul.f32 %v2325, %v2721
  %v2723 = vsub.f32 1.0, %v2722
  %v2724 = vmul.f32 %v2721, %v2723
  %v2725 = vadd.f32 %v2721, %v2724
  %vm2726 = vweird.f32 %v2325
  %vm2727 = vweird.f32 %v2721
  %vm2728 = vmor %vm2726, %vm2727
  %v2729 = vsel %vm2728, %v2721, %v2725
  %v2730 = vand.u32 2147483647, %v2325
  %vm2731 = vcmp.eq.f32.partialorder %v2730, 8.507059e+37
  %v2732 = vand.u32 %v2325, 2147483648
  %v2733 = vor.u32 1.1754944e-38, %v2732
  %v2734 = vsel %vm2731, %v2733, %v2729
  %v2735 = vmul.f32 1.0, %v2734
  %v2736 = vrcp.pop %v2326
  %v2737 = vmul.f32 %v2326, %v2736
  %v2738 = vsub.f32 1.0, %v2737
  %v2739 = vmul.f32 %v2736, %v2738
  %v2740 = vadd.f32 %v2736, %v2739
  %vm2741 = vweird.f32 %v2326
  %vm2742 = vweird.f32 %v2736
  %vm2743 = vmor %vm2741, %vm2742
  %v2744 = vsel %vm2743, %v2736, %v2740
  %v2745 = vand.u32 2147483647, %v2326
  %vm2746 = vcmp.eq.f32.partialorder %v2745, 8.507059e+37
  %v2747 = vand.u32 %v2326, 2147483648
  %v2748 = vor.u32 1.1754944e-38, %v2747
  %v2749 = vsel %vm2746, %v2748, %v2744
  %v2750 = vmul.f32 1.0, %v2749
  %v2751 = vrcp.pop %v2327
  %v2752 = vmul.f32 %v2327, %v2751
  %v2753 = vsub.f32 1.0, %v2752
  %v2754 = vmul.f32 %v2751, %v2753
  %v2755 = vadd.f32 %v2751, %v2754
  %vm2756 = vweird.f32 %v2327
  %vm2757 = vweird.f32 %v2751
  %vm2758 = vmor %vm2756, %vm2757
  %v2759 = vsel %vm2758, %v2751, %v2755
  %v2760 = vand.u32 2147483647, %v2327
  %vm2761 = vcmp.eq.f32.partialorder %v2760, 8.507059e+37
  %v2762 = vand.u32 %v2327, 2147483648
  %v2763 = vor.u32 1.1754944e-38, %v2762
  %v2764 = vsel %vm2761, %v2763, %v2759
  %v2765 = vmul.f32 1.0, %v2764
  %v2766 = vrcp.pop %v2328
  %v2767 = vmul.f32 %v2328, %v2766
  %v2768 = vsub.f32 1.0, %v2767
  %v2769 = vmul.f32 %v2766, %v2768
  %v2770 = vadd.f32 %v2766, %v2769
  %vm2771 = vweird.f32 %v2328
  %vm2772 = vweird.f32 %v2766
  %vm2773 = vmor %vm2771, %vm2772
  %v2774 = vsel %vm2773, %v2766, %v2770
  %v2775 = vand.u32 2147483647, %v2328
  %vm2776 = vcmp.eq.f32.partialorder %v2775, 8.507059e+37
  %v2777 = vand.u32 %v2328, 2147483648
  %v2778 = vor.u32 1.1754944e-38, %v2777
  %v2779 = vsel %vm2776, %v2778, %v2774
  %v2780 = vmul.f32 1.0, %v2779
  %v2781 = vrcp.pop %v2329
  %v2782 = vmul.f32 %v2329, %v2781
  %v2783 = vsub.f32 1.0, %v2782
  %v2784 = vmul.f32 %v2781, %v2783
  %v2785 = vadd.f32 %v2781, %v2784
  %vm2786 = vweird.f32 %v2329
  %vm2787 = vweird.f32 %v2781
  %vm2788 = vmor %vm2786, %vm2787
  %v2789 = vsel %vm2788, %v2781, %v2785
  %v2790 = vand.u32 2147483647, %v2329
  %vm2791 = vcmp.eq.f32.partialorder %v2790, 8.507059e+37
  %v2792 = vand.u32 %v2329, 2147483648
  %v2793 = vor.u32 1.1754944e-38, %v2792
  %v2794 = vsel %vm2791, %v2793, %v2789
  %v2795 = vmul.f32 1.0, %v2794
  %v2796 = vrcp.pop %v2330
  %v2797 = vmul.f32 %v2330, %v2796
  %v2798 = vsub.f32 1.0, %v2797
  %v2799 = vmul.f32 %v2796, %v2798
  %v2800 = vadd.f32 %v2796, %v2799
  %vm2801 = vweird.f32 %v2330
  %vm2802 = vweird.f32 %v2796
  %vm2803 = vmor %vm2801, %vm2802
  %v2804 = vsel %vm2803, %v2796, %v2800
  %v2805 = vand.u32 2147483647, %v2330
  %vm2806 = vcmp.eq.f32.partialorder %v2805, 8.507059e+37
  %v2807 = vand.u32 %v2330, 2147483648
  %v2808 = vor.u32 1.1754944e-38, %v2807
  %v2809 = vsel %vm2806, %v2808, %v2804
  %v2810 = vmul.f32 1.0, %v2809
  %v2811 = vmul.f32 %v2345, %v625
  %v2812 = vmul.f32 %v2360, %v626
  %v2813 = vmul.f32 %v2375, %v627
  %v2814 = vmul.f32 %v2390, %v628
  %v2815 = vmul.f32 %v2405, %v629
  %v2816 = vmul.f32 %v2420, %v630
  %v2817 = vmul.f32 %v2435, %v631
  %v2818 = vmul.f32 %v2450, %v632
  %v2819 = vmul.f32 %v2465, %v633
  %v2820 = vmul.f32 %v2480, %v634
  %v2821 = vmul.f32 %v2495, %v635
  %v2822 = vmul.f32 %v2510, %v636
  %v2823 = vmul.f32 %v2525, %v637
  %v2824 = vmul.f32 %v2540, %v638
  %v2825 = vmul.f32 %v2555, %v639
  %v2826 = vmul.f32 %v2570, %v640
  %v2827 = vmul.f32 %v2585, %v641
  %v2828 = vmul.f32 %v2600, %v642
  %v2829 = vmul.f32 %v2615, %v643
  %v2830 = vmul.f32 %v2630, %v644
  %v2831 = vmul.f32 %v2645, %v645
  %v2832 = vmul.f32 %v2660, %v646
  %v2833 = vmul.f32 %v2675, %v647
  %v2834 = vmul.f32 %v2690, %v648
  %v2835 = vmul.f32 %v2705, %v649
  %v2836 = vmul.f32 %v2720, %v650
  %v2837 = vmul.f32 %v2735, %v651
  %v2838 = vmul.f32 %v2750, %v652
  %v2839 = vmul.f32 %v2765, %v653
  %v2840 = vmul.f32 %v2780, %v654
  %v2841 = vmul.f32 %v2795, %v655
  %v2842 = vmul.f32 %v2810, %v656
  %v2843 = vld [vmem:[%s8] sm:$0x1]
  %v2844 = vld [vmem:[%s7] sm:$0xff]
  %v2845 = vld [vmem:[%s7 + $0x8] sm:$0xff]
  %v2846 = vld [vmem:[%s7 + $0x10] sm:$0xff]
  %v2847 = vld [vmem:[%s7 + $0x18] sm:$0xff]
  %v2848 = vld [vmem:[%s7 + $0x20] sm:$0xff]
  %v2849 = vld [vmem:[%s7 + $0x28] sm:$0xff]
  %v2850 = vld [vmem:[%s7 + $0x30] sm:$0xff]
  %v2851 = vld [vmem:[%s7 + $0x38] sm:$0xff]
  %vm2852 = vcmask 261120
  %v2853 = vsel %vm2852, 0.0, 0
  %v2856 = vsel %vm2852, %v1718, 0
  %v2859 = vsel %vm2852, %v1719, 0
  %v2862 = vsel %vm2852, %v1720, 0
  %v2865 = vsel %vm2852, %v1721, 0
  %v2868 = vsel %vm2852, %v1722, 0
  %v2871 = vsel %vm2852, %v1723, 0
  %v2874 = vsel %vm2852, %v1724, 0
  %v2877 = vsel %vm2852, %v1725, 0
  %v2880 = vsel %vm2852, %v1726, 0
  %v2883 = vsel %vm2852, %v1727, 0
  %v2886 = vsel %vm2852, %v1728, 0
  %v2889 = vsel %vm2852, %v1729, 0
  %v2892 = vsel %vm2852, %v1730, 0
  %v2895 = vsel %vm2852, %v1731, 0
  %v2898 = vsel %vm2852, %v1732, 0
  %v2901 = vsel %vm2852, %v1733, 0
  %v2904 = vsel %vm2852, %v1734, 0
  %v2907 = vsel %vm2852, %v1735, 0
  %v2910 = vsel %vm2852, %v1736, 0
  %v2913 = vsel %vm2852, %v1737, 0
  %v2916 = vsel %vm2852, %v1738, 0
  %v2919 = vsel %vm2852, %v1739, 0
  %v2922 = vsel %vm2852, %v1740, 0
  %v2925 = vsel %vm2852, %v1741, 0
  %v2928 = vsel %vm2852, %v1742, 0
  %v2931 = vsel %vm2852, %v1743, 0
  %v2934 = vsel %vm2852, %v1744, 0
  %v2937 = vsel %vm2852, %v1745, 0
  %2939 = vmatpush.msra.mxu0 0.0
  %2940 = vmatpush.msra.mxu0 0.0
  %2941 = vmatpush.msra.mxu0 0.0
  %2942 = vmatpush.msra.mxu0 0.0
  %2943 = vmatpush.msra.mxu0 0.0
  %2944 = vmatpush.msra.mxu0 0.0
  %2945 = vmatpush.msra.mxu0 0.0
  %2946 = vmatpush.msra.mxu0 0.0
  %2947 = vmatpush.msra.mxu0 0.0
  %2948 = vmatpush.msra.mxu0 0.0
  %2949 = vmatpush.msra.mxu0 0.0
  %2950 = vmatpush.msra.mxu0 0.0
  %2951 = vmatpush.msra.mxu0 %v2847
  %2952 = vmatpush.msra.mxu0 %v2846
  %2953 = vmatpush.msra.mxu0 %v2845
  %2954 = vmatpush.msra.mxu0 %v2844
  %2955 = vmatmul.f32.gmra.mxu0 %v2853
  %v2956 = vpop.f32.mrf.mxu0
  %v2957 = vadd.f32 0.0, %v2956
  %2958 = vmatmul.f32.gmra.mxu0 %v2853
  %v2959 = vpop.f32.mrf.mxu0
  %v2960 = vadd.f32 0.0, %v2959
  %2961 = vmatmul.f32.gmra.mxu0 %v2853
  %v2962 = vpop.f32.mrf.mxu0
  %v2963 = vadd.f32 0.0, %v2962
  %2964 = vmatmul.f32.gmra.mxu0 %v2853
  %v2965 = vpop.f32.mrf.mxu0
  %v2966 = vadd.f32 0.0, %v2965
  %2967 = vmatmul.f32.gmra.mxu0 %v2856
  %v2968 = vpop.f32.mrf.mxu0
  %v2969 = vadd.f32 0.0, %v2968
  %2970 = vmatmul.f32.gmra.mxu0 %v2859
  %v2971 = vpop.f32.mrf.mxu0
  %v2972 = vadd.f32 0.0, %v2971
  %2973 = vmatmul.f32.gmra.mxu0 %v2862
  %v2974 = vpop.f32.mrf.mxu0
  %v2975 = vadd.f32 0.0, %v2974
  %2976 = vmatmul.f32.gmra.mxu0 %v2865
  %v2977 = vpop.f32.mrf.mxu0
  %v2978 = vadd.f32 0.0, %v2977
  %2979 = vmatmul.f32.gmra.mxu0 %v2868
  %v2980 = vpop.f32.mrf.mxu0
  %v2981 = vadd.f32 0.0, %v2980
  %2982 = vmatmul.f32.gmra.mxu0 %v2871
  %v2983 = vpop.f32.mrf.mxu0
  %v2984 = vadd.f32 0.0, %v2983
  %2985 = vmatmul.f32.gmra.mxu0 %v2874
  %v2986 = vpop.f32.mrf.mxu0
  %v2987 = vadd.f32 0.0, %v2986
  %2988 = vmatmul.f32.gmra.mxu0 %v2877
  %v2989 = vpop.f32.mrf.mxu0
  %v2990 = vadd.f32 0.0, %v2989
  %2991 = vmatmul.f32.gmra.mxu0 %v2880
  %v2992 = vpop.f32.mrf.mxu0
  %v2993 = vadd.f32 0.0, %v2992
  %2994 = vmatmul.f32.gmra.mxu0 %v2883
  %v2995 = vpop.f32.mrf.mxu0
  %v2996 = vadd.f32 0.0, %v2995
  %2997 = vmatmul.f32.gmra.mxu0 %v2886
  %v2998 = vpop.f32.mrf.mxu0
  %v2999 = vadd.f32 0.0, %v2998
  %3000 = vmatmul.f32.gmra.mxu0 %v2889
  %v3001 = vpop.f32.mrf.mxu0
  %v3002 = vadd.f32 0.0, %v3001
  %3003 = vmatmul.f32.gmra.mxu0 %v2892
  %v3004 = vpop.f32.mrf.mxu0
  %v3005 = vadd.f32 0.0, %v3004
  %3006 = vmatmul.f32.gmra.mxu0 %v2895
  %v3007 = vpop.f32.mrf.mxu0
  %v3008 = vadd.f32 0.0, %v3007
  %3009 = vmatmul.f32.gmra.mxu0 %v2898
  %v3010 = vpop.f32.mrf.mxu0
  %v3011 = vadd.f32 0.0, %v3010
  %3012 = vmatmul.f32.gmra.mxu0 %v2901
  %v3013 = vpop.f32.mrf.mxu0
  %v3014 = vadd.f32 0.0, %v3013
  %3015 = vmatmul.f32.gmra.mxu0 %v2904
  %v3016 = vpop.f32.mrf.mxu0
  %v3017 = vadd.f32 0.0, %v3016
  %3018 = vmatmul.f32.gmra.mxu0 %v2907
  %v3019 = vpop.f32.mrf.mxu0
  %v3020 = vadd.f32 0.0, %v3019
  %3021 = vmatmul.f32.gmra.mxu0 %v2910
  %v3022 = vpop.f32.mrf.mxu0
  %v3023 = vadd.f32 0.0, %v3022
  %3024 = vmatmul.f32.gmra.mxu0 %v2913
  %v3025 = vpop.f32.mrf.mxu0
  %v3026 = vadd.f32 0.0, %v3025
  %3027 = vmatmul.f32.gmra.mxu0 %v2916
  %v3028 = vpop.f32.mrf.mxu0
  %v3029 = vadd.f32 0.0, %v3028
  %3030 = vmatmul.f32.gmra.mxu0 %v2919
  %v3031 = vpop.f32.mrf.mxu0
  %v3032 = vadd.f32 0.0, %v3031
  %3033 = vmatmul.f32.gmra.mxu0 %v2922
  %v3034 = vpop.f32.mrf.mxu0
  %v3035 = vadd.f32 0.0, %v3034
  %3036 = vmatmul.f32.gmra.mxu0 %v2925
  %v3037 = vpop.f32.mrf.mxu0
  %v3038 = vadd.f32 0.0, %v3037
  %3039 = vmatmul.f32.gmra.mxu0 %v2928
  %v3040 = vpop.f32.mrf.mxu0
  %v3041 = vadd.f32 0.0, %v3040
  %3042 = vmatmul.f32.gmra.mxu0 %v2931
  %v3043 = vpop.f32.mrf.mxu0
  %v3044 = vadd.f32 0.0, %v3043
  %3045 = vmatmul.f32.gmra.mxu0 %v2934
  %v3046 = vpop.f32.mrf.mxu0
  %v3047 = vadd.f32 0.0, %v3046
  %3048 = vmatmul.f32.gmra.mxu0 %v2937
  %v3049 = vpop.f32.mrf.mxu0
  %v3050 = vadd.f32 0.0, %v3049
  %3051 = vdwg.mxu0
  %v3053 = vperm.slane %v2843, 0
  %v3055 = vadd.f32 %v3053, %v2957
  %v3056 = vadd.f32 %v3053, %v2960
  %v3057 = vadd.f32 %v3053, %v2963
  %v3058 = vadd.f32 %v3053, %v2966
  %v3059 = vadd.f32 %v3053, %v2969
  %v3060 = vadd.f32 %v3053, %v2972
  %v3061 = vadd.f32 %v3053, %v2975
  %v3062 = vadd.f32 %v3053, %v2978
  %v3063 = vadd.f32 %v3053, %v2981
  %v3064 = vadd.f32 %v3053, %v2984
  %v3065 = vadd.f32 %v3053, %v2987
  %v3066 = vadd.f32 %v3053, %v2990
  %v3067 = vadd.f32 %v3053, %v2993
  %v3068 = vadd.f32 %v3053, %v2996
  %v3069 = vadd.f32 %v3053, %v2999
  %v3070 = vadd.f32 %v3053, %v3002
  %v3071 = vadd.f32 %v3053, %v3005
  %v3072 = vadd.f32 %v3053, %v3008
  %v3073 = vadd.f32 %v3053, %v3011
  %v3074 = vadd.f32 %v3053, %v3014
  %v3075 = vadd.f32 %v3053, %v3017
  %v3076 = vadd.f32 %v3053, %v3020
  %v3077 = vadd.f32 %v3053, %v3023
  %v3078 = vadd.f32 %v3053, %v3026
  %v3079 = vadd.f32 %v3053, %v3029
  %v3080 = vadd.f32 %v3053, %v3032
  %v3081 = vadd.f32 %v3053, %v3035
  %v3082 = vadd.f32 %v3053, %v3038
  %v3083 = vadd.f32 %v3053, %v3041
  %v3084 = vadd.f32 %v3053, %v3044
  %v3085 = vadd.f32 %v3053, %v3047
  %v3086 = vadd.f32 %v3053, %v3050
  %v3088 = vsel %vm2852, %v2811, 0
  %v3091 = vsel %vm2852, %v2812, 0
  %v3094 = vsel %vm2852, %v2813, 0
  %v3097 = vsel %vm2852, %v2814, 0
  %v3100 = vsel %vm2852, %v2815, 0
  %v3103 = vsel %vm2852, %v2816, 0
  %v3106 = vsel %vm2852, %v2817, 0
  %v3109 = vsel %vm2852, %v2818, 0
  %v3112 = vsel %vm2852, %v2819, 0
  %v3115 = vsel %vm2852, %v2820, 0
  %v3118 = vsel %vm2852, %v2821, 0
  %v3121 = vsel %vm2852, %v2822, 0
  %v3124 = vsel %vm2852, %v2823, 0
  %v3127 = vsel %vm2852, %v2824, 0
  %v3130 = vsel %vm2852, %v2825, 0
  %v3133 = vsel %vm2852, %v2826, 0
  %v3136 = vsel %vm2852, %v2827, 0
  %v3139 = vsel %vm2852, %v2828, 0
  %v3142 = vsel %vm2852, %v2829, 0
  %v3145 = vsel %vm2852, %v2830, 0
  %v3148 = vsel %vm2852, %v2831, 0
  %v3151 = vsel %vm2852, %v2832, 0
  %v3154 = vsel %vm2852, %v2833, 0
  %v3157 = vsel %vm2852, %v2834, 0
  %v3160 = vsel %vm2852, %v2835, 0
  %v3163 = vsel %vm2852, %v2836, 0
  %v3166 = vsel %vm2852, %v2837, 0
  %v3169 = vsel %vm2852, %v2838, 0
  %3171 = vmatpush.msra.mxu0 0.0
  %3172 = vmatpush.msra.mxu0 0.0
  %3173 = vmatpush.msra.mxu0 0.0
  %3174 = vmatpush.msra.mxu0 0.0
  %3175 = vmatpush.msra.mxu0 0.0
  %3176 = vmatpush.msra.mxu0 0.0
  %3177 = vmatpush.msra.mxu0 0.0
  %3178 = vmatpush.msra.mxu0 0.0
  %3179 = vmatpush.msra.mxu0 0.0
  %3180 = vmatpush.msra.mxu0 0.0
  %3181 = vmatpush.msra.mxu0 0.0
  %3182 = vmatpush.msra.mxu0 0.0
  %3183 = vmatpush.msra.mxu0 %v2851
  %3184 = vmatpush.msra.mxu0 %v2850
  %3185 = vmatpush.msra.mxu0 %v2849
  %3186 = vmatpush.msra.mxu0 %v2848
  %3187 = vmatmul.f32.gmra.mxu0 %v2853
  %v3188 = vpop.f32.mrf.mxu0
  %v3189 = vadd.f32 0.0, %v3188
  %3190 = vmatmul.f32.gmra.mxu0 %v2853
  %v3191 = vpop.f32.mrf.mxu0
  %v3192 = vadd.f32 0.0, %v3191
  %3193 = vmatmul.f32.gmra.mxu0 %v2853
  %v3194 = vpop.f32.mrf.mxu0
  %v3195 = vadd.f32 0.0, %v3194
  %3196 = vmatmul.f32.gmra.mxu0 %v2853
  %v3197 = vpop.f32.mrf.mxu0
  %v3198 = vadd.f32 0.0, %v3197
  %3199 = vmatmul.f32.gmra.mxu0 %v3088
  %v3200 = vpop.f32.mrf.mxu0
  %v3201 = vadd.f32 0.0, %v3200
  %3202 = vmatmul.f32.gmra.mxu0 %v3091
  %v3203 = vpop.f32.mrf.mxu0
  %v3204 = vadd.f32 0.0, %v3203
  %3205 = vmatmul.f32.gmra.mxu0 %v3094
  %v3206 = vpop.f32.mrf.mxu0
  %v3207 = vadd.f32 0.0, %v3206
  %3208 = vmatmul.f32.gmra.mxu0 %v3097
  %v3209 = vpop.f32.mrf.mxu0
  %v3210 = vadd.f32 0.0, %v3209
  %3211 = vmatmul.f32.gmra.mxu0 %v3100
  %v3212 = vpop.f32.mrf.mxu0
  %v3213 = vadd.f32 0.0, %v3212
  %3214 = vmatmul.f32.gmra.mxu0 %v3103
  %v3215 = vpop.f32.mrf.mxu0
  %v3216 = vadd.f32 0.0, %v3215
  %3217 = vmatmul.f32.gmra.mxu0 %v3106
  %v3218 = vpop.f32.mrf.mxu0
  %v3219 = vadd.f32 0.0, %v3218
  %3220 = vmatmul.f32.gmra.mxu0 %v3109
  %v3221 = vpop.f32.mrf.mxu0
  %v3222 = vadd.f32 0.0, %v3221
  %3223 = vmatmul.f32.gmra.mxu0 %v3112
  %v3224 = vpop.f32.mrf.mxu0
  %v3225 = vadd.f32 0.0, %v3224
  %3226 = vmatmul.f32.gmra.mxu0 %v3115
  %v3227 = vpop.f32.mrf.mxu0
  %v3228 = vadd.f32 0.0, %v3227
  %3229 = vmatmul.f32.gmra.mxu0 %v3118
  %v3230 = vpop.f32.mrf.mxu0
  %v3231 = vadd.f32 0.0, %v3230
  %3232 = vmatmul.f32.gmra.mxu0 %v3121
  %v3233 = vpop.f32.mrf.mxu0
  %v3234 = vadd.f32 0.0, %v3233
  %3235 = vmatmul.f32.gmra.mxu0 %v3124
  %v3236 = vpop.f32.mrf.mxu0
  %v3237 = vadd.f32 0.0, %v3236
  %3238 = vmatmul.f32.gmra.mxu0 %v3127
  %v3239 = vpop.f32.mrf.mxu0
  %v3240 = vadd.f32 0.0, %v3239
  %3241 = vmatmul.f32.gmra.mxu0 %v3130
  %v3242 = vpop.f32.mrf.mxu0
  %v3243 = vadd.f32 0.0, %v3242
  %3244 = vmatmul.f32.gmra.mxu0 %v3133
  %v3245 = vpop.f32.mrf.mxu0
  %v3246 = vadd.f32 0.0, %v3245
  %3247 = vmatmul.f32.gmra.mxu0 %v3136
  %v3248 = vpop.f32.mrf.mxu0
  %v3249 = vadd.f32 0.0, %v3248
  %3250 = vmatmul.f32.gmra.mxu0 %v3139
  %v3251 = vpop.f32.mrf.mxu0
  %v3252 = vadd.f32 0.0, %v3251
  %3253 = vmatmul.f32.gmra.mxu0 %v3142
  %v3254 = vpop.f32.mrf.mxu0
  %v3255 = vadd.f32 0.0, %v3254
  %3256 = vmatmul.f32.gmra.mxu0 %v3145
  %v3257 = vpop.f32.mrf.mxu0
  %v3258 = vadd.f32 0.0, %v3257
  %3259 = vmatmul.f32.gmra.mxu0 %v3148
  %v3260 = vpop.f32.mrf.mxu0
  %v3261 = vadd.f32 0.0, %v3260
  %3262 = vmatmul.f32.gmra.mxu0 %v3151
  %v3263 = vpop.f32.mrf.mxu0
  %v3264 = vadd.f32 0.0, %v3263
  %3265 = vmatmul.f32.gmra.mxu0 %v3154
  %v3266 = vpop.f32.mrf.mxu0
  %v3267 = vadd.f32 0.0, %v3266
  %3268 = vmatmul.f32.gmra.mxu0 %v3157
  %v3269 = vpop.f32.mrf.mxu0
  %v3270 = vadd.f32 0.0, %v3269
  %3271 = vmatmul.f32.gmra.mxu0 %v3160
  %v3272 = vpop.f32.mrf.mxu0
  %v3273 = vadd.f32 0.0, %v3272
  %3274 = vmatmul.f32.gmra.mxu0 %v3163
  %v3275 = vpop.f32.mrf.mxu0
  %v3276 = vadd.f32 0.0, %v3275
  %3277 = vmatmul.f32.gmra.mxu0 %v3166
  %v3278 = vpop.f32.mrf.mxu0
  %v3279 = vadd.f32 0.0, %v3278
  %3280 = vmatmul.f32.gmra.mxu0 %v3169
  %v3281 = vpop.f32.mrf.mxu0
  %v3282 = vadd.f32 0.0, %v3281
  %3283 = vdwg.mxu0
  %v3284 = vadd.f32 %v3055, %v3189
  %v3285 = vadd.f32 %v3056, %v3192
  %v3286 = vadd.f32 %v3057, %v3195
  %v3287 = vadd.f32 %v3058, %v3198
  %v3288 = vadd.f32 %v3059, %v3201
  %v3289 = vadd.f32 %v3060, %v3204
  %v3290 = vadd.f32 %v3061, %v3207
  %v3291 = vadd.f32 %v3062, %v3210
  %v3292 = vadd.f32 %v3063, %v3213
  %v3293 = vadd.f32 %v3064, %v3216
  %v3294 = vadd.f32 %v3065, %v3219
  %v3295 = vadd.f32 %v3066, %v3222
  %v3296 = vadd.f32 %v3067, %v3225
  %v3297 = vadd.f32 %v3068, %v3228
  %v3298 = vadd.f32 %v3069, %v3231
  %v3299 = vadd.f32 %v3070, %v3234
  %v3300 = vadd.f32 %v3071, %v3237
  %v3301 = vadd.f32 %v3072, %v3240
  %v3302 = vadd.f32 %v3073, %v3243
  %v3303 = vadd.f32 %v3074, %v3246
  %v3304 = vadd.f32 %v3075, %v3249
  %v3305 = vadd.f32 %v3076, %v3252
  %v3306 = vadd.f32 %v3077, %v3255
  %v3307 = vadd.f32 %v3078, %v3258
  %v3308 = vadd.f32 %v3079, %v3261
  %v3309 = vadd.f32 %v3080, %v3264
  %v3310 = vadd.f32 %v3081, %v3267
  %v3311 = vadd.f32 %v3082, %v3270
  %v3312 = vadd.f32 %v3083, %v3273
  %v3313 = vadd.f32 %v3084, %v3276
  %v3314 = vadd.f32 %v3085, %v3279
  %v3315 = vadd.f32 %v3086, %v3282
  %s3316 = scalar_lea.vmem %s7, 64
  %v3317 = vld [vmem:[%s3316] sm:$0xff]
  %v3318 = vld [vmem:[%s3316 + $0x8] sm:$0xff]
  %v3319 = vld [vmem:[%s3316 + $0x10] sm:$0xff]
  %v3320 = vld [vmem:[%s3316 + $0x18] sm:$0xff]
  %v3321 = vld [vmem:[%s3316 + $0x20] sm:$0xff]
  %v3322 = vld [vmem:[%s3316 + $0x28] sm:$0xff]
  %v3323 = vld [vmem:[%s3316 + $0x30] sm:$0xff]
  %v3324 = vld [vmem:[%s3316 + $0x38] sm:$0xff]
  %v3326 = vsel %vm2852, %v1746, 0
  %v3329 = vsel %vm2852, %v1747, 0
  %v3332 = vsel %vm2852, %v1748, 0
  %v3335 = vsel %vm2852, %v1749, 0
  %3337 = vmatpush.msra.mxu0 0.0
  %3338 = vmatpush.msra.mxu0 0.0
  %3339 = vmatpush.msra.mxu0 0.0
  %3340 = vmatpush.msra.mxu0 0.0
  %3341 = vmatpush.msra.mxu0 0.0
  %3342 = vmatpush.msra.mxu0 0.0
  %3343 = vmatpush.msra.mxu0 0.0
  %3344 = vmatpush.msra.mxu0 0.0
  %3345 = vmatpush.msra.mxu0 0.0
  %3346 = vmatpush.msra.mxu0 0.0
  %3347 = vmatpush.msra.mxu0 0.0
  %3348 = vmatpush.msra.mxu0 0.0
  %3349 = vmatpush.msra.mxu0 %v3320
  %3350 = vmatpush.msra.mxu0 %v3319
  %3351 = vmatpush.msra.mxu0 %v3318
  %3352 = vmatpush.msra.mxu0 %v3317
  %3353 = vmatmul.f32.gmra.mxu0 %v2856
  %v3354 = vpop.f32.mrf.mxu0
  %v3355 = vadd.f32 0.0, %v3354
  %3356 = vmatmul.f32.gmra.mxu0 %v2859
  %v3357 = vpop.f32.mrf.mxu0
  %v3358 = vadd.f32 0.0, %v3357
  %3359 = vmatmul.f32.gmra.mxu0 %v2862
  %v3360 = vpop.f32.mrf.mxu0
  %v3361 = vadd.f32 0.0, %v3360
  %3362 = vmatmul.f32.gmra.mxu0 %v2865
  %v3363 = vpop.f32.mrf.mxu0
  %v3364 = vadd.f32 0.0, %v3363
  %3365 = vmatmul.f32.gmra.mxu0 %v2868
  %v3366 = vpop.f32.mrf.mxu0
  %v3367 = vadd.f32 0.0, %v3366
  %3368 = vmatmul.f32.gmra.mxu0 %v2871
  %v3369 = vpop.f32.mrf.mxu0
  %v3370 = vadd.f32 0.0, %v3369
  %3371 = vmatmul.f32.gmra.mxu0 %v2874
  %v3372 = vpop.f32.mrf.mxu0
  %v3373 = vadd.f32 0.0, %v3372
  %3374 = vmatmul.f32.gmra.mxu0 %v2877
  %v3375 = vpop.f32.mrf.mxu0
  %v3376 = vadd.f32 0.0, %v3375
  %3377 = vmatmul.f32.gmra.mxu0 %v2880
  %v3378 = vpop.f32.mrf.mxu0
  %v3379 = vadd.f32 0.0, %v3378
  %3380 = vmatmul.f32.gmra.mxu0 %v2883
  %v3381 = vpop.f32.mrf.mxu0
  %v3382 = vadd.f32 0.0, %v3381
  %3383 = vmatmul.f32.gmra.mxu0 %v2886
  %v3384 = vpop.f32.mrf.mxu0
  %v3385 = vadd.f32 0.0, %v3384
  %3386 = vmatmul.f32.gmra.mxu0 %v2889
  %v3387 = vpop.f32.mrf.mxu0
  %v3388 = vadd.f32 0.0, %v3387
  %3389 = vmatmul.f32.gmra.mxu0 %v2892
  %v3390 = vpop.f32.mrf.mxu0
  %v3391 = vadd.f32 0.0, %v3390
  %3392 = vmatmul.f32.gmra.mxu0 %v2895
  %v3393 = vpop.f32.mrf.mxu0
  %v3394 = vadd.f32 0.0, %v3393
  %3395 = vmatmul.f32.gmra.mxu0 %v2898
  %v3396 = vpop.f32.mrf.mxu0
  %v3397 = vadd.f32 0.0, %v3396
  %3398 = vmatmul.f32.gmra.mxu0 %v2901
  %v3399 = vpop.f32.mrf.mxu0
  %v3400 = vadd.f32 0.0, %v3399
  %3401 = vmatmul.f32.gmra.mxu0 %v2904
  %v3402 = vpop.f32.mrf.mxu0
  %v3403 = vadd.f32 0.0, %v3402
  %3404 = vmatmul.f32.gmra.mxu0 %v2907
  %v3405 = vpop.f32.mrf.mxu0
  %v3406 = vadd.f32 0.0, %v3405
  %3407 = vmatmul.f32.gmra.mxu0 %v2910
  %v3408 = vpop.f32.mrf.mxu0
  %v3409 = vadd.f32 0.0, %v3408
  %3410 = vmatmul.f32.gmra.mxu0 %v2913
  %v3411 = vpop.f32.mrf.mxu0
  %v3412 = vadd.f32 0.0, %v3411
  %3413 = vmatmul.f32.gmra.mxu0 %v2916
  %v3414 = vpop.f32.mrf.mxu0
  %v3415 = vadd.f32 0.0, %v3414
  %3416 = vmatmul.f32.gmra.mxu0 %v2919
  %v3417 = vpop.f32.mrf.mxu0
  %v3418 = vadd.f32 0.0, %v3417
  %3419 = vmatmul.f32.gmra.mxu0 %v2922
  %v3420 = vpop.f32.mrf.mxu0
  %v3421 = vadd.f32 0.0, %v3420
  %3422 = vmatmul.f32.gmra.mxu0 %v2925
  %v3423 = vpop.f32.mrf.mxu0
  %v3424 = vadd.f32 0.0, %v3423
  %3425 = vmatmul.f32.gmra.mxu0 %v2928
  %v3426 = vpop.f32.mrf.mxu0
  %v3427 = vadd.f32 0.0, %v3426
  %3428 = vmatmul.f32.gmra.mxu0 %v2931
  %v3429 = vpop.f32.mrf.mxu0
  %v3430 = vadd.f32 0.0, %v3429
  %3431 = vmatmul.f32.gmra.mxu0 %v2934
  %v3432 = vpop.f32.mrf.mxu0
  %v3433 = vadd.f32 0.0, %v3432
  %3434 = vmatmul.f32.gmra.mxu0 %v2937
  %v3435 = vpop.f32.mrf.mxu0
  %v3436 = vadd.f32 0.0, %v3435
  %3437 = vmatmul.f32.gmra.mxu0 %v3326
  %v3438 = vpop.f32.mrf.mxu0
  %v3439 = vadd.f32 0.0, %v3438
  %3440 = vmatmul.f32.gmra.mxu0 %v3329
  %v3441 = vpop.f32.mrf.mxu0
  %v3442 = vadd.f32 0.0, %v3441
  %3443 = vmatmul.f32.gmra.mxu0 %v3332
  %v3444 = vpop.f32.mrf.mxu0
  %v3445 = vadd.f32 0.0, %v3444
  %3446 = vmatmul.f32.gmra.mxu0 %v3335
  %v3447 = vpop.f32.mrf.mxu0
  %v3448 = vadd.f32 0.0, %v3447
  %3449 = vdwg.mxu0
  %v3450 = vadd.f32 %v3284, %v3355
  %v3451 = vadd.f32 %v3285, %v3358
  %v3452 = vadd.f32 %v3286, %v3361
  %v3453 = vadd.f32 %v3287, %v3364
  %v3454 = vadd.f32 %v3288, %v3367
  %v3455 = vadd.f32 %v3289, %v3370
  %v3456 = vadd.f32 %v3290, %v3373
  %v3457 = vadd.f32 %v3291, %v3376
  %v3458 = vadd.f32 %v3292, %v3379
  %v3459 = vadd.f32 %v3293, %v3382
  %v3460 = vadd.f32 %v3294, %v3385
  %v3461 = vadd.f32 %v3295, %v3388
  %v3462 = vadd.f32 %v3296, %v3391
  %v3463 = vadd.f32 %v3297, %v3394
  %v3464 = vadd.f32 %v3298, %v3397
  %v3465 = vadd.f32 %v3299, %v3400
  %v3466 = vadd.f32 %v3300, %v3403
  %v3467 = vadd.f32 %v3301, %v3406
  %v3468 = vadd.f32 %v3302, %v3409
  %v3469 = vadd.f32 %v3303, %v3412
  %v3470 = vadd.f32 %v3304, %v3415
  %v3471 = vadd.f32 %v3305, %v3418
  %v3472 = vadd.f32 %v3306, %v3421
  %v3473 = vadd.f32 %v3307, %v3424
  %v3474 = vadd.f32 %v3308, %v3427
  %v3475 = vadd.f32 %v3309, %v3430
  %v3476 = vadd.f32 %v3310, %v3433
  %v3477 = vadd.f32 %v3311, %v3436
  %v3478 = vadd.f32 %v3312, %v3439
  %v3479 = vadd.f32 %v3313, %v3442
  %v3480 = vadd.f32 %v3314, %v3445
  %v3481 = vadd.f32 %v3315, %v3448
  %v3483 = vsel %vm2852, %v2839, 0
  %v3486 = vsel %vm2852, %v2840, 0
  %v3489 = vsel %vm2852, %v2841, 0
  %v3492 = vsel %vm2852, %v2842, 0
  %3494 = vmatpush.msra.mxu0 0.0
  %3495 = vmatpush.msra.mxu0 0.0
  %3496 = vmatpush.msra.mxu0 0.0
  %3497 = vmatpush.msra.mxu0 0.0
  %3498 = vmatpush.msra.mxu0 0.0
  %3499 = vmatpush.msra.mxu0 0.0
  %3500 = vmatpush.msra.mxu0 0.0
  %3501 = vmatpush.msra.mxu0 0.0
  %3502 = vmatpush.msra.mxu0 0.0
  %3503 = vmatpush.msra.mxu0 0.0
  %3504 = vmatpush.msra.mxu0 0.0
  %3505 = vmatpush.msra.mxu0 0.0
  %3506 = vmatpush.msra.mxu0 %v3324
  %3507 = vmatpush.msra.mxu0 %v3323
  %3508 = vmatpush.msra.mxu0 %v3322
  %3509 = vmatpush.msra.mxu0 %v3321
  %3510 = vmatmul.f32.gmra.mxu0 %v3088
  %v3511 = vpop.f32.mrf.mxu0
  %v3512 = vadd.f32 0.0, %v3511
  %3513 = vmatmul.f32.gmra.mxu0 %v3091
  %v3514 = vpop.f32.mrf.mxu0
  %v3515 = vadd.f32 0.0, %v3514
  %3516 = vmatmul.f32.gmra.mxu0 %v3094
  %v3517 = vpop.f32.mrf.mxu0
  %v3518 = vadd.f32 0.0, %v3517
  %3519 = vmatmul.f32.gmra.mxu0 %v3097
  %v3520 = vpop.f32.mrf.mxu0
  %v3521 = vadd.f32 0.0, %v3520
  %3522 = vmatmul.f32.gmra.mxu0 %v3100
  %v3523 = vpop.f32.mrf.mxu0
  %v3524 = vadd.f32 0.0, %v3523
  %3525 = vmatmul.f32.gmra.mxu0 %v3103
  %v3526 = vpop.f32.mrf.mxu0
  %v3527 = vadd.f32 0.0, %v3526
  %3528 = vmatmul.f32.gmra.mxu0 %v3106
  %v3529 = vpop.f32.mrf.mxu0
  %v3530 = vadd.f32 0.0, %v3529
  %3531 = vmatmul.f32.gmra.mxu0 %v3109
  %v3532 = vpop.f32.mrf.mxu0
  %v3533 = vadd.f32 0.0, %v3532
  %3534 = vmatmul.f32.gmra.mxu0 %v3112
  %v3535 = vpop.f32.mrf.mxu0
  %v3536 = vadd.f32 0.0, %v3535
  %3537 = vmatmul.f32.gmra.mxu0 %v3115
  %v3538 = vpop.f32.mrf.mxu0
  %v3539 = vadd.f32 0.0, %v3538
  %3540 = vmatmul.f32.gmra.mxu0 %v3118
  %v3541 = vpop.f32.mrf.mxu0
  %v3542 = vadd.f32 0.0, %v3541
  %3543 = vmatmul.f32.gmra.mxu0 %v3121
  %v3544 = vpop.f32.mrf.mxu0
  %v3545 = vadd.f32 0.0, %v3544
  %3546 = vmatmul.f32.gmra.mxu0 %v3124
  %v3547 = vpop.f32.mrf.mxu0
  %v3548 = vadd.f32 0.0, %v3547
  %3549 = vmatmul.f32.gmra.mxu0 %v3127
  %v3550 = vpop.f32.mrf.mxu0
  %v3551 = vadd.f32 0.0, %v3550
  %3552 = vmatmul.f32.gmra.mxu0 %v3130
  %v3553 = vpop.f32.mrf.mxu0
  %v3554 = vadd.f32 0.0, %v3553
  %3555 = vmatmul.f32.gmra.mxu0 %v3133
  %v3556 = vpop.f32.mrf.mxu0
  %v3557 = vadd.f32 0.0, %v3556
  %3558 = vmatmul.f32.gmra.mxu0 %v3136
  %v3559 = vpop.f32.mrf.mxu0
  %v3560 = vadd.f32 0.0, %v3559
  %3561 = vmatmul.f32.gmra.mxu0 %v3139
  %v3562 = vpop.f32.mrf.mxu0
  %v3563 = vadd.f32 0.0, %v3562
  %3564 = vmatmul.f32.gmra.mxu0 %v3142
  %v3565 = vpop.f32.mrf.mxu0
  %v3566 = vadd.f32 0.0, %v3565
  %3567 = vmatmul.f32.gmra.mxu0 %v3145
  %v3568 = vpop.f32.mrf.mxu0
  %v3569 = vadd.f32 0.0, %v3568
  %3570 = vmatmul.f32.gmra.mxu0 %v3148
  %v3571 = vpop.f32.mrf.mxu0
  %v3572 = vadd.f32 0.0, %v3571
  %3573 = vmatmul.f32.gmra.mxu0 %v3151
  %v3574 = vpop.f32.mrf.mxu0
  %v3575 = vadd.f32 0.0, %v3574
  %3576 = vmatmul.f32.gmra.mxu0 %v3154
  %v3577 = vpop.f32.mrf.mxu0
  %v3578 = vadd.f32 0.0, %v3577
  %3579 = vmatmul.f32.gmra.mxu0 %v3157
  %v3580 = vpop.f32.mrf.mxu0
  %v3581 = vadd.f32 0.0, %v3580
  %3582 = vmatmul.f32.gmra.mxu0 %v3160
  %v3583 = vpop.f32.mrf.mxu0
  %v3584 = vadd.f32 0.0, %v3583
  %3585 = vmatmul.f32.gmra.mxu0 %v3163
  %v3586 = vpop.f32.mrf.mxu0
  %v3587 = vadd.f32 0.0, %v3586
  %3588 = vmatmul.f32.gmra.mxu0 %v3166
  %v3589 = vpop.f32.mrf.mxu0
  %v3590 = vadd.f32 0.0, %v3589
  %3591 = vmatmul.f32.gmra.mxu0 %v3169
  %v3592 = vpop.f32.mrf.mxu0
  %v3593 = vadd.f32 0.0, %v3592
  %3594 = vmatmul.f32.gmra.mxu0 %v3483
  %v3595 = vpop.f32.mrf.mxu0
  %v3596 = vadd.f32 0.0, %v3595
  %3597 = vmatmul.f32.gmra.mxu0 %v3486
  %v3598 = vpop.f32.mrf.mxu0
  %v3599 = vadd.f32 0.0, %v3598
  %3600 = vmatmul.f32.gmra.mxu0 %v3489
  %v3601 = vpop.f32.mrf.mxu0
  %v3602 = vadd.f32 0.0, %v3601
  %3603 = vmatmul.f32.gmra.mxu0 %v3492
  %v3604 = vpop.f32.mrf.mxu0
  %v3605 = vadd.f32 0.0, %v3604
  %3606 = vdwg.mxu0
  %v3607 = vadd.f32 %v3450, %v3512
  %v3608 = vadd.f32 %v3451, %v3515
  %v3609 = vadd.f32 %v3452, %v3518
  %v3610 = vadd.f32 %v3453, %v3521
  %v3611 = vadd.f32 %v3454, %v3524
  %v3612 = vadd.f32 %v3455, %v3527
  %v3613 = vadd.f32 %v3456, %v3530
  %v3614 = vadd.f32 %v3457, %v3533
  %v3615 = vadd.f32 %v3458, %v3536
  %v3616 = vadd.f32 %v3459, %v3539
  %v3617 = vadd.f32 %v3460, %v3542
  %v3618 = vadd.f32 %v3461, %v3545
  %v3619 = vadd.f32 %v3462, %v3548
  %v3620 = vadd.f32 %v3463, %v3551
  %v3621 = vadd.f32 %v3464, %v3554
  %v3622 = vadd.f32 %v3465, %v3557
  %v3623 = vadd.f32 %v3466, %v3560
  %v3624 = vadd.f32 %v3467, %v3563
  %v3625 = vadd.f32 %v3468, %v3566
  %v3626 = vadd.f32 %v3469, %v3569
  %v3627 = vadd.f32 %v3470, %v3572
  %v3628 = vadd.f32 %v3471, %v3575
  %v3629 = vadd.f32 %v3472, %v3578
  %v3630 = vadd.f32 %v3473, %v3581
  %v3631 = vadd.f32 %v3474, %v3584
  %v3632 = vadd.f32 %v3475, %v3587
  %v3633 = vadd.f32 %v3476, %v3590
  %v3634 = vadd.f32 %v3477, %v3593
  %v3635 = vadd.f32 %v3478, %v3596
  %v3636 = vadd.f32 %v3479, %v3599
  %v3637 = vadd.f32 %v3480, %v3602
  %v3638 = vadd.f32 %v3481, %v3605
  %s3639 = scalar_lea.vmem %s7, 128
  %v3640 = vld [vmem:[%s3639] sm:$0xff]
  %v3641 = vld [vmem:[%s3639 + $0x8] sm:$0xff]
  %v3642 = vld [vmem:[%s3639 + $0x10] sm:$0xff]
  %v3643 = vld [vmem:[%s3639 + $0x18] sm:$0xff]
  %v3644 = vld [vmem:[%s3639 + $0x20] sm:$0xff]
  %v3645 = vld [vmem:[%s3639 + $0x28] sm:$0xff]
  %v3646 = vld [vmem:[%s3639 + $0x30] sm:$0xff]
  %v3647 = vld [vmem:[%s3639 + $0x38] sm:$0xff]
  %3648 = vmatpush.msra.mxu0 0.0
  %3649 = vmatpush.msra.mxu0 0.0
  %3650 = vmatpush.msra.mxu0 0.0
  %3651 = vmatpush.msra.mxu0 0.0
  %3652 = vmatpush.msra.mxu0 0.0
  %3653 = vmatpush.msra.mxu0 0.0
  %3654 = vmatpush.msra.mxu0 0.0
  %3655 = vmatpush.msra.mxu0 0.0
  %3656 = vmatpush.msra.mxu0 0.0
  %3657 = vmatpush.msra.mxu0 0.0
  %3658 = vmatpush.msra.mxu0 0.0
  %3659 = vmatpush.msra.mxu0 0.0
  %3660 = vmatpush.msra.mxu0 %v3643
  %3661 = vmatpush.msra.mxu0 %v3642
  %3662 = vmatpush.msra.mxu0 %v3641
  %3663 = vmatpush.msra.mxu0 %v3640
  %3664 = vmatmul.f32.gmra.mxu0 %v2868
  %v3665 = vpop.f32.mrf.mxu0
  %v3666 = vadd.f32 0.0, %v3665
  %3667 = vmatmul.f32.gmra.mxu0 %v2871
  %v3668 = vpop.f32.mrf.mxu0
  %v3669 = vadd.f32 0.0, %v3668
  %3670 = vmatmul.f32.gmra.mxu0 %v2874
  %v3671 = vpop.f32.mrf.mxu0
  %v3672 = vadd.f32 0.0, %v3671
  %3673 = vmatmul.f32.gmra.mxu0 %v2877
  %v3674 = vpop.f32.mrf.mxu0
  %v3675 = vadd.f32 0.0, %v3674
  %3676 = vmatmul.f32.gmra.mxu0 %v2880
  %v3677 = vpop.f32.mrf.mxu0
  %v3678 = vadd.f32 0.0, %v3677
  %3679 = vmatmul.f32.gmra.mxu0 %v2883
  %v3680 = vpop.f32.mrf.mxu0
  %v3681 = vadd.f32 0.0, %v3680
  %3682 = vmatmul.f32.gmra.mxu0 %v2886
  %v3683 = vpop.f32.mrf.mxu0
  %v3684 = vadd.f32 0.0, %v3683
  %3685 = vmatmul.f32.gmra.mxu0 %v2889
  %v3686 = vpop.f32.mrf.mxu0
  %v3687 = vadd.f32 0.0, %v3686
  %3688 = vmatmul.f32.gmra.mxu0 %v2892
  %v3689 = vpop.f32.mrf.mxu0
  %v3690 = vadd.f32 0.0, %v3689
  %3691 = vmatmul.f32.gmra.mxu0 %v2895
  %v3692 = vpop.f32.mrf.mxu0
  %v3693 = vadd.f32 0.0, %v3692
  %3694 = vmatmul.f32.gmra.mxu0 %v2898
  %v3695 = vpop.f32.mrf.mxu0
  %v3696 = vadd.f32 0.0, %v3695
  %3697 = vmatmul.f32.gmra.mxu0 %v2901
  %v3698 = vpop.f32.mrf.mxu0
  %v3699 = vadd.f32 0.0, %v3698
  %3700 = vmatmul.f32.gmra.mxu0 %v2904
  %v3701 = vpop.f32.mrf.mxu0
  %v3702 = vadd.f32 0.0, %v3701
  %3703 = vmatmul.f32.gmra.mxu0 %v2907
  %v3704 = vpop.f32.mrf.mxu0
  %v3705 = vadd.f32 0.0, %v3704
  %3706 = vmatmul.f32.gmra.mxu0 %v2910
  %v3707 = vpop.f32.mrf.mxu0
  %v3708 = vadd.f32 0.0, %v3707
  %3709 = vmatmul.f32.gmra.mxu0 %v2913
  %v3710 = vpop.f32.mrf.mxu0
  %v3711 = vadd.f32 0.0, %v3710
  %3712 = vmatmul.f32.gmra.mxu0 %v2916
  %v3713 = vpop.f32.mrf.mxu0
  %v3714 = vadd.f32 0.0, %v3713
  %3715 = vmatmul.f32.gmra.mxu0 %v2919
  %v3716 = vpop.f32.mrf.mxu0
  %v3717 = vadd.f32 0.0, %v3716
  %3718 = vmatmul.f32.gmra.mxu0 %v2922
  %v3719 = vpop.f32.mrf.mxu0
  %v3720 = vadd.f32 0.0, %v3719
  %3721 = vmatmul.f32.gmra.mxu0 %v2925
  %v3722 = vpop.f32.mrf.mxu0
  %v3723 = vadd.f32 0.0, %v3722
  %3724 = vmatmul.f32.gmra.mxu0 %v2928
  %v3725 = vpop.f32.mrf.mxu0
  %v3726 = vadd.f32 0.0, %v3725
  %3727 = vmatmul.f32.gmra.mxu0 %v2931
  %v3728 = vpop.f32.mrf.mxu0
  %v3729 = vadd.f32 0.0, %v3728
  %3730 = vmatmul.f32.gmra.mxu0 %v2934
  %v3731 = vpop.f32.mrf.mxu0
  %v3732 = vadd.f32 0.0, %v3731
  %3733 = vmatmul.f32.gmra.mxu0 %v2937
  %v3734 = vpop.f32.mrf.mxu0
  %v3735 = vadd.f32 0.0, %v3734
  %3736 = vmatmul.f32.gmra.mxu0 %v3326
  %v3737 = vpop.f32.mrf.mxu0
  %v3738 = vadd.f32 0.0, %v3737
  %3739 = vmatmul.f32.gmra.mxu0 %v3329
  %v3740 = vpop.f32.mrf.mxu0
  %v3741 = vadd.f32 0.0, %v3740
  %3742 = vmatmul.f32.gmra.mxu0 %v3332
  %v3743 = vpop.f32.mrf.mxu0
  %v3744 = vadd.f32 0.0, %v3743
  %3745 = vmatmul.f32.gmra.mxu0 %v3335
  %v3746 = vpop.f32.mrf.mxu0
  %v3747 = vadd.f32 0.0, %v3746
  %3748 = vmatmul.f32.gmra.mxu0 %v2853
  %v3749 = vpop.f32.mrf.mxu0
  %v3750 = vadd.f32 0.0, %v3749
  %3751 = vmatmul.f32.gmra.mxu0 %v2853
  %v3752 = vpop.f32.mrf.mxu0
  %v3753 = vadd.f32 0.0, %v3752
  %3754 = vmatmul.f32.gmra.mxu0 %v2853
  %v3755 = vpop.f32.mrf.mxu0
  %v3756 = vadd.f32 0.0, %v3755
  %3757 = vmatmul.f32.gmra.mxu0 %v2853
  %v3758 = vpop.f32.mrf.mxu0
  %v3759 = vadd.f32 0.0, %v3758
  %3760 = vdwg.mxu0
  %v3761 = vadd.f32 %v3607, %v3666
  %v3762 = vadd.f32 %v3608, %v3669
  %v3763 = vadd.f32 %v3609, %v3672
  %v3764 = vadd.f32 %v3610, %v3675
  %v3765 = vadd.f32 %v3611, %v3678
  %v3766 = vadd.f32 %v3612, %v3681
  %v3767 = vadd.f32 %v3613, %v3684
  %v3768 = vadd.f32 %v3614, %v3687
  %v3769 = vadd.f32 %v3615, %v3690
  %v3770 = vadd.f32 %v3616, %v3693
  %v3771 = vadd.f32 %v3617, %v3696
  %v3772 = vadd.f32 %v3618, %v3699
  %v3773 = vadd.f32 %v3619, %v3702
  %v3774 = vadd.f32 %v3620, %v3705
  %v3775 = vadd.f32 %v3621, %v3708
  %v3776 = vadd.f32 %v3622, %v3711
  %v3777 = vadd.f32 %v3623, %v3714
  %v3778 = vadd.f32 %v3624, %v3717
  %v3779 = vadd.f32 %v3625, %v3720
  %v3780 = vadd.f32 %v3626, %v3723
  %v3781 = vadd.f32 %v3627, %v3726
  %v3782 = vadd.f32 %v3628, %v3729
  %v3783 = vadd.f32 %v3629, %v3732
  %v3784 = vadd.f32 %v3630, %v3735
  %v3785 = vadd.f32 %v3631, %v3738
  %v3786 = vadd.f32 %v3632, %v3741
  %v3787 = vadd.f32 %v3633, %v3744
  %v3788 = vadd.f32 %v3634, %v3747
  %v3789 = vadd.f32 %v3635, %v3750
  %v3790 = vadd.f32 %v3636, %v3753
  %v3791 = vadd.f32 %v3637, %v3756
  %v3792 = vadd.f32 %v3638, %v3759
  %3793 = vmatpush.msra.mxu0 0.0
  %3794 = vmatpush.msra.mxu0 0.0
  %3795 = vmatpush.msra.mxu0 0.0
  %3796 = vmatpush.msra.mxu0 0.0
  %3797 = vmatpush.msra.mxu0 0.0
  %3798 = vmatpush.msra.mxu0 0.0
  %3799 = vmatpush.msra.mxu0 0.0
  %3800 = vmatpush.msra.mxu0 0.0
  %3801 = vmatpush.msra.mxu0 0.0
  %3802 = vmatpush.msra.mxu0 0.0
  %3803 = vmatpush.msra.mxu0 0.0
  %3804 = vmatpush.msra.mxu0 0.0
  %3805 = vmatpush.msra.mxu0 %v3647
  %3806 = vmatpush.msra.mxu0 %v3646
  %3807 = vmatpush.msra.mxu0 %v3645
  %3808 = vmatpush.msra.mxu0 %v3644
  %3809 = vmatmul.f32.gmra.mxu0 %v3100
  %v3810 = vpop.f32.mrf.mxu0
  %v3811 = vadd.f32 0.0, %v3810
  %3812 = vmatmul.f32.gmra.mxu0 %v3103
  %v3813 = vpop.f32.mrf.mxu0
  %v3814 = vadd.f32 0.0, %v3813
  %3815 = vmatmul.f32.gmra.mxu0 %v3106
  %v3816 = vpop.f32.mrf.mxu0
  %v3817 = vadd.f32 0.0, %v3816
  %3818 = vmatmul.f32.gmra.mxu0 %v3109
  %v3819 = vpop.f32.mrf.mxu0
  %v3820 = vadd.f32 0.0, %v3819
  %3821 = vmatmul.f32.gmra.mxu0 %v3112
  %v3822 = vpop.f32.mrf.mxu0
  %v3823 = vadd.f32 0.0, %v3822
  %3824 = vmatmul.f32.gmra.mxu0 %v3115
  %v3825 = vpop.f32.mrf.mxu0
  %v3826 = vadd.f32 0.0, %v3825
  %3827 = vmatmul.f32.gmra.mxu0 %v3118
  %v3828 = vpop.f32.mrf.mxu0
  %v3829 = vadd.f32 0.0, %v3828
  %3830 = vmatmul.f32.gmra.mxu0 %v3121
  %v3831 = vpop.f32.mrf.mxu0
  %v3832 = vadd.f32 0.0, %v3831
  %3833 = vmatmul.f32.gmra.mxu0 %v3124
  %v3834 = vpop.f32.mrf.mxu0
  %v3835 = vadd.f32 0.0, %v3834
  %3836 = vmatmul.f32.gmra.mxu0 %v3127
  %v3837 = vpop.f32.mrf.mxu0
  %v3838 = vadd.f32 0.0, %v3837
  %3839 = vmatmul.f32.gmra.mxu0 %v3130
  %v3840 = vpop.f32.mrf.mxu0
  %v3841 = vadd.f32 0.0, %v3840
  %3842 = vmatmul.f32.gmra.mxu0 %v3133
  %v3843 = vpop.f32.mrf.mxu0
  %v3844 = vadd.f32 0.0, %v3843
  %3845 = vmatmul.f32.gmra.mxu0 %v3136
  %v3846 = vpop.f32.mrf.mxu0
  %v3847 = vadd.f32 0.0, %v3846
  %3848 = vmatmul.f32.gmra.mxu0 %v3139
  %v3849 = vpop.f32.mrf.mxu0
  %v3850 = vadd.f32 0.0, %v3849
  %3851 = vmatmul.f32.gmra.mxu0 %v3142
  %v3852 = vpop.f32.mrf.mxu0
  %v3853 = vadd.f32 0.0, %v3852
  %3854 = vmatmul.f32.gmra.mxu0 %v3145
  %v3855 = vpop.f32.mrf.mxu0
  %v3856 = vadd.f32 0.0, %v3855
  %3857 = vmatmul.f32.gmra.mxu0 %v3148
  %v3858 = vpop.f32.mrf.mxu0
  %v3859 = vadd.f32 0.0, %v3858
  %3860 = vmatmul.f32.gmra.mxu0 %v3151
  %v3861 = vpop.f32.mrf.mxu0
  %v3862 = vadd.f32 0.0, %v3861
  %3863 = vmatmul.f32.gmra.mxu0 %v3154
  %v3864 = vpop.f32.mrf.mxu0
  %v3865 = vadd.f32 0.0, %v3864
  %3866 = vmatmul.f32.gmra.mxu0 %v3157
  %v3867 = vpop.f32.mrf.mxu0
  %v3868 = vadd.f32 0.0, %v3867
  %3869 = vmatmul.f32.gmra.mxu0 %v3160
  %v3870 = vpop.f32.mrf.mxu0
  %v3871 = vadd.f32 0.0, %v3870
  %3872 = vmatmul.f32.gmra.mxu0 %v3163
  %v3873 = vpop.f32.mrf.mxu0
  %v3874 = vadd.f32 0.0, %v3873
  %3875 = vmatmul.f32.gmra.mxu0 %v3166
  %v3876 = vpop.f32.mrf.mxu0
  %v3877 = vadd.f32 0.0, %v3876
  %3878 = vmatmul.f32.gmra.mxu0 %v3169
  %v3879 = vpop.f32.mrf.mxu0
  %v3880 = vadd.f32 0.0, %v3879
  %3881 = vmatmul.f32.gmra.mxu0 %v3483
  %v3882 = vpop.f32.mrf.mxu0
  %v3883 = vadd.f32 0.0, %v3882
  %3884 = vmatmul.f32.gmra.mxu0 %v3486
  %v3885 = vpop.f32.mrf.mxu0
  %v3886 = vadd.f32 0.0, %v3885
  %3887 = vmatmul.f32.gmra.mxu0 %v3489
  %v3888 = vpop.f32.mrf.mxu0
  %v3889 = vadd.f32 0.0, %v3888
  %3890 = vmatmul.f32.gmra.mxu0 %v3492
  %v3891 = vpop.f32.mrf.mxu0
  %v3892 = vadd.f32 0.0, %v3891
  %3893 = vmatmul.f32.gmra.mxu0 %v2853
  %v3894 = vpop.f32.mrf.mxu0
  %v3895 = vadd.f32 0.0, %v3894
  %3896 = vmatmul.f32.gmra.mxu0 %v2853
  %v3897 = vpop.f32.mrf.mxu0
  %v3898 = vadd.f32 0.0, %v3897
  %3899 = vmatmul.f32.gmra.mxu0 %v2853
  %v3900 = vpop.f32.mrf.mxu0
  %v3901 = vadd.f32 0.0, %v3900
  %3902 = vmatmul.f32.gmra.mxu0 %v2853
  %v3903 = vpop.f32.mrf.mxu0
  %v3904 = vadd.f32 0.0, %v3903
  %3905 = vdwg.mxu0
  %v3906 = vadd.f32 %v3761, %v3811
  %v3907 = vadd.f32 %v3762, %v3814
  %v3908 = vadd.f32 %v3763, %v3817
  %v3909 = vadd.f32 %v3764, %v3820
  %v3910 = vadd.f32 %v3765, %v3823
  %v3911 = vadd.f32 %v3766, %v3826
  %v3912 = vadd.f32 %v3767, %v3829
  %v3913 = vadd.f32 %v3768, %v3832
  %v3914 = vadd.f32 %v3769, %v3835
  %v3915 = vadd.f32 %v3770, %v3838
  %v3916 = vadd.f32 %v3771, %v3841
  %v3917 = vadd.f32 %v3772, %v3844
  %v3918 = vadd.f32 %v3773, %v3847
  %v3919 = vadd.f32 %v3774, %v3850
  %v3920 = vadd.f32 %v3775, %v3853
  %v3921 = vadd.f32 %v3776, %v3856
  %v3922 = vadd.f32 %v3777, %v3859
  %v3923 = vadd.f32 %v3778, %v3862
  %v3924 = vadd.f32 %v3779, %v3865
  %v3925 = vadd.f32 %v3780, %v3868
  %v3926 = vadd.f32 %v3781, %v3871
  %v3927 = vadd.f32 %v3782, %v3874
  %v3928 = vadd.f32 %v3783, %v3877
  %v3929 = vadd.f32 %v3784, %v3880
  %v3930 = vadd.f32 %v3785, %v3883
  %v3931 = vadd.f32 %v3786, %v3886
  %v3932 = vadd.f32 %v3787, %v3889
  %v3933 = vadd.f32 %v3788, %v3892
  %v3934 = vadd.f32 %v3789, %v3895
  %v3935 = vadd.f32 %v3790, %v3898
  %v3936 = vadd.f32 %v3791, %v3901
  %v3937 = vadd.f32 %v3792, %v3904
  %v3938 = vadd.f32 %v3906, %v625
  %v3939 = vadd.f32 %v3907, %v626
  %v3940 = vadd.f32 %v3908, %v627
  %v3941 = vadd.f32 %v3909, %v628
  %v3942 = vadd.f32 %v3910, %v629
  %v3943 = vadd.f32 %v3911, %v630
  %v3944 = vadd.f32 %v3912, %v631
  %v3945 = vadd.f32 %v3913, %v632
  %v3946 = vadd.f32 %v3914, %v633
  %v3947 = vadd.f32 %v3915, %v634
  %v3948 = vadd.f32 %v3916, %v635
  %v3949 = vadd.f32 %v3917, %v636
  %v3950 = vadd.f32 %v3918, %v637
  %v3951 = vadd.f32 %v3919, %v638
  %v3952 = vadd.f32 %v3920, %v639
  %v3953 = vadd.f32 %v3921, %v640
  %v3954 = vadd.f32 %v3922, %v641
  %v3955 = vadd.f32 %v3923, %v642
  %v3956 = vadd.f32 %v3924, %v643
  %v3957 = vadd.f32 %v3925, %v644
  %v3958 = vadd.f32 %v3926, %v645
  %v3959 = vadd.f32 %v3927, %v646
  %v3960 = vadd.f32 %v3928, %v647
  %v3961 = vadd.f32 %v3929, %v648
  %v3962 = vadd.f32 %v3930, %v649
  %v3963 = vadd.f32 %v3931, %v650
  %v3964 = vadd.f32 %v3932, %v651
  %v3965 = vadd.f32 %v3933, %v652
  %v3966 = vadd.f32 %v3934, %v653
  %v3967 = vadd.f32 %v3935, %v654
  %v3968 = vadd.f32 %v3936, %v655
  %v3969 = vadd.f32 %v3937, %v656
  %v3970 = vld [vmem:[%s9] sm:$0xff]
  %v3971 = vld [vmem:[%s9 + $0x8] sm:$0xff]
  %v3972 = vld [vmem:[%s10] sm:$0xff]
  %v3973 = vld [vmem:[%s10 + $0x8] sm:$0x3]
  %vm3974 = vcmask 80896
  %v3976 = vsel %vm3974, %v3970, 0
  %v3979 = vsel %vm3974, %v3971, 0
  %vm3981 = vcmask 1041408
  %v3983 = vsel %vm3981, %v3973, 0
  %3985 = vmatpush.msra.mxu0 0.0
  %3986 = vmatpush.msra.mxu0 0.0
  %3987 = vmatpush.msra.mxu0 0.0
  %3988 = vmatpush.msra.mxu0 0.0
  %3989 = vmatpush.msra.mxu0 0.0
  %3990 = vmatpush.msra.mxu0 0.0
  %3991 = vmatpush.msra.mxu0 0.0
  %3992 = vmatpush.msra.mxu0 0.0
  %3993 = vmatpush.msra.mxu0 0.0
  %3994 = vmatpush.msra.mxu0 0.0
  %3995 = vmatpush.msra.mxu0 0.0
  %3996 = vmatpush.msra.mxu0 0.0
  %3997 = vmatpush.msra.mxu0 0.0
  %3998 = vmatpush.msra.mxu0 0.0
  %3999 = vmatpush.msra.mxu0 %v3983
  %4000 = vmatpush.msra.mxu0 %v3972
  %4001 = vmatmul.f32.gmra.mxu0 %v3976
  %v4002 = vpop.f32.mrf.mxu0
  %v4003 = vadd.f32 0.0, %v4002
  %4004 = vmatmul.f32.gmra.mxu0 %v3979
  %v4005 = vpop.f32.mrf.mxu0
  %v4006 = vadd.f32 0.0, %v4005
  %4007 = vdwg.mxu0
  %v4008 = vmax.f32 %v4003, 0.0
  %v4009 = vmax.f32 %v4006, 0.0
  %vm4010 = vcmask 130048
  %v4011 = vsel %vm4010, %v4008, -inf
  %v4012 = vsel %vm4010, %v4009, -inf
  %v4013 = vmax.f32 %v4011, %v4012
  %v4014 = vrot.slane %v4013, 4
  %v4015 = vmax.f32 %v4013, %v4014
  %v4016 = vrot.slane %v4015, 2
  %v4017 = vmax.f32 %v4015, %v4016
  %v4018 = vrot.slane %v4017, 1
  %v4019 = vmax.f32 %v4017, %v4018
  %v4020 = vsub.f32 %v4008, %v4019
  %v4021 = vsub.f32 %v4009, %v4019
  %v4022 = vmul.f32 %v4020, 1.442695
  %v4023 = vpow.pop %v4022
  %v4024 = vmul.f32 %v4021, 1.442695
  %v4025 = vpow.pop %v4024
  %v4026 = vsel %vm4010, %v4023, 0.0
  %v4027 = vsel %vm4010, %v4025, 0.0
  %v4028 = vadd.f32 %v4026, %v4027
  %v4029 = vrot.slane %v4028, 4
  %v4030 = vadd.f32 %v4028, %v4029
  %v4031 = vrot.slane %v4030, 2
  %v4032 = vadd.f32 %v4030, %v4031
  %v4033 = vrot.slane %v4032, 1
  %v4034 = vadd.f32 %v4032, %v4033
  %v4035 = vrcp.pop %v4034
  %v4036 = vmul.f32 %v4034, %v4035
  %v4037 = vsub.f32 1.0, %v4036
  %v4038 = vmul.f32 %v4035, %v4037
  %v4039 = vadd.f32 %v4035, %v4038
  %vm4040 = vweird.f32 %v4034
  %vm4041 = vweird.f32 %v4035
  %vm4042 = vmor %vm4040, %vm4041
  %v4043 = vsel %vm4042, %v4035, %v4039
  %v4044 = vand.u32 2147483647, %v4034
  %vm4045 = vcmp.eq.f32.partialorder %v4044, 8.507059e+37
  %v4046 = vand.u32 %v4034, 2147483648
  %v4047 = vor.u32 1.1754944e-38, %v4046
  %v4048 = vsel %vm4045, %v4047, %v4043
  %v4049 = vmul.f32 %v4023, %v4048
  %v4050 = vmul.f32 %v4025, %v4048
  %v4051 = vld [vmem:[%s11] sm:$0xff]
  %v4052 = vld [vmem:[%s11 + $0x8] sm:$0xff]
  %s4053 = scalar_lea.vmem %s11, 16
  %v4054 = vld [vmem:[%s4053] sm:$0xff]
  %v4055 = vld [vmem:[%s4053 + $0x8] sm:$0xff]
  %v4056 = vld [vmem:[%s12] sm:$0xff]
  %v4057 = vld [vmem:[%s12 + $0x8] sm:$0xff]
  %v4058 = vld [vmem:[%s12 + $0x10] sm:$0xff]
  %v4059 = vld [vmem:[%s12 + $0x18] sm:$0xff]
  %s4060 = scalar_lea.vmem %s12, 32
  %v4061 = vld [vmem:[%s4060] sm:$0xff]
  %v4062 = vld [vmem:[%s4060 + $0x8] sm:$0xff]
  %v4063 = vld [vmem:[%s4060 + $0x10] sm:$0xff]
  %v4064 = vld [vmem:[%s4060 + $0x18] sm:$0xff]
  %v4066 = vsel %vm2852, %v3942, 0
  %v4069 = vsel %vm2852, %v3943, 0
  %v4072 = vsel %vm2852, %v3944, 0
  %v4075 = vsel %vm2852, %v3945, 0
  %v4078 = vsel %vm2852, %v3946, 0
  %v4081 = vsel %vm2852, %v3947, 0
  %v4084 = vsel %vm2852, %v3948, 0
  %v4087 = vsel %vm2852, %v3949, 0
  %v4090 = vsel %vm2852, %v3950, 0
  %v4093 = vsel %vm2852, %v3951, 0
  %v4096 = vsel %vm2852, %v3952, 0
  %v4099 = vsel %vm2852, %v3953, 0
  %v4102 = vsel %vm2852, %v3954, 0
  %v4105 = vsel %vm2852, %v3955, 0
  %v4108 = vsel %vm2852, %v3956, 0
  %v4111 = vsel %vm2852, %v3957, 0
  %v4114 = vsel %vm2852, %v3958, 0
  %v4117 = vsel %vm2852, %v3959, 0
  %v4120 = vsel %vm2852, %v3960, 0
  %v4123 = vsel %vm2852, %v3961, 0
  %v4126 = vsel %vm2852, %v3962, 0
  %v4129 = vsel %vm2852, %v3963, 0
  %v4132 = vsel %vm2852, %v3964, 0
  %v4135 = vsel %vm2852, %v3965, 0
  %v4138 = vsel %vm2852, %v3966, 0
  %v4141 = vsel %vm2852, %v3967, 0
  %v4144 = vsel %vm2852, %v3968, 0
  %v4147 = vsel %vm2852, %v3969, 0
  %4149 = vmatpush.msra.mxu0 0.0
  %4150 = vmatpush.msra.mxu0 0.0
  %4151 = vmatpush.msra.mxu0 0.0
  %4152 = vmatpush.msra.mxu0 0.0
  %4153 = vmatpush.msra.mxu0 0.0
  %4154 = vmatpush.msra.mxu0 0.0
  %4155 = vmatpush.msra.mxu0 0.0
  %4156 = vmatpush.msra.mxu0 0.0
  %4157 = vmatpush.msra.mxu0 0.0
  %4158 = vmatpush.msra.mxu0 0.0
  %4159 = vmatpush.msra.mxu0 0.0
  %4160 = vmatpush.msra.mxu0 0.0
  %4161 = vmatpush.msra.mxu0 %v4064
  %4162 = vmatpush.msra.mxu0 %v4063
  %4163 = vmatpush.msra.mxu0 %v4062
  %4164 = vmatpush.msra.mxu0 %v4061
  %4165 = vmatmul.f32.gmra.mxu0 %v4066
  %v4166 = vpop.f32.mrf.mxu0
  %v4167 = vadd.f32 0.0, %v4166
  %4168 = vmatmul.f32.gmra.mxu0 %v4069
  %v4169 = vpop.f32.mrf.mxu0
  %v4170 = vadd.f32 0.0, %v4169
  %4171 = vmatmul.f32.gmra.mxu0 %v4072
  %v4172 = vpop.f32.mrf.mxu0
  %v4173 = vadd.f32 0.0, %v4172
  %4174 = vmatmul.f32.gmra.mxu0 %v4075
  %v4175 = vpop.f32.mrf.mxu0
  %v4176 = vadd.f32 0.0, %v4175
  %4177 = vmatmul.f32.gmra.mxu0 %v4078
  %v4178 = vpop.f32.mrf.mxu0
  %v4179 = vadd.f32 0.0, %v4178
  %4180 = vmatmul.f32.gmra.mxu0 %v4081
  %v4181 = vpop.f32.mrf.mxu0
  %v4182 = vadd.f32 0.0, %v4181
  %4183 = vmatmul.f32.gmra.mxu0 %v4084
  %v4184 = vpop.f32.mrf.mxu0
  %v4185 = vadd.f32 0.0, %v4184
  %4186 = vmatmul.f32.gmra.mxu0 %v4087
  %v4187 = vpop.f32.mrf.mxu0
  %v4188 = vadd.f32 0.0, %v4187
  %4189 = vmatmul.f32.gmra.mxu0 %v4090
  %v4190 = vpop.f32.mrf.mxu0
  %v4191 = vadd.f32 0.0, %v4190
  %4192 = vmatmul.f32.gmra.mxu0 %v4093
  %v4193 = vpop.f32.mrf.mxu0
  %v4194 = vadd.f32 0.0, %v4193
  %4195 = vmatmul.f32.gmra.mxu0 %v4096
  %v4196 = vpop.f32.mrf.mxu0
  %v4197 = vadd.f32 0.0, %v4196
  %4198 = vmatmul.f32.gmra.mxu0 %v4099
  %v4199 = vpop.f32.mrf.mxu0
  %v4200 = vadd.f32 0.0, %v4199
  %4201 = vmatmul.f32.gmra.mxu0 %v4102
  %v4202 = vpop.f32.mrf.mxu0
  %v4203 = vadd.f32 0.0, %v4202
  %4204 = vmatmul.f32.gmra.mxu0 %v4105
  %v4205 = vpop.f32.mrf.mxu0
  %v4206 = vadd.f32 0.0, %v4205
  %4207 = vmatmul.f32.gmra.mxu0 %v4108
  %v4208 = vpop.f32.mrf.mxu0
  %v4209 = vadd.f32 0.0, %v4208
  %4210 = vmatmul.f32.gmra.mxu0 %v4111
  %v4211 = vpop.f32.mrf.mxu0
  %v4212 = vadd.f32 0.0, %v4211
  %4213 = vmatmul.f32.gmra.mxu0 %v4114
  %v4214 = vpop.f32.mrf.mxu0
  %v4215 = vadd.f32 0.0, %v4214
  %4216 = vmatmul.f32.gmra.mxu0 %v4117
  %v4217 = vpop.f32.mrf.mxu0
  %v4218 = vadd.f32 0.0, %v4217
  %4219 = vmatmul.f32.gmra.mxu0 %v4120
  %v4220 = vpop.f32.mrf.mxu0
  %v4221 = vadd.f32 0.0, %v4220
  %4222 = vmatmul.f32.gmra.mxu0 %v4123
  %v4223 = vpop.f32.mrf.mxu0
  %v4224 = vadd.f32 0.0, %v4223
  %4225 = vmatmul.f32.gmra.mxu0 %v4126
  %v4226 = vpop.f32.mrf.mxu0
  %v4227 = vadd.f32 0.0, %v4226
  %4228 = vmatmul.f32.gmra.mxu0 %v4129
  %v4229 = vpop.f32.mrf.mxu0
  %v4230 = vadd.f32 0.0, %v4229
  %4231 = vmatmul.f32.gmra.mxu0 %v4132
  %v4232 = vpop.f32.mrf.mxu0
  %v4233 = vadd.f32 0.0, %v4232
  %4234 = vmatmul.f32.gmra.mxu0 %v4135
  %v4235 = vpop.f32.mrf.mxu0
  %v4236 = vadd.f32 0.0, %v4235
  %4237 = vmatmul.f32.gmra.mxu0 %v4138
  %v4238 = vpop.f32.mrf.mxu0
  %v4239 = vadd.f32 0.0, %v4238
  %4240 = vmatmul.f32.gmra.mxu0 %v4141
  %v4241 = vpop.f32.mrf.mxu0
  %v4242 = vadd.f32 0.0, %v4241
  %4243 = vmatmul.f32.gmra.mxu0 %v4144
  %v4244 = vpop.f32.mrf.mxu0
  %v4245 = vadd.f32 0.0, %v4244
  %4246 = vmatmul.f32.gmra.mxu0 %v4147
  %v4247 = vpop.f32.mrf.mxu0
  %v4248 = vadd.f32 0.0, %v4247
  %4249 = vdwg.mxu0
  %v4251 = vsel %vm2852, %v3938, 0
  %v4254 = vsel %vm2852, %v3939, 0
  %v4257 = vsel %vm2852, %v3940, 0
  %v4260 = vsel %vm2852, %v3941, 0
  %4262 = vmatpush.msra.mxu0 0.0
  %4263 = vmatpush.msra.mxu0 0.0
  %4264 = vmatpush.msra.mxu0 0.0
  %4265 = vmatpush.msra.mxu0 0.0
  %4266 = vmatpush.msra.mxu0 0.0
  %4267 = vmatpush.msra.mxu0 0.0
  %4268 = vmatpush.msra.mxu0 0.0
  %4269 = vmatpush.msra.mxu0 0.0
  %4270 = vmatpush.msra.mxu0 0.0
  %4271 = vmatpush.msra.mxu0 0.0
  %4272 = vmatpush.msra.mxu0 0.0
  %4273 = vmatpush.msra.mxu0 0.0
  %4274 = vmatpush.msra.mxu0 %v4059
  %4275 = vmatpush.msra.mxu0 %v4058
  %4276 = vmatpush.msra.mxu0 %v4057
  %4277 = vmatpush.msra.mxu0 %v4056
  %4278 = vmatmul.f32.gmra.mxu0 %v4251
  %v4279 = vpop.f32.mrf.mxu0
  %v4280 = vadd.f32 %v4167, %v4279
  %4281 = vmatmul.f32.gmra.mxu0 %v4254
  %v4282 = vpop.f32.mrf.mxu0
  %v4283 = vadd.f32 %v4170, %v4282
  %4284 = vmatmul.f32.gmra.mxu0 %v4257
  %v4285 = vpop.f32.mrf.mxu0
  %v4286 = vadd.f32 %v4173, %v4285
  %4287 = vmatmul.f32.gmra.mxu0 %v4260
  %v4288 = vpop.f32.mrf.mxu0
  %v4289 = vadd.f32 %v4176, %v4288
  %4290 = vmatmul.f32.gmra.mxu0 %v4066
  %v4291 = vpop.f32.mrf.mxu0
  %v4292 = vadd.f32 %v4179, %v4291
  %4293 = vmatmul.f32.gmra.mxu0 %v4069
  %v4294 = vpop.f32.mrf.mxu0
  %v4295 = vadd.f32 %v4182, %v4294
  %4296 = vmatmul.f32.gmra.mxu0 %v4072
  %v4297 = vpop.f32.mrf.mxu0
  %v4298 = vadd.f32 %v4185, %v4297
  %4299 = vmatmul.f32.gmra.mxu0 %v4075
  %v4300 = vpop.f32.mrf.mxu0
  %v4301 = vadd.f32 %v4188, %v4300
  %4302 = vmatmul.f32.gmra.mxu0 %v4078
  %v4303 = vpop.f32.mrf.mxu0
  %v4304 = vadd.f32 %v4191, %v4303
  %4305 = vmatmul.f32.gmra.mxu0 %v4081
  %v4306 = vpop.f32.mrf.mxu0
  %v4307 = vadd.f32 %v4194, %v4306
  %4308 = vmatmul.f32.gmra.mxu0 %v4084
  %v4309 = vpop.f32.mrf.mxu0
  %v4310 = vadd.f32 %v4197, %v4309
  %4311 = vmatmul.f32.gmra.mxu0 %v4087
  %v4312 = vpop.f32.mrf.mxu0
  %v4313 = vadd.f32 %v4200, %v4312
  %4314 = vmatmul.f32.gmra.mxu0 %v4090
  %v4315 = vpop.f32.mrf.mxu0
  %v4316 = vadd.f32 %v4203, %v4315
  %4317 = vmatmul.f32.gmra.mxu0 %v4093
  %v4318 = vpop.f32.mrf.mxu0
  %v4319 = vadd.f32 %v4206, %v4318
  %4320 = vmatmul.f32.gmra.mxu0 %v4096
  %v4321 = vpop.f32.mrf.mxu0
  %v4322 = vadd.f32 %v4209, %v4321
  %4323 = vmatmul.f32.gmra.mxu0 %v4099
  %v4324 = vpop.f32.mrf.mxu0
  %v4325 = vadd.f32 %v4212, %v4324
  %4326 = vmatmul.f32.gmra.mxu0 %v4102
  %v4327 = vpop.f32.mrf.mxu0
  %v4328 = vadd.f32 %v4215, %v4327
  %4329 = vmatmul.f32.gmra.mxu0 %v4105
  %v4330 = vpop.f32.mrf.mxu0
  %v4331 = vadd.f32 %v4218, %v4330
  %4332 = vmatmul.f32.gmra.mxu0 %v4108
  %v4333 = vpop.f32.mrf.mxu0
  %v4334 = vadd.f32 %v4221, %v4333
  %4335 = vmatmul.f32.gmra.mxu0 %v4111
  %v4336 = vpop.f32.mrf.mxu0
  %v4337 = vadd.f32 %v4224, %v4336
  %4338 = vmatmul.f32.gmra.mxu0 %v4114
  %v4339 = vpop.f32.mrf.mxu0
  %v4340 = vadd.f32 %v4227, %v4339
  %4341 = vmatmul.f32.gmra.mxu0 %v4117
  %v4342 = vpop.f32.mrf.mxu0
  %v4343 = vadd.f32 %v4230, %v4342
  %4344 = vmatmul.f32.gmra.mxu0 %v4120
  %v4345 = vpop.f32.mrf.mxu0
  %v4346 = vadd.f32 %v4233, %v4345
  %4347 = vmatmul.f32.gmra.mxu0 %v4123
  %v4348 = vpop.f32.mrf.mxu0
  %v4349 = vadd.f32 %v4236, %v4348
  %4350 = vmatmul.f32.gmra.mxu0 %v4126
  %v4351 = vpop.f32.mrf.mxu0
  %v4352 = vadd.f32 %v4239, %v4351
  %4353 = vmatmul.f32.gmra.mxu0 %v4129
  %v4354 = vpop.f32.mrf.mxu0
  %v4355 = vadd.f32 %v4242, %v4354
  %4356 = vmatmul.f32.gmra.mxu0 %v4132
  %v4357 = vpop.f32.mrf.mxu0
  %v4358 = vadd.f32 %v4245, %v4357
  %4359 = vmatmul.f32.gmra.mxu0 %v4135
  %v4360 = vpop.f32.mrf.mxu0
  %v4361 = vadd.f32 %v4248, %v4360
  %4362 = vdwg.mxu0
  %v4363 = vld [vmem:[%s13] sm:$0x1]
  %v4365 = vperm.slane %v4363, 0
  %v4367 = vadd.f32 %v4280, %v4365
  %v4368 = vadd.f32 %v4283, %v4365
  %v4369 = vadd.f32 %v4286, %v4365
  %v4370 = vadd.f32 %v4289, %v4365
  %v4371 = vadd.f32 %v4292, %v4365
  %v4372 = vadd.f32 %v4295, %v4365
  %v4373 = vadd.f32 %v4298, %v4365
  %v4374 = vadd.f32 %v4301, %v4365
  %v4375 = vadd.f32 %v4304, %v4365
  %v4376 = vadd.f32 %v4307, %v4365
  %v4377 = vadd.f32 %v4310, %v4365
  %v4378 = vadd.f32 %v4313, %v4365
  %v4379 = vadd.f32 %v4316, %v4365
  %v4380 = vadd.f32 %v4319, %v4365
  %v4381 = vadd.f32 %v4322, %v4365
  %v4382 = vadd.f32 %v4325, %v4365
  %v4383 = vadd.f32 %v4328, %v4365
  %v4384 = vadd.f32 %v4331, %v4365
  %v4385 = vadd.f32 %v4334, %v4365
  %v4386 = vadd.f32 %v4337, %v4365
  %v4387 = vadd.f32 %v4340, %v4365
  %v4388 = vadd.f32 %v4343, %v4365
  %v4389 = vadd.f32 %v4346, %v4365
  %v4390 = vadd.f32 %v4349, %v4365
  %v4391 = vadd.f32 %v4352, %v4365
  %v4392 = vadd.f32 %v4355, %v4365
  %v4393 = vadd.f32 %v4358, %v4365
  %v4394 = vadd.f32 %v4361, %v4365
  %v4395 = vtanh.pop %v4367
  %v4396 = vtanh.pop %v4368
  %v4397 = vtanh.pop %v4369
  %v4398 = vtanh.pop %v4370
  %v4399 = vtanh.pop %v4371
  %v4400 = vtanh.pop %v4372
  %v4401 = vtanh.pop %v4373
  %v4402 = vtanh.pop %v4374
  %v4403 = vtanh.pop %v4375
  %v4404 = vtanh.pop %v4376
  %v4405 = vtanh.pop %v4377
  %v4406 = vtanh.pop %v4378
  %v4407 = vtanh.pop %v4379
  %v4408 = vtanh.pop %v4380
  %v4409 = vtanh.pop %v4381
  %v4410 = vtanh.pop %v4382
  %v4411 = vtanh.pop %v4383
  %v4412 = vtanh.pop %v4384
  %v4413 = vtanh.pop %v4385
  %v4414 = vtanh.pop %v4386
  %v4415 = vtanh.pop %v4387
  %v4416 = vtanh.pop %v4388
  %v4417 = vtanh.pop %v4389
  %v4418 = vtanh.pop %v4390
  %v4419 = vtanh.pop %v4391
  %v4420 = vtanh.pop %v4392
  %v4421 = vtanh.pop %v4393
  %v4422 = vtanh.pop %v4394
  %v4423 = vld [vmem:[%s14] sm:$0xff]
  %v4424 = vld [vmem:[%s14 + $0x8] sm:$0xff]
  %v4425 = vld [vmem:[%s14 + $0x10] sm:$0xff]
  %v4426 = vld [vmem:[%s14 + $0x18] sm:$0xff]
  %s4427 = scalar_lea.vmem %s14, 32
  %v4428 = vld [vmem:[%s4427] sm:$0xff]
  %v4429 = vld [vmem:[%s4427 + $0x8] sm:$0xff]
  %v4430 = vld [vmem:[%s4427 + $0x10] sm:$0xff]
  %v4431 = vld [vmem:[%s4427 + $0x18] sm:$0xff]
  %4432 = vmatpush.msra.mxu0 0.0
  %4433 = vmatpush.msra.mxu0 0.0
  %4434 = vmatpush.msra.mxu0 0.0
  %4435 = vmatpush.msra.mxu0 0.0
  %4436 = vmatpush.msra.mxu0 0.0
  %4437 = vmatpush.msra.mxu0 0.0
  %4438 = vmatpush.msra.mxu0 0.0
  %4439 = vmatpush.msra.mxu0 0.0
  %4440 = vmatpush.msra.mxu0 0.0
  %4441 = vmatpush.msra.mxu0 0.0
  %4442 = vmatpush.msra.mxu0 0.0
  %4443 = vmatpush.msra.mxu0 0.0
  %4444 = vmatpush.msra.mxu0 %v4431
  %4445 = vmatpush.msra.mxu0 %v4430
  %4446 = vmatpush.msra.mxu0 %v4429
  %4447 = vmatpush.msra.mxu0 %v4428
  %4448 = vmatmul.f32.gmra.mxu0 %v4066
  %v4449 = vpop.f32.mrf.mxu0
  %v4450 = vadd.f32 0.0, %v4449
  %4451 = vmatmul.f32.gmra.mxu0 %v4069
  %v4452 = vpop.f32.mrf.mxu0
  %v4453 = vadd.f32 0.0, %v4452
  %4454 = vmatmul.f32.gmra.mxu0 %v4072
  %v4455 = vpop.f32.mrf.mxu0
  %v4456 = vadd.f32 0.0, %v4455
  %4457 = vmatmul.f32.gmra.mxu0 %v4075
  %v4458 = vpop.f32.mrf.mxu0
  %v4459 = vadd.f32 0.0, %v4458
  %4460 = vmatmul.f32.gmra.mxu0 %v4078
  %v4461 = vpop.f32.mrf.mxu0
  %v4462 = vadd.f32 0.0, %v4461
  %4463 = vmatmul.f32.gmra.mxu0 %v4081
  %v4464 = vpop.f32.mrf.mxu0
  %v4465 = vadd.f32 0.0, %v4464
  %4466 = vmatmul.f32.gmra.mxu0 %v4084
  %v4467 = vpop.f32.mrf.mxu0
  %v4468 = vadd.f32 0.0, %v4467
  %4469 = vmatmul.f32.gmra.mxu0 %v4087
  %v4470 = vpop.f32.mrf.mxu0
  %v4471 = vadd.f32 0.0, %v4470
  %4472 = vmatmul.f32.gmra.mxu0 %v4090
  %v4473 = vpop.f32.mrf.mxu0
  %v4474 = vadd.f32 0.0, %v4473
  %4475 = vmatmul.f32.gmra.mxu0 %v4093
  %v4476 = vpop.f32.mrf.mxu0
  %v4477 = vadd.f32 0.0, %v4476
  %4478 = vmatmul.f32.gmra.mxu0 %v4096
  %v4479 = vpop.f32.mrf.mxu0
  %v4480 = vadd.f32 0.0, %v4479
  %4481 = vmatmul.f32.gmra.mxu0 %v4099
  %v4482 = vpop.f32.mrf.mxu0
  %v4483 = vadd.f32 0.0, %v4482
  %4484 = vmatmul.f32.gmra.mxu0 %v4102
  %v4485 = vpop.f32.mrf.mxu0
  %v4486 = vadd.f32 0.0, %v4485
  %4487 = vmatmul.f32.gmra.mxu0 %v4105
  %v4488 = vpop.f32.mrf.mxu0
  %v4489 = vadd.f32 0.0, %v4488
  %4490 = vmatmul.f32.gmra.mxu0 %v4108
  %v4491 = vpop.f32.mrf.mxu0
  %v4492 = vadd.f32 0.0, %v4491
  %4493 = vmatmul.f32.gmra.mxu0 %v4111
  %v4494 = vpop.f32.mrf.mxu0
  %v4495 = vadd.f32 0.0, %v4494
  %4496 = vmatmul.f32.gmra.mxu0 %v4114
  %v4497 = vpop.f32.mrf.mxu0
  %v4498 = vadd.f32 0.0, %v4497
  %4499 = vmatmul.f32.gmra.mxu0 %v4117
  %v4500 = vpop.f32.mrf.mxu0
  %v4501 = vadd.f32 0.0, %v4500
  %4502 = vmatmul.f32.gmra.mxu0 %v4120
  %v4503 = vpop.f32.mrf.mxu0
  %v4504 = vadd.f32 0.0, %v4503
  %4505 = vmatmul.f32.gmra.mxu0 %v4123
  %v4506 = vpop.f32.mrf.mxu0
  %v4507 = vadd.f32 0.0, %v4506
  %4508 = vmatmul.f32.gmra.mxu0 %v4126
  %v4509 = vpop.f32.mrf.mxu0
  %v4510 = vadd.f32 0.0, %v4509
  %4511 = vmatmul.f32.gmra.mxu0 %v4129
  %v4512 = vpop.f32.mrf.mxu0
  %v4513 = vadd.f32 0.0, %v4512
  %4514 = vmatmul.f32.gmra.mxu0 %v4132
  %v4515 = vpop.f32.mrf.mxu0
  %v4516 = vadd.f32 0.0, %v4515
  %4517 = vmatmul.f32.gmra.mxu0 %v4135
  %v4518 = vpop.f32.mrf.mxu0
  %v4519 = vadd.f32 0.0, %v4518
  %4520 = vmatmul.f32.gmra.mxu0 %v4138
  %v4521 = vpop.f32.mrf.mxu0
  %v4522 = vadd.f32 0.0, %v4521
  %4523 = vmatmul.f32.gmra.mxu0 %v4141
  %v4524 = vpop.f32.mrf.mxu0
  %v4525 = vadd.f32 0.0, %v4524
  %4526 = vmatmul.f32.gmra.mxu0 %v4144
  %v4527 = vpop.f32.mrf.mxu0
  %v4528 = vadd.f32 0.0, %v4527
  %4529 = vmatmul.f32.gmra.mxu0 %v4147
  %v4530 = vpop.f32.mrf.mxu0
  %v4531 = vadd.f32 0.0, %v4530
  %4532 = vdwg.mxu0
  %4533 = vmatpush.msra.mxu0 0.0
  %4534 = vmatpush.msra.mxu0 0.0
  %4535 = vmatpush.msra.mxu0 0.0
  %4536 = vmatpush.msra.mxu0 0.0
  %4537 = vmatpush.msra.mxu0 0.0
  %4538 = vmatpush.msra.mxu0 0.0
  %4539 = vmatpush.msra.mxu0 0.0
  %4540 = vmatpush.msra.mxu0 0.0
  %4541 = vmatpush.msra.mxu0 0.0
  %4542 = vmatpush.msra.mxu0 0.0
  %4543 = vmatpush.msra.mxu0 0.0
  %4544 = vmatpush.msra.mxu0 0.0
  %4545 = vmatpush.msra.mxu0 %v4426
  %4546 = vmatpush.msra.mxu0 %v4425
  %4547 = vmatpush.msra.mxu0 %v4424
  %4548 = vmatpush.msra.mxu0 %v4423
  %4549 = vmatmul.f32.gmra.mxu0 %v4251
  %v4550 = vpop.f32.mrf.mxu0
  %v4551 = vadd.f32 %v4450, %v4550
  %4552 = vmatmul.f32.gmra.mxu0 %v4254
  %v4553 = vpop.f32.mrf.mxu0
  %v4554 = vadd.f32 %v4453, %v4553
  %4555 = vmatmul.f32.gmra.mxu0 %v4257
  %v4556 = vpop.f32.mrf.mxu0
  %v4557 = vadd.f32 %v4456, %v4556
  %4558 = vmatmul.f32.gmra.mxu0 %v4260
  %v4559 = vpop.f32.mrf.mxu0
  %v4560 = vadd.f32 %v4459, %v4559
  %4561 = vmatmul.f32.gmra.mxu0 %v4066
  %v4562 = vpop.f32.mrf.mxu0
  %v4563 = vadd.f32 %v4462, %v4562
  %4564 = vmatmul.f32.gmra.mxu0 %v4069
  %v4565 = vpop.f32.mrf.mxu0
  %v4566 = vadd.f32 %v4465, %v4565
  %4567 = vmatmul.f32.gmra.mxu0 %v4072
  %v4568 = vpop.f32.mrf.mxu0
  %v4569 = vadd.f32 %v4468, %v4568
  %4570 = vmatmul.f32.gmra.mxu0 %v4075
  %v4571 = vpop.f32.mrf.mxu0
  %v4572 = vadd.f32 %v4471, %v4571
  %4573 = vmatmul.f32.gmra.mxu0 %v4078
  %v4574 = vpop.f32.mrf.mxu0
  %v4575 = vadd.f32 %v4474, %v4574
  %4576 = vmatmul.f32.gmra.mxu0 %v4081
  %v4577 = vpop.f32.mrf.mxu0
  %v4578 = vadd.f32 %v4477, %v4577
  %4579 = vmatmul.f32.gmra.mxu0 %v4084
  %v4580 = vpop.f32.mrf.mxu0
  %v4581 = vadd.f32 %v4480, %v4580
  %4582 = vmatmul.f32.gmra.mxu0 %v4087
  %v4583 = vpop.f32.mrf.mxu0
  %v4584 = vadd.f32 %v4483, %v4583
  %4585 = vmatmul.f32.gmra.mxu0 %v4090
  %v4586 = vpop.f32.mrf.mxu0
  %v4587 = vadd.f32 %v4486, %v4586
  %4588 = vmatmul.f32.gmra.mxu0 %v4093
  %v4589 = vpop.f32.mrf.mxu0
  %v4590 = vadd.f32 %v4489, %v4589
  %4591 = vmatmul.f32.gmra.mxu0 %v4096
  %v4592 = vpop.f32.mrf.mxu0
  %v4593 = vadd.f32 %v4492, %v4592
  %4594 = vmatmul.f32.gmra.mxu0 %v4099
  %v4595 = vpop.f32.mrf.mxu0
  %v4596 = vadd.f32 %v4495, %v4595
  %4597 = vmatmul.f32.gmra.mxu0 %v4102
  %v4598 = vpop.f32.mrf.mxu0
  %v4599 = vadd.f32 %v4498, %v4598
  %4600 = vmatmul.f32.gmra.mxu0 %v4105
  %v4601 = vpop.f32.mrf.mxu0
  %v4602 = vadd.f32 %v4501, %v4601
  %4603 = vmatmul.f32.gmra.mxu0 %v4108
  %v4604 = vpop.f32.mrf.mxu0
  %v4605 = vadd.f32 %v4504, %v4604
  %4606 = vmatmul.f32.gmra.mxu0 %v4111
  %v4607 = vpop.f32.mrf.mxu0
  %v4608 = vadd.f32 %v4507, %v4607
  %4609 = vmatmul.f32.gmra.mxu0 %v4114
  %v4610 = vpop.f32.mrf.mxu0
  %v4611 = vadd.f32 %v4510, %v4610
  %4612 = vmatmul.f32.gmra.mxu0 %v4117
  %v4613 = vpop.f32.mrf.mxu0
  %v4614 = vadd.f32 %v4513, %v4613
  %4615 = vmatmul.f32.gmra.mxu0 %v4120
  %v4616 = vpop.f32.mrf.mxu0
  %v4617 = vadd.f32 %v4516, %v4616
  %4618 = vmatmul.f32.gmra.mxu0 %v4123
  %v4619 = vpop.f32.mrf.mxu0
  %v4620 = vadd.f32 %v4519, %v4619
  %4621 = vmatmul.f32.gmra.mxu0 %v4126
  %v4622 = vpop.f32.mrf.mxu0
  %v4623 = vadd.f32 %v4522, %v4622
  %4624 = vmatmul.f32.gmra.mxu0 %v4129
  %v4625 = vpop.f32.mrf.mxu0
  %v4626 = vadd.f32 %v4525, %v4625
  %4627 = vmatmul.f32.gmra.mxu0 %v4132
  %v4628 = vpop.f32.mrf.mxu0
  %v4629 = vadd.f32 %v4528, %v4628
  %4630 = vmatmul.f32.gmra.mxu0 %v4135
  %v4631 = vpop.f32.mrf.mxu0
  %v4632 = vadd.f32 %v4531, %v4631
  %4633 = vdwg.mxu0
  %v4634 = vld [vmem:[%s15] sm:$0x1]
  %v4636 = vperm.slane %v4634, 0
  %v4638 = vadd.f32 %v4551, %v4636
  %v4639 = vadd.f32 %v4554, %v4636
  %v4640 = vadd.f32 %v4557, %v4636
  %v4641 = vadd.f32 %v4560, %v4636
  %v4642 = vadd.f32 %v4563, %v4636
  %v4643 = vadd.f32 %v4566, %v4636
  %v4644 = vadd.f32 %v4569, %v4636
  %v4645 = vadd.f32 %v4572, %v4636
  %v4646 = vadd.f32 %v4575, %v4636
  %v4647 = vadd.f32 %v4578, %v4636
  %v4648 = vadd.f32 %v4581, %v4636
  %v4649 = vadd.f32 %v4584, %v4636
  %v4650 = vadd.f32 %v4587, %v4636
  %v4651 = vadd.f32 %v4590, %v4636
  %v4652 = vadd.f32 %v4593, %v4636
  %v4653 = vadd.f32 %v4596, %v4636
  %v4654 = vadd.f32 %v4599, %v4636
  %v4655 = vadd.f32 %v4602, %v4636
  %v4656 = vadd.f32 %v4605, %v4636
  %v4657 = vadd.f32 %v4608, %v4636
  %v4658 = vadd.f32 %v4611, %v4636
  %v4659 = vadd.f32 %v4614, %v4636
  %v4660 = vadd.f32 %v4617, %v4636
  %v4661 = vadd.f32 %v4620, %v4636
  %v4662 = vadd.f32 %v4623, %v4636
  %v4663 = vadd.f32 %v4626, %v4636
  %v4664 = vadd.f32 %v4629, %v4636
  %v4665 = vadd.f32 %v4632, %v4636
  %v4666 = vxor.u32 %v4638, 2147483648
  %v4667 = vxor.u32 %v4639, 2147483648
  %v4668 = vxor.u32 %v4640, 2147483648
  %v4669 = vxor.u32 %v4641, 2147483648
  %v4670 = vxor.u32 %v4642, 2147483648
  %v4671 = vxor.u32 %v4643, 2147483648
  %v4672 = vxor.u32 %v4644, 2147483648
  %v4673 = vxor.u32 %v4645, 2147483648
  %v4674 = vxor.u32 %v4646, 2147483648
  %v4675 = vxor.u32 %v4647, 2147483648
  %v4676 = vxor.u32 %v4648, 2147483648
  %v4677 = vxor.u32 %v4649, 2147483648
  %v4678 = vxor.u32 %v4650, 2147483648
  %v4679 = vxor.u32 %v4651, 2147483648
  %v4680 = vxor.u32 %v4652, 2147483648
  %v4681 = vxor.u32 %v4653, 2147483648
  %v4682 = vxor.u32 %v4654, 2147483648
  %v4683 = vxor.u32 %v4655, 2147483648
  %v4684 = vxor.u32 %v4656, 2147483648
  %v4685 = vxor.u32 %v4657, 2147483648
  %v4686 = vxor.u32 %v4658, 2147483648
  %v4687 = vxor.u32 %v4659, 2147483648
  %v4688 = vxor.u32 %v4660, 2147483648
  %v4689 = vxor.u32 %v4661, 2147483648
  %v4690 = vxor.u32 %v4662, 2147483648
  %v4691 = vxor.u32 %v4663, 2147483648
  %v4692 = vxor.u32 %v4664, 2147483648
  %v4693 = vxor.u32 %v4665, 2147483648
  %v4694 = vmul.f32 %v4666, 1.442695
  %v4695 = vpow.pop %v4694
  %v4696 = vmul.f32 %v4667, 1.442695
  %v4697 = vpow.pop %v4696
  %v4698 = vmul.f32 %v4668, 1.442695
  %v4699 = vpow.pop %v4698
  %v4700 = vmul.f32 %v4669, 1.442695
  %v4701 = vpow.pop %v4700
  %v4702 = vmul.f32 %v4670, 1.442695
  %v4703 = vpow.pop %v4702
  %v4704 = vmul.f32 %v4671, 1.442695
  %v4705 = vpow.pop %v4704
  %v4706 = vmul.f32 %v4672, 1.442695
  %v4707 = vpow.pop %v4706
  %v4708 = vmul.f32 %v4673, 1.442695
  %v4709 = vpow.pop %v4708
  %v4710 = vmul.f32 %v4674, 1.442695
  %v4711 = vpow.pop %v4710
  %v4712 = vmul.f32 %v4675, 1.442695
  %v4713 = vpow.pop %v4712
  %v4714 = vmul.f32 %v4676, 1.442695
  %v4715 = vpow.pop %v4714
  %v4716 = vmul.f32 %v4677, 1.442695
  %v4717 = vpow.pop %v4716
  %v4718 = vmul.f32 %v4678, 1.442695
  %v4719 = vpow.pop %v4718
  %v4720 = vmul.f32 %v4679, 1.442695
  %v4721 = vpow.pop %v4720
  %v4722 = vmul.f32 %v4680, 1.442695
  %v4723 = vpow.pop %v4722
  %v4724 = vmul.f32 %v4681, 1.442695
  %v4725 = vpow.pop %v4724
  %v4726 = vmul.f32 %v4682, 1.442695
  %v4727 = vpow.pop %v4726
  %v4728 = vmul.f32 %v4683, 1.442695
  %v4729 = vpow.pop %v4728
  %v4730 = vmul.f32 %v4684, 1.442695
  %v4731 = vpow.pop %v4730
  %v4732 = vmul.f32 %v4685, 1.442695
  %v4733 = vpow.pop %v4732
  %v4734 = vmul.f32 %v4686, 1.442695
  %v4735 = vpow.pop %v4734
  %v4736 = vmul.f32 %v4687, 1.442695
  %v4737 = vpow.pop %v4736
  %v4738 = vmul.f32 %v4688, 1.442695
  %v4739 = vpow.pop %v4738
  %v4740 = vmul.f32 %v4689, 1.442695
  %v4741 = vpow.pop %v4740
  %v4742 = vmul.f32 %v4690, 1.442695
  %v4743 = vpow.pop %v4742
  %v4744 = vmul.f32 %v4691, 1.442695
  %v4745 = vpow.pop %v4744
  %v4746 = vmul.f32 %v4692, 1.442695
  %v4747 = vpow.pop %v4746
  %v4748 = vmul.f32 %v4693, 1.442695
  %v4749 = vpow.pop %v4748
  %v4750 = vadd.f32 %v4695, 1.0
  %v4751 = vadd.f32 %v4697, 1.0
  %v4752 = vadd.f32 %v4699, 1.0
  %v4753 = vadd.f32 %v4701, 1.0
  %v4754 = vadd.f32 %v4703, 1.0
  %v4755 = vadd.f32 %v4705, 1.0
  %v4756 = vadd.f32 %v4707, 1.0
  %v4757 = vadd.f32 %v4709, 1.0
  %v4758 = vadd.f32 %v4711, 1.0
  %v4759 = vadd.f32 %v4713, 1.0
  %v4760 = vadd.f32 %v4715, 1.0
  %v4761 = vadd.f32 %v4717, 1.0
  %v4762 = vadd.f32 %v4719, 1.0
  %v4763 = vadd.f32 %v4721, 1.0
  %v4764 = vadd.f32 %v4723, 1.0
  %v4765 = vadd.f32 %v4725, 1.0
  %v4766 = vadd.f32 %v4727, 1.0
  %v4767 = vadd.f32 %v4729, 1.0
  %v4768 = vadd.f32 %v4731, 1.0
  %v4769 = vadd.f32 %v4733, 1.0
  %v4770 = vadd.f32 %v4735, 1.0
  %v4771 = vadd.f32 %v4737, 1.0
  %v4772 = vadd.f32 %v4739, 1.0
  %v4773 = vadd.f32 %v4741, 1.0
  %v4774 = vadd.f32 %v4743, 1.0
  %v4775 = vadd.f32 %v4745, 1.0
  %v4776 = vadd.f32 %v4747, 1.0
  %v4777 = vadd.f32 %v4749, 1.0
  %v4778 = vrcp.pop %v4750
  %v4779 = vmul.f32 %v4750, %v4778
  %v4780 = vsub.f32 1.0, %v4779
  %v4781 = vmul.f32 %v4778, %v4780
  %v4782 = vadd.f32 %v4778, %v4781
  %vm4783 = vweird.f32 %v4750
  %vm4784 = vweird.f32 %v4778
  %vm4785 = vmor %vm4783, %vm4784
  %v4786 = vsel %vm4785, %v4778, %v4782
  %v4787 = vand.u32 2147483647, %v4750
  %vm4788 = vcmp.eq.f32.partialorder %v4787, 8.507059e+37
  %v4789 = vand.u32 %v4750, 2147483648
  %v4790 = vor.u32 1.1754944e-38, %v4789
  %v4791 = vsel %vm4788, %v4790, %v4786
  %v4792 = vmul.f32 1.0, %v4791
  %v4793 = vrcp.pop %v4751
  %v4794 = vmul.f32 %v4751, %v4793
  %v4795 = vsub.f32 1.0, %v4794
  %v4796 = vmul.f32 %v4793, %v4795
  %v4797 = vadd.f32 %v4793, %v4796
  %vm4798 = vweird.f32 %v4751
  %vm4799 = vweird.f32 %v4793
  %vm4800 = vmor %vm4798, %vm4799
  %v4801 = vsel %vm4800, %v4793, %v4797
  %v4802 = vand.u32 2147483647, %v4751
  %vm4803 = vcmp.eq.f32.partialorder %v4802, 8.507059e+37
  %v4804 = vand.u32 %v4751, 2147483648
  %v4805 = vor.u32 1.1754944e-38, %v4804
  %v4806 = vsel %vm4803, %v4805, %v4801
  %v4807 = vmul.f32 1.0, %v4806
  %v4808 = vrcp.pop %v4752
  %v4809 = vmul.f32 %v4752, %v4808
  %v4810 = vsub.f32 1.0, %v4809
  %v4811 = vmul.f32 %v4808, %v4810
  %v4812 = vadd.f32 %v4808, %v4811
  %vm4813 = vweird.f32 %v4752
  %vm4814 = vweird.f32 %v4808
  %vm4815 = vmor %vm4813, %vm4814
  %v4816 = vsel %vm4815, %v4808, %v4812
  %v4817 = vand.u32 2147483647, %v4752
  %vm4818 = vcmp.eq.f32.partialorder %v4817, 8.507059e+37
  %v4819 = vand.u32 %v4752, 2147483648
  %v4820 = vor.u32 1.1754944e-38, %v4819
  %v4821 = vsel %vm4818, %v4820, %v4816
  %v4822 = vmul.f32 1.0, %v4821
  %v4823 = vrcp.pop %v4753
  %v4824 = vmul.f32 %v4753, %v4823
  %v4825 = vsub.f32 1.0, %v4824
  %v4826 = vmul.f32 %v4823, %v4825
  %v4827 = vadd.f32 %v4823, %v4826
  %vm4828 = vweird.f32 %v4753
  %vm4829 = vweird.f32 %v4823
  %vm4830 = vmor %vm4828, %vm4829
  %v4831 = vsel %vm4830, %v4823, %v4827
  %v4832 = vand.u32 2147483647, %v4753
  %vm4833 = vcmp.eq.f32.partialorder %v4832, 8.507059e+37
  %v4834 = vand.u32 %v4753, 2147483648
  %v4835 = vor.u32 1.1754944e-38, %v4834
  %v4836 = vsel %vm4833, %v4835, %v4831
  %v4837 = vmul.f32 1.0, %v4836
  %v4838 = vrcp.pop %v4754
  %v4839 = vmul.f32 %v4754, %v4838
  %v4840 = vsub.f32 1.0, %v4839
  %v4841 = vmul.f32 %v4838, %v4840
  %v4842 = vadd.f32 %v4838, %v4841
  %vm4843 = vweird.f32 %v4754
  %vm4844 = vweird.f32 %v4838
  %vm4845 = vmor %vm4843, %vm4844
  %v4846 = vsel %vm4845, %v4838, %v4842
  %v4847 = vand.u32 2147483647, %v4754
  %vm4848 = vcmp.eq.f32.partialorder %v4847, 8.507059e+37
  %v4849 = vand.u32 %v4754, 2147483648
  %v4850 = vor.u32 1.1754944e-38, %v4849
  %v4851 = vsel %vm4848, %v4850, %v4846
  %v4852 = vmul.f32 1.0, %v4851
  %v4853 = vrcp.pop %v4755
  %v4854 = vmul.f32 %v4755, %v4853
  %v4855 = vsub.f32 1.0, %v4854
  %v4856 = vmul.f32 %v4853, %v4855
  %v4857 = vadd.f32 %v4853, %v4856
  %vm4858 = vweird.f32 %v4755
  %vm4859 = vweird.f32 %v4853
  %vm4860 = vmor %vm4858, %vm4859
  %v4861 = vsel %vm4860, %v4853, %v4857
  %v4862 = vand.u32 2147483647, %v4755
  %vm4863 = vcmp.eq.f32.partialorder %v4862, 8.507059e+37
  %v4864 = vand.u32 %v4755, 2147483648
  %v4865 = vor.u32 1.1754944e-38, %v4864
  %v4866 = vsel %vm4863, %v4865, %v4861
  %v4867 = vmul.f32 1.0, %v4866
  %v4868 = vrcp.pop %v4756
  %v4869 = vmul.f32 %v4756, %v4868
  %v4870 = vsub.f32 1.0, %v4869
  %v4871 = vmul.f32 %v4868, %v4870
  %v4872 = vadd.f32 %v4868, %v4871
  %vm4873 = vweird.f32 %v4756
  %vm4874 = vweird.f32 %v4868
  %vm4875 = vmor %vm4873, %vm4874
  %v4876 = vsel %vm4875, %v4868, %v4872
  %v4877 = vand.u32 2147483647, %v4756
  %vm4878 = vcmp.eq.f32.partialorder %v4877, 8.507059e+37
  %v4879 = vand.u32 %v4756, 2147483648
  %v4880 = vor.u32 1.1754944e-38, %v4879
  %v4881 = vsel %vm4878, %v4880, %v4876
  %v4882 = vmul.f32 1.0, %v4881
  %v4883 = vrcp.pop %v4757
  %v4884 = vmul.f32 %v4757, %v4883
  %v4885 = vsub.f32 1.0, %v4884
  %v4886 = vmul.f32 %v4883, %v4885
  %v4887 = vadd.f32 %v4883, %v4886
  %vm4888 = vweird.f32 %v4757
  %vm4889 = vweird.f32 %v4883
  %vm4890 = vmor %vm4888, %vm4889
  %v4891 = vsel %vm4890, %v4883, %v4887
  %v4892 = vand.u32 2147483647, %v4757
  %vm4893 = vcmp.eq.f32.partialorder %v4892, 8.507059e+37
  %v4894 = vand.u32 %v4757, 2147483648
  %v4895 = vor.u32 1.1754944e-38, %v4894
  %v4896 = vsel %vm4893, %v4895, %v4891
  %v4897 = vmul.f32 1.0, %v4896
  %v4898 = vrcp.pop %v4758
  %v4899 = vmul.f32 %v4758, %v4898
  %v4900 = vsub.f32 1.0, %v4899
  %v4901 = vmul.f32 %v4898, %v4900
  %v4902 = vadd.f32 %v4898, %v4901
  %vm4903 = vweird.f32 %v4758
  %vm4904 = vweird.f32 %v4898
  %vm4905 = vmor %vm4903, %vm4904
  %v4906 = vsel %vm4905, %v4898, %v4902
  %v4907 = vand.u32 2147483647, %v4758
  %vm4908 = vcmp.eq.f32.partialorder %v4907, 8.507059e+37
  %v4909 = vand.u32 %v4758, 2147483648
  %v4910 = vor.u32 1.1754944e-38, %v4909
  %v4911 = vsel %vm4908, %v4910, %v4906
  %v4912 = vmul.f32 1.0, %v4911
  %v4913 = vrcp.pop %v4759
  %v4914 = vmul.f32 %v4759, %v4913
  %v4915 = vsub.f32 1.0, %v4914
  %v4916 = vmul.f32 %v4913, %v4915
  %v4917 = vadd.f32 %v4913, %v4916
  %vm4918 = vweird.f32 %v4759
  %vm4919 = vweird.f32 %v4913
  %vm4920 = vmor %vm4918, %vm4919
  %v4921 = vsel %vm4920, %v4913, %v4917
  %v4922 = vand.u32 2147483647, %v4759
  %vm4923 = vcmp.eq.f32.partialorder %v4922, 8.507059e+37
  %v4924 = vand.u32 %v4759, 2147483648
  %v4925 = vor.u32 1.1754944e-38, %v4924
  %v4926 = vsel %vm4923, %v4925, %v4921
  %v4927 = vmul.f32 1.0, %v4926
  %v4928 = vrcp.pop %v4760
  %v4929 = vmul.f32 %v4760, %v4928
  %v4930 = vsub.f32 1.0, %v4929
  %v4931 = vmul.f32 %v4928, %v4930
  %v4932 = vadd.f32 %v4928, %v4931
  %vm4933 = vweird.f32 %v4760
  %vm4934 = vweird.f32 %v4928
  %vm4935 = vmor %vm4933, %vm4934
  %v4936 = vsel %vm4935, %v4928, %v4932
  %v4937 = vand.u32 2147483647, %v4760
  %vm4938 = vcmp.eq.f32.partialorder %v4937, 8.507059e+37
  %v4939 = vand.u32 %v4760, 2147483648
  %v4940 = vor.u32 1.1754944e-38, %v4939
  %v4941 = vsel %vm4938, %v4940, %v4936
  %v4942 = vmul.f32 1.0, %v4941
  %v4943 = vrcp.pop %v4761
  %v4944 = vmul.f32 %v4761, %v4943
  %v4945 = vsub.f32 1.0, %v4944
  %v4946 = vmul.f32 %v4943, %v4945
  %v4947 = vadd.f32 %v4943, %v4946
  %vm4948 = vweird.f32 %v4761
  %vm4949 = vweird.f32 %v4943
  %vm4950 = vmor %vm4948, %vm4949
  %v4951 = vsel %vm4950, %v4943, %v4947
  %v4952 = vand.u32 2147483647, %v4761
  %vm4953 = vcmp.eq.f32.partialorder %v4952, 8.507059e+37
  %v4954 = vand.u32 %v4761, 2147483648
  %v4955 = vor.u32 1.1754944e-38, %v4954
  %v4956 = vsel %vm4953, %v4955, %v4951
  %v4957 = vmul.f32 1.0, %v4956
  %v4958 = vrcp.pop %v4762
  %v4959 = vmul.f32 %v4762, %v4958
  %v4960 = vsub.f32 1.0, %v4959
  %v4961 = vmul.f32 %v4958, %v4960
  %v4962 = vadd.f32 %v4958, %v4961
  %vm4963 = vweird.f32 %v4762
  %vm4964 = vweird.f32 %v4958
  %vm4965 = vmor %vm4963, %vm4964
  %v4966 = vsel %vm4965, %v4958, %v4962
  %v4967 = vand.u32 2147483647, %v4762
  %vm4968 = vcmp.eq.f32.partialorder %v4967, 8.507059e+37
  %v4969 = vand.u32 %v4762, 2147483648
  %v4970 = vor.u32 1.1754944e-38, %v4969
  %v4971 = vsel %vm4968, %v4970, %v4966
  %v4972 = vmul.f32 1.0, %v4971
  %v4973 = vrcp.pop %v4763
  %v4974 = vmul.f32 %v4763, %v4973
  %v4975 = vsub.f32 1.0, %v4974
  %v4976 = vmul.f32 %v4973, %v4975
  %v4977 = vadd.f32 %v4973, %v4976
  %vm4978 = vweird.f32 %v4763
  %vm4979 = vweird.f32 %v4973
  %vm4980 = vmor %vm4978, %vm4979
  %v4981 = vsel %vm4980, %v4973, %v4977
  %v4982 = vand.u32 2147483647, %v4763
  %vm4983 = vcmp.eq.f32.partialorder %v4982, 8.507059e+37
  %v4984 = vand.u32 %v4763, 2147483648
  %v4985 = vor.u32 1.1754944e-38, %v4984
  %v4986 = vsel %vm4983, %v4985, %v4981
  %v4987 = vmul.f32 1.0, %v4986
  %v4988 = vrcp.pop %v4764
  %v4989 = vmul.f32 %v4764, %v4988
  %v4990 = vsub.f32 1.0, %v4989
  %v4991 = vmul.f32 %v4988, %v4990
  %v4992 = vadd.f32 %v4988, %v4991
  %vm4993 = vweird.f32 %v4764
  %vm4994 = vweird.f32 %v4988
  %vm4995 = vmor %vm4993, %vm4994
  %v4996 = vsel %vm4995, %v4988, %v4992
  %v4997 = vand.u32 2147483647, %v4764
  %vm4998 = vcmp.eq.f32.partialorder %v4997, 8.507059e+37
  %v4999 = vand.u32 %v4764, 2147483648
  %v5000 = vor.u32 1.1754944e-38, %v4999
  %v5001 = vsel %vm4998, %v5000, %v4996
  %v5002 = vmul.f32 1.0, %v5001
  %v5003 = vrcp.pop %v4765
  %v5004 = vmul.f32 %v4765, %v5003
  %v5005 = vsub.f32 1.0, %v5004
  %v5006 = vmul.f32 %v5003, %v5005
  %v5007 = vadd.f32 %v5003, %v5006
  %vm5008 = vweird.f32 %v4765
  %vm5009 = vweird.f32 %v5003
  %vm5010 = vmor %vm5008, %vm5009
  %v5011 = vsel %vm5010, %v5003, %v5007
  %v5012 = vand.u32 2147483647, %v4765
  %vm5013 = vcmp.eq.f32.partialorder %v5012, 8.507059e+37
  %v5014 = vand.u32 %v4765, 2147483648
  %v5015 = vor.u32 1.1754944e-38, %v5014
  %v5016 = vsel %vm5013, %v5015, %v5011
  %v5017 = vmul.f32 1.0, %v5016
  %v5018 = vrcp.pop %v4766
  %v5019 = vmul.f32 %v4766, %v5018
  %v5020 = vsub.f32 1.0, %v5019
  %v5021 = vmul.f32 %v5018, %v5020
  %v5022 = vadd.f32 %v5018, %v5021
  %vm5023 = vweird.f32 %v4766
  %vm5024 = vweird.f32 %v5018
  %vm5025 = vmor %vm5023, %vm5024
  %v5026 = vsel %vm5025, %v5018, %v5022
  %v5027 = vand.u32 2147483647, %v4766
  %vm5028 = vcmp.eq.f32.partialorder %v5027, 8.507059e+37
  %v5029 = vand.u32 %v4766, 2147483648
  %v5030 = vor.u32 1.1754944e-38, %v5029
  %v5031 = vsel %vm5028, %v5030, %v5026
  %v5032 = vmul.f32 1.0, %v5031
  %v5033 = vrcp.pop %v4767
  %v5034 = vmul.f32 %v4767, %v5033
  %v5035 = vsub.f32 1.0, %v5034
  %v5036 = vmul.f32 %v5033, %v5035
  %v5037 = vadd.f32 %v5033, %v5036
  %vm5038 = vweird.f32 %v4767
  %vm5039 = vweird.f32 %v5033
  %vm5040 = vmor %vm5038, %vm5039
  %v5041 = vsel %vm5040, %v5033, %v5037
  %v5042 = vand.u32 2147483647, %v4767
  %vm5043 = vcmp.eq.f32.partialorder %v5042, 8.507059e+37
  %v5044 = vand.u32 %v4767, 2147483648
  %v5045 = vor.u32 1.1754944e-38, %v5044
  %v5046 = vsel %vm5043, %v5045, %v5041
  %v5047 = vmul.f32 1.0, %v5046
  %v5048 = vrcp.pop %v4768
  %v5049 = vmul.f32 %v4768, %v5048
  %v5050 = vsub.f32 1.0, %v5049
  %v5051 = vmul.f32 %v5048, %v5050
  %v5052 = vadd.f32 %v5048, %v5051
  %vm5053 = vweird.f32 %v4768
  %vm5054 = vweird.f32 %v5048
  %vm5055 = vmor %vm5053, %vm5054
  %v5056 = vsel %vm5055, %v5048, %v5052
  %v5057 = vand.u32 2147483647, %v4768
  %vm5058 = vcmp.eq.f32.partialorder %v5057, 8.507059e+37
  %v5059 = vand.u32 %v4768, 2147483648
  %v5060 = vor.u32 1.1754944e-38, %v5059
  %v5061 = vsel %vm5058, %v5060, %v5056
  %v5062 = vmul.f32 1.0, %v5061
  %v5063 = vrcp.pop %v4769
  %v5064 = vmul.f32 %v4769, %v5063
  %v5065 = vsub.f32 1.0, %v5064
  %v5066 = vmul.f32 %v5063, %v5065
  %v5067 = vadd.f32 %v5063, %v5066
  %vm5068 = vweird.f32 %v4769
  %vm5069 = vweird.f32 %v5063
  %vm5070 = vmor %vm5068, %vm5069
  %v5071 = vsel %vm5070, %v5063, %v5067
  %v5072 = vand.u32 2147483647, %v4769
  %vm5073 = vcmp.eq.f32.partialorder %v5072, 8.507059e+37
  %v5074 = vand.u32 %v4769, 2147483648
  %v5075 = vor.u32 1.1754944e-38, %v5074
  %v5076 = vsel %vm5073, %v5075, %v5071
  %v5077 = vmul.f32 1.0, %v5076
  %v5078 = vrcp.pop %v4770
  %v5079 = vmul.f32 %v4770, %v5078
  %v5080 = vsub.f32 1.0, %v5079
  %v5081 = vmul.f32 %v5078, %v5080
  %v5082 = vadd.f32 %v5078, %v5081
  %vm5083 = vweird.f32 %v4770
  %vm5084 = vweird.f32 %v5078
  %vm5085 = vmor %vm5083, %vm5084
  %v5086 = vsel %vm5085, %v5078, %v5082
  %v5087 = vand.u32 2147483647, %v4770
  %vm5088 = vcmp.eq.f32.partialorder %v5087, 8.507059e+37
  %v5089 = vand.u32 %v4770, 2147483648
  %v5090 = vor.u32 1.1754944e-38, %v5089
  %v5091 = vsel %vm5088, %v5090, %v5086
  %v5092 = vmul.f32 1.0, %v5091
  %v5093 = vrcp.pop %v4771
  %v5094 = vmul.f32 %v4771, %v5093
  %v5095 = vsub.f32 1.0, %v5094
  %v5096 = vmul.f32 %v5093, %v5095
  %v5097 = vadd.f32 %v5093, %v5096
  %vm5098 = vweird.f32 %v4771
  %vm5099 = vweird.f32 %v5093
  %vm5100 = vmor %vm5098, %vm5099
  %v5101 = vsel %vm5100, %v5093, %v5097
  %v5102 = vand.u32 2147483647, %v4771
  %vm5103 = vcmp.eq.f32.partialorder %v5102, 8.507059e+37
  %v5104 = vand.u32 %v4771, 2147483648
  %v5105 = vor.u32 1.1754944e-38, %v5104
  %v5106 = vsel %vm5103, %v5105, %v5101
  %v5107 = vmul.f32 1.0, %v5106
  %v5108 = vrcp.pop %v4772
  %v5109 = vmul.f32 %v4772, %v5108
  %v5110 = vsub.f32 1.0, %v5109
  %v5111 = vmul.f32 %v5108, %v5110
  %v5112 = vadd.f32 %v5108, %v5111
  %vm5113 = vweird.f32 %v4772
  %vm5114 = vweird.f32 %v5108
  %vm5115 = vmor %vm5113, %vm5114
  %v5116 = vsel %vm5115, %v5108, %v5112
  %v5117 = vand.u32 2147483647, %v4772
  %vm5118 = vcmp.eq.f32.partialorder %v5117, 8.507059e+37
  %v5119 = vand.u32 %v4772, 2147483648
  %v5120 = vor.u32 1.1754944e-38, %v5119
  %v5121 = vsel %vm5118, %v5120, %v5116
  %v5122 = vmul.f32 1.0, %v5121
  %v5123 = vrcp.pop %v4773
  %v5124 = vmul.f32 %v4773, %v5123
  %v5125 = vsub.f32 1.0, %v5124
  %v5126 = vmul.f32 %v5123, %v5125
  %v5127 = vadd.f32 %v5123, %v5126
  %vm5128 = vweird.f32 %v4773
  %vm5129 = vweird.f32 %v5123
  %vm5130 = vmor %vm5128, %vm5129
  %v5131 = vsel %vm5130, %v5123, %v5127
  %v5132 = vand.u32 2147483647, %v4773
  %vm5133 = vcmp.eq.f32.partialorder %v5132, 8.507059e+37
  %v5134 = vand.u32 %v4773, 2147483648
  %v5135 = vor.u32 1.1754944e-38, %v5134
  %v5136 = vsel %vm5133, %v5135, %v5131
  %v5137 = vmul.f32 1.0, %v5136
  %v5138 = vrcp.pop %v4774
  %v5139 = vmul.f32 %v4774, %v5138
  %v5140 = vsub.f32 1.0, %v5139
  %v5141 = vmul.f32 %v5138, %v5140
  %v5142 = vadd.f32 %v5138, %v5141
  %vm5143 = vweird.f32 %v4774
  %vm5144 = vweird.f32 %v5138
  %vm5145 = vmor %vm5143, %vm5144
  %v5146 = vsel %vm5145, %v5138, %v5142
  %v5147 = vand.u32 2147483647, %v4774
  %vm5148 = vcmp.eq.f32.partialorder %v5147, 8.507059e+37
  %v5149 = vand.u32 %v4774, 2147483648
  %v5150 = vor.u32 1.1754944e-38, %v5149
  %v5151 = vsel %vm5148, %v5150, %v5146
  %v5152 = vmul.f32 1.0, %v5151
  %v5153 = vrcp.pop %v4775
  %v5154 = vmul.f32 %v4775, %v5153
  %v5155 = vsub.f32 1.0, %v5154
  %v5156 = vmul.f32 %v5153, %v5155
  %v5157 = vadd.f32 %v5153, %v5156
  %vm5158 = vweird.f32 %v4775
  %vm5159 = vweird.f32 %v5153
  %vm5160 = vmor %vm5158, %vm5159
  %v5161 = vsel %vm5160, %v5153, %v5157
  %v5162 = vand.u32 2147483647, %v4775
  %vm5163 = vcmp.eq.f32.partialorder %v5162, 8.507059e+37
  %v5164 = vand.u32 %v4775, 2147483648
  %v5165 = vor.u32 1.1754944e-38, %v5164
  %v5166 = vsel %vm5163, %v5165, %v5161
  %v5167 = vmul.f32 1.0, %v5166
  %v5168 = vrcp.pop %v4776
  %v5169 = vmul.f32 %v4776, %v5168
  %v5170 = vsub.f32 1.0, %v5169
  %v5171 = vmul.f32 %v5168, %v5170
  %v5172 = vadd.f32 %v5168, %v5171
  %vm5173 = vweird.f32 %v4776
  %vm5174 = vweird.f32 %v5168
  %vm5175 = vmor %vm5173, %vm5174
  %v5176 = vsel %vm5175, %v5168, %v5172
  %v5177 = vand.u32 2147483647, %v4776
  %vm5178 = vcmp.eq.f32.partialorder %v5177, 8.507059e+37
  %v5179 = vand.u32 %v4776, 2147483648
  %v5180 = vor.u32 1.1754944e-38, %v5179
  %v5181 = vsel %vm5178, %v5180, %v5176
  %v5182 = vmul.f32 1.0, %v5181
  %v5183 = vrcp.pop %v4777
  %v5184 = vmul.f32 %v4777, %v5183
  %v5185 = vsub.f32 1.0, %v5184
  %v5186 = vmul.f32 %v5183, %v5185
  %v5187 = vadd.f32 %v5183, %v5186
  %vm5188 = vweird.f32 %v4777
  %vm5189 = vweird.f32 %v5183
  %vm5190 = vmor %vm5188, %vm5189
  %v5191 = vsel %vm5190, %v5183, %v5187
  %v5192 = vand.u32 2147483647, %v4777
  %vm5193 = vcmp.eq.f32.partialorder %v5192, 8.507059e+37
  %v5194 = vand.u32 %v4777, 2147483648
  %v5195 = vor.u32 1.1754944e-38, %v5194
  %v5196 = vsel %vm5193, %v5195, %v5191
  %v5197 = vmul.f32 1.0, %v5196
  %v5198 = vmul.f32 %v4395, %v4792
  %v5199 = vmul.f32 %v4396, %v4807
  %v5200 = vmul.f32 %v4397, %v4822
  %v5201 = vmul.f32 %v4398, %v4837
  %v5202 = vmul.f32 %v4399, %v4852
  %v5203 = vmul.f32 %v4400, %v4867
  %v5204 = vmul.f32 %v4401, %v4882
  %v5205 = vmul.f32 %v4402, %v4897
  %v5206 = vmul.f32 %v4403, %v4912
  %v5207 = vmul.f32 %v4404, %v4927
  %v5208 = vmul.f32 %v4405, %v4942
  %v5209 = vmul.f32 %v4406, %v4957
  %v5210 = vmul.f32 %v4407, %v4972
  %v5211 = vmul.f32 %v4408, %v4987
  %v5212 = vmul.f32 %v4409, %v5002
  %v5213 = vmul.f32 %v4410, %v5017
  %v5214 = vmul.f32 %v4411, %v5032
  %v5215 = vmul.f32 %v4412, %v5047
  %v5216 = vmul.f32 %v4413, %v5062
  %v5217 = vmul.f32 %v4414, %v5077
  %v5218 = vmul.f32 %v4415, %v5092
  %v5219 = vmul.f32 %v4416, %v5107
  %v5220 = vmul.f32 %v4417, %v5122
  %v5221 = vmul.f32 %v4418, %v5137
  %v5222 = vmul.f32 %v4419, %v5152
  %v5223 = vmul.f32 %v4420, %v5167
  %v5224 = vmul.f32 %v4421, %v5182
  %v5225 = vmul.f32 %v4422, %v5197
  %v5226 = vld [vmem:[%s16] sm:$0xff]
  %v5227 = vld [vmem:[%s16 + $0x8] sm:$0xff]
  %v5228 = vld [vmem:[%s16 + $0x10] sm:$0xff]
  %v5229 = vld [vmem:[%s16 + $0x18] sm:$0xff]
  %v5230 = vld [vmem:[%s17] sm:$0x1]
  %v5232 = vperm.slane %v5230, 0
  %v5235 = vsel %vm2852, %v5198, 0
  %v5238 = vsel %vm2852, %v5199, 0
  %v5241 = vsel %vm2852, %v5200, 0
  %v5244 = vsel %vm2852, %v5201, 0
  %v5247 = vsel %vm2852, %v5202, 0
  %v5250 = vsel %vm2852, %v5203, 0
  %v5253 = vsel %vm2852, %v5204, 0
  %v5256 = vsel %vm2852, %v5205, 0
  %v5259 = vsel %vm2852, %v5206, 0
  %v5262 = vsel %vm2852, %v5207, 0
  %v5265 = vsel %vm2852, %v5208, 0
  %v5268 = vsel %vm2852, %v5209, 0
  %v5271 = vsel %vm2852, %v5210, 0
  %v5274 = vsel %vm2852, %v5211, 0
  %v5277 = vsel %vm2852, %v5212, 0
  %v5280 = vsel %vm2852, %v5213, 0
  %v5283 = vsel %vm2852, %v5214, 0
  %v5286 = vsel %vm2852, %v5215, 0
  %v5289 = vsel %vm2852, %v5216, 0
  %v5292 = vsel %vm2852, %v5217, 0
  %v5295 = vsel %vm2852, %v5218, 0
  %v5298 = vsel %vm2852, %v5219, 0
  %v5301 = vsel %vm2852, %v5220, 0
  %v5304 = vsel %vm2852, %v5221, 0
  %v5307 = vsel %vm2852, %v5222, 0
  %v5310 = vsel %vm2852, %v5223, 0
  %v5313 = vsel %vm2852, %v5224, 0
  %v5316 = vsel %vm2852, %v5225, 0
  %5318 = vmatpush.msra.mxu0 0.0
  %5319 = vmatpush.msra.mxu0 0.0
  %5320 = vmatpush.msra.mxu0 0.0
  %5321 = vmatpush.msra.mxu0 0.0
  %5322 = vmatpush.msra.mxu0 0.0
  %5323 = vmatpush.msra.mxu0 0.0
  %5324 = vmatpush.msra.mxu0 0.0
  %5325 = vmatpush.msra.mxu0 0.0
  %5326 = vmatpush.msra.mxu0 0.0
  %5327 = vmatpush.msra.mxu0 0.0
  %5328 = vmatpush.msra.mxu0 0.0
  %5329 = vmatpush.msra.mxu0 0.0
  %5330 = vmatpush.msra.mxu0 %v5229
  %5331 = vmatpush.msra.mxu0 %v5228
  %5332 = vmatpush.msra.mxu0 %v5227
  %5333 = vmatpush.msra.mxu0 %v5226
  %5334 = vmatmul.f32.gmra.mxu0 %v5235
  %v5335 = vpop.f32.mrf.mxu0
  %5336 = vmatmul.f32.gmra.mxu0 %v5238
  %v5337 = vpop.f32.mrf.mxu0
  %5338 = vmatmul.f32.gmra.mxu0 %v5241
  %v5339 = vpop.f32.mrf.mxu0
  %5340 = vmatmul.f32.gmra.mxu0 %v5244
  %v5341 = vpop.f32.mrf.mxu0
  %5342 = vmatmul.f32.gmra.mxu0 %v5247
  %v5343 = vpop.f32.mrf.mxu0
  %5344 = vmatmul.f32.gmra.mxu0 %v5250
  %v5345 = vpop.f32.mrf.mxu0
  %5346 = vmatmul.f32.gmra.mxu0 %v5253
  %v5347 = vpop.f32.mrf.mxu0
  %5348 = vmatmul.f32.gmra.mxu0 %v5256
  %v5349 = vpop.f32.mrf.mxu0
  %5350 = vmatmul.f32.gmra.mxu0 %v5259
  %v5351 = vpop.f32.mrf.mxu0
  %v5352 = vadd.f32 %v5232, %v5351
  %5353 = vmatmul.f32.gmra.mxu0 %v5262
  %v5354 = vpop.f32.mrf.mxu0
  %v5355 = vadd.f32 %v5232, %v5354
  %5356 = vmatmul.f32.gmra.mxu0 %v5265
  %v5357 = vpop.f32.mrf.mxu0
  %v5358 = vadd.f32 %v5232, %v5357
  %5359 = vmatmul.f32.gmra.mxu0 %v5268
  %v5360 = vpop.f32.mrf.mxu0
  %v5361 = vadd.f32 %v5232, %v5360
  %5362 = vmatmul.f32.gmra.mxu0 %v5271
  %v5363 = vpop.f32.mrf.mxu0
  %v5364 = vadd.f32 %v5232, %v5363
  %5365 = vmatmul.f32.gmra.mxu0 %v5274
  %v5366 = vpop.f32.mrf.mxu0
  %v5367 = vadd.f32 %v5232, %v5366
  %5368 = vmatmul.f32.gmra.mxu0 %v5277
  %v5369 = vpop.f32.mrf.mxu0
  %v5370 = vadd.f32 %v5232, %v5369
  %5371 = vmatmul.f32.gmra.mxu0 %v5280
  %v5372 = vpop.f32.mrf.mxu0
  %v5373 = vadd.f32 %v5232, %v5372
  %5374 = vmatmul.f32.gmra.mxu0 %v5283
  %v5375 = vpop.f32.mrf.mxu0
  %v5376 = vadd.f32 %v5232, %v5375
  %5377 = vmatmul.f32.gmra.mxu0 %v5286
  %v5378 = vpop.f32.mrf.mxu0
  %v5379 = vadd.f32 %v5232, %v5378
  %5380 = vmatmul.f32.gmra.mxu0 %v5289
  %v5381 = vpop.f32.mrf.mxu0
  %v5382 = vadd.f32 %v5232, %v5381
  %5383 = vmatmul.f32.gmra.mxu0 %v5292
  %v5384 = vpop.f32.mrf.mxu0
  %v5385 = vadd.f32 %v5232, %v5384
  %5386 = vmatmul.f32.gmra.mxu0 %v5295
  %v5387 = vpop.f32.mrf.mxu0
  %v5388 = vadd.f32 %v5232, %v5387
  %5389 = vmatmul.f32.gmra.mxu0 %v5298
  %v5390 = vpop.f32.mrf.mxu0
  %v5391 = vadd.f32 %v5232, %v5390
  %5392 = vmatmul.f32.gmra.mxu0 %v5301
  %v5393 = vpop.f32.mrf.mxu0
  %v5394 = vadd.f32 %v5232, %v5393
  %5395 = vmatmul.f32.gmra.mxu0 %v5304
  %v5396 = vpop.f32.mrf.mxu0
  %v5397 = vadd.f32 %v5232, %v5396
  %5398 = vmatmul.f32.gmra.mxu0 %v5307
  %v5399 = vpop.f32.mrf.mxu0
  %v5400 = vadd.f32 %v5232, %v5399
  %5401 = vmatmul.f32.gmra.mxu0 %v5310
  %v5402 = vpop.f32.mrf.mxu0
  %v5403 = vadd.f32 %v5232, %v5402
  %5404 = vmatmul.f32.gmra.mxu0 %v5313
  %v5405 = vpop.f32.mrf.mxu0
  %v5406 = vadd.f32 %v5232, %v5405
  %5407 = vmatmul.f32.gmra.mxu0 %v5316
  %v5408 = vpop.f32.mrf.mxu0
  %v5409 = vadd.f32 %v5232, %v5408
  %5410 = vdwg.mxu0
  %v5411 = vld [vmem:[%s18] sm:$0xff]
  %v5412 = vld [vmem:[%s18 + $0x8] sm:$0xff]
  %v5413 = vld [vmem:[%s18 + $0x10] sm:$0xff]
  %v5414 = vld [vmem:[%s18 + $0x18] sm:$0xff]
  %v5415 = vld [vmem:[%s18 + $0x20] sm:$0xff]
  %v5416 = vld [vmem:[%s18 + $0x28] sm:$0xff]
  %v5417 = vld [vmem:[%s18 + $0x30] sm:$0xff]
  %v5418 = vld [vmem:[%s18 + $0x38] sm:$0xff]
  %v5419 = vld [vmem:[%s18 + $0x40] sm:$0xff]
  %v5420 = vld [vmem:[%s18 + $0x48] sm:$0xff]
  %v5421 = vld [vmem:[%s18 + $0x50] sm:$0xff]
  %v5422 = vld [vmem:[%s18 + $0x58] sm:$0xff]
  %v5423 = vld [vmem:[%s18 + $0x60] sm:$0xff]
  %v5424 = vld [vmem:[%s18 + $0x68] sm:$0xff]
  %v5425 = vld [vmem:[%s18 + $0x70] sm:$0xff]
  %v5426 = vld [vmem:[%s18 + $0x78] sm:$0xff]
  %v5427 = vld [vmem:[%s18 + $0x80] sm:$0xff]
  %v5428 = vld [vmem:[%s18 + $0x88] sm:$0xff]
  %v5429 = vld [vmem:[%s18 + $0x90] sm:$0xff]
  %v5430 = vld [vmem:[%s18 + $0x98] sm:$0xff]
  %v5431 = vld [vmem:[%s18 + $0xa0] sm:$0xff]
  %v5432 = vld [vmem:[%s18 + $0xa8] sm:$0xff]
  %v5433 = vld [vmem:[%s18 + $0xb0] sm:$0xff]
  %v5434 = vld [vmem:[%s18 + $0xb8] sm:$0xff]
  %v5435 = vld [vmem:[%s18 + $0xc0] sm:$0xff]
  %v5436 = vld [vmem:[%s18 + $0xc8] sm:$0xff]
  %v5437 = vld [vmem:[%s18 + $0xd0] sm:$0xff]
  %v5438 = vld [vmem:[%s18 + $0xd8] sm:$0xff]
  %v5440 = vsel %vm4010, %v4051, 0
  %v5443 = vsel %vm4010, %v4052, 0
  %5445 = vmatpush.msra.mxu0 0.0
  %5446 = vmatpush.msra.mxu0 0.0
  %5447 = vmatpush.msra.mxu0 0.0
  %5448 = vmatpush.msra.mxu0 0.0
  %5449 = vmatpush.msra.mxu0 0.0
  %5450 = vmatpush.msra.mxu0 0.0
  %5451 = vmatpush.msra.mxu0 0.0
  %5452 = vmatpush.msra.mxu0 0.0
  %5453 = vmatpush.msra.mxu0 0.0
  %5454 = vmatpush.msra.mxu0 0.0
  %5455 = vmatpush.msra.mxu0 0.0
  %5456 = vmatpush.msra.mxu0 0.0
  %5457 = vmatpush.msra.mxu0 0.0
  %5458 = vmatpush.msra.mxu0 0.0
  %5459 = vmatpush.msra.mxu0 %v5199
  %5460 = vmatpush.msra.mxu0 %v5198
  %5461 = vmatmul.f32.gmra.mxu0 %v5440
  %v5462 = vpop.f32.mrf.mxu0
  %v5463 = vadd.f32 0.0, %v5462
  %5464 = vmatmul.f32.gmra.mxu0 %v5443
  %v5465 = vpop.f32.mrf.mxu0
  %v5466 = vadd.f32 0.0, %v5465
  %5467 = vdwg.mxu0
  %5468 = vmatpush.msra.mxu0 0.0
  %5469 = vmatpush.msra.mxu0 0.0
  %5470 = vmatpush.msra.mxu0 0.0
  %5471 = vmatpush.msra.mxu0 0.0
  %5472 = vmatpush.msra.mxu0 0.0
  %5473 = vmatpush.msra.mxu0 0.0
  %5474 = vmatpush.msra.mxu0 0.0
  %5475 = vmatpush.msra.mxu0 0.0
  %5476 = vmatpush.msra.mxu0 0.0
  %5477 = vmatpush.msra.mxu0 0.0
  %5478 = vmatpush.msra.mxu0 0.0
  %5479 = vmatpush.msra.mxu0 0.0
  %5480 = vmatpush.msra.mxu0 0.0
  %5481 = vmatpush.msra.mxu0 0.0
  %5482 = vmatpush.msra.mxu0 %v5201
  %5483 = vmatpush.msra.mxu0 %v5200
  %5484 = vmatmul.f32.gmra.mxu0 %v5440
  %v5485 = vpop.f32.mrf.mxu0
  %v5486 = vadd.f32 0.0, %v5485
  %5487 = vmatmul.f32.gmra.mxu0 %v5443
  %v5488 = vpop.f32.mrf.mxu0
  %v5489 = vadd.f32 0.0, %v5488
  %5490 = vdwg.mxu0
  %5491 = vmatpush.msra.mxu0 0.0
  %5492 = vmatpush.msra.mxu0 0.0
  %5493 = vmatpush.msra.mxu0 0.0
  %5494 = vmatpush.msra.mxu0 0.0
  %5495 = vmatpush.msra.mxu0 0.0
  %5496 = vmatpush.msra.mxu0 0.0
  %5497 = vmatpush.msra.mxu0 0.0
  %5498 = vmatpush.msra.mxu0 0.0
  %5499 = vmatpush.msra.mxu0 0.0
  %5500 = vmatpush.msra.mxu0 0.0
  %5501 = vmatpush.msra.mxu0 0.0
  %5502 = vmatpush.msra.mxu0 0.0
  %5503 = vmatpush.msra.mxu0 0.0
  %5504 = vmatpush.msra.mxu0 0.0
  %5505 = vmatpush.msra.mxu0 %v5203
  %5506 = vmatpush.msra.mxu0 %v5202
  %5507 = vmatmul.f32.gmra.mxu0 %v5440
  %v5508 = vpop.f32.mrf.mxu0
  %v5509 = vadd.f32 0.0, %v5508
  %5510 = vmatmul.f32.gmra.mxu0 %v5443
  %v5511 = vpop.f32.mrf.mxu0
  %v5512 = vadd.f32 0.0, %v5511
  %5513 = vdwg.mxu0
  %5514 = vmatpush.msra.mxu0 0.0
  %5515 = vmatpush.msra.mxu0 0.0
  %5516 = vmatpush.msra.mxu0 0.0
  %5517 = vmatpush.msra.mxu0 0.0
  %5518 = vmatpush.msra.mxu0 0.0
  %5519 = vmatpush.msra.mxu0 0.0
  %5520 = vmatpush.msra.mxu0 0.0
  %5521 = vmatpush.msra.mxu0 0.0
  %5522 = vmatpush.msra.mxu0 0.0
  %5523 = vmatpush.msra.mxu0 0.0
  %5524 = vmatpush.msra.mxu0 0.0
  %5525 = vmatpush.msra.mxu0 0.0
  %5526 = vmatpush.msra.mxu0 0.0
  %5527 = vmatpush.msra.mxu0 0.0
  %5528 = vmatpush.msra.mxu0 %v5205
  %5529 = vmatpush.msra.mxu0 %v5204
  %5530 = vmatmul.f32.gmra.mxu0 %v5440
  %v5531 = vpop.f32.mrf.mxu0
  %v5532 = vadd.f32 0.0, %v5531
  %5533 = vmatmul.f32.gmra.mxu0 %v5443
  %v5534 = vpop.f32.mrf.mxu0
  %v5535 = vadd.f32 0.0, %v5534
  %5536 = vdwg.mxu0
  %5537 = vmatpush.msra.mxu0 0.0
  %5538 = vmatpush.msra.mxu0 0.0
  %5539 = vmatpush.msra.mxu0 0.0
  %5540 = vmatpush.msra.mxu0 0.0
  %5541 = vmatpush.msra.mxu0 0.0
  %5542 = vmatpush.msra.mxu0 0.0
  %5543 = vmatpush.msra.mxu0 0.0
  %5544 = vmatpush.msra.mxu0 0.0
  %5545 = vmatpush.msra.mxu0 0.0
  %5546 = vmatpush.msra.mxu0 0.0
  %5547 = vmatpush.msra.mxu0 0.0
  %5548 = vmatpush.msra.mxu0 0.0
  %5549 = vmatpush.msra.mxu0 0.0
  %5550 = vmatpush.msra.mxu0 0.0
  %5551 = vmatpush.msra.mxu0 %v5207
  %5552 = vmatpush.msra.mxu0 %v5206
  %5553 = vmatmul.f32.gmra.mxu0 %v5440
  %v5554 = vpop.f32.mrf.mxu0
  %v5555 = vadd.f32 0.0, %v5554
  %5556 = vmatmul.f32.gmra.mxu0 %v5443
  %v5557 = vpop.f32.mrf.mxu0
  %v5558 = vadd.f32 0.0, %v5557
  %5559 = vdwg.mxu0
  %5560 = vmatpush.msra.mxu0 0.0
  %5561 = vmatpush.msra.mxu0 0.0
  %5562 = vmatpush.msra.mxu0 0.0
  %5563 = vmatpush.msra.mxu0 0.0
  %5564 = vmatpush.msra.mxu0 0.0
  %5565 = vmatpush.msra.mxu0 0.0
  %5566 = vmatpush.msra.mxu0 0.0
  %5567 = vmatpush.msra.mxu0 0.0
  %5568 = vmatpush.msra.mxu0 0.0
  %5569 = vmatpush.msra.mxu0 0.0
  %5570 = vmatpush.msra.mxu0 0.0
  %5571 = vmatpush.msra.mxu0 0.0
  %5572 = vmatpush.msra.mxu0 0.0
  %5573 = vmatpush.msra.mxu0 0.0
  %5574 = vmatpush.msra.mxu0 %v5209
  %5575 = vmatpush.msra.mxu0 %v5208
  %5576 = vmatmul.f32.gmra.mxu0 %v5440
  %v5577 = vpop.f32.mrf.mxu0
  %v5578 = vadd.f32 0.0, %v5577
  %5579 = vmatmul.f32.gmra.mxu0 %v5443
  %v5580 = vpop.f32.mrf.mxu0
  %v5581 = vadd.f32 0.0, %v5580
  %5582 = vdwg.mxu0
  %5583 = vmatpush.msra.mxu0 0.0
  %5584 = vmatpush.msra.mxu0 0.0
  %5585 = vmatpush.msra.mxu0 0.0
  %5586 = vmatpush.msra.mxu0 0.0
  %5587 = vmatpush.msra.mxu0 0.0
  %5588 = vmatpush.msra.mxu0 0.0
  %5589 = vmatpush.msra.mxu0 0.0
  %5590 = vmatpush.msra.mxu0 0.0
  %5591 = vmatpush.msra.mxu0 0.0
  %5592 = vmatpush.msra.mxu0 0.0
  %5593 = vmatpush.msra.mxu0 0.0
  %5594 = vmatpush.msra.mxu0 0.0
  %5595 = vmatpush.msra.mxu0 0.0
  %5596 = vmatpush.msra.mxu0 0.0
  %5597 = vmatpush.msra.mxu0 %v5211
  %5598 = vmatpush.msra.mxu0 %v5210
  %5599 = vmatmul.f32.gmra.mxu0 %v5440
  %v5600 = vpop.f32.mrf.mxu0
  %v5601 = vadd.f32 0.0, %v5600
  %5602 = vmatmul.f32.gmra.mxu0 %v5443
  %v5603 = vpop.f32.mrf.mxu0
  %v5604 = vadd.f32 0.0, %v5603
  %5605 = vdwg.mxu0
  %5606 = vmatpush.msra.mxu0 0.0
  %5607 = vmatpush.msra.mxu0 0.0
  %5608 = vmatpush.msra.mxu0 0.0
  %5609 = vmatpush.msra.mxu0 0.0
  %5610 = vmatpush.msra.mxu0 0.0
  %5611 = vmatpush.msra.mxu0 0.0
  %5612 = vmatpush.msra.mxu0 0.0
  %5613 = vmatpush.msra.mxu0 0.0
  %5614 = vmatpush.msra.mxu0 0.0
  %5615 = vmatpush.msra.mxu0 0.0
  %5616 = vmatpush.msra.mxu0 0.0
  %5617 = vmatpush.msra.mxu0 0.0
  %5618 = vmatpush.msra.mxu0 0.0
  %5619 = vmatpush.msra.mxu0 0.0
  %5620 = vmatpush.msra.mxu0 %v5213
  %5621 = vmatpush.msra.mxu0 %v5212
  %5622 = vmatmul.f32.gmra.mxu0 %v5440
  %v5623 = vpop.f32.mrf.mxu0
  %v5624 = vadd.f32 0.0, %v5623
  %5625 = vmatmul.f32.gmra.mxu0 %v5443
  %v5626 = vpop.f32.mrf.mxu0
  %v5627 = vadd.f32 0.0, %v5626
  %5628 = vdwg.mxu0
  %5629 = vmatpush.msra.mxu0 0.0
  %5630 = vmatpush.msra.mxu0 0.0
  %5631 = vmatpush.msra.mxu0 0.0
  %5632 = vmatpush.msra.mxu0 0.0
  %5633 = vmatpush.msra.mxu0 0.0
  %5634 = vmatpush.msra.mxu0 0.0
  %5635 = vmatpush.msra.mxu0 0.0
  %5636 = vmatpush.msra.mxu0 0.0
  %5637 = vmatpush.msra.mxu0 0.0
  %5638 = vmatpush.msra.mxu0 0.0
  %5639 = vmatpush.msra.mxu0 0.0
  %5640 = vmatpush.msra.mxu0 0.0
  %5641 = vmatpush.msra.mxu0 0.0
  %5642 = vmatpush.msra.mxu0 0.0
  %5643 = vmatpush.msra.mxu0 %v5215
  %5644 = vmatpush.msra.mxu0 %v5214
  %5645 = vmatmul.f32.gmra.mxu0 %v5440
  %v5646 = vpop.f32.mrf.mxu0
  %v5647 = vadd.f32 0.0, %v5646
  %5648 = vmatmul.f32.gmra.mxu0 %v5443
  %v5649 = vpop.f32.mrf.mxu0
  %v5650 = vadd.f32 0.0, %v5649
  %5651 = vdwg.mxu0
  %5652 = vmatpush.msra.mxu0 0.0
  %5653 = vmatpush.msra.mxu0 0.0
  %5654 = vmatpush.msra.mxu0 0.0
  %5655 = vmatpush.msra.mxu0 0.0
  %5656 = vmatpush.msra.mxu0 0.0
  %5657 = vmatpush.msra.mxu0 0.0
  %5658 = vmatpush.msra.mxu0 0.0
  %5659 = vmatpush.msra.mxu0 0.0
  %5660 = vmatpush.msra.mxu0 0.0
  %5661 = vmatpush.msra.mxu0 0.0
  %5662 = vmatpush.msra.mxu0 0.0
  %5663 = vmatpush.msra.mxu0 0.0
  %5664 = vmatpush.msra.mxu0 0.0
  %5665 = vmatpush.msra.mxu0 0.0
  %5666 = vmatpush.msra.mxu0 %v5217
  %5667 = vmatpush.msra.mxu0 %v5216
  %5668 = vmatmul.f32.gmra.mxu0 %v5440
  %v5669 = vpop.f32.mrf.mxu0
  %v5670 = vadd.f32 0.0, %v5669
  %5671 = vmatmul.f32.gmra.mxu0 %v5443
  %v5672 = vpop.f32.mrf.mxu0
  %v5673 = vadd.f32 0.0, %v5672
  %5674 = vdwg.mxu0
  %5675 = vmatpush.msra.mxu0 0.0
  %5676 = vmatpush.msra.mxu0 0.0
  %5677 = vmatpush.msra.mxu0 0.0
  %5678 = vmatpush.msra.mxu0 0.0
  %5679 = vmatpush.msra.mxu0 0.0
  %5680 = vmatpush.msra.mxu0 0.0
  %5681 = vmatpush.msra.mxu0 0.0
  %5682 = vmatpush.msra.mxu0 0.0
  %5683 = vmatpush.msra.mxu0 0.0
  %5684 = vmatpush.msra.mxu0 0.0
  %5685 = vmatpush.msra.mxu0 0.0
  %5686 = vmatpush.msra.mxu0 0.0
  %5687 = vmatpush.msra.mxu0 0.0
  %5688 = vmatpush.msra.mxu0 0.0
  %5689 = vmatpush.msra.mxu0 %v5219
  %5690 = vmatpush.msra.mxu0 %v5218
  %5691 = vmatmul.f32.gmra.mxu0 %v5440
  %v5692 = vpop.f32.mrf.mxu0
  %v5693 = vadd.f32 0.0, %v5692
  %5694 = vmatmul.f32.gmra.mxu0 %v5443
  %v5695 = vpop.f32.mrf.mxu0
  %v5696 = vadd.f32 0.0, %v5695
  %5697 = vdwg.mxu0
  %5698 = vmatpush.msra.mxu0 0.0
  %5699 = vmatpush.msra.mxu0 0.0
  %5700 = vmatpush.msra.mxu0 0.0
  %5701 = vmatpush.msra.mxu0 0.0
  %5702 = vmatpush.msra.mxu0 0.0
  %5703 = vmatpush.msra.mxu0 0.0
  %5704 = vmatpush.msra.mxu0 0.0
  %5705 = vmatpush.msra.mxu0 0.0
  %5706 = vmatpush.msra.mxu0 0.0
  %5707 = vmatpush.msra.mxu0 0.0
  %5708 = vmatpush.msra.mxu0 0.0
  %5709 = vmatpush.msra.mxu0 0.0
  %5710 = vmatpush.msra.mxu0 0.0
  %5711 = vmatpush.msra.mxu0 0.0
  %5712 = vmatpush.msra.mxu0 %v5221
  %5713 = vmatpush.msra.mxu0 %v5220
  %5714 = vmatmul.f32.gmra.mxu0 %v5440
  %v5715 = vpop.f32.mrf.mxu0
  %v5716 = vadd.f32 0.0, %v5715
  %5717 = vmatmul.f32.gmra.mxu0 %v5443
  %v5718 = vpop.f32.mrf.mxu0
  %v5719 = vadd.f32 0.0, %v5718
  %5720 = vdwg.mxu0
  %5721 = vmatpush.msra.mxu0 0.0
  %5722 = vmatpush.msra.mxu0 0.0
  %5723 = vmatpush.msra.mxu0 0.0
  %5724 = vmatpush.msra.mxu0 0.0
  %5725 = vmatpush.msra.mxu0 0.0
  %5726 = vmatpush.msra.mxu0 0.0
  %5727 = vmatpush.msra.mxu0 0.0
  %5728 = vmatpush.msra.mxu0 0.0
  %5729 = vmatpush.msra.mxu0 0.0
  %5730 = vmatpush.msra.mxu0 0.0
  %5731 = vmatpush.msra.mxu0 0.0
  %5732 = vmatpush.msra.mxu0 0.0
  %5733 = vmatpush.msra.mxu0 0.0
  %5734 = vmatpush.msra.mxu0 0.0
  %5735 = vmatpush.msra.mxu0 %v5223
  %5736 = vmatpush.msra.mxu0 %v5222
  %5737 = vmatmul.f32.gmra.mxu0 %v5440
  %v5738 = vpop.f32.mrf.mxu0
  %v5739 = vadd.f32 0.0, %v5738
  %5740 = vmatmul.f32.gmra.mxu0 %v5443
  %v5741 = vpop.f32.mrf.mxu0
  %v5742 = vadd.f32 0.0, %v5741
  %5743 = vdwg.mxu0
  %5744 = vmatpush.msra.mxu0 0.0
  %5745 = vmatpush.msra.mxu0 0.0
  %5746 = vmatpush.msra.mxu0 0.0
  %5747 = vmatpush.msra.mxu0 0.0
  %5748 = vmatpush.msra.mxu0 0.0
  %5749 = vmatpush.msra.mxu0 0.0
  %5750 = vmatpush.msra.mxu0 0.0
  %5751 = vmatpush.msra.mxu0 0.0
  %5752 = vmatpush.msra.mxu0 0.0
  %5753 = vmatpush.msra.mxu0 0.0
  %5754 = vmatpush.msra.mxu0 0.0
  %5755 = vmatpush.msra.mxu0 0.0
  %5756 = vmatpush.msra.mxu0 0.0
  %5757 = vmatpush.msra.mxu0 0.0
  %5758 = vmatpush.msra.mxu0 %v5225
  %5759 = vmatpush.msra.mxu0 %v5224
  %5760 = vmatmul.f32.gmra.mxu0 %v5440
  %v5761 = vpop.f32.mrf.mxu0
  %v5762 = vadd.f32 0.0, %v5761
  %5763 = vmatmul.f32.gmra.mxu0 %v5443
  %v5764 = vpop.f32.mrf.mxu0
  %v5765 = vadd.f32 0.0, %v5764
  %5766 = vdwg.mxu0
  %v5768 = vsel %vm2852, %v5463, 0
  %v5771 = vsel %vm2852, %v5466, 0
  %v5774 = vsel %vm2852, %v5486, 0
  %v5777 = vsel %vm2852, %v5489, 0
  %v5780 = vsel %vm2852, %v5509, 0
  %v5783 = vsel %vm2852, %v5512, 0
  %v5786 = vsel %vm2852, %v5532, 0
  %v5789 = vsel %vm2852, %v5535, 0
  %v5792 = vsel %vm2852, %v5555, 0
  %v5795 = vsel %vm2852, %v5558, 0
  %v5798 = vsel %vm2852, %v5578, 0
  %v5801 = vsel %vm2852, %v5581, 0
  %v5804 = vsel %vm2852, %v5601, 0
  %v5807 = vsel %vm2852, %v5604, 0
  %v5810 = vsel %vm2852, %v5624, 0
  %v5813 = vsel %vm2852, %v5627, 0
  %v5816 = vsel %vm2852, %v5647, 0
  %v5819 = vsel %vm2852, %v5650, 0
  %v5822 = vsel %vm2852, %v5670, 0
  %v5825 = vsel %vm2852, %v5673, 0
  %v5828 = vsel %vm2852, %v5693, 0
  %v5831 = vsel %vm2852, %v5696, 0
  %v5834 = vsel %vm2852, %v5716, 0
  %v5837 = vsel %vm2852, %v5719, 0
  %v5840 = vsel %vm2852, %v5739, 0
  %v5843 = vsel %vm2852, %v5742, 0
  %v5846 = vsel %vm2852, %v5762, 0
  %v5849 = vsel %vm2852, %v5765, 0
  %5851 = vmatpush.msra.mxu0 0.0
  %5852 = vmatpush.msra.mxu0 0.0
  %5853 = vmatpush.msra.mxu0 0.0
  %5854 = vmatpush.msra.mxu0 0.0
  %5855 = vmatpush.msra.mxu0 0.0
  %5856 = vmatpush.msra.mxu0 0.0
  %5857 = vmatpush.msra.mxu0 0.0
  %5858 = vmatpush.msra.mxu0 0.0
  %5859 = vmatpush.msra.mxu0 0.0
  %5860 = vmatpush.msra.mxu0 0.0
  %5861 = vmatpush.msra.mxu0 0.0
  %5862 = vmatpush.msra.mxu0 0.0
  %5863 = vmatpush.msra.mxu0 %v5418
  %5864 = vmatpush.msra.mxu0 %v5417
  %5865 = vmatpush.msra.mxu0 %v5416
  %5866 = vmatpush.msra.mxu0 %v5415
  %5867 = vmatmul.f32.gmra.mxu0 %v5768
  %v5868 = vpop.f32.mrf.mxu0
  %v5869 = vadd.f32 0.0, %v5868
  %5870 = vmatmul.f32.gmra.mxu0 %v5771
  %v5871 = vpop.f32.mrf.mxu0
  %v5872 = vadd.f32 0.0, %v5871
  %5873 = vmatmul.f32.gmra.mxu0 %v5774
  %v5874 = vpop.f32.mrf.mxu0
  %v5875 = vadd.f32 0.0, %v5874
  %5876 = vmatmul.f32.gmra.mxu0 %v5777
  %v5877 = vpop.f32.mrf.mxu0
  %v5878 = vadd.f32 0.0, %v5877
  %5879 = vmatmul.f32.gmra.mxu0 %v5780
  %v5880 = vpop.f32.mrf.mxu0
  %v5881 = vadd.f32 0.0, %v5880
  %5882 = vmatmul.f32.gmra.mxu0 %v5783
  %v5883 = vpop.f32.mrf.mxu0
  %v5884 = vadd.f32 0.0, %v5883
  %5885 = vmatmul.f32.gmra.mxu0 %v5786
  %v5886 = vpop.f32.mrf.mxu0
  %v5887 = vadd.f32 0.0, %v5886
  %5888 = vmatmul.f32.gmra.mxu0 %v5789
  %v5889 = vpop.f32.mrf.mxu0
  %v5890 = vadd.f32 0.0, %v5889
  %5891 = vmatmul.f32.gmra.mxu0 %v5792
  %v5892 = vpop.f32.mrf.mxu0
  %v5893 = vadd.f32 0.0, %v5892
  %5894 = vmatmul.f32.gmra.mxu0 %v5795
  %v5895 = vpop.f32.mrf.mxu0
  %v5896 = vadd.f32 0.0, %v5895
  %5897 = vmatmul.f32.gmra.mxu0 %v5798
  %v5898 = vpop.f32.mrf.mxu0
  %v5899 = vadd.f32 0.0, %v5898
  %5900 = vmatmul.f32.gmra.mxu0 %v5801
  %v5901 = vpop.f32.mrf.mxu0
  %v5902 = vadd.f32 0.0, %v5901
  %5903 = vmatmul.f32.gmra.mxu0 %v5804
  %v5904 = vpop.f32.mrf.mxu0
  %v5905 = vadd.f32 0.0, %v5904
  %5906 = vmatmul.f32.gmra.mxu0 %v5807
  %v5907 = vpop.f32.mrf.mxu0
  %v5908 = vadd.f32 0.0, %v5907
  %5909 = vmatmul.f32.gmra.mxu0 %v5810
  %v5910 = vpop.f32.mrf.mxu0
  %v5911 = vadd.f32 0.0, %v5910
  %5912 = vmatmul.f32.gmra.mxu0 %v5813
  %v5913 = vpop.f32.mrf.mxu0
  %v5914 = vadd.f32 0.0, %v5913
  %5915 = vmatmul.f32.gmra.mxu0 %v5816
  %v5916 = vpop.f32.mrf.mxu0
  %v5917 = vadd.f32 0.0, %v5916
  %5918 = vmatmul.f32.gmra.mxu0 %v5819
  %v5919 = vpop.f32.mrf.mxu0
  %v5920 = vadd.f32 0.0, %v5919
  %5921 = vmatmul.f32.gmra.mxu0 %v5822
  %v5922 = vpop.f32.mrf.mxu0
  %v5923 = vadd.f32 0.0, %v5922
  %5924 = vmatmul.f32.gmra.mxu0 %v5825
  %v5925 = vpop.f32.mrf.mxu0
  %v5926 = vadd.f32 0.0, %v5925
  %5927 = vmatmul.f32.gmra.mxu0 %v5828
  %v5928 = vpop.f32.mrf.mxu0
  %v5929 = vadd.f32 0.0, %v5928
  %5930 = vmatmul.f32.gmra.mxu0 %v5831
  %v5931 = vpop.f32.mrf.mxu0
  %v5932 = vadd.f32 0.0, %v5931
  %5933 = vmatmul.f32.gmra.mxu0 %v5834
  %v5934 = vpop.f32.mrf.mxu0
  %v5935 = vadd.f32 0.0, %v5934
  %5936 = vmatmul.f32.gmra.mxu0 %v5837
  %v5937 = vpop.f32.mrf.mxu0
  %v5938 = vadd.f32 0.0, %v5937
  %5939 = vmatmul.f32.gmra.mxu0 %v5840
  %v5940 = vpop.f32.mrf.mxu0
  %v5941 = vadd.f32 0.0, %v5940
  %5942 = vmatmul.f32.gmra.mxu0 %v5843
  %v5943 = vpop.f32.mrf.mxu0
  %v5944 = vadd.f32 0.0, %v5943
  %5945 = vmatmul.f32.gmra.mxu0 %v5846
  %v5946 = vpop.f32.mrf.mxu0
  %v5947 = vadd.f32 0.0, %v5946
  %5948 = vmatmul.f32.gmra.mxu0 %v5849
  %v5949 = vpop.f32.mrf.mxu0
  %v5950 = vadd.f32 0.0, %v5949
  %5951 = vdwg.mxu0
  %5952 = vmatpush.msra.mxu0 0.0
  %5953 = vmatpush.msra.mxu0 0.0
  %5954 = vmatpush.msra.mxu0 0.0
  %5955 = vmatpush.msra.mxu0 0.0
  %5956 = vmatpush.msra.mxu0 0.0
  %5957 = vmatpush.msra.mxu0 0.0
  %5958 = vmatpush.msra.mxu0 0.0
  %5959 = vmatpush.msra.mxu0 0.0
  %5960 = vmatpush.msra.mxu0 0.0
  %5961 = vmatpush.msra.mxu0 0.0
  %5962 = vmatpush.msra.mxu0 0.0
  %5963 = vmatpush.msra.mxu0 0.0
  %5964 = vmatpush.msra.mxu0 %v5414
  %5965 = vmatpush.msra.mxu0 %v5413
  %5966 = vmatpush.msra.mxu0 %v5412
  %5967 = vmatpush.msra.mxu0 %v5411
  %5968 = vmatmul.f32.gmra.mxu0 %v5235
  %v5969 = vpop.f32.mrf.mxu0
  %v5970 = vadd.f32 %v5869, %v5969
  %5971 = vmatmul.f32.gmra.mxu0 %v5238
  %v5972 = vpop.f32.mrf.mxu0
  %v5973 = vadd.f32 %v5872, %v5972
  %5974 = vmatmul.f32.gmra.mxu0 %v5241
  %v5975 = vpop.f32.mrf.mxu0
  %v5976 = vadd.f32 %v5875, %v5975
  %5977 = vmatmul.f32.gmra.mxu0 %v5244
  %v5978 = vpop.f32.mrf.mxu0
  %v5979 = vadd.f32 %v5878, %v5978
  %5980 = vmatmul.f32.gmra.mxu0 %v5247
  %v5981 = vpop.f32.mrf.mxu0
  %v5982 = vadd.f32 %v5881, %v5981
  %5983 = vmatmul.f32.gmra.mxu0 %v5250
  %v5984 = vpop.f32.mrf.mxu0
  %v5985 = vadd.f32 %v5884, %v5984
  %5986 = vmatmul.f32.gmra.mxu0 %v5253
  %v5987 = vpop.f32.mrf.mxu0
  %v5988 = vadd.f32 %v5887, %v5987
  %5989 = vmatmul.f32.gmra.mxu0 %v5256
  %v5990 = vpop.f32.mrf.mxu0
  %v5991 = vadd.f32 %v5890, %v5990
  %5992 = vmatmul.f32.gmra.mxu0 %v5259
  %v5993 = vpop.f32.mrf.mxu0
  %v5994 = vadd.f32 %v5893, %v5993
  %5995 = vmatmul.f32.gmra.mxu0 %v5262
  %v5996 = vpop.f32.mrf.mxu0
  %v5997 = vadd.f32 %v5896, %v5996
  %5998 = vmatmul.f32.gmra.mxu0 %v5265
  %v5999 = vpop.f32.mrf.mxu0
  %v6000 = vadd.f32 %v5899, %v5999
  %6001 = vmatmul.f32.gmra.mxu0 %v5268
  %v6002 = vpop.f32.mrf.mxu0
  %v6003 = vadd.f32 %v5902, %v6002
  %6004 = vmatmul.f32.gmra.mxu0 %v5271
  %v6005 = vpop.f32.mrf.mxu0
  %v6006 = vadd.f32 %v5905, %v6005
  %6007 = vmatmul.f32.gmra.mxu0 %v5274
  %v6008 = vpop.f32.mrf.mxu0
  %v6009 = vadd.f32 %v5908, %v6008
  %6010 = vmatmul.f32.gmra.mxu0 %v5277
  %v6011 = vpop.f32.mrf.mxu0
  %v6012 = vadd.f32 %v5911, %v6011
  %6013 = vmatmul.f32.gmra.mxu0 %v5280
  %v6014 = vpop.f32.mrf.mxu0
  %v6015 = vadd.f32 %v5914, %v6014
  %6016 = vmatmul.f32.gmra.mxu0 %v5283
  %v6017 = vpop.f32.mrf.mxu0
  %v6018 = vadd.f32 %v5917, %v6017
  %6019 = vmatmul.f32.gmra.mxu0 %v5286
  %v6020 = vpop.f32.mrf.mxu0
  %v6021 = vadd.f32 %v5920, %v6020
  %6022 = vmatmul.f32.gmra.mxu0 %v5289
  %v6023 = vpop.f32.mrf.mxu0
  %v6024 = vadd.f32 %v5923, %v6023
  %6025 = vmatmul.f32.gmra.mxu0 %v5292
  %v6026 = vpop.f32.mrf.mxu0
  %v6027 = vadd.f32 %v5926, %v6026
  %6028 = vmatmul.f32.gmra.mxu0 %v5295
  %v6029 = vpop.f32.mrf.mxu0
  %v6030 = vadd.f32 %v5929, %v6029
  %6031 = vmatmul.f32.gmra.mxu0 %v5298
  %v6032 = vpop.f32.mrf.mxu0
  %v6033 = vadd.f32 %v5932, %v6032
  %6034 = vmatmul.f32.gmra.mxu0 %v5301
  %v6035 = vpop.f32.mrf.mxu0
  %v6036 = vadd.f32 %v5935, %v6035
  %6037 = vmatmul.f32.gmra.mxu0 %v5304
  %v6038 = vpop.f32.mrf.mxu0
  %v6039 = vadd.f32 %v5938, %v6038
  %6040 = vmatmul.f32.gmra.mxu0 %v5307
  %v6041 = vpop.f32.mrf.mxu0
  %v6042 = vadd.f32 %v5941, %v6041
  %6043 = vmatmul.f32.gmra.mxu0 %v5310
  %v6044 = vpop.f32.mrf.mxu0
  %v6045 = vadd.f32 %v5944, %v6044
  %6046 = vmatmul.f32.gmra.mxu0 %v5313
  %v6047 = vpop.f32.mrf.mxu0
  %v6048 = vadd.f32 %v5947, %v6047
  %6049 = vmatmul.f32.gmra.mxu0 %v5316
  %v6050 = vpop.f32.mrf.mxu0
  %v6051 = vadd.f32 %v5950, %v6050
  %6052 = vdwg.mxu0
  %6053 = vmatpush.msra.mxu0 0.0
  %6054 = vmatpush.msra.mxu0 0.0
  %6055 = vmatpush.msra.mxu0 0.0
  %6056 = vmatpush.msra.mxu0 0.0
  %6057 = vmatpush.msra.mxu0 0.0
  %6058 = vmatpush.msra.mxu0 0.0
  %6059 = vmatpush.msra.mxu0 0.0
  %6060 = vmatpush.msra.mxu0 0.0
  %6061 = vmatpush.msra.mxu0 0.0
  %6062 = vmatpush.msra.mxu0 0.0
  %6063 = vmatpush.msra.mxu0 0.0
  %6064 = vmatpush.msra.mxu0 0.0
  %6065 = vmatpush.msra.mxu0 0.0
  %6066 = vmatpush.msra.mxu0 0.0
  %6067 = vmatpush.msra.mxu0 %v5466
  %6068 = vmatpush.msra.mxu0 %v5463
  %6069 = vmatmul.f32.gmra.mxu0 %v5440
  %v6070 = vpop.f32.mrf.mxu0
  %v6071 = vadd.f32 0.0, %v6070
  %6072 = vmatmul.f32.gmra.mxu0 %v5443
  %v6073 = vpop.f32.mrf.mxu0
  %v6074 = vadd.f32 0.0, %v6073
  %6075 = vdwg.mxu0
  %6076 = vmatpush.msra.mxu0 0.0
  %6077 = vmatpush.msra.mxu0 0.0
  %6078 = vmatpush.msra.mxu0 0.0
  %6079 = vmatpush.msra.mxu0 0.0
  %6080 = vmatpush.msra.mxu0 0.0
  %6081 = vmatpush.msra.mxu0 0.0
  %6082 = vmatpush.msra.mxu0 0.0
  %6083 = vmatpush.msra.mxu0 0.0
  %6084 = vmatpush.msra.mxu0 0.0
  %6085 = vmatpush.msra.mxu0 0.0
  %6086 = vmatpush.msra.mxu0 0.0
  %6087 = vmatpush.msra.mxu0 0.0
  %6088 = vmatpush.msra.mxu0 0.0
  %6089 = vmatpush.msra.mxu0 0.0
  %6090 = vmatpush.msra.mxu0 %v5489
  %6091 = vmatpush.msra.mxu0 %v5486
  %6092 = vmatmul.f32.gmra.mxu0 %v5440
  %v6093 = vpop.f32.mrf.mxu0
  %v6094 = vadd.f32 0.0, %v6093
  %6095 = vmatmul.f32.gmra.mxu0 %v5443
  %v6096 = vpop.f32.mrf.mxu0
  %v6097 = vadd.f32 0.0, %v6096
  %6098 = vdwg.mxu0
  %6099 = vmatpush.msra.mxu0 0.0
  %6100 = vmatpush.msra.mxu0 0.0
  %6101 = vmatpush.msra.mxu0 0.0
  %6102 = vmatpush.msra.mxu0 0.0
  %6103 = vmatpush.msra.mxu0 0.0
  %6104 = vmatpush.msra.mxu0 0.0
  %6105 = vmatpush.msra.mxu0 0.0
  %6106 = vmatpush.msra.mxu0 0.0
  %6107 = vmatpush.msra.mxu0 0.0
  %6108 = vmatpush.msra.mxu0 0.0
  %6109 = vmatpush.msra.mxu0 0.0
  %6110 = vmatpush.msra.mxu0 0.0
  %6111 = vmatpush.msra.mxu0 0.0
  %6112 = vmatpush.msra.mxu0 0.0
  %6113 = vmatpush.msra.mxu0 %v5512
  %6114 = vmatpush.msra.mxu0 %v5509
  %6115 = vmatmul.f32.gmra.mxu0 %v5440
  %v6116 = vpop.f32.mrf.mxu0
  %v6117 = vadd.f32 0.0, %v6116
  %6118 = vmatmul.f32.gmra.mxu0 %v5443
  %v6119 = vpop.f32.mrf.mxu0
  %v6120 = vadd.f32 0.0, %v6119
  %6121 = vdwg.mxu0
  %6122 = vmatpush.msra.mxu0 0.0
  %6123 = vmatpush.msra.mxu0 0.0
  %6124 = vmatpush.msra.mxu0 0.0
  %6125 = vmatpush.msra.mxu0 0.0
  %6126 = vmatpush.msra.mxu0 0.0
  %6127 = vmatpush.msra.mxu0 0.0
  %6128 = vmatpush.msra.mxu0 0.0
  %6129 = vmatpush.msra.mxu0 0.0
  %6130 = vmatpush.msra.mxu0 0.0
  %6131 = vmatpush.msra.mxu0 0.0
  %6132 = vmatpush.msra.mxu0 0.0
  %6133 = vmatpush.msra.mxu0 0.0
  %6134 = vmatpush.msra.mxu0 0.0
  %6135 = vmatpush.msra.mxu0 0.0
  %6136 = vmatpush.msra.mxu0 %v5535
  %6137 = vmatpush.msra.mxu0 %v5532
  %6138 = vmatmul.f32.gmra.mxu0 %v5440
  %v6139 = vpop.f32.mrf.mxu0
  %v6140 = vadd.f32 0.0, %v6139
  %6141 = vmatmul.f32.gmra.mxu0 %v5443
  %v6142 = vpop.f32.mrf.mxu0
  %v6143 = vadd.f32 0.0, %v6142
  %6144 = vdwg.mxu0
  %6145 = vmatpush.msra.mxu0 0.0
  %6146 = vmatpush.msra.mxu0 0.0
  %6147 = vmatpush.msra.mxu0 0.0
  %6148 = vmatpush.msra.mxu0 0.0
  %6149 = vmatpush.msra.mxu0 0.0
  %6150 = vmatpush.msra.mxu0 0.0
  %6151 = vmatpush.msra.mxu0 0.0
  %6152 = vmatpush.msra.mxu0 0.0
  %6153 = vmatpush.msra.mxu0 0.0
  %6154 = vmatpush.msra.mxu0 0.0
  %6155 = vmatpush.msra.mxu0 0.0
  %6156 = vmatpush.msra.mxu0 0.0
  %6157 = vmatpush.msra.mxu0 0.0
  %6158 = vmatpush.msra.mxu0 0.0
  %6159 = vmatpush.msra.mxu0 %v5558
  %6160 = vmatpush.msra.mxu0 %v5555
  %6161 = vmatmul.f32.gmra.mxu0 %v5440
  %v6162 = vpop.f32.mrf.mxu0
  %v6163 = vadd.f32 0.0, %v6162
  %6164 = vmatmul.f32.gmra.mxu0 %v5443
  %v6165 = vpop.f32.mrf.mxu0
  %v6166 = vadd.f32 0.0, %v6165
  %6167 = vdwg.mxu0
  %6168 = vmatpush.msra.mxu0 0.0
  %6169 = vmatpush.msra.mxu0 0.0
  %6170 = vmatpush.msra.mxu0 0.0
  %6171 = vmatpush.msra.mxu0 0.0
  %6172 = vmatpush.msra.mxu0 0.0
  %6173 = vmatpush.msra.mxu0 0.0
  %6174 = vmatpush.msra.mxu0 0.0
  %6175 = vmatpush.msra.mxu0 0.0
  %6176 = vmatpush.msra.mxu0 0.0
  %6177 = vmatpush.msra.mxu0 0.0
  %6178 = vmatpush.msra.mxu0 0.0
  %6179 = vmatpush.msra.mxu0 0.0
  %6180 = vmatpush.msra.mxu0 0.0
  %6181 = vmatpush.msra.mxu0 0.0
  %6182 = vmatpush.msra.mxu0 %v5581
  %6183 = vmatpush.msra.mxu0 %v5578
  %6184 = vmatmul.f32.gmra.mxu0 %v5440
  %v6185 = vpop.f32.mrf.mxu0
  %v6186 = vadd.f32 0.0, %v6185
  %6187 = vmatmul.f32.gmra.mxu0 %v5443
  %v6188 = vpop.f32.mrf.mxu0
  %v6189 = vadd.f32 0.0, %v6188
  %6190 = vdwg.mxu0
  %6191 = vmatpush.msra.mxu0 0.0
  %6192 = vmatpush.msra.mxu0 0.0
  %6193 = vmatpush.msra.mxu0 0.0
  %6194 = vmatpush.msra.mxu0 0.0
  %6195 = vmatpush.msra.mxu0 0.0
  %6196 = vmatpush.msra.mxu0 0.0
  %6197 = vmatpush.msra.mxu0 0.0
  %6198 = vmatpush.msra.mxu0 0.0
  %6199 = vmatpush.msra.mxu0 0.0
  %6200 = vmatpush.msra.mxu0 0.0
  %6201 = vmatpush.msra.mxu0 0.0
  %6202 = vmatpush.msra.mxu0 0.0
  %6203 = vmatpush.msra.mxu0 0.0
  %6204 = vmatpush.msra.mxu0 0.0
  %6205 = vmatpush.msra.mxu0 %v5604
  %6206 = vmatpush.msra.mxu0 %v5601
  %6207 = vmatmul.f32.gmra.mxu0 %v5440
  %v6208 = vpop.f32.mrf.mxu0
  %v6209 = vadd.f32 0.0, %v6208
  %6210 = vmatmul.f32.gmra.mxu0 %v5443
  %v6211 = vpop.f32.mrf.mxu0
  %v6212 = vadd.f32 0.0, %v6211
  %6213 = vdwg.mxu0
  %6214 = vmatpush.msra.mxu0 0.0
  %6215 = vmatpush.msra.mxu0 0.0
  %6216 = vmatpush.msra.mxu0 0.0
  %6217 = vmatpush.msra.mxu0 0.0
  %6218 = vmatpush.msra.mxu0 0.0
  %6219 = vmatpush.msra.mxu0 0.0
  %6220 = vmatpush.msra.mxu0 0.0
  %6221 = vmatpush.msra.mxu0 0.0
  %6222 = vmatpush.msra.mxu0 0.0
  %6223 = vmatpush.msra.mxu0 0.0
  %6224 = vmatpush.msra.mxu0 0.0
  %6225 = vmatpush.msra.mxu0 0.0
  %6226 = vmatpush.msra.mxu0 0.0
  %6227 = vmatpush.msra.mxu0 0.0
  %6228 = vmatpush.msra.mxu0 %v5627
  %6229 = vmatpush.msra.mxu0 %v5624
  %6230 = vmatmul.f32.gmra.mxu0 %v5440
  %v6231 = vpop.f32.mrf.mxu0
  %v6232 = vadd.f32 0.0, %v6231
  %6233 = vmatmul.f32.gmra.mxu0 %v5443
  %v6234 = vpop.f32.mrf.mxu0
  %v6235 = vadd.f32 0.0, %v6234
  %6236 = vdwg.mxu0
  %6237 = vmatpush.msra.mxu0 0.0
  %6238 = vmatpush.msra.mxu0 0.0
  %6239 = vmatpush.msra.mxu0 0.0
  %6240 = vmatpush.msra.mxu0 0.0
  %6241 = vmatpush.msra.mxu0 0.0
  %6242 = vmatpush.msra.mxu0 0.0
  %6243 = vmatpush.msra.mxu0 0.0
  %6244 = vmatpush.msra.mxu0 0.0
  %6245 = vmatpush.msra.mxu0 0.0
  %6246 = vmatpush.msra.mxu0 0.0
  %6247 = vmatpush.msra.mxu0 0.0
  %6248 = vmatpush.msra.mxu0 0.0
  %6249 = vmatpush.msra.mxu0 0.0
  %6250 = vmatpush.msra.mxu0 0.0
  %6251 = vmatpush.msra.mxu0 %v5650
  %6252 = vmatpush.msra.mxu0 %v5647
  %6253 = vmatmul.f32.gmra.mxu0 %v5440
  %v6254 = vpop.f32.mrf.mxu0
  %v6255 = vadd.f32 0.0, %v6254
  %6256 = vmatmul.f32.gmra.mxu0 %v5443
  %v6257 = vpop.f32.mrf.mxu0
  %v6258 = vadd.f32 0.0, %v6257
  %6259 = vdwg.mxu0
  %6260 = vmatpush.msra.mxu0 0.0
  %6261 = vmatpush.msra.mxu0 0.0
  %6262 = vmatpush.msra.mxu0 0.0
  %6263 = vmatpush.msra.mxu0 0.0
  %6264 = vmatpush.msra.mxu0 0.0
  %6265 = vmatpush.msra.mxu0 0.0
  %6266 = vmatpush.msra.mxu0 0.0
  %6267 = vmatpush.msra.mxu0 0.0
  %6268 = vmatpush.msra.mxu0 0.0
  %6269 = vmatpush.msra.mxu0 0.0
  %6270 = vmatpush.msra.mxu0 0.0
  %6271 = vmatpush.msra.mxu0 0.0
  %6272 = vmatpush.msra.mxu0 0.0
  %6273 = vmatpush.msra.mxu0 0.0
  %6274 = vmatpush.msra.mxu0 %v5673
  %6275 = vmatpush.msra.mxu0 %v5670
  %6276 = vmatmul.f32.gmra.mxu0 %v5440
  %v6277 = vpop.f32.mrf.mxu0
  %v6278 = vadd.f32 0.0, %v6277
  %6279 = vmatmul.f32.gmra.mxu0 %v5443
  %v6280 = vpop.f32.mrf.mxu0
  %v6281 = vadd.f32 0.0, %v6280
  %6282 = vdwg.mxu0
  %6283 = vmatpush.msra.mxu0 0.0
  %6284 = vmatpush.msra.mxu0 0.0
  %6285 = vmatpush.msra.mxu0 0.0
  %6286 = vmatpush.msra.mxu0 0.0
  %6287 = vmatpush.msra.mxu0 0.0
  %6288 = vmatpush.msra.mxu0 0.0
  %6289 = vmatpush.msra.mxu0 0.0
  %6290 = vmatpush.msra.mxu0 0.0
  %6291 = vmatpush.msra.mxu0 0.0
  %6292 = vmatpush.msra.mxu0 0.0
  %6293 = vmatpush.msra.mxu0 0.0
  %6294 = vmatpush.msra.mxu0 0.0
  %6295 = vmatpush.msra.mxu0 0.0
  %6296 = vmatpush.msra.mxu0 0.0
  %6297 = vmatpush.msra.mxu0 %v5696
  %6298 = vmatpush.msra.mxu0 %v5693
  %6299 = vmatmul.f32.gmra.mxu0 %v5440
  %v6300 = vpop.f32.mrf.mxu0
  %v6301 = vadd.f32 0.0, %v6300
  %6302 = vmatmul.f32.gmra.mxu0 %v5443
  %v6303 = vpop.f32.mrf.mxu0
  %v6304 = vadd.f32 0.0, %v6303
  %6305 = vdwg.mxu0
  %6306 = vmatpush.msra.mxu0 0.0
  %6307 = vmatpush.msra.mxu0 0.0
  %6308 = vmatpush.msra.mxu0 0.0
  %6309 = vmatpush.msra.mxu0 0.0
  %6310 = vmatpush.msra.mxu0 0.0
  %6311 = vmatpush.msra.mxu0 0.0
  %6312 = vmatpush.msra.mxu0 0.0
  %6313 = vmatpush.msra.mxu0 0.0
  %6314 = vmatpush.msra.mxu0 0.0
  %6315 = vmatpush.msra.mxu0 0.0
  %6316 = vmatpush.msra.mxu0 0.0
  %6317 = vmatpush.msra.mxu0 0.0
  %6318 = vmatpush.msra.mxu0 0.0
  %6319 = vmatpush.msra.mxu0 0.0
  %6320 = vmatpush.msra.mxu0 %v5719
  %6321 = vmatpush.msra.mxu0 %v5716
  %6322 = vmatmul.f32.gmra.mxu0 %v5440
  %v6323 = vpop.f32.mrf.mxu0
  %v6324 = vadd.f32 0.0, %v6323
  %6325 = vmatmul.f32.gmra.mxu0 %v5443
  %v6326 = vpop.f32.mrf.mxu0
  %v6327 = vadd.f32 0.0, %v6326
  %6328 = vdwg.mxu0
  %6329 = vmatpush.msra.mxu0 0.0
  %6330 = vmatpush.msra.mxu0 0.0
  %6331 = vmatpush.msra.mxu0 0.0
  %6332 = vmatpush.msra.mxu0 0.0
  %6333 = vmatpush.msra.mxu0 0.0
  %6334 = vmatpush.msra.mxu0 0.0
  %6335 = vmatpush.msra.mxu0 0.0
  %6336 = vmatpush.msra.mxu0 0.0
  %6337 = vmatpush.msra.mxu0 0.0
  %6338 = vmatpush.msra.mxu0 0.0
  %6339 = vmatpush.msra.mxu0 0.0
  %6340 = vmatpush.msra.mxu0 0.0
  %6341 = vmatpush.msra.mxu0 0.0
  %6342 = vmatpush.msra.mxu0 0.0
  %6343 = vmatpush.msra.mxu0 %v5742
  %6344 = vmatpush.msra.mxu0 %v5739
  %6345 = vmatmul.f32.gmra.mxu0 %v5440
  %v6346 = vpop.f32.mrf.mxu0
  %v6347 = vadd.f32 0.0, %v6346
  %6348 = vmatmul.f32.gmra.mxu0 %v5443
  %v6349 = vpop.f32.mrf.mxu0
  %v6350 = vadd.f32 0.0, %v6349
  %6351 = vdwg.mxu0
  %6352 = vmatpush.msra.mxu0 0.0
  %6353 = vmatpush.msra.mxu0 0.0
  %6354 = vmatpush.msra.mxu0 0.0
  %6355 = vmatpush.msra.mxu0 0.0
  %6356 = vmatpush.msra.mxu0 0.0
  %6357 = vmatpush.msra.mxu0 0.0
  %6358 = vmatpush.msra.mxu0 0.0
  %6359 = vmatpush.msra.mxu0 0.0
  %6360 = vmatpush.msra.mxu0 0.0
  %6361 = vmatpush.msra.mxu0 0.0
  %6362 = vmatpush.msra.mxu0 0.0
  %6363 = vmatpush.msra.mxu0 0.0
  %6364 = vmatpush.msra.mxu0 0.0
  %6365 = vmatpush.msra.mxu0 0.0
  %6366 = vmatpush.msra.mxu0 %v5765
  %6367 = vmatpush.msra.mxu0 %v5762
  %6368 = vmatmul.f32.gmra.mxu0 %v5440
  %v6369 = vpop.f32.mrf.mxu0
  %v6370 = vadd.f32 0.0, %v6369
  %6371 = vmatmul.f32.gmra.mxu0 %v5443
  %v6372 = vpop.f32.mrf.mxu0
  %v6373 = vadd.f32 0.0, %v6372
  %6374 = vdwg.mxu0
  %v6376 = vsel %vm2852, %v6071, 0
  %v6379 = vsel %vm2852, %v6074, 0
  %v6382 = vsel %vm2852, %v6094, 0
  %v6385 = vsel %vm2852, %v6097, 0
  %v6388 = vsel %vm2852, %v6117, 0
  %v6391 = vsel %vm2852, %v6120, 0
  %v6394 = vsel %vm2852, %v6140, 0
  %v6397 = vsel %vm2852, %v6143, 0
  %v6400 = vsel %vm2852, %v6163, 0
  %v6403 = vsel %vm2852, %v6166, 0
  %v6406 = vsel %vm2852, %v6186, 0
  %v6409 = vsel %vm2852, %v6189, 0
  %v6412 = vsel %vm2852, %v6209, 0
  %v6415 = vsel %vm2852, %v6212, 0
  %v6418 = vsel %vm2852, %v6232, 0
  %v6421 = vsel %vm2852, %v6235, 0
  %v6424 = vsel %vm2852, %v6255, 0
  %v6427 = vsel %vm2852, %v6258, 0
  %v6430 = vsel %vm2852, %v6278, 0
  %v6433 = vsel %vm2852, %v6281, 0
  %v6436 = vsel %vm2852, %v6301, 0
  %v6439 = vsel %vm2852, %v6304, 0
  %v6442 = vsel %vm2852, %v6324, 0
  %v6445 = vsel %vm2852, %v6327, 0
  %v6448 = vsel %vm2852, %v6347, 0
  %v6451 = vsel %vm2852, %v6350, 0
  %v6454 = vsel %vm2852, %v6370, 0
  %v6457 = vsel %vm2852, %v6373, 0
  %6459 = vmatpush.msra.mxu0 0.0
  %6460 = vmatpush.msra.mxu0 0.0
  %6461 = vmatpush.msra.mxu0 0.0
  %6462 = vmatpush.msra.mxu0 0.0
  %6463 = vmatpush.msra.mxu0 0.0
  %6464 = vmatpush.msra.mxu0 0.0
  %6465 = vmatpush.msra.mxu0 0.0
  %6466 = vmatpush.msra.mxu0 0.0
  %6467 = vmatpush.msra.mxu0 0.0
  %6468 = vmatpush.msra.mxu0 0.0
  %6469 = vmatpush.msra.mxu0 0.0
  %6470 = vmatpush.msra.mxu0 0.0
  %6471 = vmatpush.msra.mxu0 %v5422
  %6472 = vmatpush.msra.mxu0 %v5421
  %6473 = vmatpush.msra.mxu0 %v5420
  %6474 = vmatpush.msra.mxu0 %v5419
  %6475 = vmatmul.f32.gmra.mxu0 %v6376
  %v6476 = vpop.f32.mrf.mxu0
  %v6477 = vadd.f32 0.0, %v6476
  %6478 = vmatmul.f32.gmra.mxu0 %v6379
  %v6479 = vpop.f32.mrf.mxu0
  %v6480 = vadd.f32 0.0, %v6479
  %6481 = vmatmul.f32.gmra.mxu0 %v6382
  %v6482 = vpop.f32.mrf.mxu0
  %v6483 = vadd.f32 0.0, %v6482
  %6484 = vmatmul.f32.gmra.mxu0 %v6385
  %v6485 = vpop.f32.mrf.mxu0
  %v6486 = vadd.f32 0.0, %v6485
  %6487 = vmatmul.f32.gmra.mxu0 %v6388
  %v6488 = vpop.f32.mrf.mxu0
  %v6489 = vadd.f32 0.0, %v6488
  %6490 = vmatmul.f32.gmra.mxu0 %v6391
  %v6491 = vpop.f32.mrf.mxu0
  %v6492 = vadd.f32 0.0, %v6491
  %6493 = vmatmul.f32.gmra.mxu0 %v6394
  %v6494 = vpop.f32.mrf.mxu0
  %v6495 = vadd.f32 0.0, %v6494
  %6496 = vmatmul.f32.gmra.mxu0 %v6397
  %v6497 = vpop.f32.mrf.mxu0
  %v6498 = vadd.f32 0.0, %v6497
  %6499 = vmatmul.f32.gmra.mxu0 %v6400
  %v6500 = vpop.f32.mrf.mxu0
  %v6501 = vadd.f32 0.0, %v6500
  %6502 = vmatmul.f32.gmra.mxu0 %v6403
  %v6503 = vpop.f32.mrf.mxu0
  %v6504 = vadd.f32 0.0, %v6503
  %6505 = vmatmul.f32.gmra.mxu0 %v6406
  %v6506 = vpop.f32.mrf.mxu0
  %v6507 = vadd.f32 0.0, %v6506
  %6508 = vmatmul.f32.gmra.mxu0 %v6409
  %v6509 = vpop.f32.mrf.mxu0
  %v6510 = vadd.f32 0.0, %v6509
  %6511 = vmatmul.f32.gmra.mxu0 %v6412
  %v6512 = vpop.f32.mrf.mxu0
  %v6513 = vadd.f32 0.0, %v6512
  %6514 = vmatmul.f32.gmra.mxu0 %v6415
  %v6515 = vpop.f32.mrf.mxu0
  %v6516 = vadd.f32 0.0, %v6515
  %6517 = vmatmul.f32.gmra.mxu0 %v6418
  %v6518 = vpop.f32.mrf.mxu0
  %v6519 = vadd.f32 0.0, %v6518
  %6520 = vmatmul.f32.gmra.mxu0 %v6421
  %v6521 = vpop.f32.mrf.mxu0
  %v6522 = vadd.f32 0.0, %v6521
  %6523 = vmatmul.f32.gmra.mxu0 %v6424
  %v6524 = vpop.f32.mrf.mxu0
  %v6525 = vadd.f32 0.0, %v6524
  %6526 = vmatmul.f32.gmra.mxu0 %v6427
  %v6527 = vpop.f32.mrf.mxu0
  %v6528 = vadd.f32 0.0, %v6527
  %6529 = vmatmul.f32.gmra.mxu0 %v6430
  %v6530 = vpop.f32.mrf.mxu0
  %v6531 = vadd.f32 0.0, %v6530
  %6532 = vmatmul.f32.gmra.mxu0 %v6433
  %v6533 = vpop.f32.mrf.mxu0
  %v6534 = vadd.f32 0.0, %v6533
  %6535 = vmatmul.f32.gmra.mxu0 %v6436
  %v6536 = vpop.f32.mrf.mxu0
  %v6537 = vadd.f32 0.0, %v6536
  %6538 = vmatmul.f32.gmra.mxu0 %v6439
  %v6539 = vpop.f32.mrf.mxu0
  %v6540 = vadd.f32 0.0, %v6539
  %6541 = vmatmul.f32.gmra.mxu0 %v6442
  %v6542 = vpop.f32.mrf.mxu0
  %v6543 = vadd.f32 0.0, %v6542
  %6544 = vmatmul.f32.gmra.mxu0 %v6445
  %v6545 = vpop.f32.mrf.mxu0
  %v6546 = vadd.f32 0.0, %v6545
  %6547 = vmatmul.f32.gmra.mxu0 %v6448
  %v6548 = vpop.f32.mrf.mxu0
  %v6549 = vadd.f32 0.0, %v6548
  %6550 = vmatmul.f32.gmra.mxu0 %v6451
  %v6551 = vpop.f32.mrf.mxu0
  %v6552 = vadd.f32 0.0, %v6551
  %6553 = vmatmul.f32.gmra.mxu0 %v6454
  %v6554 = vpop.f32.mrf.mxu0
  %v6555 = vadd.f32 0.0, %v6554
  %6556 = vmatmul.f32.gmra.mxu0 %v6457
  %v6557 = vpop.f32.mrf.mxu0
  %v6558 = vadd.f32 0.0, %v6557
  %6559 = vdwg.mxu0
  %v6560 = vadd.f32 %v5970, %v6477
  %v6561 = vadd.f32 %v5973, %v6480
  %v6562 = vadd.f32 %v5976, %v6483
  %v6563 = vadd.f32 %v5979, %v6486
  %v6564 = vadd.f32 %v5982, %v6489
  %v6565 = vadd.f32 %v5985, %v6492
  %v6566 = vadd.f32 %v5988, %v6495
  %v6567 = vadd.f32 %v5991, %v6498
  %v6568 = vadd.f32 %v5994, %v6501
  %v6569 = vadd.f32 %v5997, %v6504
  %v6570 = vadd.f32 %v6000, %v6507
  %v6571 = vadd.f32 %v6003, %v6510
  %v6572 = vadd.f32 %v6006, %v6513
  %v6573 = vadd.f32 %v6009, %v6516
  %v6574 = vadd.f32 %v6012, %v6519
  %v6575 = vadd.f32 %v6015, %v6522
  %v6576 = vadd.f32 %v6018, %v6525
  %v6577 = vadd.f32 %v6021, %v6528
  %v6578 = vadd.f32 %v6024, %v6531
  %v6579 = vadd.f32 %v6027, %v6534
  %v6580 = vadd.f32 %v6030, %v6537
  %v6581 = vadd.f32 %v6033, %v6540
  %v6582 = vadd.f32 %v6036, %v6543
  %v6583 = vadd.f32 %v6039, %v6546
  %v6584 = vadd.f32 %v6042, %v6549
  %v6585 = vadd.f32 %v6045, %v6552
  %v6586 = vadd.f32 %v6048, %v6555
  %v6587 = vadd.f32 %v6051, %v6558
  %v6589 = vsel %vm4010, %v4054, 0
  %v6592 = vsel %vm4010, %v4055, 0
  %6594 = vmatpush.msra.mxu0 0.0
  %6595 = vmatpush.msra.mxu0 0.0
  %6596 = vmatpush.msra.mxu0 0.0
  %6597 = vmatpush.msra.mxu0 0.0
  %6598 = vmatpush.msra.mxu0 0.0
  %6599 = vmatpush.msra.mxu0 0.0
  %6600 = vmatpush.msra.mxu0 0.0
  %6601 = vmatpush.msra.mxu0 0.0
  %6602 = vmatpush.msra.mxu0 0.0
  %6603 = vmatpush.msra.mxu0 0.0
  %6604 = vmatpush.msra.mxu0 0.0
  %6605 = vmatpush.msra.mxu0 0.0
  %6606 = vmatpush.msra.mxu0 0.0
  %6607 = vmatpush.msra.mxu0 0.0
  %6608 = vmatpush.msra.mxu0 %v5199
  %6609 = vmatpush.msra.mxu0 %v5198
  %6610 = vmatmul.f32.gmra.mxu0 %v6589
  %v6611 = vpop.f32.mrf.mxu0
  %v6612 = vadd.f32 0.0, %v6611
  %6613 = vmatmul.f32.gmra.mxu0 %v6592
  %v6614 = vpop.f32.mrf.mxu0
  %v6615 = vadd.f32 0.0, %v6614
  %6616 = vdwg.mxu0
  %6617 = vmatpush.msra.mxu0 0.0
  %6618 = vmatpush.msra.mxu0 0.0
  %6619 = vmatpush.msra.mxu0 0.0
  %6620 = vmatpush.msra.mxu0 0.0
  %6621 = vmatpush.msra.mxu0 0.0
  %6622 = vmatpush.msra.mxu0 0.0
  %6623 = vmatpush.msra.mxu0 0.0
  %6624 = vmatpush.msra.mxu0 0.0
  %6625 = vmatpush.msra.mxu0 0.0
  %6626 = vmatpush.msra.mxu0 0.0
  %6627 = vmatpush.msra.mxu0 0.0
  %6628 = vmatpush.msra.mxu0 0.0
  %6629 = vmatpush.msra.mxu0 0.0
  %6630 = vmatpush.msra.mxu0 0.0
  %6631 = vmatpush.msra.mxu0 %v5201
  %6632 = vmatpush.msra.mxu0 %v5200
  %6633 = vmatmul.f32.gmra.mxu0 %v6589
  %v6634 = vpop.f32.mrf.mxu0
  %v6635 = vadd.f32 0.0, %v6634
  %6636 = vmatmul.f32.gmra.mxu0 %v6592
  %v6637 = vpop.f32.mrf.mxu0
  %v6638 = vadd.f32 0.0, %v6637
  %6639 = vdwg.mxu0
  %6640 = vmatpush.msra.mxu0 0.0
  %6641 = vmatpush.msra.mxu0 0.0
  %6642 = vmatpush.msra.mxu0 0.0
  %6643 = vmatpush.msra.mxu0 0.0
  %6644 = vmatpush.msra.mxu0 0.0
  %6645 = vmatpush.msra.mxu0 0.0
  %6646 = vmatpush.msra.mxu0 0.0
  %6647 = vmatpush.msra.mxu0 0.0
  %6648 = vmatpush.msra.mxu0 0.0
  %6649 = vmatpush.msra.mxu0 0.0
  %6650 = vmatpush.msra.mxu0 0.0
  %6651 = vmatpush.msra.mxu0 0.0
  %6652 = vmatpush.msra.mxu0 0.0
  %6653 = vmatpush.msra.mxu0 0.0
  %6654 = vmatpush.msra.mxu0 %v5203
  %6655 = vmatpush.msra.mxu0 %v5202
  %6656 = vmatmul.f32.gmra.mxu0 %v6589
  %v6657 = vpop.f32.mrf.mxu0
  %v6658 = vadd.f32 0.0, %v6657
  %6659 = vmatmul.f32.gmra.mxu0 %v6592
  %v6660 = vpop.f32.mrf.mxu0
  %v6661 = vadd.f32 0.0, %v6660
  %6662 = vdwg.mxu0
  %6663 = vmatpush.msra.mxu0 0.0
  %6664 = vmatpush.msra.mxu0 0.0
  %6665 = vmatpush.msra.mxu0 0.0
  %6666 = vmatpush.msra.mxu0 0.0
  %6667 = vmatpush.msra.mxu0 0.0
  %6668 = vmatpush.msra.mxu0 0.0
  %6669 = vmatpush.msra.mxu0 0.0
  %6670 = vmatpush.msra.mxu0 0.0
  %6671 = vmatpush.msra.mxu0 0.0
  %6672 = vmatpush.msra.mxu0 0.0
  %6673 = vmatpush.msra.mxu0 0.0
  %6674 = vmatpush.msra.mxu0 0.0
  %6675 = vmatpush.msra.mxu0 0.0
  %6676 = vmatpush.msra.mxu0 0.0
  %6677 = vmatpush.msra.mxu0 %v5205
  %6678 = vmatpush.msra.mxu0 %v5204
  %6679 = vmatmul.f32.gmra.mxu0 %v6589
  %v6680 = vpop.f32.mrf.mxu0
  %v6681 = vadd.f32 0.0, %v6680
  %6682 = vmatmul.f32.gmra.mxu0 %v6592
  %v6683 = vpop.f32.mrf.mxu0
  %v6684 = vadd.f32 0.0, %v6683
  %6685 = vdwg.mxu0
  %6686 = vmatpush.msra.mxu0 0.0
  %6687 = vmatpush.msra.mxu0 0.0
  %6688 = vmatpush.msra.mxu0 0.0
  %6689 = vmatpush.msra.mxu0 0.0
  %6690 = vmatpush.msra.mxu0 0.0
  %6691 = vmatpush.msra.mxu0 0.0
  %6692 = vmatpush.msra.mxu0 0.0
  %6693 = vmatpush.msra.mxu0 0.0
  %6694 = vmatpush.msra.mxu0 0.0
  %6695 = vmatpush.msra.mxu0 0.0
  %6696 = vmatpush.msra.mxu0 0.0
  %6697 = vmatpush.msra.mxu0 0.0
  %6698 = vmatpush.msra.mxu0 0.0
  %6699 = vmatpush.msra.mxu0 0.0
  %6700 = vmatpush.msra.mxu0 %v5207
  %6701 = vmatpush.msra.mxu0 %v5206
  %6702 = vmatmul.f32.gmra.mxu0 %v6589
  %v6703 = vpop.f32.mrf.mxu0
  %v6704 = vadd.f32 0.0, %v6703
  %6705 = vmatmul.f32.gmra.mxu0 %v6592
  %v6706 = vpop.f32.mrf.mxu0
  %v6707 = vadd.f32 0.0, %v6706
  %6708 = vdwg.mxu0
  %6709 = vmatpush.msra.mxu0 0.0
  %6710 = vmatpush.msra.mxu0 0.0
  %6711 = vmatpush.msra.mxu0 0.0
  %6712 = vmatpush.msra.mxu0 0.0
  %6713 = vmatpush.msra.mxu0 0.0
  %6714 = vmatpush.msra.mxu0 0.0
  %6715 = vmatpush.msra.mxu0 0.0
  %6716 = vmatpush.msra.mxu0 0.0
  %6717 = vmatpush.msra.mxu0 0.0
  %6718 = vmatpush.msra.mxu0 0.0
  %6719 = vmatpush.msra.mxu0 0.0
  %6720 = vmatpush.msra.mxu0 0.0
  %6721 = vmatpush.msra.mxu0 0.0
  %6722 = vmatpush.msra.mxu0 0.0
  %6723 = vmatpush.msra.mxu0 %v5209
  %6724 = vmatpush.msra.mxu0 %v5208
  %6725 = vmatmul.f32.gmra.mxu0 %v6589
  %v6726 = vpop.f32.mrf.mxu0
  %v6727 = vadd.f32 0.0, %v6726
  %6728 = vmatmul.f32.gmra.mxu0 %v6592
  %v6729 = vpop.f32.mrf.mxu0
  %v6730 = vadd.f32 0.0, %v6729
  %6731 = vdwg.mxu0
  %6732 = vmatpush.msra.mxu0 0.0
  %6733 = vmatpush.msra.mxu0 0.0
  %6734 = vmatpush.msra.mxu0 0.0
  %6735 = vmatpush.msra.mxu0 0.0
  %6736 = vmatpush.msra.mxu0 0.0
  %6737 = vmatpush.msra.mxu0 0.0
  %6738 = vmatpush.msra.mxu0 0.0
  %6739 = vmatpush.msra.mxu0 0.0
  %6740 = vmatpush.msra.mxu0 0.0
  %6741 = vmatpush.msra.mxu0 0.0
  %6742 = vmatpush.msra.mxu0 0.0
  %6743 = vmatpush.msra.mxu0 0.0
  %6744 = vmatpush.msra.mxu0 0.0
  %6745 = vmatpush.msra.mxu0 0.0
  %6746 = vmatpush.msra.mxu0 %v5211
  %6747 = vmatpush.msra.mxu0 %v5210
  %6748 = vmatmul.f32.gmra.mxu0 %v6589
  %v6749 = vpop.f32.mrf.mxu0
  %v6750 = vadd.f32 0.0, %v6749
  %6751 = vmatmul.f32.gmra.mxu0 %v6592
  %v6752 = vpop.f32.mrf.mxu0
  %v6753 = vadd.f32 0.0, %v6752
  %6754 = vdwg.mxu0
  %6755 = vmatpush.msra.mxu0 0.0
  %6756 = vmatpush.msra.mxu0 0.0
  %6757 = vmatpush.msra.mxu0 0.0
  %6758 = vmatpush.msra.mxu0 0.0
  %6759 = vmatpush.msra.mxu0 0.0
  %6760 = vmatpush.msra.mxu0 0.0
  %6761 = vmatpush.msra.mxu0 0.0
  %6762 = vmatpush.msra.mxu0 0.0
  %6763 = vmatpush.msra.mxu0 0.0
  %6764 = vmatpush.msra.mxu0 0.0
  %6765 = vmatpush.msra.mxu0 0.0
  %6766 = vmatpush.msra.mxu0 0.0
  %6767 = vmatpush.msra.mxu0 0.0
  %6768 = vmatpush.msra.mxu0 0.0
  %6769 = vmatpush.msra.mxu0 %v5213
  %6770 = vmatpush.msra.mxu0 %v5212
  %6771 = vmatmul.f32.gmra.mxu0 %v6589
  %v6772 = vpop.f32.mrf.mxu0
  %v6773 = vadd.f32 0.0, %v6772
  %6774 = vmatmul.f32.gmra.mxu0 %v6592
  %v6775 = vpop.f32.mrf.mxu0
  %v6776 = vadd.f32 0.0, %v6775
  %6777 = vdwg.mxu0
  %6778 = vmatpush.msra.mxu0 0.0
  %6779 = vmatpush.msra.mxu0 0.0
  %6780 = vmatpush.msra.mxu0 0.0
  %6781 = vmatpush.msra.mxu0 0.0
  %6782 = vmatpush.msra.mxu0 0.0
  %6783 = vmatpush.msra.mxu0 0.0
  %6784 = vmatpush.msra.mxu0 0.0
  %6785 = vmatpush.msra.mxu0 0.0
  %6786 = vmatpush.msra.mxu0 0.0
  %6787 = vmatpush.msra.mxu0 0.0
  %6788 = vmatpush.msra.mxu0 0.0
  %6789 = vmatpush.msra.mxu0 0.0
  %6790 = vmatpush.msra.mxu0 0.0
  %6791 = vmatpush.msra.mxu0 0.0
  %6792 = vmatpush.msra.mxu0 %v5215
  %6793 = vmatpush.msra.mxu0 %v5214
  %6794 = vmatmul.f32.gmra.mxu0 %v6589
  %v6795 = vpop.f32.mrf.mxu0
  %v6796 = vadd.f32 0.0, %v6795
  %6797 = vmatmul.f32.gmra.mxu0 %v6592
  %v6798 = vpop.f32.mrf.mxu0
  %v6799 = vadd.f32 0.0, %v6798
  %6800 = vdwg.mxu0
  %6801 = vmatpush.msra.mxu0 0.0
  %6802 = vmatpush.msra.mxu0 0.0
  %6803 = vmatpush.msra.mxu0 0.0
  %6804 = vmatpush.msra.mxu0 0.0
  %6805 = vmatpush.msra.mxu0 0.0
  %6806 = vmatpush.msra.mxu0 0.0
  %6807 = vmatpush.msra.mxu0 0.0
  %6808 = vmatpush.msra.mxu0 0.0
  %6809 = vmatpush.msra.mxu0 0.0
  %6810 = vmatpush.msra.mxu0 0.0
  %6811 = vmatpush.msra.mxu0 0.0
  %6812 = vmatpush.msra.mxu0 0.0
  %6813 = vmatpush.msra.mxu0 0.0
  %6814 = vmatpush.msra.mxu0 0.0
  %6815 = vmatpush.msra.mxu0 %v5217
  %6816 = vmatpush.msra.mxu0 %v5216
  %6817 = vmatmul.f32.gmra.mxu0 %v6589
  %v6818 = vpop.f32.mrf.mxu0
  %v6819 = vadd.f32 0.0, %v6818
  %6820 = vmatmul.f32.gmra.mxu0 %v6592
  %v6821 = vpop.f32.mrf.mxu0
  %v6822 = vadd.f32 0.0, %v6821
  %6823 = vdwg.mxu0
  %6824 = vmatpush.msra.mxu0 0.0
  %6825 = vmatpush.msra.mxu0 0.0
  %6826 = vmatpush.msra.mxu0 0.0
  %6827 = vmatpush.msra.mxu0 0.0
  %6828 = vmatpush.msra.mxu0 0.0
  %6829 = vmatpush.msra.mxu0 0.0
  %6830 = vmatpush.msra.mxu0 0.0
  %6831 = vmatpush.msra.mxu0 0.0
  %6832 = vmatpush.msra.mxu0 0.0
  %6833 = vmatpush.msra.mxu0 0.0
  %6834 = vmatpush.msra.mxu0 0.0
  %6835 = vmatpush.msra.mxu0 0.0
  %6836 = vmatpush.msra.mxu0 0.0
  %6837 = vmatpush.msra.mxu0 0.0
  %6838 = vmatpush.msra.mxu0 %v5219
  %6839 = vmatpush.msra.mxu0 %v5218
  %6840 = vmatmul.f32.gmra.mxu0 %v6589
  %v6841 = vpop.f32.mrf.mxu0
  %v6842 = vadd.f32 0.0, %v6841
  %6843 = vmatmul.f32.gmra.mxu0 %v6592
  %v6844 = vpop.f32.mrf.mxu0
  %v6845 = vadd.f32 0.0, %v6844
  %6846 = vdwg.mxu0
  %6847 = vmatpush.msra.mxu0 0.0
  %6848 = vmatpush.msra.mxu0 0.0
  %6849 = vmatpush.msra.mxu0 0.0
  %6850 = vmatpush.msra.mxu0 0.0
  %6851 = vmatpush.msra.mxu0 0.0
  %6852 = vmatpush.msra.mxu0 0.0
  %6853 = vmatpush.msra.mxu0 0.0
  %6854 = vmatpush.msra.mxu0 0.0
  %6855 = vmatpush.msra.mxu0 0.0
  %6856 = vmatpush.msra.mxu0 0.0
  %6857 = vmatpush.msra.mxu0 0.0
  %6858 = vmatpush.msra.mxu0 0.0
  %6859 = vmatpush.msra.mxu0 0.0
  %6860 = vmatpush.msra.mxu0 0.0
  %6861 = vmatpush.msra.mxu0 %v5221
  %6862 = vmatpush.msra.mxu0 %v5220
  %6863 = vmatmul.f32.gmra.mxu0 %v6589
  %v6864 = vpop.f32.mrf.mxu0
  %v6865 = vadd.f32 0.0, %v6864
  %6866 = vmatmul.f32.gmra.mxu0 %v6592
  %v6867 = vpop.f32.mrf.mxu0
  %v6868 = vadd.f32 0.0, %v6867
  %6869 = vdwg.mxu0
  %6870 = vmatpush.msra.mxu0 0.0
  %6871 = vmatpush.msra.mxu0 0.0
  %6872 = vmatpush.msra.mxu0 0.0
  %6873 = vmatpush.msra.mxu0 0.0
  %6874 = vmatpush.msra.mxu0 0.0
  %6875 = vmatpush.msra.mxu0 0.0
  %6876 = vmatpush.msra.mxu0 0.0
  %6877 = vmatpush.msra.mxu0 0.0
  %6878 = vmatpush.msra.mxu0 0.0
  %6879 = vmatpush.msra.mxu0 0.0
  %6880 = vmatpush.msra.mxu0 0.0
  %6881 = vmatpush.msra.mxu0 0.0
  %6882 = vmatpush.msra.mxu0 0.0
  %6883 = vmatpush.msra.mxu0 0.0
  %6884 = vmatpush.msra.mxu0 %v5223
  %6885 = vmatpush.msra.mxu0 %v5222
  %6886 = vmatmul.f32.gmra.mxu0 %v6589
  %v6887 = vpop.f32.mrf.mxu0
  %v6888 = vadd.f32 0.0, %v6887
  %6889 = vmatmul.f32.gmra.mxu0 %v6592
  %v6890 = vpop.f32.mrf.mxu0
  %v6891 = vadd.f32 0.0, %v6890
  %6892 = vdwg.mxu0
  %6893 = vmatpush.msra.mxu0 0.0
  %6894 = vmatpush.msra.mxu0 0.0
  %6895 = vmatpush.msra.mxu0 0.0
  %6896 = vmatpush.msra.mxu0 0.0
  %6897 = vmatpush.msra.mxu0 0.0
  %6898 = vmatpush.msra.mxu0 0.0
  %6899 = vmatpush.msra.mxu0 0.0
  %6900 = vmatpush.msra.mxu0 0.0
  %6901 = vmatpush.msra.mxu0 0.0
  %6902 = vmatpush.msra.mxu0 0.0
  %6903 = vmatpush.msra.mxu0 0.0
  %6904 = vmatpush.msra.mxu0 0.0
  %6905 = vmatpush.msra.mxu0 0.0
  %6906 = vmatpush.msra.mxu0 0.0
  %6907 = vmatpush.msra.mxu0 %v5225
  %6908 = vmatpush.msra.mxu0 %v5224
  %6909 = vmatmul.f32.gmra.mxu0 %v6589
  %v6910 = vpop.f32.mrf.mxu0
  %v6911 = vadd.f32 0.0, %v6910
  %6912 = vmatmul.f32.gmra.mxu0 %v6592
  %v6913 = vpop.f32.mrf.mxu0
  %v6914 = vadd.f32 0.0, %v6913
  %6915 = vdwg.mxu0
  %v6917 = vsel %vm2852, %v6612, 0
  %v6920 = vsel %vm2852, %v6615, 0
  %v6923 = vsel %vm2852, %v6635, 0
  %v6926 = vsel %vm2852, %v6638, 0
  %v6929 = vsel %vm2852, %v6658, 0
  %v6932 = vsel %vm2852, %v6661, 0
  %v6935 = vsel %vm2852, %v6681, 0
  %v6938 = vsel %vm2852, %v6684, 0
  %v6941 = vsel %vm2852, %v6704, 0
  %v6944 = vsel %vm2852, %v6707, 0
  %v6947 = vsel %vm2852, %v6727, 0
  %v6950 = vsel %vm2852, %v6730, 0
  %v6953 = vsel %vm2852, %v6750, 0
  %v6956 = vsel %vm2852, %v6753, 0
  %v6959 = vsel %vm2852, %v6773, 0
  %v6962 = vsel %vm2852, %v6776, 0
  %v6965 = vsel %vm2852, %v6796, 0
  %v6968 = vsel %vm2852, %v6799, 0
  %v6971 = vsel %vm2852, %v6819, 0
  %v6974 = vsel %vm2852, %v6822, 0
  %v6977 = vsel %vm2852, %v6842, 0
  %v6980 = vsel %vm2852, %v6845, 0
  %v6983 = vsel %vm2852, %v6865, 0
  %v6986 = vsel %vm2852, %v6868, 0
  %v6989 = vsel %vm2852, %v6888, 0
  %v6992 = vsel %vm2852, %v6891, 0
  %v6995 = vsel %vm2852, %v6911, 0
  %v6998 = vsel %vm2852, %v6914, 0
  %7000 = vmatpush.msra.mxu0 0.0
  %7001 = vmatpush.msra.mxu0 0.0
  %7002 = vmatpush.msra.mxu0 0.0
  %7003 = vmatpush.msra.mxu0 0.0
  %7004 = vmatpush.msra.mxu0 0.0
  %7005 = vmatpush.msra.mxu0 0.0
  %7006 = vmatpush.msra.mxu0 0.0
  %7007 = vmatpush.msra.mxu0 0.0
  %7008 = vmatpush.msra.mxu0 0.0
  %7009 = vmatpush.msra.mxu0 0.0
  %7010 = vmatpush.msra.mxu0 0.0
  %7011 = vmatpush.msra.mxu0 0.0
  %7012 = vmatpush.msra.mxu0 %v5426
  %7013 = vmatpush.msra.mxu0 %v5425
  %7014 = vmatpush.msra.mxu0 %v5424
  %7015 = vmatpush.msra.mxu0 %v5423
  %7016 = vmatmul.f32.gmra.mxu0 %v6917
  %v7017 = vpop.f32.mrf.mxu0
  %v7018 = vadd.f32 0.0, %v7017
  %7019 = vmatmul.f32.gmra.mxu0 %v6920
  %v7020 = vpop.f32.mrf.mxu0
  %v7021 = vadd.f32 0.0, %v7020
  %7022 = vmatmul.f32.gmra.mxu0 %v6923
  %v7023 = vpop.f32.mrf.mxu0
  %v7024 = vadd.f32 0.0, %v7023
  %7025 = vmatmul.f32.gmra.mxu0 %v6926
  %v7026 = vpop.f32.mrf.mxu0
  %v7027 = vadd.f32 0.0, %v7026
  %7028 = vmatmul.f32.gmra.mxu0 %v6929
  %v7029 = vpop.f32.mrf.mxu0
  %v7030 = vadd.f32 0.0, %v7029
  %7031 = vmatmul.f32.gmra.mxu0 %v6932
  %v7032 = vpop.f32.mrf.mxu0
  %v7033 = vadd.f32 0.0, %v7032
  %7034 = vmatmul.f32.gmra.mxu0 %v6935
  %v7035 = vpop.f32.mrf.mxu0
  %v7036 = vadd.f32 0.0, %v7035
  %7037 = vmatmul.f32.gmra.mxu0 %v6938
  %v7038 = vpop.f32.mrf.mxu0
  %v7039 = vadd.f32 0.0, %v7038
  %7040 = vmatmul.f32.gmra.mxu0 %v6941
  %v7041 = vpop.f32.mrf.mxu0
  %v7042 = vadd.f32 0.0, %v7041
  %7043 = vmatmul.f32.gmra.mxu0 %v6944
  %v7044 = vpop.f32.mrf.mxu0
  %v7045 = vadd.f32 0.0, %v7044
  %7046 = vmatmul.f32.gmra.mxu0 %v6947
  %v7047 = vpop.f32.mrf.mxu0
  %v7048 = vadd.f32 0.0, %v7047
  %7049 = vmatmul.f32.gmra.mxu0 %v6950
  %v7050 = vpop.f32.mrf.mxu0
  %v7051 = vadd.f32 0.0, %v7050
  %7052 = vmatmul.f32.gmra.mxu0 %v6953
  %v7053 = vpop.f32.mrf.mxu0
  %v7054 = vadd.f32 0.0, %v7053
  %7055 = vmatmul.f32.gmra.mxu0 %v6956
  %v7056 = vpop.f32.mrf.mxu0
  %v7057 = vadd.f32 0.0, %v7056
  %7058 = vmatmul.f32.gmra.mxu0 %v6959
  %v7059 = vpop.f32.mrf.mxu0
  %v7060 = vadd.f32 0.0, %v7059
  %7061 = vmatmul.f32.gmra.mxu0 %v6962
  %v7062 = vpop.f32.mrf.mxu0
  %v7063 = vadd.f32 0.0, %v7062
  %7064 = vmatmul.f32.gmra.mxu0 %v6965
  %v7065 = vpop.f32.mrf.mxu0
  %v7066 = vadd.f32 0.0, %v7065
  %7067 = vmatmul.f32.gmra.mxu0 %v6968
  %v7068 = vpop.f32.mrf.mxu0
  %v7069 = vadd.f32 0.0, %v7068
  %7070 = vmatmul.f32.gmra.mxu0 %v6971
  %v7071 = vpop.f32.mrf.mxu0
  %v7072 = vadd.f32 0.0, %v7071
  %7073 = vmatmul.f32.gmra.mxu0 %v6974
  %v7074 = vpop.f32.mrf.mxu0
  %v7075 = vadd.f32 0.0, %v7074
  %7076 = vmatmul.f32.gmra.mxu0 %v6977
  %v7077 = vpop.f32.mrf.mxu0
  %v7078 = vadd.f32 0.0, %v7077
  %7079 = vmatmul.f32.gmra.mxu0 %v6980
  %v7080 = vpop.f32.mrf.mxu0
  %v7081 = vadd.f32 0.0, %v7080
  %7082 = vmatmul.f32.gmra.mxu0 %v6983
  %v7083 = vpop.f32.mrf.mxu0
  %v7084 = vadd.f32 0.0, %v7083
  %7085 = vmatmul.f32.gmra.mxu0 %v6986
  %v7086 = vpop.f32.mrf.mxu0
  %v7087 = vadd.f32 0.0, %v7086
  %7088 = vmatmul.f32.gmra.mxu0 %v6989
  %v7089 = vpop.f32.mrf.mxu0
  %v7090 = vadd.f32 0.0, %v7089
  %7091 = vmatmul.f32.gmra.mxu0 %v6992
  %v7092 = vpop.f32.mrf.mxu0
  %v7093 = vadd.f32 0.0, %v7092
  %7094 = vmatmul.f32.gmra.mxu0 %v6995
  %v7095 = vpop.f32.mrf.mxu0
  %v7096 = vadd.f32 0.0, %v7095
  %7097 = vmatmul.f32.gmra.mxu0 %v6998
  %v7098 = vpop.f32.mrf.mxu0
  %v7099 = vadd.f32 0.0, %v7098
  %7100 = vdwg.mxu0
  %v7101 = vadd.f32 %v6560, %v7018
  %v7102 = vadd.f32 %v6561, %v7021
  %v7103 = vadd.f32 %v6562, %v7024
  %v7104 = vadd.f32 %v6563, %v7027
  %v7105 = vadd.f32 %v6564, %v7030
  %v7106 = vadd.f32 %v6565, %v7033
  %v7107 = vadd.f32 %v6566, %v7036
  %v7108 = vadd.f32 %v6567, %v7039
  %v7109 = vadd.f32 %v6568, %v7042
  %v7110 = vadd.f32 %v6569, %v7045
  %v7111 = vadd.f32 %v6570, %v7048
  %v7112 = vadd.f32 %v6571, %v7051
  %v7113 = vadd.f32 %v6572, %v7054
  %v7114 = vadd.f32 %v6573, %v7057
  %v7115 = vadd.f32 %v6574, %v7060
  %v7116 = vadd.f32 %v6575, %v7063
  %v7117 = vadd.f32 %v6576, %v7066
  %v7118 = vadd.f32 %v6577, %v7069
  %v7119 = vadd.f32 %v6578, %v7072
  %v7120 = vadd.f32 %v6579, %v7075
  %v7121 = vadd.f32 %v6580, %v7078
  %v7122 = vadd.f32 %v6581, %v7081
  %v7123 = vadd.f32 %v6582, %v7084
  %v7124 = vadd.f32 %v6583, %v7087
  %v7125 = vadd.f32 %v6584, %v7090
  %v7126 = vadd.f32 %v6585, %v7093
  %v7127 = vadd.f32 %v6586, %v7096
  %v7128 = vadd.f32 %v6587, %v7099
  %7129 = vmatpush.msra.mxu0 0.0
  %7130 = vmatpush.msra.mxu0 0.0
  %7131 = vmatpush.msra.mxu0 0.0
  %7132 = vmatpush.msra.mxu0 0.0
  %7133 = vmatpush.msra.mxu0 0.0
  %7134 = vmatpush.msra.mxu0 0.0
  %7135 = vmatpush.msra.mxu0 0.0
  %7136 = vmatpush.msra.mxu0 0.0
  %7137 = vmatpush.msra.mxu0 0.0
  %7138 = vmatpush.msra.mxu0 0.0
  %7139 = vmatpush.msra.mxu0 0.0
  %7140 = vmatpush.msra.mxu0 0.0
  %7141 = vmatpush.msra.mxu0 0.0
  %7142 = vmatpush.msra.mxu0 0.0
  %7143 = vmatpush.msra.mxu0 %v6615
  %7144 = vmatpush.msra.mxu0 %v6612
  %7145 = vmatmul.f32.gmra.mxu0 %v6589
  %v7146 = vpop.f32.mrf.mxu0
  %v7147 = vadd.f32 0.0, %v7146
  %7148 = vmatmul.f32.gmra.mxu0 %v6592
  %v7149 = vpop.f32.mrf.mxu0
  %v7150 = vadd.f32 0.0, %v7149
  %7151 = vdwg.mxu0
  %7152 = vmatpush.msra.mxu0 0.0
  %7153 = vmatpush.msra.mxu0 0.0
  %7154 = vmatpush.msra.mxu0 0.0
  %7155 = vmatpush.msra.mxu0 0.0
  %7156 = vmatpush.msra.mxu0 0.0
  %7157 = vmatpush.msra.mxu0 0.0
  %7158 = vmatpush.msra.mxu0 0.0
  %7159 = vmatpush.msra.mxu0 0.0
  %7160 = vmatpush.msra.mxu0 0.0
  %7161 = vmatpush.msra.mxu0 0.0
  %7162 = vmatpush.msra.mxu0 0.0
  %7163 = vmatpush.msra.mxu0 0.0
  %7164 = vmatpush.msra.mxu0 0.0
  %7165 = vmatpush.msra.mxu0 0.0
  %7166 = vmatpush.msra.mxu0 %v6638
  %7167 = vmatpush.msra.mxu0 %v6635
  %7168 = vmatmul.f32.gmra.mxu0 %v6589
  %v7169 = vpop.f32.mrf.mxu0
  %v7170 = vadd.f32 0.0, %v7169
  %7171 = vmatmul.f32.gmra.mxu0 %v6592
  %v7172 = vpop.f32.mrf.mxu0
  %v7173 = vadd.f32 0.0, %v7172
  %7174 = vdwg.mxu0
  %7175 = vmatpush.msra.mxu0 0.0
  %7176 = vmatpush.msra.mxu0 0.0
  %7177 = vmatpush.msra.mxu0 0.0
  %7178 = vmatpush.msra.mxu0 0.0
  %7179 = vmatpush.msra.mxu0 0.0
  %7180 = vmatpush.msra.mxu0 0.0
  %7181 = vmatpush.msra.mxu0 0.0
  %7182 = vmatpush.msra.mxu0 0.0
  %7183 = vmatpush.msra.mxu0 0.0
  %7184 = vmatpush.msra.mxu0 0.0
  %7185 = vmatpush.msra.mxu0 0.0
  %7186 = vmatpush.msra.mxu0 0.0
  %7187 = vmatpush.msra.mxu0 0.0
  %7188 = vmatpush.msra.mxu0 0.0
  %7189 = vmatpush.msra.mxu0 %v6661
  %7190 = vmatpush.msra.mxu0 %v6658
  %7191 = vmatmul.f32.gmra.mxu0 %v6589
  %v7192 = vpop.f32.mrf.mxu0
  %v7193 = vadd.f32 0.0, %v7192
  %7194 = vmatmul.f32.gmra.mxu0 %v6592
  %v7195 = vpop.f32.mrf.mxu0
  %v7196 = vadd.f32 0.0, %v7195
  %7197 = vdwg.mxu0
  %7198 = vmatpush.msra.mxu0 0.0
  %7199 = vmatpush.msra.mxu0 0.0
  %7200 = vmatpush.msra.mxu0 0.0
  %7201 = vmatpush.msra.mxu0 0.0
  %7202 = vmatpush.msra.mxu0 0.0
  %7203 = vmatpush.msra.mxu0 0.0
  %7204 = vmatpush.msra.mxu0 0.0
  %7205 = vmatpush.msra.mxu0 0.0
  %7206 = vmatpush.msra.mxu0 0.0
  %7207 = vmatpush.msra.mxu0 0.0
  %7208 = vmatpush.msra.mxu0 0.0
  %7209 = vmatpush.msra.mxu0 0.0
  %7210 = vmatpush.msra.mxu0 0.0
  %7211 = vmatpush.msra.mxu0 0.0
  %7212 = vmatpush.msra.mxu0 %v6684
  %7213 = vmatpush.msra.mxu0 %v6681
  %7214 = vmatmul.f32.gmra.mxu0 %v6589
  %v7215 = vpop.f32.mrf.mxu0
  %v7216 = vadd.f32 0.0, %v7215
  %7217 = vmatmul.f32.gmra.mxu0 %v6592
  %v7218 = vpop.f32.mrf.mxu0
  %v7219 = vadd.f32 0.0, %v7218
  %7220 = vdwg.mxu0
  %7221 = vmatpush.msra.mxu0 0.0
  %7222 = vmatpush.msra.mxu0 0.0
  %7223 = vmatpush.msra.mxu0 0.0
  %7224 = vmatpush.msra.mxu0 0.0
  %7225 = vmatpush.msra.mxu0 0.0
  %7226 = vmatpush.msra.mxu0 0.0
  %7227 = vmatpush.msra.mxu0 0.0
  %7228 = vmatpush.msra.mxu0 0.0
  %7229 = vmatpush.msra.mxu0 0.0
  %7230 = vmatpush.msra.mxu0 0.0
  %7231 = vmatpush.msra.mxu0 0.0
  %7232 = vmatpush.msra.mxu0 0.0
  %7233 = vmatpush.msra.mxu0 0.0
  %7234 = vmatpush.msra.mxu0 0.0
  %7235 = vmatpush.msra.mxu0 %v6707
  %7236 = vmatpush.msra.mxu0 %v6704
  %7237 = vmatmul.f32.gmra.mxu0 %v6589
  %v7238 = vpop.f32.mrf.mxu0
  %v7239 = vadd.f32 0.0, %v7238
  %7240 = vmatmul.f32.gmra.mxu0 %v6592
  %v7241 = vpop.f32.mrf.mxu0
  %v7242 = vadd.f32 0.0, %v7241
  %7243 = vdwg.mxu0
  %7244 = vmatpush.msra.mxu0 0.0
  %7245 = vmatpush.msra.mxu0 0.0
  %7246 = vmatpush.msra.mxu0 0.0
  %7247 = vmatpush.msra.mxu0 0.0
  %7248 = vmatpush.msra.mxu0 0.0
  %7249 = vmatpush.msra.mxu0 0.0
  %7250 = vmatpush.msra.mxu0 0.0
  %7251 = vmatpush.msra.mxu0 0.0
  %7252 = vmatpush.msra.mxu0 0.0
  %7253 = vmatpush.msra.mxu0 0.0
  %7254 = vmatpush.msra.mxu0 0.0
  %7255 = vmatpush.msra.mxu0 0.0
  %7256 = vmatpush.msra.mxu0 0.0
  %7257 = vmatpush.msra.mxu0 0.0
  %7258 = vmatpush.msra.mxu0 %v6730
  %7259 = vmatpush.msra.mxu0 %v6727
  %7260 = vmatmul.f32.gmra.mxu0 %v6589
  %v7261 = vpop.f32.mrf.mxu0
  %v7262 = vadd.f32 0.0, %v7261
  %7263 = vmatmul.f32.gmra.mxu0 %v6592
  %v7264 = vpop.f32.mrf.mxu0
  %v7265 = vadd.f32 0.0, %v7264
  %7266 = vdwg.mxu0
  %7267 = vmatpush.msra.mxu0 0.0
  %7268 = vmatpush.msra.mxu0 0.0
  %7269 = vmatpush.msra.mxu0 0.0
  %7270 = vmatpush.msra.mxu0 0.0
  %7271 = vmatpush.msra.mxu0 0.0
  %7272 = vmatpush.msra.mxu0 0.0
  %7273 = vmatpush.msra.mxu0 0.0
  %7274 = vmatpush.msra.mxu0 0.0
  %7275 = vmatpush.msra.mxu0 0.0
  %7276 = vmatpush.msra.mxu0 0.0
  %7277 = vmatpush.msra.mxu0 0.0
  %7278 = vmatpush.msra.mxu0 0.0
  %7279 = vmatpush.msra.mxu0 0.0
  %7280 = vmatpush.msra.mxu0 0.0
  %7281 = vmatpush.msra.mxu0 %v6753
  %7282 = vmatpush.msra.mxu0 %v6750
  %7283 = vmatmul.f32.gmra.mxu0 %v6589
  %v7284 = vpop.f32.mrf.mxu0
  %v7285 = vadd.f32 0.0, %v7284
  %7286 = vmatmul.f32.gmra.mxu0 %v6592
  %v7287 = vpop.f32.mrf.mxu0
  %v7288 = vadd.f32 0.0, %v7287
  %7289 = vdwg.mxu0
  %7290 = vmatpush.msra.mxu0 0.0
  %7291 = vmatpush.msra.mxu0 0.0
  %7292 = vmatpush.msra.mxu0 0.0
  %7293 = vmatpush.msra.mxu0 0.0
  %7294 = vmatpush.msra.mxu0 0.0
  %7295 = vmatpush.msra.mxu0 0.0
  %7296 = vmatpush.msra.mxu0 0.0
  %7297 = vmatpush.msra.mxu0 0.0
  %7298 = vmatpush.msra.mxu0 0.0
  %7299 = vmatpush.msra.mxu0 0.0
  %7300 = vmatpush.msra.mxu0 0.0
  %7301 = vmatpush.msra.mxu0 0.0
  %7302 = vmatpush.msra.mxu0 0.0
  %7303 = vmatpush.msra.mxu0 0.0
  %7304 = vmatpush.msra.mxu0 %v6776
  %7305 = vmatpush.msra.mxu0 %v6773
  %7306 = vmatmul.f32.gmra.mxu0 %v6589
  %v7307 = vpop.f32.mrf.mxu0
  %v7308 = vadd.f32 0.0, %v7307
  %7309 = vmatmul.f32.gmra.mxu0 %v6592
  %v7310 = vpop.f32.mrf.mxu0
  %v7311 = vadd.f32 0.0, %v7310
  %7312 = vdwg.mxu0
  %7313 = vmatpush.msra.mxu0 0.0
  %7314 = vmatpush.msra.mxu0 0.0
  %7315 = vmatpush.msra.mxu0 0.0
  %7316 = vmatpush.msra.mxu0 0.0
  %7317 = vmatpush.msra.mxu0 0.0
  %7318 = vmatpush.msra.mxu0 0.0
  %7319 = vmatpush.msra.mxu0 0.0
  %7320 = vmatpush.msra.mxu0 0.0
  %7321 = vmatpush.msra.mxu0 0.0
  %7322 = vmatpush.msra.mxu0 0.0
  %7323 = vmatpush.msra.mxu0 0.0
  %7324 = vmatpush.msra.mxu0 0.0
  %7325 = vmatpush.msra.mxu0 0.0
  %7326 = vmatpush.msra.mxu0 0.0
  %7327 = vmatpush.msra.mxu0 %v6799
  %7328 = vmatpush.msra.mxu0 %v6796
  %7329 = vmatmul.f32.gmra.mxu0 %v6589
  %v7330 = vpop.f32.mrf.mxu0
  %v7331 = vadd.f32 0.0, %v7330
  %7332 = vmatmul.f32.gmra.mxu0 %v6592
  %v7333 = vpop.f32.mrf.mxu0
  %v7334 = vadd.f32 0.0, %v7333
  %7335 = vdwg.mxu0
  %7336 = vmatpush.msra.mxu0 0.0
  %7337 = vmatpush.msra.mxu0 0.0
  %7338 = vmatpush.msra.mxu0 0.0
  %7339 = vmatpush.msra.mxu0 0.0
  %7340 = vmatpush.msra.mxu0 0.0
  %7341 = vmatpush.msra.mxu0 0.0
  %7342 = vmatpush.msra.mxu0 0.0
  %7343 = vmatpush.msra.mxu0 0.0
  %7344 = vmatpush.msra.mxu0 0.0
  %7345 = vmatpush.msra.mxu0 0.0
  %7346 = vmatpush.msra.mxu0 0.0
  %7347 = vmatpush.msra.mxu0 0.0
  %7348 = vmatpush.msra.mxu0 0.0
  %7349 = vmatpush.msra.mxu0 0.0
  %7350 = vmatpush.msra.mxu0 %v6822
  %7351 = vmatpush.msra.mxu0 %v6819
  %7352 = vmatmul.f32.gmra.mxu0 %v6589
  %v7353 = vpop.f32.mrf.mxu0
  %v7354 = vadd.f32 0.0, %v7353
  %7355 = vmatmul.f32.gmra.mxu0 %v6592
  %v7356 = vpop.f32.mrf.mxu0
  %v7357 = vadd.f32 0.0, %v7356
  %7358 = vdwg.mxu0
  %7359 = vmatpush.msra.mxu0 0.0
  %7360 = vmatpush.msra.mxu0 0.0
  %7361 = vmatpush.msra.mxu0 0.0
  %7362 = vmatpush.msra.mxu0 0.0
  %7363 = vmatpush.msra.mxu0 0.0
  %7364 = vmatpush.msra.mxu0 0.0
  %7365 = vmatpush.msra.mxu0 0.0
  %7366 = vmatpush.msra.mxu0 0.0
  %7367 = vmatpush.msra.mxu0 0.0
  %7368 = vmatpush.msra.mxu0 0.0
  %7369 = vmatpush.msra.mxu0 0.0
  %7370 = vmatpush.msra.mxu0 0.0
  %7371 = vmatpush.msra.mxu0 0.0
  %7372 = vmatpush.msra.mxu0 0.0
  %7373 = vmatpush.msra.mxu0 %v6845
  %7374 = vmatpush.msra.mxu0 %v6842
  %7375 = vmatmul.f32.gmra.mxu0 %v6589
  %v7376 = vpop.f32.mrf.mxu0
  %v7377 = vadd.f32 0.0, %v7376
  %7378 = vmatmul.f32.gmra.mxu0 %v6592
  %v7379 = vpop.f32.mrf.mxu0
  %v7380 = vadd.f32 0.0, %v7379
  %7381 = vdwg.mxu0
  %7382 = vmatpush.msra.mxu0 0.0
  %7383 = vmatpush.msra.mxu0 0.0
  %7384 = vmatpush.msra.mxu0 0.0
  %7385 = vmatpush.msra.mxu0 0.0
  %7386 = vmatpush.msra.mxu0 0.0
  %7387 = vmatpush.msra.mxu0 0.0
  %7388 = vmatpush.msra.mxu0 0.0
  %7389 = vmatpush.msra.mxu0 0.0
  %7390 = vmatpush.msra.mxu0 0.0
  %7391 = vmatpush.msra.mxu0 0.0
  %7392 = vmatpush.msra.mxu0 0.0
  %7393 = vmatpush.msra.mxu0 0.0
  %7394 = vmatpush.msra.mxu0 0.0
  %7395 = vmatpush.msra.mxu0 0.0
  %7396 = vmatpush.msra.mxu0 %v6868
  %7397 = vmatpush.msra.mxu0 %v6865
  %7398 = vmatmul.f32.gmra.mxu0 %v6589
  %v7399 = vpop.f32.mrf.mxu0
  %v7400 = vadd.f32 0.0, %v7399
  %7401 = vmatmul.f32.gmra.mxu0 %v6592
  %v7402 = vpop.f32.mrf.mxu0
  %v7403 = vadd.f32 0.0, %v7402
  %7404 = vdwg.mxu0
  %7405 = vmatpush.msra.mxu0 0.0
  %7406 = vmatpush.msra.mxu0 0.0
  %7407 = vmatpush.msra.mxu0 0.0
  %7408 = vmatpush.msra.mxu0 0.0
  %7409 = vmatpush.msra.mxu0 0.0
  %7410 = vmatpush.msra.mxu0 0.0
  %7411 = vmatpush.msra.mxu0 0.0
  %7412 = vmatpush.msra.mxu0 0.0
  %7413 = vmatpush.msra.mxu0 0.0
  %7414 = vmatpush.msra.mxu0 0.0
  %7415 = vmatpush.msra.mxu0 0.0
  %7416 = vmatpush.msra.mxu0 0.0
  %7417 = vmatpush.msra.mxu0 0.0
  %7418 = vmatpush.msra.mxu0 0.0
  %7419 = vmatpush.msra.mxu0 %v6891
  %7420 = vmatpush.msra.mxu0 %v6888
  %7421 = vmatmul.f32.gmra.mxu0 %v6589
  %v7422 = vpop.f32.mrf.mxu0
  %v7423 = vadd.f32 0.0, %v7422
  %7424 = vmatmul.f32.gmra.mxu0 %v6592
  %v7425 = vpop.f32.mrf.mxu0
  %v7426 = vadd.f32 0.0, %v7425
  %7427 = vdwg.mxu0
  %7428 = vmatpush.msra.mxu0 0.0
  %7429 = vmatpush.msra.mxu0 0.0
  %7430 = vmatpush.msra.mxu0 0.0
  %7431 = vmatpush.msra.mxu0 0.0
  %7432 = vmatpush.msra.mxu0 0.0
  %7433 = vmatpush.msra.mxu0 0.0
  %7434 = vmatpush.msra.mxu0 0.0
  %7435 = vmatpush.msra.mxu0 0.0
  %7436 = vmatpush.msra.mxu0 0.0
  %7437 = vmatpush.msra.mxu0 0.0
  %7438 = vmatpush.msra.mxu0 0.0
  %7439 = vmatpush.msra.mxu0 0.0
  %7440 = vmatpush.msra.mxu0 0.0
  %7441 = vmatpush.msra.mxu0 0.0
  %7442 = vmatpush.msra.mxu0 %v6914
  %7443 = vmatpush.msra.mxu0 %v6911
  %7444 = vmatmul.f32.gmra.mxu0 %v6589
  %v7445 = vpop.f32.mrf.mxu0
  %v7446 = vadd.f32 0.0, %v7445
  %7447 = vmatmul.f32.gmra.mxu0 %v6592
  %v7448 = vpop.f32.mrf.mxu0
  %v7449 = vadd.f32 0.0, %v7448
  %7450 = vdwg.mxu0
  %v7452 = vsel %vm2852, %v7147, 0
  %v7455 = vsel %vm2852, %v7150, 0
  %v7458 = vsel %vm2852, %v7170, 0
  %v7461 = vsel %vm2852, %v7173, 0
  %v7464 = vsel %vm2852, %v7193, 0
  %v7467 = vsel %vm2852, %v7196, 0
  %v7470 = vsel %vm2852, %v7216, 0
  %v7473 = vsel %vm2852, %v7219, 0
  %v7476 = vsel %vm2852, %v7239, 0
  %v7479 = vsel %vm2852, %v7242, 0
  %v7482 = vsel %vm2852, %v7262, 0
  %v7485 = vsel %vm2852, %v7265, 0
  %v7488 = vsel %vm2852, %v7285, 0
  %v7491 = vsel %vm2852, %v7288, 0
  %v7494 = vsel %vm2852, %v7308, 0
  %v7497 = vsel %vm2852, %v7311, 0
  %v7500 = vsel %vm2852, %v7331, 0
  %v7503 = vsel %vm2852, %v7334, 0
  %v7506 = vsel %vm2852, %v7354, 0
  %v7509 = vsel %vm2852, %v7357, 0
  %v7512 = vsel %vm2852, %v7377, 0
  %v7515 = vsel %vm2852, %v7380, 0
  %v7518 = vsel %vm2852, %v7400, 0
  %v7521 = vsel %vm2852, %v7403, 0
  %v7524 = vsel %vm2852, %v7423, 0
  %v7527 = vsel %vm2852, %v7426, 0
  %v7530 = vsel %vm2852, %v7446, 0
  %v7533 = vsel %vm2852, %v7449, 0
  %7535 = vmatpush.msra.mxu0 0.0
  %7536 = vmatpush.msra.mxu0 0.0
  %7537 = vmatpush.msra.mxu0 0.0
  %7538 = vmatpush.msra.mxu0 0.0
  %7539 = vmatpush.msra.mxu0 0.0
  %7540 = vmatpush.msra.mxu0 0.0
  %7541 = vmatpush.msra.mxu0 0.0
  %7542 = vmatpush.msra.mxu0 0.0
  %7543 = vmatpush.msra.mxu0 0.0
  %7544 = vmatpush.msra.mxu0 0.0
  %7545 = vmatpush.msra.mxu0 0.0
  %7546 = vmatpush.msra.mxu0 0.0
  %7547 = vmatpush.msra.mxu0 %v5430
  %7548 = vmatpush.msra.mxu0 %v5429
  %7549 = vmatpush.msra.mxu0 %v5428
  %7550 = vmatpush.msra.mxu0 %v5427
  %7551 = vmatmul.f32.gmra.mxu0 %v7452
  %v7552 = vpop.f32.mrf.mxu0
  %v7553 = vadd.f32 0.0, %v7552
  %7554 = vmatmul.f32.gmra.mxu0 %v7455
  %v7555 = vpop.f32.mrf.mxu0
  %v7556 = vadd.f32 0.0, %v7555
  %7557 = vmatmul.f32.gmra.mxu0 %v7458
  %v7558 = vpop.f32.mrf.mxu0
  %v7559 = vadd.f32 0.0, %v7558
  %7560 = vmatmul.f32.gmra.mxu0 %v7461
  %v7561 = vpop.f32.mrf.mxu0
  %v7562 = vadd.f32 0.0, %v7561
  %7563 = vmatmul.f32.gmra.mxu0 %v7464
  %v7564 = vpop.f32.mrf.mxu0
  %v7565 = vadd.f32 0.0, %v7564
  %7566 = vmatmul.f32.gmra.mxu0 %v7467
  %v7567 = vpop.f32.mrf.mxu0
  %v7568 = vadd.f32 0.0, %v7567
  %7569 = vmatmul.f32.gmra.mxu0 %v7470
  %v7570 = vpop.f32.mrf.mxu0
  %v7571 = vadd.f32 0.0, %v7570
  %7572 = vmatmul.f32.gmra.mxu0 %v7473
  %v7573 = vpop.f32.mrf.mxu0
  %v7574 = vadd.f32 0.0, %v7573
  %7575 = vmatmul.f32.gmra.mxu0 %v7476
  %v7576 = vpop.f32.mrf.mxu0
  %v7577 = vadd.f32 0.0, %v7576
  %7578 = vmatmul.f32.gmra.mxu0 %v7479
  %v7579 = vpop.f32.mrf.mxu0
  %v7580 = vadd.f32 0.0, %v7579
  %7581 = vmatmul.f32.gmra.mxu0 %v7482
  %v7582 = vpop.f32.mrf.mxu0
  %v7583 = vadd.f32 0.0, %v7582
  %7584 = vmatmul.f32.gmra.mxu0 %v7485
  %v7585 = vpop.f32.mrf.mxu0
  %v7586 = vadd.f32 0.0, %v7585
  %7587 = vmatmul.f32.gmra.mxu0 %v7488
  %v7588 = vpop.f32.mrf.mxu0
  %v7589 = vadd.f32 0.0, %v7588
  %7590 = vmatmul.f32.gmra.mxu0 %v7491
  %v7591 = vpop.f32.mrf.mxu0
  %v7592 = vadd.f32 0.0, %v7591
  %7593 = vmatmul.f32.gmra.mxu0 %v7494
  %v7594 = vpop.f32.mrf.mxu0
  %v7595 = vadd.f32 0.0, %v7594
  %7596 = vmatmul.f32.gmra.mxu0 %v7497
  %v7597 = vpop.f32.mrf.mxu0
  %v7598 = vadd.f32 0.0, %v7597
  %7599 = vmatmul.f32.gmra.mxu0 %v7500
  %v7600 = vpop.f32.mrf.mxu0
  %v7601 = vadd.f32 0.0, %v7600
  %7602 = vmatmul.f32.gmra.mxu0 %v7503
  %v7603 = vpop.f32.mrf.mxu0
  %v7604 = vadd.f32 0.0, %v7603
  %7605 = vmatmul.f32.gmra.mxu0 %v7506
  %v7606 = vpop.f32.mrf.mxu0
  %v7607 = vadd.f32 0.0, %v7606
  %7608 = vmatmul.f32.gmra.mxu0 %v7509
  %v7609 = vpop.f32.mrf.mxu0
  %v7610 = vadd.f32 0.0, %v7609
  %7611 = vmatmul.f32.gmra.mxu0 %v7512
  %v7612 = vpop.f32.mrf.mxu0
  %v7613 = vadd.f32 0.0, %v7612
  %7614 = vmatmul.f32.gmra.mxu0 %v7515
  %v7615 = vpop.f32.mrf.mxu0
  %v7616 = vadd.f32 0.0, %v7615
  %7617 = vmatmul.f32.gmra.mxu0 %v7518
  %v7618 = vpop.f32.mrf.mxu0
  %v7619 = vadd.f32 0.0, %v7618
  %7620 = vmatmul.f32.gmra.mxu0 %v7521
  %v7621 = vpop.f32.mrf.mxu0
  %v7622 = vadd.f32 0.0, %v7621
  %7623 = vmatmul.f32.gmra.mxu0 %v7524
  %v7624 = vpop.f32.mrf.mxu0
  %v7625 = vadd.f32 0.0, %v7624
  %7626 = vmatmul.f32.gmra.mxu0 %v7527
  %v7627 = vpop.f32.mrf.mxu0
  %v7628 = vadd.f32 0.0, %v7627
  %7629 = vmatmul.f32.gmra.mxu0 %v7530
  %v7630 = vpop.f32.mrf.mxu0
  %v7631 = vadd.f32 0.0, %v7630
  %7632 = vmatmul.f32.gmra.mxu0 %v7533
  %v7633 = vpop.f32.mrf.mxu0
  %v7634 = vadd.f32 0.0, %v7633
  %7635 = vdwg.mxu0
  %v7636 = vadd.f32 %v7101, %v7553
  %v7637 = vadd.f32 %v7102, %v7556
  %v7638 = vadd.f32 %v7103, %v7559
  %v7639 = vadd.f32 %v7104, %v7562
  %v7640 = vadd.f32 %v7105, %v7565
  %v7641 = vadd.f32 %v7106, %v7568
  %v7642 = vadd.f32 %v7107, %v7571
  %v7643 = vadd.f32 %v7108, %v7574
  %v7644 = vadd.f32 %v7109, %v7577
  %v7645 = vadd.f32 %v7110, %v7580
  %v7646 = vadd.f32 %v7111, %v7583
  %v7647 = vadd.f32 %v7112, %v7586
  %v7648 = vadd.f32 %v7113, %v7589
  %v7649 = vadd.f32 %v7114, %v7592
  %v7650 = vadd.f32 %v7115, %v7595
  %v7651 = vadd.f32 %v7116, %v7598
  %v7652 = vadd.f32 %v7117, %v7601
  %v7653 = vadd.f32 %v7118, %v7604
  %v7654 = vadd.f32 %v7119, %v7607
  %v7655 = vadd.f32 %v7120, %v7610
  %v7656 = vadd.f32 %v7121, %v7613
  %v7657 = vadd.f32 %v7122, %v7616
  %v7658 = vadd.f32 %v7123, %v7619
  %v7659 = vadd.f32 %v7124, %v7622
  %v7660 = vadd.f32 %v7125, %v7625
  %v7661 = vadd.f32 %v7126, %v7628
  %v7662 = vadd.f32 %v7127, %v7631
  %v7663 = vadd.f32 %v7128, %v7634
  %v7665 = vsel %vm4010, %v4049, 0
  %v7668 = vsel %vm4010, %v4050, 0
  %7670 = vmatpush.msra.mxu0 0.0
  %7671 = vmatpush.msra.mxu0 0.0
  %7672 = vmatpush.msra.mxu0 0.0
  %7673 = vmatpush.msra.mxu0 0.0
  %7674 = vmatpush.msra.mxu0 0.0
  %7675 = vmatpush.msra.mxu0 0.0
  %7676 = vmatpush.msra.mxu0 0.0
  %7677 = vmatpush.msra.mxu0 0.0
  %7678 = vmatpush.msra.mxu0 0.0
  %7679 = vmatpush.msra.mxu0 0.0
  %7680 = vmatpush.msra.mxu0 0.0
  %7681 = vmatpush.msra.mxu0 0.0
  %7682 = vmatpush.msra.mxu0 0.0
  %7683 = vmatpush.msra.mxu0 0.0
  %7684 = vmatpush.msra.mxu0 %v5199
  %7685 = vmatpush.msra.mxu0 %v5198
  %7686 = vmatmul.f32.gmra.mxu0 %v7665
  %v7687 = vpop.f32.mrf.mxu0
  %v7688 = vadd.f32 0.0, %v7687
  %7689 = vmatmul.f32.gmra.mxu0 %v7668
  %v7690 = vpop.f32.mrf.mxu0
  %v7691 = vadd.f32 0.0, %v7690
  %7692 = vdwg.mxu0
  %7693 = vmatpush.msra.mxu0 0.0
  %7694 = vmatpush.msra.mxu0 0.0
  %7695 = vmatpush.msra.mxu0 0.0
  %7696 = vmatpush.msra.mxu0 0.0
  %7697 = vmatpush.msra.mxu0 0.0
  %7698 = vmatpush.msra.mxu0 0.0
  %7699 = vmatpush.msra.mxu0 0.0
  %7700 = vmatpush.msra.mxu0 0.0
  %7701 = vmatpush.msra.mxu0 0.0
  %7702 = vmatpush.msra.mxu0 0.0
  %7703 = vmatpush.msra.mxu0 0.0
  %7704 = vmatpush.msra.mxu0 0.0
  %7705 = vmatpush.msra.mxu0 0.0
  %7706 = vmatpush.msra.mxu0 0.0
  %7707 = vmatpush.msra.mxu0 %v5201
  %7708 = vmatpush.msra.mxu0 %v5200
  %7709 = vmatmul.f32.gmra.mxu0 %v7665
  %v7710 = vpop.f32.mrf.mxu0
  %v7711 = vadd.f32 0.0, %v7710
  %7712 = vmatmul.f32.gmra.mxu0 %v7668
  %v7713 = vpop.f32.mrf.mxu0
  %v7714 = vadd.f32 0.0, %v7713
  %7715 = vdwg.mxu0
  %7716 = vmatpush.msra.mxu0 0.0
  %7717 = vmatpush.msra.mxu0 0.0
  %7718 = vmatpush.msra.mxu0 0.0
  %7719 = vmatpush.msra.mxu0 0.0
  %7720 = vmatpush.msra.mxu0 0.0
  %7721 = vmatpush.msra.mxu0 0.0
  %7722 = vmatpush.msra.mxu0 0.0
  %7723 = vmatpush.msra.mxu0 0.0
  %7724 = vmatpush.msra.mxu0 0.0
  %7725 = vmatpush.msra.mxu0 0.0
  %7726 = vmatpush.msra.mxu0 0.0
  %7727 = vmatpush.msra.mxu0 0.0
  %7728 = vmatpush.msra.mxu0 0.0
  %7729 = vmatpush.msra.mxu0 0.0
  %7730 = vmatpush.msra.mxu0 %v5203
  %7731 = vmatpush.msra.mxu0 %v5202
  %7732 = vmatmul.f32.gmra.mxu0 %v7665
  %v7733 = vpop.f32.mrf.mxu0
  %v7734 = vadd.f32 0.0, %v7733
  %7735 = vmatmul.f32.gmra.mxu0 %v7668
  %v7736 = vpop.f32.mrf.mxu0
  %v7737 = vadd.f32 0.0, %v7736
  %7738 = vdwg.mxu0
  %7739 = vmatpush.msra.mxu0 0.0
  %7740 = vmatpush.msra.mxu0 0.0
  %7741 = vmatpush.msra.mxu0 0.0
  %7742 = vmatpush.msra.mxu0 0.0
  %7743 = vmatpush.msra.mxu0 0.0
  %7744 = vmatpush.msra.mxu0 0.0
  %7745 = vmatpush.msra.mxu0 0.0
  %7746 = vmatpush.msra.mxu0 0.0
  %7747 = vmatpush.msra.mxu0 0.0
  %7748 = vmatpush.msra.mxu0 0.0
  %7749 = vmatpush.msra.mxu0 0.0
  %7750 = vmatpush.msra.mxu0 0.0
  %7751 = vmatpush.msra.mxu0 0.0
  %7752 = vmatpush.msra.mxu0 0.0
  %7753 = vmatpush.msra.mxu0 %v5205
  %7754 = vmatpush.msra.mxu0 %v5204
  %7755 = vmatmul.f32.gmra.mxu0 %v7665
  %v7756 = vpop.f32.mrf.mxu0
  %v7757 = vadd.f32 0.0, %v7756
  %7758 = vmatmul.f32.gmra.mxu0 %v7668
  %v7759 = vpop.f32.mrf.mxu0
  %v7760 = vadd.f32 0.0, %v7759
  %7761 = vdwg.mxu0
  %7762 = vmatpush.msra.mxu0 0.0
  %7763 = vmatpush.msra.mxu0 0.0
  %7764 = vmatpush.msra.mxu0 0.0
  %7765 = vmatpush.msra.mxu0 0.0
  %7766 = vmatpush.msra.mxu0 0.0
  %7767 = vmatpush.msra.mxu0 0.0
  %7768 = vmatpush.msra.mxu0 0.0
  %7769 = vmatpush.msra.mxu0 0.0
  %7770 = vmatpush.msra.mxu0 0.0
  %7771 = vmatpush.msra.mxu0 0.0
  %7772 = vmatpush.msra.mxu0 0.0
  %7773 = vmatpush.msra.mxu0 0.0
  %7774 = vmatpush.msra.mxu0 0.0
  %7775 = vmatpush.msra.mxu0 0.0
  %7776 = vmatpush.msra.mxu0 %v5207
  %7777 = vmatpush.msra.mxu0 %v5206
  %7778 = vmatmul.f32.gmra.mxu0 %v7665
  %v7779 = vpop.f32.mrf.mxu0
  %v7780 = vadd.f32 0.0, %v7779
  %7781 = vmatmul.f32.gmra.mxu0 %v7668
  %v7782 = vpop.f32.mrf.mxu0
  %v7783 = vadd.f32 0.0, %v7782
  %7784 = vdwg.mxu0
  %7785 = vmatpush.msra.mxu0 0.0
  %7786 = vmatpush.msra.mxu0 0.0
  %7787 = vmatpush.msra.mxu0 0.0
  %7788 = vmatpush.msra.mxu0 0.0
  %7789 = vmatpush.msra.mxu0 0.0
  %7790 = vmatpush.msra.mxu0 0.0
  %7791 = vmatpush.msra.mxu0 0.0
  %7792 = vmatpush.msra.mxu0 0.0
  %7793 = vmatpush.msra.mxu0 0.0
  %7794 = vmatpush.msra.mxu0 0.0
  %7795 = vmatpush.msra.mxu0 0.0
  %7796 = vmatpush.msra.mxu0 0.0
  %7797 = vmatpush.msra.mxu0 0.0
  %7798 = vmatpush.msra.mxu0 0.0
  %7799 = vmatpush.msra.mxu0 %v5209
  %7800 = vmatpush.msra.mxu0 %v5208
  %7801 = vmatmul.f32.gmra.mxu0 %v7665
  %v7802 = vpop.f32.mrf.mxu0
  %v7803 = vadd.f32 0.0, %v7802
  %7804 = vmatmul.f32.gmra.mxu0 %v7668
  %v7805 = vpop.f32.mrf.mxu0
  %v7806 = vadd.f32 0.0, %v7805
  %7807 = vdwg.mxu0
  %7808 = vmatpush.msra.mxu0 0.0
  %7809 = vmatpush.msra.mxu0 0.0
  %7810 = vmatpush.msra.mxu0 0.0
  %7811 = vmatpush.msra.mxu0 0.0
  %7812 = vmatpush.msra.mxu0 0.0
  %7813 = vmatpush.msra.mxu0 0.0
  %7814 = vmatpush.msra.mxu0 0.0
  %7815 = vmatpush.msra.mxu0 0.0
  %7816 = vmatpush.msra.mxu0 0.0
  %7817 = vmatpush.msra.mxu0 0.0
  %7818 = vmatpush.msra.mxu0 0.0
  %7819 = vmatpush.msra.mxu0 0.0
  %7820 = vmatpush.msra.mxu0 0.0
  %7821 = vmatpush.msra.mxu0 0.0
  %7822 = vmatpush.msra.mxu0 %v5211
  %7823 = vmatpush.msra.mxu0 %v5210
  %7824 = vmatmul.f32.gmra.mxu0 %v7665
  %v7825 = vpop.f32.mrf.mxu0
  %v7826 = vadd.f32 0.0, %v7825
  %7827 = vmatmul.f32.gmra.mxu0 %v7668
  %v7828 = vpop.f32.mrf.mxu0
  %v7829 = vadd.f32 0.0, %v7828
  %7830 = vdwg.mxu0
  %7831 = vmatpush.msra.mxu0 0.0
  %7832 = vmatpush.msra.mxu0 0.0
  %7833 = vmatpush.msra.mxu0 0.0
  %7834 = vmatpush.msra.mxu0 0.0
  %7835 = vmatpush.msra.mxu0 0.0
  %7836 = vmatpush.msra.mxu0 0.0
  %7837 = vmatpush.msra.mxu0 0.0
  %7838 = vmatpush.msra.mxu0 0.0
  %7839 = vmatpush.msra.mxu0 0.0
  %7840 = vmatpush.msra.mxu0 0.0
  %7841 = vmatpush.msra.mxu0 0.0
  %7842 = vmatpush.msra.mxu0 0.0
  %7843 = vmatpush.msra.mxu0 0.0
  %7844 = vmatpush.msra.mxu0 0.0
  %7845 = vmatpush.msra.mxu0 %v5213
  %7846 = vmatpush.msra.mxu0 %v5212
  %7847 = vmatmul.f32.gmra.mxu0 %v7665
  %v7848 = vpop.f32.mrf.mxu0
  %v7849 = vadd.f32 0.0, %v7848
  %7850 = vmatmul.f32.gmra.mxu0 %v7668
  %v7851 = vpop.f32.mrf.mxu0
  %v7852 = vadd.f32 0.0, %v7851
  %7853 = vdwg.mxu0
  %7854 = vmatpush.msra.mxu0 0.0
  %7855 = vmatpush.msra.mxu0 0.0
  %7856 = vmatpush.msra.mxu0 0.0
  %7857 = vmatpush.msra.mxu0 0.0
  %7858 = vmatpush.msra.mxu0 0.0
  %7859 = vmatpush.msra.mxu0 0.0
  %7860 = vmatpush.msra.mxu0 0.0
  %7861 = vmatpush.msra.mxu0 0.0
  %7862 = vmatpush.msra.mxu0 0.0
  %7863 = vmatpush.msra.mxu0 0.0
  %7864 = vmatpush.msra.mxu0 0.0
  %7865 = vmatpush.msra.mxu0 0.0
  %7866 = vmatpush.msra.mxu0 0.0
  %7867 = vmatpush.msra.mxu0 0.0
  %7868 = vmatpush.msra.mxu0 %v5215
  %7869 = vmatpush.msra.mxu0 %v5214
  %7870 = vmatmul.f32.gmra.mxu0 %v7665
  %v7871 = vpop.f32.mrf.mxu0
  %v7872 = vadd.f32 0.0, %v7871
  %7873 = vmatmul.f32.gmra.mxu0 %v7668
  %v7874 = vpop.f32.mrf.mxu0
  %v7875 = vadd.f32 0.0, %v7874
  %7876 = vdwg.mxu0
  %7877 = vmatpush.msra.mxu0 0.0
  %7878 = vmatpush.msra.mxu0 0.0
  %7879 = vmatpush.msra.mxu0 0.0
  %7880 = vmatpush.msra.mxu0 0.0
  %7881 = vmatpush.msra.mxu0 0.0
  %7882 = vmatpush.msra.mxu0 0.0
  %7883 = vmatpush.msra.mxu0 0.0
  %7884 = vmatpush.msra.mxu0 0.0
  %7885 = vmatpush.msra.mxu0 0.0
  %7886 = vmatpush.msra.mxu0 0.0
  %7887 = vmatpush.msra.mxu0 0.0
  %7888 = vmatpush.msra.mxu0 0.0
  %7889 = vmatpush.msra.mxu0 0.0
  %7890 = vmatpush.msra.mxu0 0.0
  %7891 = vmatpush.msra.mxu0 %v5217
  %7892 = vmatpush.msra.mxu0 %v5216
  %7893 = vmatmul.f32.gmra.mxu0 %v7665
  %v7894 = vpop.f32.mrf.mxu0
  %v7895 = vadd.f32 0.0, %v7894
  %7896 = vmatmul.f32.gmra.mxu0 %v7668
  %v7897 = vpop.f32.mrf.mxu0
  %v7898 = vadd.f32 0.0, %v7897
  %7899 = vdwg.mxu0
  %7900 = vmatpush.msra.mxu0 0.0
  %7901 = vmatpush.msra.mxu0 0.0
  %7902 = vmatpush.msra.mxu0 0.0
  %7903 = vmatpush.msra.mxu0 0.0
  %7904 = vmatpush.msra.mxu0 0.0
  %7905 = vmatpush.msra.mxu0 0.0
  %7906 = vmatpush.msra.mxu0 0.0
  %7907 = vmatpush.msra.mxu0 0.0
  %7908 = vmatpush.msra.mxu0 0.0
  %7909 = vmatpush.msra.mxu0 0.0
  %7910 = vmatpush.msra.mxu0 0.0
  %7911 = vmatpush.msra.mxu0 0.0
  %7912 = vmatpush.msra.mxu0 0.0
  %7913 = vmatpush.msra.mxu0 0.0
  %7914 = vmatpush.msra.mxu0 %v5219
  %7915 = vmatpush.msra.mxu0 %v5218
  %7916 = vmatmul.f32.gmra.mxu0 %v7665
  %v7917 = vpop.f32.mrf.mxu0
  %v7918 = vadd.f32 0.0, %v7917
  %7919 = vmatmul.f32.gmra.mxu0 %v7668
  %v7920 = vpop.f32.mrf.mxu0
  %v7921 = vadd.f32 0.0, %v7920
  %7922 = vdwg.mxu0
  %7923 = vmatpush.msra.mxu0 0.0
  %7924 = vmatpush.msra.mxu0 0.0
  %7925 = vmatpush.msra.mxu0 0.0
  %7926 = vmatpush.msra.mxu0 0.0
  %7927 = vmatpush.msra.mxu0 0.0
  %7928 = vmatpush.msra.mxu0 0.0
  %7929 = vmatpush.msra.mxu0 0.0
  %7930 = vmatpush.msra.mxu0 0.0
  %7931 = vmatpush.msra.mxu0 0.0
  %7932 = vmatpush.msra.mxu0 0.0
  %7933 = vmatpush.msra.mxu0 0.0
  %7934 = vmatpush.msra.mxu0 0.0
  %7935 = vmatpush.msra.mxu0 0.0
  %7936 = vmatpush.msra.mxu0 0.0
  %7937 = vmatpush.msra.mxu0 %v5221
  %7938 = vmatpush.msra.mxu0 %v5220
  %7939 = vmatmul.f32.gmra.mxu0 %v7665
  %v7940 = vpop.f32.mrf.mxu0
  %v7941 = vadd.f32 0.0, %v7940
  %7942 = vmatmul.f32.gmra.mxu0 %v7668
  %v7943 = vpop.f32.mrf.mxu0
  %v7944 = vadd.f32 0.0, %v7943
  %7945 = vdwg.mxu0
  %7946 = vmatpush.msra.mxu0 0.0
  %7947 = vmatpush.msra.mxu0 0.0
  %7948 = vmatpush.msra.mxu0 0.0
  %7949 = vmatpush.msra.mxu0 0.0
  %7950 = vmatpush.msra.mxu0 0.0
  %7951 = vmatpush.msra.mxu0 0.0
  %7952 = vmatpush.msra.mxu0 0.0
  %7953 = vmatpush.msra.mxu0 0.0
  %7954 = vmatpush.msra.mxu0 0.0
  %7955 = vmatpush.msra.mxu0 0.0
  %7956 = vmatpush.msra.mxu0 0.0
  %7957 = vmatpush.msra.mxu0 0.0
  %7958 = vmatpush.msra.mxu0 0.0
  %7959 = vmatpush.msra.mxu0 0.0
  %7960 = vmatpush.msra.mxu0 %v5223
  %7961 = vmatpush.msra.mxu0 %v5222
  %7962 = vmatmul.f32.gmra.mxu0 %v7665
  %v7963 = vpop.f32.mrf.mxu0
  %v7964 = vadd.f32 0.0, %v7963
  %7965 = vmatmul.f32.gmra.mxu0 %v7668
  %v7966 = vpop.f32.mrf.mxu0
  %v7967 = vadd.f32 0.0, %v7966
  %7968 = vdwg.mxu0
  %7969 = vmatpush.msra.mxu0 0.0
  %7970 = vmatpush.msra.mxu0 0.0
  %7971 = vmatpush.msra.mxu0 0.0
  %7972 = vmatpush.msra.mxu0 0.0
  %7973 = vmatpush.msra.mxu0 0.0
  %7974 = vmatpush.msra.mxu0 0.0
  %7975 = vmatpush.msra.mxu0 0.0
  %7976 = vmatpush.msra.mxu0 0.0
  %7977 = vmatpush.msra.mxu0 0.0
  %7978 = vmatpush.msra.mxu0 0.0
  %7979 = vmatpush.msra.mxu0 0.0
  %7980 = vmatpush.msra.mxu0 0.0
  %7981 = vmatpush.msra.mxu0 0.0
  %7982 = vmatpush.msra.mxu0 0.0
  %7983 = vmatpush.msra.mxu0 %v5225
  %7984 = vmatpush.msra.mxu0 %v5224
  %7985 = vmatmul.f32.gmra.mxu0 %v7665
  %v7986 = vpop.f32.mrf.mxu0
  %v7987 = vadd.f32 0.0, %v7986
  %7988 = vmatmul.f32.gmra.mxu0 %v7668
  %v7989 = vpop.f32.mrf.mxu0
  %v7990 = vadd.f32 0.0, %v7989
  %7991 = vdwg.mxu0
  %v7993 = vsel %vm2852, %v7688, 0
  %v7996 = vsel %vm2852, %v7691, 0
  %v7999 = vsel %vm2852, %v7711, 0
  %v8002 = vsel %vm2852, %v7714, 0
  %v8005 = vsel %vm2852, %v7734, 0
  %v8008 = vsel %vm2852, %v7737, 0
  %v8011 = vsel %vm2852, %v7757, 0
  %v8014 = vsel %vm2852, %v7760, 0
  %v8017 = vsel %vm2852, %v7780, 0
  %v8020 = vsel %vm2852, %v7783, 0
  %v8023 = vsel %vm2852, %v7803, 0
  %v8026 = vsel %vm2852, %v7806, 0
  %v8029 = vsel %vm2852, %v7826, 0
  %v8032 = vsel %vm2852, %v7829, 0
  %v8035 = vsel %vm2852, %v7849, 0
  %v8038 = vsel %vm2852, %v7852, 0
  %v8041 = vsel %vm2852, %v7872, 0
  %v8044 = vsel %vm2852, %v7875, 0
  %v8047 = vsel %vm2852, %v7895, 0
  %v8050 = vsel %vm2852, %v7898, 0
  %v8053 = vsel %vm2852, %v7918, 0
  %v8056 = vsel %vm2852, %v7921, 0
  %v8059 = vsel %vm2852, %v7941, 0
  %v8062 = vsel %vm2852, %v7944, 0
  %v8065 = vsel %vm2852, %v7964, 0
  %v8068 = vsel %vm2852, %v7967, 0
  %v8071 = vsel %vm2852, %v7987, 0
  %v8074 = vsel %vm2852, %v7990, 0
  %8076 = vmatpush.msra.mxu0 0.0
  %8077 = vmatpush.msra.mxu0 0.0
  %8078 = vmatpush.msra.mxu0 0.0
  %8079 = vmatpush.msra.mxu0 0.0
  %8080 = vmatpush.msra.mxu0 0.0
  %8081 = vmatpush.msra.mxu0 0.0
  %8082 = vmatpush.msra.mxu0 0.0
  %8083 = vmatpush.msra.mxu0 0.0
  %8084 = vmatpush.msra.mxu0 0.0
  %8085 = vmatpush.msra.mxu0 0.0
  %8086 = vmatpush.msra.mxu0 0.0
  %8087 = vmatpush.msra.mxu0 0.0
  %8088 = vmatpush.msra.mxu0 %v5434
  %8089 = vmatpush.msra.mxu0 %v5433
  %8090 = vmatpush.msra.mxu0 %v5432
  %8091 = vmatpush.msra.mxu0 %v5431
  %8092 = vmatmul.f32.gmra.mxu0 %v7993
  %v8093 = vpop.f32.mrf.mxu0
  %v8094 = vadd.f32 0.0, %v8093
  %8095 = vmatmul.f32.gmra.mxu0 %v7996
  %v8096 = vpop.f32.mrf.mxu0
  %v8097 = vadd.f32 0.0, %v8096
  %8098 = vmatmul.f32.gmra.mxu0 %v7999
  %v8099 = vpop.f32.mrf.mxu0
  %v8100 = vadd.f32 0.0, %v8099
  %8101 = vmatmul.f32.gmra.mxu0 %v8002
  %v8102 = vpop.f32.mrf.mxu0
  %v8103 = vadd.f32 0.0, %v8102
  %8104 = vmatmul.f32.gmra.mxu0 %v8005
  %v8105 = vpop.f32.mrf.mxu0
  %v8106 = vadd.f32 0.0, %v8105
  %8107 = vmatmul.f32.gmra.mxu0 %v8008
  %v8108 = vpop.f32.mrf.mxu0
  %v8109 = vadd.f32 0.0, %v8108
  %8110 = vmatmul.f32.gmra.mxu0 %v8011
  %v8111 = vpop.f32.mrf.mxu0
  %v8112 = vadd.f32 0.0, %v8111
  %8113 = vmatmul.f32.gmra.mxu0 %v8014
  %v8114 = vpop.f32.mrf.mxu0
  %v8115 = vadd.f32 0.0, %v8114
  %8116 = vmatmul.f32.gmra.mxu0 %v8017
  %v8117 = vpop.f32.mrf.mxu0
  %v8118 = vadd.f32 0.0, %v8117
  %8119 = vmatmul.f32.gmra.mxu0 %v8020
  %v8120 = vpop.f32.mrf.mxu0
  %v8121 = vadd.f32 0.0, %v8120
  %8122 = vmatmul.f32.gmra.mxu0 %v8023
  %v8123 = vpop.f32.mrf.mxu0
  %v8124 = vadd.f32 0.0, %v8123
  %8125 = vmatmul.f32.gmra.mxu0 %v8026
  %v8126 = vpop.f32.mrf.mxu0
  %v8127 = vadd.f32 0.0, %v8126
  %8128 = vmatmul.f32.gmra.mxu0 %v8029
  %v8129 = vpop.f32.mrf.mxu0
  %v8130 = vadd.f32 0.0, %v8129
  %8131 = vmatmul.f32.gmra.mxu0 %v8032
  %v8132 = vpop.f32.mrf.mxu0
  %v8133 = vadd.f32 0.0, %v8132
  %8134 = vmatmul.f32.gmra.mxu0 %v8035
  %v8135 = vpop.f32.mrf.mxu0
  %v8136 = vadd.f32 0.0, %v8135
  %8137 = vmatmul.f32.gmra.mxu0 %v8038
  %v8138 = vpop.f32.mrf.mxu0
  %v8139 = vadd.f32 0.0, %v8138
  %8140 = vmatmul.f32.gmra.mxu0 %v8041
  %v8141 = vpop.f32.mrf.mxu0
  %v8142 = vadd.f32 0.0, %v8141
  %8143 = vmatmul.f32.gmra.mxu0 %v8044
  %v8144 = vpop.f32.mrf.mxu0
  %v8145 = vadd.f32 0.0, %v8144
  %8146 = vmatmul.f32.gmra.mxu0 %v8047
  %v8147 = vpop.f32.mrf.mxu0
  %v8148 = vadd.f32 0.0, %v8147
  %8149 = vmatmul.f32.gmra.mxu0 %v8050
  %v8150 = vpop.f32.mrf.mxu0
  %v8151 = vadd.f32 0.0, %v8150
  %8152 = vmatmul.f32.gmra.mxu0 %v8053
  %v8153 = vpop.f32.mrf.mxu0
  %v8154 = vadd.f32 0.0, %v8153
  %8155 = vmatmul.f32.gmra.mxu0 %v8056
  %v8156 = vpop.f32.mrf.mxu0
  %v8157 = vadd.f32 0.0, %v8156
  %8158 = vmatmul.f32.gmra.mxu0 %v8059
  %v8159 = vpop.f32.mrf.mxu0
  %v8160 = vadd.f32 0.0, %v8159
  %8161 = vmatmul.f32.gmra.mxu0 %v8062
  %v8162 = vpop.f32.mrf.mxu0
  %v8163 = vadd.f32 0.0, %v8162
  %8164 = vmatmul.f32.gmra.mxu0 %v8065
  %v8165 = vpop.f32.mrf.mxu0
  %v8166 = vadd.f32 0.0, %v8165
  %8167 = vmatmul.f32.gmra.mxu0 %v8068
  %v8168 = vpop.f32.mrf.mxu0
  %v8169 = vadd.f32 0.0, %v8168
  %8170 = vmatmul.f32.gmra.mxu0 %v8071
  %v8171 = vpop.f32.mrf.mxu0
  %v8172 = vadd.f32 0.0, %v8171
  %8173 = vmatmul.f32.gmra.mxu0 %v8074
  %v8174 = vpop.f32.mrf.mxu0
  %v8175 = vadd.f32 0.0, %v8174
  %8176 = vdwg.mxu0
  %v8177 = vadd.f32 %v7636, %v8094
  %v8178 = vadd.f32 %v7637, %v8097
  %v8179 = vadd.f32 %v7638, %v8100
  %v8180 = vadd.f32 %v7639, %v8103
  %v8181 = vadd.f32 %v7640, %v8106
  %v8182 = vadd.f32 %v7641, %v8109
  %v8183 = vadd.f32 %v7642, %v8112
  %v8184 = vadd.f32 %v7643, %v8115
  %v8185 = vadd.f32 %v7644, %v8118
  %v8186 = vadd.f32 %v7645, %v8121
  %v8187 = vadd.f32 %v7646, %v8124
  %v8188 = vadd.f32 %v7647, %v8127
  %v8189 = vadd.f32 %v7648, %v8130
  %v8190 = vadd.f32 %v7649, %v8133
  %v8191 = vadd.f32 %v7650, %v8136
  %v8192 = vadd.f32 %v7651, %v8139
  %v8193 = vadd.f32 %v7652, %v8142
  %v8194 = vadd.f32 %v7653, %v8145
  %v8195 = vadd.f32 %v7654, %v8148
  %v8196 = vadd.f32 %v7655, %v8151
  %v8197 = vadd.f32 %v7656, %v8154
  %v8198 = vadd.f32 %v7657, %v8157
  %v8199 = vadd.f32 %v7658, %v8160
  %v8200 = vadd.f32 %v7659, %v8163
  %v8201 = vadd.f32 %v7660, %v8166
  %v8202 = vadd.f32 %v7661, %v8169
  %v8203 = vadd.f32 %v7662, %v8172
  %v8204 = vadd.f32 %v7663, %v8175
  %8205 = vmatpush.msra.mxu0 0.0
  %8206 = vmatpush.msra.mxu0 0.0
  %8207 = vmatpush.msra.mxu0 0.0
  %8208 = vmatpush.msra.mxu0 0.0
  %8209 = vmatpush.msra.mxu0 0.0
  %8210 = vmatpush.msra.mxu0 0.0
  %8211 = vmatpush.msra.mxu0 0.0
  %8212 = vmatpush.msra.mxu0 0.0
  %8213 = vmatpush.msra.mxu0 0.0
  %8214 = vmatpush.msra.mxu0 0.0
  %8215 = vmatpush.msra.mxu0 0.0
  %8216 = vmatpush.msra.mxu0 0.0
  %8217 = vmatpush.msra.mxu0 0.0
  %8218 = vmatpush.msra.mxu0 0.0
  %8219 = vmatpush.msra.mxu0 %v7691
  %8220 = vmatpush.msra.mxu0 %v7688
  %8221 = vmatmul.f32.gmra.mxu0 %v7665
  %v8222 = vpop.f32.mrf.mxu0
  %v8223 = vadd.f32 0.0, %v8222
  %8224 = vmatmul.f32.gmra.mxu0 %v7668
  %v8225 = vpop.f32.mrf.mxu0
  %v8226 = vadd.f32 0.0, %v8225
  %8227 = vdwg.mxu0
  %8228 = vmatpush.msra.mxu0 0.0
  %8229 = vmatpush.msra.mxu0 0.0
  %8230 = vmatpush.msra.mxu0 0.0
  %8231 = vmatpush.msra.mxu0 0.0
  %8232 = vmatpush.msra.mxu0 0.0
  %8233 = vmatpush.msra.mxu0 0.0
  %8234 = vmatpush.msra.mxu0 0.0
  %8235 = vmatpush.msra.mxu0 0.0
  %8236 = vmatpush.msra.mxu0 0.0
  %8237 = vmatpush.msra.mxu0 0.0
  %8238 = vmatpush.msra.mxu0 0.0
  %8239 = vmatpush.msra.mxu0 0.0
  %8240 = vmatpush.msra.mxu0 0.0
  %8241 = vmatpush.msra.mxu0 0.0
  %8242 = vmatpush.msra.mxu0 %v7714
  %8243 = vmatpush.msra.mxu0 %v7711
  %8244 = vmatmul.f32.gmra.mxu0 %v7665
  %v8245 = vpop.f32.mrf.mxu0
  %v8246 = vadd.f32 0.0, %v8245
  %8247 = vmatmul.f32.gmra.mxu0 %v7668
  %v8248 = vpop.f32.mrf.mxu0
  %v8249 = vadd.f32 0.0, %v8248
  %8250 = vdwg.mxu0
  %8251 = vmatpush.msra.mxu0 0.0
  %8252 = vmatpush.msra.mxu0 0.0
  %8253 = vmatpush.msra.mxu0 0.0
  %8254 = vmatpush.msra.mxu0 0.0
  %8255 = vmatpush.msra.mxu0 0.0
  %8256 = vmatpush.msra.mxu0 0.0
  %8257 = vmatpush.msra.mxu0 0.0
  %8258 = vmatpush.msra.mxu0 0.0
  %8259 = vmatpush.msra.mxu0 0.0
  %8260 = vmatpush.msra.mxu0 0.0
  %8261 = vmatpush.msra.mxu0 0.0
  %8262 = vmatpush.msra.mxu0 0.0
  %8263 = vmatpush.msra.mxu0 0.0
  %8264 = vmatpush.msra.mxu0 0.0
  %8265 = vmatpush.msra.mxu0 %v7737
  %8266 = vmatpush.msra.mxu0 %v7734
  %8267 = vmatmul.f32.gmra.mxu0 %v7665
  %v8268 = vpop.f32.mrf.mxu0
  %v8269 = vadd.f32 0.0, %v8268
  %8270 = vmatmul.f32.gmra.mxu0 %v7668
  %v8271 = vpop.f32.mrf.mxu0
  %v8272 = vadd.f32 0.0, %v8271
  %8273 = vdwg.mxu0
  %8274 = vmatpush.msra.mxu0 0.0
  %8275 = vmatpush.msra.mxu0 0.0
  %8276 = vmatpush.msra.mxu0 0.0
  %8277 = vmatpush.msra.mxu0 0.0
  %8278 = vmatpush.msra.mxu0 0.0
  %8279 = vmatpush.msra.mxu0 0.0
  %8280 = vmatpush.msra.mxu0 0.0
  %8281 = vmatpush.msra.mxu0 0.0
  %8282 = vmatpush.msra.mxu0 0.0
  %8283 = vmatpush.msra.mxu0 0.0
  %8284 = vmatpush.msra.mxu0 0.0
  %8285 = vmatpush.msra.mxu0 0.0
  %8286 = vmatpush.msra.mxu0 0.0
  %8287 = vmatpush.msra.mxu0 0.0
  %8288 = vmatpush.msra.mxu0 %v7760
  %8289 = vmatpush.msra.mxu0 %v7757
  %8290 = vmatmul.f32.gmra.mxu0 %v7665
  %v8291 = vpop.f32.mrf.mxu0
  %v8292 = vadd.f32 0.0, %v8291
  %8293 = vmatmul.f32.gmra.mxu0 %v7668
  %v8294 = vpop.f32.mrf.mxu0
  %v8295 = vadd.f32 0.0, %v8294
  %8296 = vdwg.mxu0
  %8297 = vmatpush.msra.mxu0 0.0
  %8298 = vmatpush.msra.mxu0 0.0
  %8299 = vmatpush.msra.mxu0 0.0
  %8300 = vmatpush.msra.mxu0 0.0
  %8301 = vmatpush.msra.mxu0 0.0
  %8302 = vmatpush.msra.mxu0 0.0
  %8303 = vmatpush.msra.mxu0 0.0
  %8304 = vmatpush.msra.mxu0 0.0
  %8305 = vmatpush.msra.mxu0 0.0
  %8306 = vmatpush.msra.mxu0 0.0
  %8307 = vmatpush.msra.mxu0 0.0
  %8308 = vmatpush.msra.mxu0 0.0
  %8309 = vmatpush.msra.mxu0 0.0
  %8310 = vmatpush.msra.mxu0 0.0
  %8311 = vmatpush.msra.mxu0 %v7783
  %8312 = vmatpush.msra.mxu0 %v7780
  %8313 = vmatmul.f32.gmra.mxu0 %v7665
  %v8314 = vpop.f32.mrf.mxu0
  %v8315 = vadd.f32 0.0, %v8314
  %8316 = vmatmul.f32.gmra.mxu0 %v7668
  %v8317 = vpop.f32.mrf.mxu0
  %v8318 = vadd.f32 0.0, %v8317
  %8319 = vdwg.mxu0
  %8320 = vmatpush.msra.mxu0 0.0
  %8321 = vmatpush.msra.mxu0 0.0
  %8322 = vmatpush.msra.mxu0 0.0
  %8323 = vmatpush.msra.mxu0 0.0
  %8324 = vmatpush.msra.mxu0 0.0
  %8325 = vmatpush.msra.mxu0 0.0
  %8326 = vmatpush.msra.mxu0 0.0
  %8327 = vmatpush.msra.mxu0 0.0
  %8328 = vmatpush.msra.mxu0 0.0
  %8329 = vmatpush.msra.mxu0 0.0
  %8330 = vmatpush.msra.mxu0 0.0
  %8331 = vmatpush.msra.mxu0 0.0
  %8332 = vmatpush.msra.mxu0 0.0
  %8333 = vmatpush.msra.mxu0 0.0
  %8334 = vmatpush.msra.mxu0 %v7806
  %8335 = vmatpush.msra.mxu0 %v7803
  %8336 = vmatmul.f32.gmra.mxu0 %v7665
  %v8337 = vpop.f32.mrf.mxu0
  %v8338 = vadd.f32 0.0, %v8337
  %8339 = vmatmul.f32.gmra.mxu0 %v7668
  %v8340 = vpop.f32.mrf.mxu0
  %v8341 = vadd.f32 0.0, %v8340
  %8342 = vdwg.mxu0
  %8343 = vmatpush.msra.mxu0 0.0
  %8344 = vmatpush.msra.mxu0 0.0
  %8345 = vmatpush.msra.mxu0 0.0
  %8346 = vmatpush.msra.mxu0 0.0
  %8347 = vmatpush.msra.mxu0 0.0
  %8348 = vmatpush.msra.mxu0 0.0
  %8349 = vmatpush.msra.mxu0 0.0
  %8350 = vmatpush.msra.mxu0 0.0
  %8351 = vmatpush.msra.mxu0 0.0
  %8352 = vmatpush.msra.mxu0 0.0
  %8353 = vmatpush.msra.mxu0 0.0
  %8354 = vmatpush.msra.mxu0 0.0
  %8355 = vmatpush.msra.mxu0 0.0
  %8356 = vmatpush.msra.mxu0 0.0
  %8357 = vmatpush.msra.mxu0 %v7829
  %8358 = vmatpush.msra.mxu0 %v7826
  %8359 = vmatmul.f32.gmra.mxu0 %v7665
  %v8360 = vpop.f32.mrf.mxu0
  %v8361 = vadd.f32 0.0, %v8360
  %8362 = vmatmul.f32.gmra.mxu0 %v7668
  %v8363 = vpop.f32.mrf.mxu0
  %v8364 = vadd.f32 0.0, %v8363
  %8365 = vdwg.mxu0
  %8366 = vmatpush.msra.mxu0 0.0
  %8367 = vmatpush.msra.mxu0 0.0
  %8368 = vmatpush.msra.mxu0 0.0
  %8369 = vmatpush.msra.mxu0 0.0
  %8370 = vmatpush.msra.mxu0 0.0
  %8371 = vmatpush.msra.mxu0 0.0
  %8372 = vmatpush.msra.mxu0 0.0
  %8373 = vmatpush.msra.mxu0 0.0
  %8374 = vmatpush.msra.mxu0 0.0
  %8375 = vmatpush.msra.mxu0 0.0
  %8376 = vmatpush.msra.mxu0 0.0
  %8377 = vmatpush.msra.mxu0 0.0
  %8378 = vmatpush.msra.mxu0 0.0
  %8379 = vmatpush.msra.mxu0 0.0
  %8380 = vmatpush.msra.mxu0 %v7852
  %8381 = vmatpush.msra.mxu0 %v7849
  %8382 = vmatmul.f32.gmra.mxu0 %v7665
  %v8383 = vpop.f32.mrf.mxu0
  %v8384 = vadd.f32 0.0, %v8383
  %8385 = vmatmul.f32.gmra.mxu0 %v7668
  %v8386 = vpop.f32.mrf.mxu0
  %v8387 = vadd.f32 0.0, %v8386
  %8388 = vdwg.mxu0
  %8389 = vmatpush.msra.mxu0 0.0
  %8390 = vmatpush.msra.mxu0 0.0
  %8391 = vmatpush.msra.mxu0 0.0
  %8392 = vmatpush.msra.mxu0 0.0
  %8393 = vmatpush.msra.mxu0 0.0
  %8394 = vmatpush.msra.mxu0 0.0
  %8395 = vmatpush.msra.mxu0 0.0
  %8396 = vmatpush.msra.mxu0 0.0
  %8397 = vmatpush.msra.mxu0 0.0
  %8398 = vmatpush.msra.mxu0 0.0
  %8399 = vmatpush.msra.mxu0 0.0
  %8400 = vmatpush.msra.mxu0 0.0
  %8401 = vmatpush.msra.mxu0 0.0
  %8402 = vmatpush.msra.mxu0 0.0
  %8403 = vmatpush.msra.mxu0 %v7875
  %8404 = vmatpush.msra.mxu0 %v7872
  %8405 = vmatmul.f32.gmra.mxu0 %v7665
  %v8406 = vpop.f32.mrf.mxu0
  %v8407 = vadd.f32 0.0, %v8406
  %8408 = vmatmul.f32.gmra.mxu0 %v7668
  %v8409 = vpop.f32.mrf.mxu0
  %v8410 = vadd.f32 0.0, %v8409
  %8411 = vdwg.mxu0
  %8412 = vmatpush.msra.mxu0 0.0
  %8413 = vmatpush.msra.mxu0 0.0
  %8414 = vmatpush.msra.mxu0 0.0
  %8415 = vmatpush.msra.mxu0 0.0
  %8416 = vmatpush.msra.mxu0 0.0
  %8417 = vmatpush.msra.mxu0 0.0
  %8418 = vmatpush.msra.mxu0 0.0
  %8419 = vmatpush.msra.mxu0 0.0
  %8420 = vmatpush.msra.mxu0 0.0
  %8421 = vmatpush.msra.mxu0 0.0
  %8422 = vmatpush.msra.mxu0 0.0
  %8423 = vmatpush.msra.mxu0 0.0
  %8424 = vmatpush.msra.mxu0 0.0
  %8425 = vmatpush.msra.mxu0 0.0
  %8426 = vmatpush.msra.mxu0 %v7898
  %8427 = vmatpush.msra.mxu0 %v7895
  %8428 = vmatmul.f32.gmra.mxu0 %v7665
  %v8429 = vpop.f32.mrf.mxu0
  %v8430 = vadd.f32 0.0, %v8429
  %8431 = vmatmul.f32.gmra.mxu0 %v7668
  %v8432 = vpop.f32.mrf.mxu0
  %v8433 = vadd.f32 0.0, %v8432
  %8434 = vdwg.mxu0
  %8435 = vmatpush.msra.mxu0 0.0
  %8436 = vmatpush.msra.mxu0 0.0
  %8437 = vmatpush.msra.mxu0 0.0
  %8438 = vmatpush.msra.mxu0 0.0
  %8439 = vmatpush.msra.mxu0 0.0
  %8440 = vmatpush.msra.mxu0 0.0
  %8441 = vmatpush.msra.mxu0 0.0
  %8442 = vmatpush.msra.mxu0 0.0
  %8443 = vmatpush.msra.mxu0 0.0
  %8444 = vmatpush.msra.mxu0 0.0
  %8445 = vmatpush.msra.mxu0 0.0
  %8446 = vmatpush.msra.mxu0 0.0
  %8447 = vmatpush.msra.mxu0 0.0
  %8448 = vmatpush.msra.mxu0 0.0
  %8449 = vmatpush.msra.mxu0 %v7921
  %8450 = vmatpush.msra.mxu0 %v7918
  %8451 = vmatmul.f32.gmra.mxu0 %v7665
  %v8452 = vpop.f32.mrf.mxu0
  %v8453 = vadd.f32 0.0, %v8452
  %8454 = vmatmul.f32.gmra.mxu0 %v7668
  %v8455 = vpop.f32.mrf.mxu0
  %v8456 = vadd.f32 0.0, %v8455
  %8457 = vdwg.mxu0
  %8458 = vmatpush.msra.mxu0 0.0
  %8459 = vmatpush.msra.mxu0 0.0
  %8460 = vmatpush.msra.mxu0 0.0
  %8461 = vmatpush.msra.mxu0 0.0
  %8462 = vmatpush.msra.mxu0 0.0
  %8463 = vmatpush.msra.mxu0 0.0
  %8464 = vmatpush.msra.mxu0 0.0
  %8465 = vmatpush.msra.mxu0 0.0
  %8466 = vmatpush.msra.mxu0 0.0
  %8467 = vmatpush.msra.mxu0 0.0
  %8468 = vmatpush.msra.mxu0 0.0
  %8469 = vmatpush.msra.mxu0 0.0
  %8470 = vmatpush.msra.mxu0 0.0
  %8471 = vmatpush.msra.mxu0 0.0
  %8472 = vmatpush.msra.mxu0 %v7944
  %8473 = vmatpush.msra.mxu0 %v7941
  %8474 = vmatmul.f32.gmra.mxu0 %v7665
  %v8475 = vpop.f32.mrf.mxu0
  %v8476 = vadd.f32 0.0, %v8475
  %8477 = vmatmul.f32.gmra.mxu0 %v7668
  %v8478 = vpop.f32.mrf.mxu0
  %v8479 = vadd.f32 0.0, %v8478
  %8480 = vdwg.mxu0
  %8481 = vmatpush.msra.mxu0 0.0
  %8482 = vmatpush.msra.mxu0 0.0
  %8483 = vmatpush.msra.mxu0 0.0
  %8484 = vmatpush.msra.mxu0 0.0
  %8485 = vmatpush.msra.mxu0 0.0
  %8486 = vmatpush.msra.mxu0 0.0
  %8487 = vmatpush.msra.mxu0 0.0
  %8488 = vmatpush.msra.mxu0 0.0
  %8489 = vmatpush.msra.mxu0 0.0
  %8490 = vmatpush.msra.mxu0 0.0
  %8491 = vmatpush.msra.mxu0 0.0
  %8492 = vmatpush.msra.mxu0 0.0
  %8493 = vmatpush.msra.mxu0 0.0
  %8494 = vmatpush.msra.mxu0 0.0
  %8495 = vmatpush.msra.mxu0 %v7967
  %8496 = vmatpush.msra.mxu0 %v7964
  %8497 = vmatmul.f32.gmra.mxu0 %v7665
  %v8498 = vpop.f32.mrf.mxu0
  %v8499 = vadd.f32 0.0, %v8498
  %8500 = vmatmul.f32.gmra.mxu0 %v7668
  %v8501 = vpop.f32.mrf.mxu0
  %v8502 = vadd.f32 0.0, %v8501
  %8503 = vdwg.mxu0
  %8504 = vmatpush.msra.mxu0 0.0
  %8505 = vmatpush.msra.mxu0 0.0
  %8506 = vmatpush.msra.mxu0 0.0
  %8507 = vmatpush.msra.mxu0 0.0
  %8508 = vmatpush.msra.mxu0 0.0
  %8509 = vmatpush.msra.mxu0 0.0
  %8510 = vmatpush.msra.mxu0 0.0
  %8511 = vmatpush.msra.mxu0 0.0
  %8512 = vmatpush.msra.mxu0 0.0
  %8513 = vmatpush.msra.mxu0 0.0
  %8514 = vmatpush.msra.mxu0 0.0
  %8515 = vmatpush.msra.mxu0 0.0
  %8516 = vmatpush.msra.mxu0 0.0
  %8517 = vmatpush.msra.mxu0 0.0
  %8518 = vmatpush.msra.mxu0 %v7990
  %8519 = vmatpush.msra.mxu0 %v7987
  %8520 = vmatmul.f32.gmra.mxu0 %v7665
  %v8521 = vpop.f32.mrf.mxu0
  %v8522 = vadd.f32 0.0, %v8521
  %8523 = vmatmul.f32.gmra.mxu0 %v7668
  %v8524 = vpop.f32.mrf.mxu0
  %v8525 = vadd.f32 0.0, %v8524
  %8526 = vdwg.mxu0
  %v8528 = vsel %vm2852, %v8223, 0
  %v8531 = vsel %vm2852, %v8226, 0
  %v8534 = vsel %vm2852, %v8246, 0
  %v8537 = vsel %vm2852, %v8249, 0
  %v8540 = vsel %vm2852, %v8269, 0
  %v8543 = vsel %vm2852, %v8272, 0
  %v8546 = vsel %vm2852, %v8292, 0
  %v8549 = vsel %vm2852, %v8295, 0
  %v8552 = vsel %vm2852, %v8315, 0
  %v8555 = vsel %vm2852, %v8318, 0
  %v8558 = vsel %vm2852, %v8338, 0
  %v8561 = vsel %vm2852, %v8341, 0
  %v8564 = vsel %vm2852, %v8361, 0
  %v8567 = vsel %vm2852, %v8364, 0
  %v8570 = vsel %vm2852, %v8384, 0
  %v8573 = vsel %vm2852, %v8387, 0
  %v8576 = vsel %vm2852, %v8407, 0
  %v8579 = vsel %vm2852, %v8410, 0
  %v8582 = vsel %vm2852, %v8430, 0
  %v8585 = vsel %vm2852, %v8433, 0
  %v8588 = vsel %vm2852, %v8453, 0
  %v8591 = vsel %vm2852, %v8456, 0
  %v8594 = vsel %vm2852, %v8476, 0
  %v8597 = vsel %vm2852, %v8479, 0
  %v8600 = vsel %vm2852, %v8499, 0
  %v8603 = vsel %vm2852, %v8502, 0
  %v8606 = vsel %vm2852, %v8522, 0
  %v8609 = vsel %vm2852, %v8525, 0
  %8611 = vmatpush.msra.mxu0 0.0
  %8612 = vmatpush.msra.mxu0 0.0
  %8613 = vmatpush.msra.mxu0 0.0
  %8614 = vmatpush.msra.mxu0 0.0
  %8615 = vmatpush.msra.mxu0 0.0
  %8616 = vmatpush.msra.mxu0 0.0
  %8617 = vmatpush.msra.mxu0 0.0
  %8618 = vmatpush.msra.mxu0 0.0
  %8619 = vmatpush.msra.mxu0 0.0
  %8620 = vmatpush.msra.mxu0 0.0
  %8621 = vmatpush.msra.mxu0 0.0
  %8622 = vmatpush.msra.mxu0 0.0
  %8623 = vmatpush.msra.mxu0 %v5438
  %8624 = vmatpush.msra.mxu0 %v5437
  %8625 = vmatpush.msra.mxu0 %v5436
  %8626 = vmatpush.msra.mxu0 %v5435
  %8627 = vmatmul.f32.gmra.mxu0 %v8528
  %v8628 = vpop.f32.mrf.mxu0
  %v8629 = vadd.f32 0.0, %v8628
  %8630 = vmatmul.f32.gmra.mxu0 %v8531
  %v8631 = vpop.f32.mrf.mxu0
  %v8632 = vadd.f32 0.0, %v8631
  %8633 = vmatmul.f32.gmra.mxu0 %v8534
  %v8634 = vpop.f32.mrf.mxu0
  %v8635 = vadd.f32 0.0, %v8634
  %8636 = vmatmul.f32.gmra.mxu0 %v8537
  %v8637 = vpop.f32.mrf.mxu0
  %v8638 = vadd.f32 0.0, %v8637
  %8639 = vmatmul.f32.gmra.mxu0 %v8540
  %v8640 = vpop.f32.mrf.mxu0
  %v8641 = vadd.f32 0.0, %v8640
  %8642 = vmatmul.f32.gmra.mxu0 %v8543
  %v8643 = vpop.f32.mrf.mxu0
  %v8644 = vadd.f32 0.0, %v8643
  %8645 = vmatmul.f32.gmra.mxu0 %v8546
  %v8646 = vpop.f32.mrf.mxu0
  %v8647 = vadd.f32 0.0, %v8646
  %8648 = vmatmul.f32.gmra.mxu0 %v8549
  %v8649 = vpop.f32.mrf.mxu0
  %v8650 = vadd.f32 0.0, %v8649
  %8651 = vmatmul.f32.gmra.mxu0 %v8552
  %v8652 = vpop.f32.mrf.mxu0
  %v8653 = vadd.f32 0.0, %v8652
  %8654 = vmatmul.f32.gmra.mxu0 %v8555
  %v8655 = vpop.f32.mrf.mxu0
  %v8656 = vadd.f32 0.0, %v8655
  %8657 = vmatmul.f32.gmra.mxu0 %v8558
  %v8658 = vpop.f32.mrf.mxu0
  %v8659 = vadd.f32 0.0, %v8658
  %8660 = vmatmul.f32.gmra.mxu0 %v8561
  %v8661 = vpop.f32.mrf.mxu0
  %v8662 = vadd.f32 0.0, %v8661
  %8663 = vmatmul.f32.gmra.mxu0 %v8564
  %v8664 = vpop.f32.mrf.mxu0
  %v8665 = vadd.f32 0.0, %v8664
  %8666 = vmatmul.f32.gmra.mxu0 %v8567
  %v8667 = vpop.f32.mrf.mxu0
  %v8668 = vadd.f32 0.0, %v8667
  %8669 = vmatmul.f32.gmra.mxu0 %v8570
  %v8670 = vpop.f32.mrf.mxu0
  %v8671 = vadd.f32 0.0, %v8670
  %8672 = vmatmul.f32.gmra.mxu0 %v8573
  %v8673 = vpop.f32.mrf.mxu0
  %v8674 = vadd.f32 0.0, %v8673
  %8675 = vmatmul.f32.gmra.mxu0 %v8576
  %v8676 = vpop.f32.mrf.mxu0
  %v8677 = vadd.f32 0.0, %v8676
  %8678 = vmatmul.f32.gmra.mxu0 %v8579
  %v8679 = vpop.f32.mrf.mxu0
  %v8680 = vadd.f32 0.0, %v8679
  %8681 = vmatmul.f32.gmra.mxu0 %v8582
  %v8682 = vpop.f32.mrf.mxu0
  %v8683 = vadd.f32 0.0, %v8682
  %8684 = vmatmul.f32.gmra.mxu0 %v8585
  %v8685 = vpop.f32.mrf.mxu0
  %v8686 = vadd.f32 0.0, %v8685
  %8687 = vmatmul.f32.gmra.mxu0 %v8588
  %v8688 = vpop.f32.mrf.mxu0
  %v8689 = vadd.f32 0.0, %v8688
  %8690 = vmatmul.f32.gmra.mxu0 %v8591
  %v8691 = vpop.f32.mrf.mxu0
  %v8692 = vadd.f32 0.0, %v8691
  %8693 = vmatmul.f32.gmra.mxu0 %v8594
  %v8694 = vpop.f32.mrf.mxu0
  %v8695 = vadd.f32 0.0, %v8694
  %8696 = vmatmul.f32.gmra.mxu0 %v8597
  %v8697 = vpop.f32.mrf.mxu0
  %v8698 = vadd.f32 0.0, %v8697
  %8699 = vmatmul.f32.gmra.mxu0 %v8600
  %v8700 = vpop.f32.mrf.mxu0
  %v8701 = vadd.f32 0.0, %v8700
  %8702 = vmatmul.f32.gmra.mxu0 %v8603
  %v8703 = vpop.f32.mrf.mxu0
  %v8704 = vadd.f32 0.0, %v8703
  %8705 = vmatmul.f32.gmra.mxu0 %v8606
  %v8706 = vpop.f32.mrf.mxu0
  %v8707 = vadd.f32 0.0, %v8706
  %8708 = vmatmul.f32.gmra.mxu0 %v8609
  %v8709 = vpop.f32.mrf.mxu0
  %v8710 = vadd.f32 0.0, %v8709
  %8711 = vdwg.mxu0
  %v8712 = vadd.f32 %v8177, %v8629
  %v8713 = vadd.f32 %v8178, %v8632
  %v8714 = vadd.f32 %v8179, %v8635
  %v8715 = vadd.f32 %v8180, %v8638
  %v8716 = vadd.f32 %v8181, %v8641
  %v8717 = vadd.f32 %v8182, %v8644
  %v8718 = vadd.f32 %v8183, %v8647
  %v8719 = vadd.f32 %v8184, %v8650
  %v8720 = vadd.f32 %v8185, %v8653
  %v8721 = vadd.f32 %v8186, %v8656
  %v8722 = vadd.f32 %v8187, %v8659
  %v8723 = vadd.f32 %v8188, %v8662
  %v8724 = vadd.f32 %v8189, %v8665
  %v8725 = vadd.f32 %v8190, %v8668
  %v8726 = vadd.f32 %v8191, %v8671
  %v8727 = vadd.f32 %v8192, %v8674
  %v8728 = vadd.f32 %v8193, %v8677
  %v8729 = vadd.f32 %v8194, %v8680
  %v8730 = vadd.f32 %v8195, %v8683
  %v8731 = vadd.f32 %v8196, %v8686
  %v8732 = vadd.f32 %v8197, %v8689
  %v8733 = vadd.f32 %v8198, %v8692
  %v8734 = vadd.f32 %v8199, %v8695
  %v8735 = vadd.f32 %v8200, %v8698
  %v8736 = vadd.f32 %v8201, %v8701
  %v8737 = vadd.f32 %v8202, %v8704
  %v8738 = vadd.f32 %v8203, %v8707
  %v8739 = vadd.f32 %v8204, %v8710
  %v8740 = vld [vmem:[%s19] sm:$0x1]
  %v8742 = vperm.slane %v8740, 0
  %v8744 = vadd.f32 %v8712, %v8742
  %v8745 = vadd.f32 %v8713, %v8742
  %v8746 = vadd.f32 %v8714, %v8742
  %v8747 = vadd.f32 %v8715, %v8742
  %v8748 = vadd.f32 %v8716, %v8742
  %v8749 = vadd.f32 %v8717, %v8742
  %v8750 = vadd.f32 %v8718, %v8742
  %v8751 = vadd.f32 %v8719, %v8742
  %v8752 = vadd.f32 %v8720, %v8742
  %v8753 = vadd.f32 %v8721, %v8742
  %v8754 = vadd.f32 %v8722, %v8742
  %v8755 = vadd.f32 %v8723, %v8742
  %v8756 = vadd.f32 %v8724, %v8742
  %v8757 = vadd.f32 %v8725, %v8742
  %v8758 = vadd.f32 %v8726, %v8742
  %v8759 = vadd.f32 %v8727, %v8742
  %v8760 = vadd.f32 %v8728, %v8742
  %v8761 = vadd.f32 %v8729, %v8742
  %v8762 = vadd.f32 %v8730, %v8742
  %v8763 = vadd.f32 %v8731, %v8742
  %v8764 = vadd.f32 %v8732, %v8742
  %v8765 = vadd.f32 %v8733, %v8742
  %v8766 = vadd.f32 %v8734, %v8742
  %v8767 = vadd.f32 %v8735, %v8742
  %v8768 = vadd.f32 %v8736, %v8742
  %v8769 = vadd.f32 %v8737, %v8742
  %v8770 = vadd.f32 %v8738, %v8742
  %v8771 = vadd.f32 %v8739, %v8742
  %v8772 = vadd.f32 %v8744, %v3942
  %v8773 = vadd.f32 %v8745, %v3943
  %v8774 = vadd.f32 %v8746, %v3944
  %v8775 = vadd.f32 %v8747, %v3945
  %v8776 = vadd.f32 %v8748, %v3946
  %v8777 = vadd.f32 %v8749, %v3947
  %v8778 = vadd.f32 %v8750, %v3948
  %v8779 = vadd.f32 %v8751, %v3949
  %v8780 = vadd.f32 %v8752, %v3950
  %v8781 = vadd.f32 %v8753, %v3951
  %v8782 = vadd.f32 %v8754, %v3952
  %v8783 = vadd.f32 %v8755, %v3953
  %v8784 = vadd.f32 %v8756, %v3954
  %v8785 = vadd.f32 %v8757, %v3955
  %v8786 = vadd.f32 %v8758, %v3956
  %v8787 = vadd.f32 %v8759, %v3957
  %v8788 = vadd.f32 %v8760, %v3958
  %v8789 = vadd.f32 %v8761, %v3959
  %v8790 = vadd.f32 %v8762, %v3960
  %v8791 = vadd.f32 %v8763, %v3961
  %v8792 = vadd.f32 %v8764, %v3962
  %v8793 = vadd.f32 %v8765, %v3963
  %v8794 = vadd.f32 %v8766, %v3964
  %v8795 = vadd.f32 %v8767, %v3965
  %v8796 = vadd.f32 %v8768, %v3966
  %v8797 = vadd.f32 %v8769, %v3967
  %v8798 = vadd.f32 %v8770, %v3968
  %v8799 = vadd.f32 %v8771, %v3969
  %v8800 = vsel %vm2852, %v8772, 0.0
  %v8801 = vsel %vm2852, %v8773, 0.0
  %v8802 = vadd.f32 %v8800, %v8801
  %v8803 = vsel %vm2852, %v8774, 0.0
  %v8804 = vadd.f32 %v8802, %v8803
  %v8805 = vsel %vm2852, %v8775, 0.0
  %v8806 = vadd.f32 %v8804, %v8805
  %v8807 = vsel %vm2852, %v8776, 0.0
  %v8808 = vadd.f32 %v8806, %v8807
  %v8809 = vsel %vm2852, %v8777, 0.0
  %v8810 = vadd.f32 %v8808, %v8809
  %v8811 = vsel %vm2852, %v8778, 0.0
  %v8812 = vadd.f32 %v8810, %v8811
  %v8813 = vsel %vm2852, %v8779, 0.0
  %v8814 = vadd.f32 %v8812, %v8813
  %v8815 = vsel %vm2852, %v8780, 0.0
  %v8816 = vadd.f32 %v8814, %v8815
  %v8817 = vsel %vm2852, %v8781, 0.0
  %v8818 = vadd.f32 %v8816, %v8817
  %v8819 = vsel %vm2852, %v8782, 0.0
  %v8820 = vadd.f32 %v8818, %v8819
  %v8821 = vsel %vm2852, %v8783, 0.0
  %v8822 = vadd.f32 %v8820, %v8821
  %v8823 = vsel %vm2852, %v8784, 0.0
  %v8824 = vadd.f32 %v8822, %v8823
  %v8825 = vsel %vm2852, %v8785, 0.0
  %v8826 = vadd.f32 %v8824, %v8825
  %v8827 = vsel %vm2852, %v8786, 0.0
  %v8828 = vadd.f32 %v8826, %v8827
  %v8829 = vsel %vm2852, %v8787, 0.0
  %v8830 = vadd.f32 %v8828, %v8829
  %v8831 = vsel %vm2852, %v8788, 0.0
  %v8832 = vadd.f32 %v8830, %v8831
  %v8833 = vsel %vm2852, %v8789, 0.0
  %v8834 = vadd.f32 %v8832, %v8833
  %v8835 = vsel %vm2852, %v8790, 0.0
  %v8836 = vadd.f32 %v8834, %v8835
  %v8837 = vsel %vm2852, %v8791, 0.0
  %v8838 = vadd.f32 %v8836, %v8837
  %v8839 = vsel %vm2852, %v8792, 0.0
  %v8840 = vadd.f32 %v8838, %v8839
  %v8841 = vsel %vm2852, %v8793, 0.0
  %v8842 = vadd.f32 %v8840, %v8841
  %v8843 = vsel %vm2852, %v8794, 0.0
  %v8844 = vadd.f32 %v8842, %v8843
  %v8845 = vsel %vm2852, %v8795, 0.0
  %v8846 = vadd.f32 %v8844, %v8845
  %v8847 = vsel %vm2852, %v8796, 0.0
  %v8848 = vadd.f32 %v8846, %v8847
  %v8849 = vsel %vm2852, %v8797, 0.0
  %v8850 = vadd.f32 %v8848, %v8849
  %v8851 = vsel %vm2852, %v8798, 0.0
  %v8852 = vadd.f32 %v8850, %v8851
  %v8853 = vsel %vm2852, %v8799, 0.0
  %v8854 = vadd.f32 %v8852, %v8853
  %v8855 = vrot.slane %v8854, 4
  %v8856 = vadd.f32 %v8854, %v8855
  %v8857 = vrot.slane %v8856, 2
  %v8858 = vadd.f32 %v8856, %v8857
  %v8859 = vrot.slane %v8858, 1
  %v8860 = vadd.f32 %v8858, %v8859
  %v8861 = vrcp.pop 224.0
  %v8862 = vmul.f32 224.0, %v8861
  %v8863 = vsub.f32 1.0, %v8862
  %v8864 = vmul.f32 %v8861, %v8863
  %v8865 = vadd.f32 %v8861, %v8864
  %vm8866 = vweird.f32 %v8861
  %v8867 = vsel %vm8866, %v8861, %v8865
  %v8868 = vmul.f32 %v8860, %v8867
  %v8869 = vsub.f32 %v8772, %v8868
  %v8870 = vsub.f32 %v8773, %v8868
  %v8871 = vsub.f32 %v8774, %v8868
  %v8872 = vsub.f32 %v8775, %v8868
  %v8873 = vsub.f32 %v8776, %v8868
  %v8874 = vsub.f32 %v8777, %v8868
  %v8875 = vsub.f32 %v8778, %v8868
  %v8876 = vsub.f32 %v8779, %v8868
  %v8877 = vsub.f32 %v8780, %v8868
  %v8878 = vsub.f32 %v8781, %v8868
  %v8879 = vsub.f32 %v8782, %v8868
  %v8880 = vsub.f32 %v8783, %v8868
  %v8881 = vsub.f32 %v8784, %v8868
  %v8882 = vsub.f32 %v8785, %v8868
  %v8883 = vsub.f32 %v8786, %v8868
  %v8884 = vsub.f32 %v8787, %v8868
  %v8885 = vsub.f32 %v8788, %v8868
  %v8886 = vsub.f32 %v8789, %v8868
  %v8887 = vsub.f32 %v8790, %v8868
  %v8888 = vsub.f32 %v8791, %v8868
  %v8889 = vsub.f32 %v8792, %v8868
  %v8890 = vsub.f32 %v8793, %v8868
  %v8891 = vsub.f32 %v8794, %v8868
  %v8892 = vsub.f32 %v8795, %v8868
  %v8893 = vsub.f32 %v8796, %v8868
  %v8894 = vsub.f32 %v8797, %v8868
  %v8895 = vsub.f32 %v8798, %v8868
  %v8896 = vsub.f32 %v8799, %v8868
  %v8897 = vmul.f32 %v8869, %v8869
  %v8898 = vmul.f32 %v8870, %v8870
  %v8899 = vmul.f32 %v8871, %v8871
  %v8900 = vmul.f32 %v8872, %v8872
  %v8901 = vmul.f32 %v8873, %v8873
  %v8902 = vmul.f32 %v8874, %v8874
  %v8903 = vmul.f32 %v8875, %v8875
  %v8904 = vmul.f32 %v8876, %v8876
  %v8905 = vmul.f32 %v8877, %v8877
  %v8906 = vmul.f32 %v8878, %v8878
  %v8907 = vmul.f32 %v8879, %v8879
  %v8908 = vmul.f32 %v8880, %v8880
  %v8909 = vmul.f32 %v8881, %v8881
  %v8910 = vmul.f32 %v8882, %v8882
  %v8911 = vmul.f32 %v8883, %v8883
  %v8912 = vmul.f32 %v8884, %v8884
  %v8913 = vmul.f32 %v8885, %v8885
  %v8914 = vmul.f32 %v8886, %v8886
  %v8915 = vmul.f32 %v8887, %v8887
  %v8916 = vmul.f32 %v8888, %v8888
  %v8917 = vmul.f32 %v8889, %v8889
  %v8918 = vmul.f32 %v8890, %v8890
  %v8919 = vmul.f32 %v8891, %v8891
  %v8920 = vmul.f32 %v8892, %v8892
  %v8921 = vmul.f32 %v8893, %v8893
  %v8922 = vmul.f32 %v8894, %v8894
  %v8923 = vmul.f32 %v8895, %v8895
  %v8924 = vmul.f32 %v8896, %v8896
  %v8925 = vsel %vm2852, %v8897, 0.0
  %v8926 = vsel %vm2852, %v8898, 0.0
  %v8927 = vadd.f32 %v8925, %v8926
  %v8928 = vsel %vm2852, %v8899, 0.0
  %v8929 = vadd.f32 %v8927, %v8928
  %v8930 = vsel %vm2852, %v8900, 0.0
  %v8931 = vadd.f32 %v8929, %v8930
  %v8932 = vsel %vm2852, %v8901, 0.0
  %v8933 = vadd.f32 %v8931, %v8932
  %v8934 = vsel %vm2852, %v8902, 0.0
  %v8935 = vadd.f32 %v8933, %v8934
  %v8936 = vsel %vm2852, %v8903, 0.0
  %v8937 = vadd.f32 %v8935, %v8936
  %v8938 = vsel %vm2852, %v8904, 0.0
  %v8939 = vadd.f32 %v8937, %v8938
  %v8940 = vsel %vm2852, %v8905, 0.0
  %v8941 = vadd.f32 %v8939, %v8940
  %v8942 = vsel %vm2852, %v8906, 0.0
  %v8943 = vadd.f32 %v8941, %v8942
  %v8944 = vsel %vm2852, %v8907, 0.0
  %v8945 = vadd.f32 %v8943, %v8944
  %v8946 = vsel %vm2852, %v8908, 0.0
  %v8947 = vadd.f32 %v8945, %v8946
  %v8948 = vsel %vm2852, %v8909, 0.0
  %v8949 = vadd.f32 %v8947, %v8948
  %v8950 = vsel %vm2852, %v8910, 0.0
  %v8951 = vadd.f32 %v8949, %v8950
  %v8952 = vsel %vm2852, %v8911, 0.0
  %v8953 = vadd.f32 %v8951, %v8952
  %v8954 = vsel %vm2852, %v8912, 0.0
  %v8955 = vadd.f32 %v8953, %v8954
  %v8956 = vsel %vm2852, %v8913, 0.0
  %v8957 = vadd.f32 %v8955, %v8956
  %v8958 = vsel %vm2852, %v8914, 0.0
  %v8959 = vadd.f32 %v8957, %v8958
  %v8960 = vsel %vm2852, %v8915, 0.0
  %v8961 = vadd.f32 %v8959, %v8960
  %v8962 = vsel %vm2852, %v8916, 0.0
  %v8963 = vadd.f32 %v8961, %v8962
  %v8964 = vsel %vm2852, %v8917, 0.0
  %v8965 = vadd.f32 %v8963, %v8964
  %v8966 = vsel %vm2852, %v8918, 0.0
  %v8967 = vadd.f32 %v8965, %v8966
  %v8968 = vsel %vm2852, %v8919, 0.0
  %v8969 = vadd.f32 %v8967, %v8968
  %v8970 = vsel %vm2852, %v8920, 0.0
  %v8971 = vadd.f32 %v8969, %v8970
  %v8972 = vsel %vm2852, %v8921, 0.0
  %v8973 = vadd.f32 %v8971, %v8972
  %v8974 = vsel %vm2852, %v8922, 0.0
  %v8975 = vadd.f32 %v8973, %v8974
  %v8976 = vsel %vm2852, %v8923, 0.0
  %v8977 = vadd.f32 %v8975, %v8976
  %v8978 = vsel %vm2852, %v8924, 0.0
  %v8979 = vadd.f32 %v8977, %v8978
  %v8980 = vrot.slane %v8979, 4
  %v8981 = vadd.f32 %v8979, %v8980
  %v8982 = vrot.slane %v8981, 2
  %v8983 = vadd.f32 %v8981, %v8982
  %v8984 = vrot.slane %v8983, 1
  %v8985 = vadd.f32 %v8983, %v8984
  %v8986 = vmul.f32 %v8985, %v8867
  %v8987 = vadd.f32 %v8986, 1e-05
  %v8988 = vrsqrt.pop %v8987
  %v8989 = vmul.f32 %v8988, %v8987
  %v8990 = vmul.f32 %v8989, %v8988
  %v8991 = vmul.f32 0.5, %v8990
  %v8992 = vsub.f32 1.5, %v8991
  %v8993 = vmul.f32 %v8988, %v8992
  %vm8994 = vweird.f32 %v8987
  %vm8995 = vweird.f32 %v8988
  %vm8996 = vmor %vm8994, %vm8995
  %v8997 = vsel %vm8996, %v8988, %v8993
  %v8998 = vmul.f32 %v8869, %v8997
  %v8999 = vmul.f32 %v8870, %v8997
  %v9000 = vmul.f32 %v8871, %v8997
  %v9001 = vmul.f32 %v8872, %v8997
  %v9002 = vmul.f32 %v8873, %v8997
  %v9003 = vmul.f32 %v8874, %v8997
  %v9004 = vmul.f32 %v8875, %v8997
  %v9005 = vmul.f32 %v8876, %v8997
  %v9006 = vmul.f32 %v8877, %v8997
  %v9007 = vmul.f32 %v8878, %v8997
  %v9008 = vmul.f32 %v8879, %v8997
  %v9009 = vmul.f32 %v8880, %v8997
  %v9010 = vmul.f32 %v8881, %v8997
  %v9011 = vmul.f32 %v8882, %v8997
  %v9012 = vmul.f32 %v8883, %v8997
  %v9013 = vmul.f32 %v8884, %v8997
  %v9014 = vmul.f32 %v8885, %v8997
  %v9015 = vmul.f32 %v8886, %v8997
  %v9016 = vmul.f32 %v8887, %v8997
  %v9017 = vmul.f32 %v8888, %v8997
  %v9018 = vmul.f32 %v8889, %v8997
  %v9019 = vmul.f32 %v8890, %v8997
  %v9020 = vmul.f32 %v8891, %v8997
  %v9021 = vmul.f32 %v8892, %v8997
  %v9022 = vmul.f32 %v8893, %v8997
  %v9023 = vmul.f32 %v8894, %v8997
  %v9024 = vmul.f32 %v8895, %v8997
  %v9025 = vmul.f32 %v8896, %v8997
  %v9026 = vld [vmem:[%s20] sm:$0x1]
  %v9028 = vperm.slane %v9026, 0
  %v9030 = vmul.f32 %v8998, %v9028
  %v9031 = vmul.f32 %v8999, %v9028
  %v9032 = vmul.f32 %v9000, %v9028
  %v9033 = vmul.f32 %v9001, %v9028
  %v9034 = vmul.f32 %v9002, %v9028
  %v9035 = vmul.f32 %v9003, %v9028
  %v9036 = vmul.f32 %v9004, %v9028
  %v9037 = vmul.f32 %v9005, %v9028
  %v9038 = vmul.f32 %v9006, %v9028
  %v9039 = vmul.f32 %v9007, %v9028
  %v9040 = vmul.f32 %v9008, %v9028
  %v9041 = vmul.f32 %v9009, %v9028
  %v9042 = vmul.f32 %v9010, %v9028
  %v9043 = vmul.f32 %v9011, %v9028
  %v9044 = vmul.f32 %v9012, %v9028
  %v9045 = vmul.f32 %v9013, %v9028
  %v9046 = vmul.f32 %v9014, %v9028
  %v9047 = vmul.f32 %v9015, %v9028
  %v9048 = vmul.f32 %v9016, %v9028
  %v9049 = vmul.f32 %v9017, %v9028
  %v9050 = vmul.f32 %v9018, %v9028
  %v9051 = vmul.f32 %v9019, %v9028
  %v9052 = vmul.f32 %v9020, %v9028
  %v9053 = vmul.f32 %v9021, %v9028
  %v9054 = vmul.f32 %v9022, %v9028
  %v9055 = vmul.f32 %v9023, %v9028
  %v9056 = vmul.f32 %v9024, %v9028
  %v9057 = vmul.f32 %v9025, %v9028
  %v9058 = vld [vmem:[%s21] sm:$0x1]
  %v9060 = vperm.slane %v9058, 0
  %v9062 = vadd.f32 %v9030, %v9060
  %v9063 = vadd.f32 %v9031, %v9060
  %v9064 = vadd.f32 %v9032, %v9060
  %v9065 = vadd.f32 %v9033, %v9060
  %v9066 = vadd.f32 %v9034, %v9060
  %v9067 = vadd.f32 %v9035, %v9060
  %v9068 = vadd.f32 %v9036, %v9060
  %v9069 = vadd.f32 %v9037, %v9060
  %v9070 = vadd.f32 %v9038, %v9060
  %v9071 = vadd.f32 %v9039, %v9060
  %v9072 = vadd.f32 %v9040, %v9060
  %v9073 = vadd.f32 %v9041, %v9060
  %v9074 = vadd.f32 %v9042, %v9060
  %v9075 = vadd.f32 %v9043, %v9060
  %v9076 = vadd.f32 %v9044, %v9060
  %v9077 = vadd.f32 %v9045, %v9060
  %v9078 = vadd.f32 %v9046, %v9060
  %v9079 = vadd.f32 %v9047, %v9060
  %v9080 = vadd.f32 %v9048, %v9060
  %v9081 = vadd.f32 %v9049, %v9060
  %v9082 = vadd.f32 %v9050, %v9060
  %v9083 = vadd.f32 %v9051, %v9060
  %v9084 = vadd.f32 %v9052, %v9060
  %v9085 = vadd.f32 %v9053, %v9060
  %v9086 = vadd.f32 %v9054, %v9060
  %v9087 = vadd.f32 %v9055, %v9060
  %v9088 = vadd.f32 %v9056, %v9060
  %v9089 = vadd.f32 %v9057, %v9060
  %s9090 = scalar_lea.vmem %s12, 64
  %v9091 = vld [vmem:[%s9090] sm:$0xff]
  %v9092 = vld [vmem:[%s9090 + $0x8] sm:$0xff]
  %v9093 = vld [vmem:[%s9090 + $0x10] sm:$0xff]
  %v9094 = vld [vmem:[%s9090 + $0x18] sm:$0xff]
  %s9095 = scalar_lea.vmem %s12, 96
  %v9096 = vld [vmem:[%s9095] sm:$0xff]
  %v9097 = vld [vmem:[%s9095 + $0x8] sm:$0xff]
  %v9098 = vld [vmem:[%s9095 + $0x10] sm:$0xff]
  %v9099 = vld [vmem:[%s9095 + $0x18] sm:$0xff]
  %v9101 = vsel %vm2852, %v9070, 0
  %v9104 = vsel %vm2852, %v9071, 0
  %v9107 = vsel %vm2852, %v9072, 0
  %v9110 = vsel %vm2852, %v9073, 0
  %v9113 = vsel %vm2852, %v9074, 0
  %v9116 = vsel %vm2852, %v9075, 0
  %v9119 = vsel %vm2852, %v9076, 0
  %v9122 = vsel %vm2852, %v9077, 0
  %v9125 = vsel %vm2852, %v9078, 0
  %v9128 = vsel %vm2852, %v9079, 0
  %v9131 = vsel %vm2852, %v9080, 0
  %v9134 = vsel %vm2852, %v9081, 0
  %v9137 = vsel %vm2852, %v9082, 0
  %v9140 = vsel %vm2852, %v9083, 0
  %v9143 = vsel %vm2852, %v9084, 0
  %v9146 = vsel %vm2852, %v9085, 0
  %v9149 = vsel %vm2852, %v9086, 0
  %v9152 = vsel %vm2852, %v9087, 0
  %v9155 = vsel %vm2852, %v9088, 0
  %v9158 = vsel %vm2852, %v9089, 0
  %9160 = vmatpush.msra.mxu0 0.0
  %9161 = vmatpush.msra.mxu0 0.0
  %9162 = vmatpush.msra.mxu0 0.0
  %9163 = vmatpush.msra.mxu0 0.0
  %9164 = vmatpush.msra.mxu0 0.0
  %9165 = vmatpush.msra.mxu0 0.0
  %9166 = vmatpush.msra.mxu0 0.0
  %9167 = vmatpush.msra.mxu0 0.0
  %9168 = vmatpush.msra.mxu0 0.0
  %9169 = vmatpush.msra.mxu0 0.0
  %9170 = vmatpush.msra.mxu0 0.0
  %9171 = vmatpush.msra.mxu0 0.0
  %9172 = vmatpush.msra.mxu0 %v9099
  %9173 = vmatpush.msra.mxu0 %v9098
  %9174 = vmatpush.msra.mxu0 %v9097
  %9175 = vmatpush.msra.mxu0 %v9096
  %9176 = vmatmul.f32.gmra.mxu0 %v9101
  %v9177 = vpop.f32.mrf.mxu0
  %v9178 = vadd.f32 0.0, %v9177
  %9179 = vmatmul.f32.gmra.mxu0 %v9104
  %v9180 = vpop.f32.mrf.mxu0
  %v9181 = vadd.f32 0.0, %v9180
  %9182 = vmatmul.f32.gmra.mxu0 %v9107
  %v9183 = vpop.f32.mrf.mxu0
  %v9184 = vadd.f32 0.0, %v9183
  %9185 = vmatmul.f32.gmra.mxu0 %v9110
  %v9186 = vpop.f32.mrf.mxu0
  %v9187 = vadd.f32 0.0, %v9186
  %9188 = vmatmul.f32.gmra.mxu0 %v9113
  %v9189 = vpop.f32.mrf.mxu0
  %v9190 = vadd.f32 0.0, %v9189
  %9191 = vmatmul.f32.gmra.mxu0 %v9116
  %v9192 = vpop.f32.mrf.mxu0
  %v9193 = vadd.f32 0.0, %v9192
  %9194 = vmatmul.f32.gmra.mxu0 %v9119
  %v9195 = vpop.f32.mrf.mxu0
  %v9196 = vadd.f32 0.0, %v9195
  %9197 = vmatmul.f32.gmra.mxu0 %v9122
  %v9198 = vpop.f32.mrf.mxu0
  %v9199 = vadd.f32 0.0, %v9198
  %9200 = vmatmul.f32.gmra.mxu0 %v9125
  %v9201 = vpop.f32.mrf.mxu0
  %v9202 = vadd.f32 0.0, %v9201
  %9203 = vmatmul.f32.gmra.mxu0 %v9128
  %v9204 = vpop.f32.mrf.mxu0
  %v9205 = vadd.f32 0.0, %v9204
  %9206 = vmatmul.f32.gmra.mxu0 %v9131
  %v9207 = vpop.f32.mrf.mxu0
  %v9208 = vadd.f32 0.0, %v9207
  %9209 = vmatmul.f32.gmra.mxu0 %v9134
  %v9210 = vpop.f32.mrf.mxu0
  %v9211 = vadd.f32 0.0, %v9210
  %9212 = vmatmul.f32.gmra.mxu0 %v9137
  %v9213 = vpop.f32.mrf.mxu0
  %v9214 = vadd.f32 0.0, %v9213
  %9215 = vmatmul.f32.gmra.mxu0 %v9140
  %v9216 = vpop.f32.mrf.mxu0
  %v9217 = vadd.f32 0.0, %v9216
  %9218 = vmatmul.f32.gmra.mxu0 %v9143
  %v9219 = vpop.f32.mrf.mxu0
  %v9220 = vadd.f32 0.0, %v9219
  %9221 = vmatmul.f32.gmra.mxu0 %v9146
  %v9222 = vpop.f32.mrf.mxu0
  %v9223 = vadd.f32 0.0, %v9222
  %9224 = vmatmul.f32.gmra.mxu0 %v9149
  %v9225 = vpop.f32.mrf.mxu0
  %v9226 = vadd.f32 0.0, %v9225
  %9227 = vmatmul.f32.gmra.mxu0 %v9152
  %v9228 = vpop.f32.mrf.mxu0
  %v9229 = vadd.f32 0.0, %v9228
  %9230 = vmatmul.f32.gmra.mxu0 %v9155
  %v9231 = vpop.f32.mrf.mxu0
  %v9232 = vadd.f32 0.0, %v9231
  %9233 = vmatmul.f32.gmra.mxu0 %v9158
  %v9234 = vpop.f32.mrf.mxu0
  %v9235 = vadd.f32 0.0, %v9234
  %9236 = vdwg.mxu0
  %v9238 = vsel %vm2852, %v9062, 0
  %v9241 = vsel %vm2852, %v9063, 0
  %v9244 = vsel %vm2852, %v9064, 0
  %v9247 = vsel %vm2852, %v9065, 0
  %v9250 = vsel %vm2852, %v9066, 0
  %v9253 = vsel %vm2852, %v9067, 0
  %v9256 = vsel %vm2852, %v9068, 0
  %v9259 = vsel %vm2852, %v9069, 0
  %9261 = vmatpush.msra.mxu0 0.0
  %9262 = vmatpush.msra.mxu0 0.0
  %9263 = vmatpush.msra.mxu0 0.0
  %9264 = vmatpush.msra.mxu0 0.0
  %9265 = vmatpush.msra.mxu0 0.0
  %9266 = vmatpush.msra.mxu0 0.0
  %9267 = vmatpush.msra.mxu0 0.0
  %9268 = vmatpush.msra.mxu0 0.0
  %9269 = vmatpush.msra.mxu0 0.0
  %9270 = vmatpush.msra.mxu0 0.0
  %9271 = vmatpush.msra.mxu0 0.0
  %9272 = vmatpush.msra.mxu0 0.0
  %9273 = vmatpush.msra.mxu0 %v9094
  %9274 = vmatpush.msra.mxu0 %v9093
  %9275 = vmatpush.msra.mxu0 %v9092
  %9276 = vmatpush.msra.mxu0 %v9091
  %9277 = vmatmul.f32.gmra.mxu0 %v9238
  %v9278 = vpop.f32.mrf.mxu0
  %v9279 = vadd.f32 %v9178, %v9278
  %9280 = vmatmul.f32.gmra.mxu0 %v9241
  %v9281 = vpop.f32.mrf.mxu0
  %v9282 = vadd.f32 %v9181, %v9281
  %9283 = vmatmul.f32.gmra.mxu0 %v9244
  %v9284 = vpop.f32.mrf.mxu0
  %v9285 = vadd.f32 %v9184, %v9284
  %9286 = vmatmul.f32.gmra.mxu0 %v9247
  %v9287 = vpop.f32.mrf.mxu0
  %v9288 = vadd.f32 %v9187, %v9287
  %9289 = vmatmul.f32.gmra.mxu0 %v9250
  %v9290 = vpop.f32.mrf.mxu0
  %v9291 = vadd.f32 %v9190, %v9290
  %9292 = vmatmul.f32.gmra.mxu0 %v9253
  %v9293 = vpop.f32.mrf.mxu0
  %v9294 = vadd.f32 %v9193, %v9293
  %9295 = vmatmul.f32.gmra.mxu0 %v9256
  %v9296 = vpop.f32.mrf.mxu0
  %v9297 = vadd.f32 %v9196, %v9296
  %9298 = vmatmul.f32.gmra.mxu0 %v9259
  %v9299 = vpop.f32.mrf.mxu0
  %v9300 = vadd.f32 %v9199, %v9299
  %9301 = vmatmul.f32.gmra.mxu0 %v9101
  %v9302 = vpop.f32.mrf.mxu0
  %v9303 = vadd.f32 %v9202, %v9302
  %9304 = vmatmul.f32.gmra.mxu0 %v9104
  %v9305 = vpop.f32.mrf.mxu0
  %v9306 = vadd.f32 %v9205, %v9305
  %9307 = vmatmul.f32.gmra.mxu0 %v9107
  %v9308 = vpop.f32.mrf.mxu0
  %v9309 = vadd.f32 %v9208, %v9308
  %9310 = vmatmul.f32.gmra.mxu0 %v9110
  %v9311 = vpop.f32.mrf.mxu0
  %v9312 = vadd.f32 %v9211, %v9311
  %9313 = vmatmul.f32.gmra.mxu0 %v9113
  %v9314 = vpop.f32.mrf.mxu0
  %v9315 = vadd.f32 %v9214, %v9314
  %9316 = vmatmul.f32.gmra.mxu0 %v9116
  %v9317 = vpop.f32.mrf.mxu0
  %v9318 = vadd.f32 %v9217, %v9317
  %9319 = vmatmul.f32.gmra.mxu0 %v9119
  %v9320 = vpop.f32.mrf.mxu0
  %v9321 = vadd.f32 %v9220, %v9320
  %9322 = vmatmul.f32.gmra.mxu0 %v9122
  %v9323 = vpop.f32.mrf.mxu0
  %v9324 = vadd.f32 %v9223, %v9323
  %9325 = vmatmul.f32.gmra.mxu0 %v9125
  %v9326 = vpop.f32.mrf.mxu0
  %v9327 = vadd.f32 %v9226, %v9326
  %9328 = vmatmul.f32.gmra.mxu0 %v9128
  %v9329 = vpop.f32.mrf.mxu0
  %v9330 = vadd.f32 %v9229, %v9329
  %9331 = vmatmul.f32.gmra.mxu0 %v9131
  %v9332 = vpop.f32.mrf.mxu0
  %v9333 = vadd.f32 %v9232, %v9332
  %9334 = vmatmul.f32.gmra.mxu0 %v9134
  %v9335 = vpop.f32.mrf.mxu0
  %v9336 = vadd.f32 %v9235, %v9335
  %9337 = vdwg.mxu0
  %s9338 = scalar_lea.vmem %s13, 1
  %v9339 = vld [vmem:[%s9338] sm:$0x1]
  %v9341 = vperm.slane %v9339, 0
  %v9343 = vadd.f32 %v9279, %v9341
  %v9344 = vadd.f32 %v9282, %v9341
  %v9345 = vadd.f32 %v9285, %v9341
  %v9346 = vadd.f32 %v9288, %v9341
  %v9347 = vadd.f32 %v9291, %v9341
  %v9348 = vadd.f32 %v9294, %v9341
  %v9349 = vadd.f32 %v9297, %v9341
  %v9350 = vadd.f32 %v9300, %v9341
  %v9351 = vadd.f32 %v9303, %v9341
  %v9352 = vadd.f32 %v9306, %v9341
  %v9353 = vadd.f32 %v9309, %v9341
  %v9354 = vadd.f32 %v9312, %v9341
  %v9355 = vadd.f32 %v9315, %v9341
  %v9356 = vadd.f32 %v9318, %v9341
  %v9357 = vadd.f32 %v9321, %v9341
  %v9358 = vadd.f32 %v9324, %v9341
  %v9359 = vadd.f32 %v9327, %v9341
  %v9360 = vadd.f32 %v9330, %v9341
  %v9361 = vadd.f32 %v9333, %v9341
  %v9362 = vadd.f32 %v9336, %v9341
  %v9363 = vtanh.pop %v9343
  %v9364 = vtanh.pop %v9344
  %v9365 = vtanh.pop %v9345
  %v9366 = vtanh.pop %v9346
  %v9367 = vtanh.pop %v9347
  %v9368 = vtanh.pop %v9348
  %v9369 = vtanh.pop %v9349
  %v9370 = vtanh.pop %v9350
  %v9371 = vtanh.pop %v9351
  %v9372 = vtanh.pop %v9352
  %v9373 = vtanh.pop %v9353
  %v9374 = vtanh.pop %v9354
  %v9375 = vtanh.pop %v9355
  %v9376 = vtanh.pop %v9356
  %v9377 = vtanh.pop %v9357
  %v9378 = vtanh.pop %v9358
  %v9379 = vtanh.pop %v9359
  %v9380 = vtanh.pop %v9360
  %v9381 = vtanh.pop %v9361
  %v9382 = vtanh.pop %v9362
  %s9383 = scalar_lea.vmem %s14, 64
  %v9384 = vld [vmem:[%s9383] sm:$0xff]
  %v9385 = vld [vmem:[%s9383 + $0x8] sm:$0xff]
  %v9386 = vld [vmem:[%s9383 + $0x10] sm:$0xff]
  %v9387 = vld [vmem:[%s9383 + $0x18] sm:$0xff]
  %s9388 = scalar_lea.vmem %s14, 96
  %v9389 = vld [vmem:[%s9388] sm:$0xff]
  %v9390 = vld [vmem:[%s9388 + $0x8] sm:$0xff]
  %v9391 = vld [vmem:[%s9388 + $0x10] sm:$0xff]
  %v9392 = vld [vmem:[%s9388 + $0x18] sm:$0xff]
  %9393 = vmatpush.msra.mxu0 0.0
  %9394 = vmatpush.msra.mxu0 0.0
  %9395 = vmatpush.msra.mxu0 0.0
  %9396 = vmatpush.msra.mxu0 0.0
  %9397 = vmatpush.msra.mxu0 0.0
  %9398 = vmatpush.msra.mxu0 0.0
  %9399 = vmatpush.msra.mxu0 0.0
  %9400 = vmatpush.msra.mxu0 0.0
  %9401 = vmatpush.msra.mxu0 0.0
  %9402 = vmatpush.msra.mxu0 0.0
  %9403 = vmatpush.msra.mxu0 0.0
  %9404 = vmatpush.msra.mxu0 0.0
  %9405 = vmatpush.msra.mxu0 %v9392
  %9406 = vmatpush.msra.mxu0 %v9391
  %9407 = vmatpush.msra.mxu0 %v9390
  %9408 = vmatpush.msra.mxu0 %v9389
  %9409 = vmatmul.f32.gmra.mxu0 %v9101
  %v9410 = vpop.f32.mrf.mxu0
  %v9411 = vadd.f32 0.0, %v9410
  %9412 = vmatmul.f32.gmra.mxu0 %v9104
  %v9413 = vpop.f32.mrf.mxu0
  %v9414 = vadd.f32 0.0, %v9413
  %9415 = vmatmul.f32.gmra.mxu0 %v9107
  %v9416 = vpop.f32.mrf.mxu0
  %v9417 = vadd.f32 0.0, %v9416
  %9418 = vmatmul.f32.gmra.mxu0 %v9110
  %v9419 = vpop.f32.mrf.mxu0
  %v9420 = vadd.f32 0.0, %v9419
  %9421 = vmatmul.f32.gmra.mxu0 %v9113
  %v9422 = vpop.f32.mrf.mxu0
  %v9423 = vadd.f32 0.0, %v9422
  %9424 = vmatmul.f32.gmra.mxu0 %v9116
  %v9425 = vpop.f32.mrf.mxu0
  %v9426 = vadd.f32 0.0, %v9425
  %9427 = vmatmul.f32.gmra.mxu0 %v9119
  %v9428 = vpop.f32.mrf.mxu0
  %v9429 = vadd.f32 0.0, %v9428
  %9430 = vmatmul.f32.gmra.mxu0 %v9122
  %v9431 = vpop.f32.mrf.mxu0
  %v9432 = vadd.f32 0.0, %v9431
  %9433 = vmatmul.f32.gmra.mxu0 %v9125
  %v9434 = vpop.f32.mrf.mxu0
  %v9435 = vadd.f32 0.0, %v9434
  %9436 = vmatmul.f32.gmra.mxu0 %v9128
  %v9437 = vpop.f32.mrf.mxu0
  %v9438 = vadd.f32 0.0, %v9437
  %9439 = vmatmul.f32.gmra.mxu0 %v9131
  %v9440 = vpop.f32.mrf.mxu0
  %v9441 = vadd.f32 0.0, %v9440
  %9442 = vmatmul.f32.gmra.mxu0 %v9134
  %v9443 = vpop.f32.mrf.mxu0
  %v9444 = vadd.f32 0.0, %v9443
  %9445 = vmatmul.f32.gmra.mxu0 %v9137
  %v9446 = vpop.f32.mrf.mxu0
  %v9447 = vadd.f32 0.0, %v9446
  %9448 = vmatmul.f32.gmra.mxu0 %v9140
  %v9449 = vpop.f32.mrf.mxu0
  %v9450 = vadd.f32 0.0, %v9449
  %9451 = vmatmul.f32.gmra.mxu0 %v9143
  %v9452 = vpop.f32.mrf.mxu0
  %v9453 = vadd.f32 0.0, %v9452
  %9454 = vmatmul.f32.gmra.mxu0 %v9146
  %v9455 = vpop.f32.mrf.mxu0
  %v9456 = vadd.f32 0.0, %v9455
  %9457 = vmatmul.f32.gmra.mxu0 %v9149
  %v9458 = vpop.f32.mrf.mxu0
  %v9459 = vadd.f32 0.0, %v9458
  %9460 = vmatmul.f32.gmra.mxu0 %v9152
  %v9461 = vpop.f32.mrf.mxu0
  %v9462 = vadd.f32 0.0, %v9461
  %9463 = vmatmul.f32.gmra.mxu0 %v9155
  %v9464 = vpop.f32.mrf.mxu0
  %v9465 = vadd.f32 0.0, %v9464
  %9466 = vmatmul.f32.gmra.mxu0 %v9158
  %v9467 = vpop.f32.mrf.mxu0
  %v9468 = vadd.f32 0.0, %v9467
  %9469 = vdwg.mxu0
  %9470 = vmatpush.msra.mxu0 0.0
  %9471 = vmatpush.msra.mxu0 0.0
  %9472 = vmatpush.msra.mxu0 0.0
  %9473 = vmatpush.msra.mxu0 0.0
  %9474 = vmatpush.msra.mxu0 0.0
  %9475 = vmatpush.msra.mxu0 0.0
  %9476 = vmatpush.msra.mxu0 0.0
  %9477 = vmatpush.msra.mxu0 0.0
  %9478 = vmatpush.msra.mxu0 0.0
  %9479 = vmatpush.msra.mxu0 0.0
  %9480 = vmatpush.msra.mxu0 0.0
  %9481 = vmatpush.msra.mxu0 0.0
  %9482 = vmatpush.msra.mxu0 %v9387
  %9483 = vmatpush.msra.mxu0 %v9386
  %9484 = vmatpush.msra.mxu0 %v9385
  %9485 = vmatpush.msra.mxu0 %v9384
  %9486 = vmatmul.f32.gmra.mxu0 %v9238
  %v9487 = vpop.f32.mrf.mxu0
  %v9488 = vadd.f32 %v9411, %v9487
  %9489 = vmatmul.f32.gmra.mxu0 %v9241
  %v9490 = vpop.f32.mrf.mxu0
  %v9491 = vadd.f32 %v9414, %v9490
  %9492 = vmatmul.f32.gmra.mxu0 %v9244
  %v9493 = vpop.f32.mrf.mxu0
  %v9494 = vadd.f32 %v9417, %v9493
  %9495 = vmatmul.f32.gmra.mxu0 %v9247
  %v9496 = vpop.f32.mrf.mxu0
  %v9497 = vadd.f32 %v9420, %v9496
  %9498 = vmatmul.f32.gmra.mxu0 %v9250
  %v9499 = vpop.f32.mrf.mxu0
  %v9500 = vadd.f32 %v9423, %v9499
  %9501 = vmatmul.f32.gmra.mxu0 %v9253
  %v9502 = vpop.f32.mrf.mxu0
  %v9503 = vadd.f32 %v9426, %v9502
  %9504 = vmatmul.f32.gmra.mxu0 %v9256
  %v9505 = vpop.f32.mrf.mxu0
  %v9506 = vadd.f32 %v9429, %v9505
  %9507 = vmatmul.f32.gmra.mxu0 %v9259
  %v9508 = vpop.f32.mrf.mxu0
  %v9509 = vadd.f32 %v9432, %v9508
  %9510 = vmatmul.f32.gmra.mxu0 %v9101
  %v9511 = vpop.f32.mrf.mxu0
  %v9512 = vadd.f32 %v9435, %v9511
  %9513 = vmatmul.f32.gmra.mxu0 %v9104
  %v9514 = vpop.f32.mrf.mxu0
  %v9515 = vadd.f32 %v9438, %v9514
  %9516 = vmatmul.f32.gmra.mxu0 %v9107
  %v9517 = vpop.f32.mrf.mxu0
  %v9518 = vadd.f32 %v9441, %v9517
  %9519 = vmatmul.f32.gmra.mxu0 %v9110
  %v9520 = vpop.f32.mrf.mxu0
  %v9521 = vadd.f32 %v9444, %v9520
  %9522 = vmatmul.f32.gmra.mxu0 %v9113
  %v9523 = vpop.f32.mrf.mxu0
  %v9524 = vadd.f32 %v9447, %v9523
  %9525 = vmatmul.f32.gmra.mxu0 %v9116
  %v9526 = vpop.f32.mrf.mxu0
  %v9527 = vadd.f32 %v9450, %v9526
  %9528 = vmatmul.f32.gmra.mxu0 %v9119
  %v9529 = vpop.f32.mrf.mxu0
  %v9530 = vadd.f32 %v9453, %v9529
  %9531 = vmatmul.f32.gmra.mxu0 %v9122
  %v9532 = vpop.f32.mrf.mxu0
  %v9533 = vadd.f32 %v9456, %v9532
  %9534 = vmatmul.f32.gmra.mxu0 %v9125
  %v9535 = vpop.f32.mrf.mxu0
  %v9536 = vadd.f32 %v9459, %v9535
  %9537 = vmatmul.f32.gmra.mxu0 %v9128
  %v9538 = vpop.f32.mrf.mxu0
  %v9539 = vadd.f32 %v9462, %v9538
  %9540 = vmatmul.f32.gmra.mxu0 %v9131
  %v9541 = vpop.f32.mrf.mxu0
  %v9542 = vadd.f32 %v9465, %v9541
  %9543 = vmatmul.f32.gmra.mxu0 %v9134
  %v9544 = vpop.f32.mrf.mxu0
  %v9545 = vadd.f32 %v9468, %v9544
  %9546 = vdwg.mxu0
  %s9547 = scalar_lea.vmem %s15, 1
  %v9548 = vld [vmem:[%s9547] sm:$0x1]
  %v9550 = vperm.slane %v9548, 0
  %v9552 = vadd.f32 %v9488, %v9550
  %v9553 = vadd.f32 %v9491, %v9550
  %v9554 = vadd.f32 %v9494, %v9550
  %v9555 = vadd.f32 %v9497, %v9550
  %v9556 = vadd.f32 %v9500, %v9550
  %v9557 = vadd.f32 %v9503, %v9550
  %v9558 = vadd.f32 %v9506, %v9550
  %v9559 = vadd.f32 %v9509, %v9550
  %v9560 = vadd.f32 %v9512, %v9550
  %v9561 = vadd.f32 %v9515, %v9550
  %v9562 = vadd.f32 %v9518, %v9550
  %v9563 = vadd.f32 %v9521, %v9550
  %v9564 = vadd.f32 %v9524, %v9550
  %v9565 = vadd.f32 %v9527, %v9550
  %v9566 = vadd.f32 %v9530, %v9550
  %v9567 = vadd.f32 %v9533, %v9550
  %v9568 = vadd.f32 %v9536, %v9550
  %v9569 = vadd.f32 %v9539, %v9550
  %v9570 = vadd.f32 %v9542, %v9550
  %v9571 = vadd.f32 %v9545, %v9550
  %v9572 = vxor.u32 %v9552, 2147483648
  %v9573 = vxor.u32 %v9553, 2147483648
  %v9574 = vxor.u32 %v9554, 2147483648
  %v9575 = vxor.u32 %v9555, 2147483648
  %v9576 = vxor.u32 %v9556, 2147483648
  %v9577 = vxor.u32 %v9557, 2147483648
  %v9578 = vxor.u32 %v9558, 2147483648
  %v9579 = vxor.u32 %v9559, 2147483648
  %v9580 = vxor.u32 %v9560, 2147483648
  %v9581 = vxor.u32 %v9561, 2147483648
  %v9582 = vxor.u32 %v9562, 2147483648
  %v9583 = vxor.u32 %v9563, 2147483648
  %v9584 = vxor.u32 %v9564, 2147483648
  %v9585 = vxor.u32 %v9565, 2147483648
  %v9586 = vxor.u32 %v9566, 2147483648
  %v9587 = vxor.u32 %v9567, 2147483648
  %v9588 = vxor.u32 %v9568, 2147483648
  %v9589 = vxor.u32 %v9569, 2147483648
  %v9590 = vxor.u32 %v9570, 2147483648
  %v9591 = vxor.u32 %v9571, 2147483648
  %v9592 = vmul.f32 %v9572, 1.442695
  %v9593 = vpow.pop %v9592
  %v9594 = vmul.f32 %v9573, 1.442695
  %v9595 = vpow.pop %v9594
  %v9596 = vmul.f32 %v9574, 1.442695
  %v9597 = vpow.pop %v9596
  %v9598 = vmul.f32 %v9575, 1.442695
  %v9599 = vpow.pop %v9598
  %v9600 = vmul.f32 %v9576, 1.442695
  %v9601 = vpow.pop %v9600
  %v9602 = vmul.f32 %v9577, 1.442695
  %v9603 = vpow.pop %v9602
  %v9604 = vmul.f32 %v9578, 1.442695
  %v9605 = vpow.pop %v9604
  %v9606 = vmul.f32 %v9579, 1.442695
  %v9607 = vpow.pop %v9606
  %v9608 = vmul.f32 %v9580, 1.442695
  %v9609 = vpow.pop %v9608
  %v9610 = vmul.f32 %v9581, 1.442695
  %v9611 = vpow.pop %v9610
  %v9612 = vmul.f32 %v9582, 1.442695
  %v9613 = vpow.pop %v9612
  %v9614 = vmul.f32 %v9583, 1.442695
  %v9615 = vpow.pop %v9614
  %v9616 = vmul.f32 %v9584, 1.442695
  %v9617 = vpow.pop %v9616
  %v9618 = vmul.f32 %v9585, 1.442695
  %v9619 = vpow.pop %v9618
  %v9620 = vmul.f32 %v9586, 1.442695
  %v9621 = vpow.pop %v9620
  %v9622 = vmul.f32 %v9587, 1.442695
  %v9623 = vpow.pop %v9622
  %v9624 = vmul.f32 %v9588, 1.442695
  %v9625 = vpow.pop %v9624
  %v9626 = vmul.f32 %v9589, 1.442695
  %v9627 = vpow.pop %v9626
  %v9628 = vmul.f32 %v9590, 1.442695
  %v9629 = vpow.pop %v9628
  %v9630 = vmul.f32 %v9591, 1.442695
  %v9631 = vpow.pop %v9630
  %v9632 = vadd.f32 %v9593, 1.0
  %v9633 = vadd.f32 %v9595, 1.0
  %v9634 = vadd.f32 %v9597, 1.0
  %v9635 = vadd.f32 %v9599, 1.0
  %v9636 = vadd.f32 %v9601, 1.0
  %v9637 = vadd.f32 %v9603, 1.0
  %v9638 = vadd.f32 %v9605, 1.0
  %v9639 = vadd.f32 %v9607, 1.0
  %v9640 = vadd.f32 %v9609, 1.0
  %v9641 = vadd.f32 %v9611, 1.0
  %v9642 = vadd.f32 %v9613, 1.0
  %v9643 = vadd.f32 %v9615, 1.0
  %v9644 = vadd.f32 %v9617, 1.0
  %v9645 = vadd.f32 %v9619, 1.0
  %v9646 = vadd.f32 %v9621, 1.0
  %v9647 = vadd.f32 %v9623, 1.0
  %v9648 = vadd.f32 %v9625, 1.0
  %v9649 = vadd.f32 %v9627, 1.0
  %v9650 = vadd.f32 %v9629, 1.0
  %v9651 = vadd.f32 %v9631, 1.0
  %v9652 = vrcp.pop %v9632
  %v9653 = vmul.f32 %v9632, %v9652
  %v9654 = vsub.f32 1.0, %v9653
  %v9655 = vmul.f32 %v9652, %v9654
  %v9656 = vadd.f32 %v9652, %v9655
  %vm9657 = vweird.f32 %v9632
  %vm9658 = vweird.f32 %v9652
  %vm9659 = vmor %vm9657, %vm9658
  %v9660 = vsel %vm9659, %v9652, %v9656
  %v9661 = vand.u32 2147483647, %v9632
  %vm9662 = vcmp.eq.f32.partialorder %v9661, 8.507059e+37
  %v9663 = vand.u32 %v9632, 2147483648
  %v9664 = vor.u32 1.1754944e-38, %v9663
  %v9665 = vsel %vm9662, %v9664, %v9660
  %v9666 = vmul.f32 1.0, %v9665
  %v9667 = vrcp.pop %v9633
  %v9668 = vmul.f32 %v9633, %v9667
  %v9669 = vsub.f32 1.0, %v9668
  %v9670 = vmul.f32 %v9667, %v9669
  %v9671 = vadd.f32 %v9667, %v9670
  %vm9672 = vweird.f32 %v9633
  %vm9673 = vweird.f32 %v9667
  %vm9674 = vmor %vm9672, %vm9673
  %v9675 = vsel %vm9674, %v9667, %v9671
  %v9676 = vand.u32 2147483647, %v9633
  %vm9677 = vcmp.eq.f32.partialorder %v9676, 8.507059e+37
  %v9678 = vand.u32 %v9633, 2147483648
  %v9679 = vor.u32 1.1754944e-38, %v9678
  %v9680 = vsel %vm9677, %v9679, %v9675
  %v9681 = vmul.f32 1.0, %v9680
  %v9682 = vrcp.pop %v9634
  %v9683 = vmul.f32 %v9634, %v9682
  %v9684 = vsub.f32 1.0, %v9683
  %v9685 = vmul.f32 %v9682, %v9684
  %v9686 = vadd.f32 %v9682, %v9685
  %vm9687 = vweird.f32 %v9634
  %vm9688 = vweird.f32 %v9682
  %vm9689 = vmor %vm9687, %vm9688
  %v9690 = vsel %vm9689, %v9682, %v9686
  %v9691 = vand.u32 2147483647, %v9634
  %vm9692 = vcmp.eq.f32.partialorder %v9691, 8.507059e+37
  %v9693 = vand.u32 %v9634, 2147483648
  %v9694 = vor.u32 1.1754944e-38, %v9693
  %v9695 = vsel %vm9692, %v9694, %v9690
  %v9696 = vmul.f32 1.0, %v9695
  %v9697 = vrcp.pop %v9635
  %v9698 = vmul.f32 %v9635, %v9697
  %v9699 = vsub.f32 1.0, %v9698
  %v9700 = vmul.f32 %v9697, %v9699
  %v9701 = vadd.f32 %v9697, %v9700
  %vm9702 = vweird.f32 %v9635
  %vm9703 = vweird.f32 %v9697
  %vm9704 = vmor %vm9702, %vm9703
  %v9705 = vsel %vm9704, %v9697, %v9701
  %v9706 = vand.u32 2147483647, %v9635
  %vm9707 = vcmp.eq.f32.partialorder %v9706, 8.507059e+37
  %v9708 = vand.u32 %v9635, 2147483648
  %v9709 = vor.u32 1.1754944e-38, %v9708
  %v9710 = vsel %vm9707, %v9709, %v9705
  %v9711 = vmul.f32 1.0, %v9710
  %v9712 = vrcp.pop %v9636
  %v9713 = vmul.f32 %v9636, %v9712
  %v9714 = vsub.f32 1.0, %v9713
  %v9715 = vmul.f32 %v9712, %v9714
  %v9716 = vadd.f32 %v9712, %v9715
  %vm9717 = vweird.f32 %v9636
  %vm9718 = vweird.f32 %v9712
  %vm9719 = vmor %vm9717, %vm9718
  %v9720 = vsel %vm9719, %v9712, %v9716
  %v9721 = vand.u32 2147483647, %v9636
  %vm9722 = vcmp.eq.f32.partialorder %v9721, 8.507059e+37
  %v9723 = vand.u32 %v9636, 2147483648
  %v9724 = vor.u32 1.1754944e-38, %v9723
  %v9725 = vsel %vm9722, %v9724, %v9720
  %v9726 = vmul.f32 1.0, %v9725
  %v9727 = vrcp.pop %v9637
  %v9728 = vmul.f32 %v9637, %v9727
  %v9729 = vsub.f32 1.0, %v9728
  %v9730 = vmul.f32 %v9727, %v9729
  %v9731 = vadd.f32 %v9727, %v9730
  %vm9732 = vweird.f32 %v9637
  %vm9733 = vweird.f32 %v9727
  %vm9734 = vmor %vm9732, %vm9733
  %v9735 = vsel %vm9734, %v9727, %v9731
  %v9736 = vand.u32 2147483647, %v9637
  %vm9737 = vcmp.eq.f32.partialorder %v9736, 8.507059e+37
  %v9738 = vand.u32 %v9637, 2147483648
  %v9739 = vor.u32 1.1754944e-38, %v9738
  %v9740 = vsel %vm9737, %v9739, %v9735
  %v9741 = vmul.f32 1.0, %v9740
  %v9742 = vrcp.pop %v9638
  %v9743 = vmul.f32 %v9638, %v9742
  %v9744 = vsub.f32 1.0, %v9743
  %v9745 = vmul.f32 %v9742, %v9744
  %v9746 = vadd.f32 %v9742, %v9745
  %vm9747 = vweird.f32 %v9638
  %vm9748 = vweird.f32 %v9742
  %vm9749 = vmor %vm9747, %vm9748
  %v9750 = vsel %vm9749, %v9742, %v9746
  %v9751 = vand.u32 2147483647, %v9638
  %vm9752 = vcmp.eq.f32.partialorder %v9751, 8.507059e+37
  %v9753 = vand.u32 %v9638, 2147483648
  %v9754 = vor.u32 1.1754944e-38, %v9753
  %v9755 = vsel %vm9752, %v9754, %v9750
  %v9756 = vmul.f32 1.0, %v9755
  %v9757 = vrcp.pop %v9639
  %v9758 = vmul.f32 %v9639, %v9757
  %v9759 = vsub.f32 1.0, %v9758
  %v9760 = vmul.f32 %v9757, %v9759
  %v9761 = vadd.f32 %v9757, %v9760
  %vm9762 = vweird.f32 %v9639
  %vm9763 = vweird.f32 %v9757
  %vm9764 = vmor %vm9762, %vm9763
  %v9765 = vsel %vm9764, %v9757, %v9761
  %v9766 = vand.u32 2147483647, %v9639
  %vm9767 = vcmp.eq.f32.partialorder %v9766, 8.507059e+37
  %v9768 = vand.u32 %v9639, 2147483648
  %v9769 = vor.u32 1.1754944e-38, %v9768
  %v9770 = vsel %vm9767, %v9769, %v9765
  %v9771 = vmul.f32 1.0, %v9770
  %v9772 = vrcp.pop %v9640
  %v9773 = vmul.f32 %v9640, %v9772
  %v9774 = vsub.f32 1.0, %v9773
  %v9775 = vmul.f32 %v9772, %v9774
  %v9776 = vadd.f32 %v9772, %v9775
  %vm9777 = vweird.f32 %v9640
  %vm9778 = vweird.f32 %v9772
  %vm9779 = vmor %vm9777, %vm9778
  %v9780 = vsel %vm9779, %v9772, %v9776
  %v9781 = vand.u32 2147483647, %v9640
  %vm9782 = vcmp.eq.f32.partialorder %v9781, 8.507059e+37
  %v9783 = vand.u32 %v9640, 2147483648
  %v9784 = vor.u32 1.1754944e-38, %v9783
  %v9785 = vsel %vm9782, %v9784, %v9780
  %v9786 = vmul.f32 1.0, %v9785
  %v9787 = vrcp.pop %v9641
  %v9788 = vmul.f32 %v9641, %v9787
  %v9789 = vsub.f32 1.0, %v9788
  %v9790 = vmul.f32 %v9787, %v9789
  %v9791 = vadd.f32 %v9787, %v9790
  %vm9792 = vweird.f32 %v9641
  %vm9793 = vweird.f32 %v9787
  %vm9794 = vmor %vm9792, %vm9793
  %v9795 = vsel %vm9794, %v9787, %v9791
  %v9796 = vand.u32 2147483647, %v9641
  %vm9797 = vcmp.eq.f32.partialorder %v9796, 8.507059e+37
  %v9798 = vand.u32 %v9641, 2147483648
  %v9799 = vor.u32 1.1754944e-38, %v9798
  %v9800 = vsel %vm9797, %v9799, %v9795
  %v9801 = vmul.f32 1.0, %v9800
  %v9802 = vrcp.pop %v9642
  %v9803 = vmul.f32 %v9642, %v9802
  %v9804 = vsub.f32 1.0, %v9803
  %v9805 = vmul.f32 %v9802, %v9804
  %v9806 = vadd.f32 %v9802, %v9805
  %vm9807 = vweird.f32 %v9642
  %vm9808 = vweird.f32 %v9802
  %vm9809 = vmor %vm9807, %vm9808
  %v9810 = vsel %vm9809, %v9802, %v9806
  %v9811 = vand.u32 2147483647, %v9642
  %vm9812 = vcmp.eq.f32.partialorder %v9811, 8.507059e+37
  %v9813 = vand.u32 %v9642, 2147483648
  %v9814 = vor.u32 1.1754944e-38, %v9813
  %v9815 = vsel %vm9812, %v9814, %v9810
  %v9816 = vmul.f32 1.0, %v9815
  %v9817 = vrcp.pop %v9643
  %v9818 = vmul.f32 %v9643, %v9817
  %v9819 = vsub.f32 1.0, %v9818
  %v9820 = vmul.f32 %v9817, %v9819
  %v9821 = vadd.f32 %v9817, %v9820
  %vm9822 = vweird.f32 %v9643
  %vm9823 = vweird.f32 %v9817
  %vm9824 = vmor %vm9822, %vm9823
  %v9825 = vsel %vm9824, %v9817, %v9821
  %v9826 = vand.u32 2147483647, %v9643
  %vm9827 = vcmp.eq.f32.partialorder %v9826, 8.507059e+37
  %v9828 = vand.u32 %v9643, 2147483648
  %v9829 = vor.u32 1.1754944e-38, %v9828
  %v9830 = vsel %vm9827, %v9829, %v9825
  %v9831 = vmul.f32 1.0, %v9830
  %v9832 = vrcp.pop %v9644
  %v9833 = vmul.f32 %v9644, %v9832
  %v9834 = vsub.f32 1.0, %v9833
  %v9835 = vmul.f32 %v9832, %v9834
  %v9836 = vadd.f32 %v9832, %v9835
  %vm9837 = vweird.f32 %v9644
  %vm9838 = vweird.f32 %v9832
  %vm9839 = vmor %vm9837, %vm9838
  %v9840 = vsel %vm9839, %v9832, %v9836
  %v9841 = vand.u32 2147483647, %v9644
  %vm9842 = vcmp.eq.f32.partialorder %v9841, 8.507059e+37
  %v9843 = vand.u32 %v9644, 2147483648
  %v9844 = vor.u32 1.1754944e-38, %v9843
  %v9845 = vsel %vm9842, %v9844, %v9840
  %v9846 = vmul.f32 1.0, %v9845
  %v9847 = vrcp.pop %v9645
  %v9848 = vmul.f32 %v9645, %v9847
  %v9849 = vsub.f32 1.0, %v9848
  %v9850 = vmul.f32 %v9847, %v9849
  %v9851 = vadd.f32 %v9847, %v9850
  %vm9852 = vweird.f32 %v9645
  %vm9853 = vweird.f32 %v9847
  %vm9854 = vmor %vm9852, %vm9853
  %v9855 = vsel %vm9854, %v9847, %v9851
  %v9856 = vand.u32 2147483647, %v9645
  %vm9857 = vcmp.eq.f32.partialorder %v9856, 8.507059e+37
  %v9858 = vand.u32 %v9645, 2147483648
  %v9859 = vor.u32 1.1754944e-38, %v9858
  %v9860 = vsel %vm9857, %v9859, %v9855
  %v9861 = vmul.f32 1.0, %v9860
  %v9862 = vrcp.pop %v9646
  %v9863 = vmul.f32 %v9646, %v9862
  %v9864 = vsub.f32 1.0, %v9863
  %v9865 = vmul.f32 %v9862, %v9864
  %v9866 = vadd.f32 %v9862, %v9865
  %vm9867 = vweird.f32 %v9646
  %vm9868 = vweird.f32 %v9862
  %vm9869 = vmor %vm9867, %vm9868
  %v9870 = vsel %vm9869, %v9862, %v9866
  %v9871 = vand.u32 2147483647, %v9646
  %vm9872 = vcmp.eq.f32.partialorder %v9871, 8.507059e+37
  %v9873 = vand.u32 %v9646, 2147483648
  %v9874 = vor.u32 1.1754944e-38, %v9873
  %v9875 = vsel %vm9872, %v9874, %v9870
  %v9876 = vmul.f32 1.0, %v9875
  %v9877 = vrcp.pop %v9647
  %v9878 = vmul.f32 %v9647, %v9877
  %v9879 = vsub.f32 1.0, %v9878
  %v9880 = vmul.f32 %v9877, %v9879
  %v9881 = vadd.f32 %v9877, %v9880
  %vm9882 = vweird.f32 %v9647
  %vm9883 = vweird.f32 %v9877
  %vm9884 = vmor %vm9882, %vm9883
  %v9885 = vsel %vm9884, %v9877, %v9881
  %v9886 = vand.u32 2147483647, %v9647
  %vm9887 = vcmp.eq.f32.partialorder %v9886, 8.507059e+37
  %v9888 = vand.u32 %v9647, 2147483648
  %v9889 = vor.u32 1.1754944e-38, %v9888
  %v9890 = vsel %vm9887, %v9889, %v9885
  %v9891 = vmul.f32 1.0, %v9890
  %v9892 = vrcp.pop %v9648
  %v9893 = vmul.f32 %v9648, %v9892
  %v9894 = vsub.f32 1.0, %v9893
  %v9895 = vmul.f32 %v9892, %v9894
  %v9896 = vadd.f32 %v9892, %v9895
  %vm9897 = vweird.f32 %v9648
  %vm9898 = vweird.f32 %v9892
  %vm9899 = vmor %vm9897, %vm9898
  %v9900 = vsel %vm9899, %v9892, %v9896
  %v9901 = vand.u32 2147483647, %v9648
  %vm9902 = vcmp.eq.f32.partialorder %v9901, 8.507059e+37
  %v9903 = vand.u32 %v9648, 2147483648
  %v9904 = vor.u32 1.1754944e-38, %v9903
  %v9905 = vsel %vm9902, %v9904, %v9900
  %v9906 = vmul.f32 1.0, %v9905
  %v9907 = vrcp.pop %v9649
  %v9908 = vmul.f32 %v9649, %v9907
  %v9909 = vsub.f32 1.0, %v9908
  %v9910 = vmul.f32 %v9907, %v9909
  %v9911 = vadd.f32 %v9907, %v9910
  %vm9912 = vweird.f32 %v9649
  %vm9913 = vweird.f32 %v9907
  %vm9914 = vmor %vm9912, %vm9913
  %v9915 = vsel %vm9914, %v9907, %v9911
  %v9916 = vand.u32 2147483647, %v9649
  %vm9917 = vcmp.eq.f32.partialorder %v9916, 8.507059e+37
  %v9918 = vand.u32 %v9649, 2147483648
  %v9919 = vor.u32 1.1754944e-38, %v9918
  %v9920 = vsel %vm9917, %v9919, %v9915
  %v9921 = vmul.f32 1.0, %v9920
  %v9922 = vrcp.pop %v9650
  %v9923 = vmul.f32 %v9650, %v9922
  %v9924 = vsub.f32 1.0, %v9923
  %v9925 = vmul.f32 %v9922, %v9924
  %v9926 = vadd.f32 %v9922, %v9925
  %vm9927 = vweird.f32 %v9650
  %vm9928 = vweird.f32 %v9922
  %vm9929 = vmor %vm9927, %vm9928
  %v9930 = vsel %vm9929, %v9922, %v9926
  %v9931 = vand.u32 2147483647, %v9650
  %vm9932 = vcmp.eq.f32.partialorder %v9931, 8.507059e+37
  %v9933 = vand.u32 %v9650, 2147483648
  %v9934 = vor.u32 1.1754944e-38, %v9933
  %v9935 = vsel %vm9932, %v9934, %v9930
  %v9936 = vmul.f32 1.0, %v9935
  %v9937 = vrcp.pop %v9651
  %v9938 = vmul.f32 %v9651, %v9937
  %v9939 = vsub.f32 1.0, %v9938
  %v9940 = vmul.f32 %v9937, %v9939
  %v9941 = vadd.f32 %v9937, %v9940
  %vm9942 = vweird.f32 %v9651
  %vm9943 = vweird.f32 %v9937
  %vm9944 = vmor %vm9942, %vm9943
  %v9945 = vsel %vm9944, %v9937, %v9941
  %v9946 = vand.u32 2147483647, %v9651
  %vm9947 = vcmp.eq.f32.partialorder %v9946, 8.507059e+37
  %v9948 = vand.u32 %v9651, 2147483648
  %v9949 = vor.u32 1.1754944e-38, %v9948
  %v9950 = vsel %vm9947, %v9949, %v9945
  %v9951 = vmul.f32 1.0, %v9950
  %v9952 = vmul.f32 %v9363, %v9666
  %v9953 = vmul.f32 %v9364, %v9681
  %v9954 = vmul.f32 %v9365, %v9696
  %v9955 = vmul.f32 %v9366, %v9711
  %v9956 = vmul.f32 %v9367, %v9726
  %v9957 = vmul.f32 %v9368, %v9741
  %v9958 = vmul.f32 %v9369, %v9756
  %v9959 = vmul.f32 %v9370, %v9771
  %v9960 = vmul.f32 %v9371, %v9786
  %v9961 = vmul.f32 %v9372, %v9801
  %v9962 = vmul.f32 %v9373, %v9816
  %v9963 = vmul.f32 %v9374, %v9831
  %v9964 = vmul.f32 %v9375, %v9846
  %v9965 = vmul.f32 %v9376, %v9861
  %v9966 = vmul.f32 %v9377, %v9876
  %v9967 = vmul.f32 %v9378, %v9891
  %v9968 = vmul.f32 %v9379, %v9906
  %v9969 = vmul.f32 %v9380, %v9921
  %v9970 = vmul.f32 %v9381, %v9936
  %v9971 = vmul.f32 %v9382, %v9951
  %s9972 = scalar_lea.vmem %s16, 32
  %v9973 = vld [vmem:[%s9972] sm:$0xff]
  %v9974 = vld [vmem:[%s9972 + $0x8] sm:$0xff]
  %v9975 = vld [vmem:[%s9972 + $0x10] sm:$0xff]
  %v9976 = vld [vmem:[%s9972 + $0x18] sm:$0xff]
  %s9977 = scalar_lea.vmem %s17, 1
  %v9978 = vld [vmem:[%s9977] sm:$0x1]
  %v9980 = vperm.slane %v9978, 0
  %v9983 = vsel %vm2852, %v9952, 0
  %v9986 = vsel %vm2852, %v9953, 0
  %v9989 = vsel %vm2852, %v9954, 0
  %v9992 = vsel %vm2852, %v9955, 0
  %v9995 = vsel %vm2852, %v9956, 0
  %v9998 = vsel %vm2852, %v9957, 0
  %v10001 = vsel %vm2852, %v9958, 0
  %v10004 = vsel %vm2852, %v9959, 0
  %v10007 = vsel %vm2852, %v9960, 0
  %v10010 = vsel %vm2852, %v9961, 0
  %v10013 = vsel %vm2852, %v9962, 0
  %v10016 = vsel %vm2852, %v9963, 0
  %v10019 = vsel %vm2852, %v9964, 0
  %v10022 = vsel %vm2852, %v9965, 0
  %v10025 = vsel %vm2852, %v9966, 0
  %v10028 = vsel %vm2852, %v9967, 0
  %v10031 = vsel %vm2852, %v9968, 0
  %v10034 = vsel %vm2852, %v9969, 0
  %v10037 = vsel %vm2852, %v9970, 0
  %v10040 = vsel %vm2852, %v9971, 0
  %10042 = vmatpush.msra.mxu0 0.0
  %10043 = vmatpush.msra.mxu0 0.0
  %10044 = vmatpush.msra.mxu0 0.0
  %10045 = vmatpush.msra.mxu0 0.0
  %10046 = vmatpush.msra.mxu0 0.0
  %10047 = vmatpush.msra.mxu0 0.0
  %10048 = vmatpush.msra.mxu0 0.0
  %10049 = vmatpush.msra.mxu0 0.0
  %10050 = vmatpush.msra.mxu0 0.0
  %10051 = vmatpush.msra.mxu0 0.0
  %10052 = vmatpush.msra.mxu0 0.0
  %10053 = vmatpush.msra.mxu0 0.0
  %10054 = vmatpush.msra.mxu0 %v9976
  %10055 = vmatpush.msra.mxu0 %v9975
  %10056 = vmatpush.msra.mxu0 %v9974
  %10057 = vmatpush.msra.mxu0 %v9973
  %10058 = vmatmul.f32.gmra.mxu0 %v9983
  %v10059 = vpop.f32.mrf.mxu0
  %v10060 = vadd.f32 %v9980, %v10059
  %10061 = vmatmul.f32.gmra.mxu0 %v9986
  %v10062 = vpop.f32.mrf.mxu0
  %v10063 = vadd.f32 %v9980, %v10062
  %10064 = vmatmul.f32.gmra.mxu0 %v9989
  %v10065 = vpop.f32.mrf.mxu0
  %v10066 = vadd.f32 %v9980, %v10065
  %10067 = vmatmul.f32.gmra.mxu0 %v9992
  %v10068 = vpop.f32.mrf.mxu0
  %v10069 = vadd.f32 %v9980, %v10068
  %10070 = vmatmul.f32.gmra.mxu0 %v9995
  %v10071 = vpop.f32.mrf.mxu0
  %v10072 = vadd.f32 %v9980, %v10071
  %10073 = vmatmul.f32.gmra.mxu0 %v9998
  %v10074 = vpop.f32.mrf.mxu0
  %v10075 = vadd.f32 %v9980, %v10074
  %10076 = vmatmul.f32.gmra.mxu0 %v10001
  %v10077 = vpop.f32.mrf.mxu0
  %v10078 = vadd.f32 %v9980, %v10077
  %10079 = vmatmul.f32.gmra.mxu0 %v10004
  %v10080 = vpop.f32.mrf.mxu0
  %v10081 = vadd.f32 %v9980, %v10080
  %10082 = vmatmul.f32.gmra.mxu0 %v10007
  %v10083 = vpop.f32.mrf.mxu0
  %v10084 = vadd.f32 %v9980, %v10083
  %10085 = vmatmul.f32.gmra.mxu0 %v10010
  %v10086 = vpop.f32.mrf.mxu0
  %v10087 = vadd.f32 %v9980, %v10086
  %10088 = vmatmul.f32.gmra.mxu0 %v10013
  %v10089 = vpop.f32.mrf.mxu0
  %v10090 = vadd.f32 %v9980, %v10089
  %10091 = vmatmul.f32.gmra.mxu0 %v10016
  %v10092 = vpop.f32.mrf.mxu0
  %v10093 = vadd.f32 %v9980, %v10092
  %10094 = vmatmul.f32.gmra.mxu0 %v10019
  %v10095 = vpop.f32.mrf.mxu0
  %v10096 = vadd.f32 %v9980, %v10095
  %10097 = vmatmul.f32.gmra.mxu0 %v10022
  %v10098 = vpop.f32.mrf.mxu0
  %v10099 = vadd.f32 %v9980, %v10098
  %10100 = vmatmul.f32.gmra.mxu0 %v10025
  %v10101 = vpop.f32.mrf.mxu0
  %v10102 = vadd.f32 %v9980, %v10101
  %10103 = vmatmul.f32.gmra.mxu0 %v10028
  %v10104 = vpop.f32.mrf.mxu0
  %v10105 = vadd.f32 %v9980, %v10104
  %10106 = vmatmul.f32.gmra.mxu0 %v10031
  %v10107 = vpop.f32.mrf.mxu0
  %v10108 = vadd.f32 %v9980, %v10107
  %10109 = vmatmul.f32.gmra.mxu0 %v10034
  %v10110 = vpop.f32.mrf.mxu0
  %v10111 = vadd.f32 %v9980, %v10110
  %10112 = vmatmul.f32.gmra.mxu0 %v10037
  %v10113 = vpop.f32.mrf.mxu0
  %v10114 = vadd.f32 %v9980, %v10113
  %10115 = vmatmul.f32.gmra.mxu0 %v10040
  %v10116 = vpop.f32.mrf.mxu0
  %v10117 = vadd.f32 %v9980, %v10116
  %10118 = vdwg.mxu0
  %v10119 = vadd.f32 %v10060, %v5352
  %v10120 = vadd.f32 %v10063, %v5355
  %v10121 = vadd.f32 %v10066, %v5358
  %v10122 = vadd.f32 %v10069, %v5361
  %v10123 = vadd.f32 %v10072, %v5364
  %v10124 = vadd.f32 %v10075, %v5367
  %v10125 = vadd.f32 %v10078, %v5370
  %v10126 = vadd.f32 %v10081, %v5373
  %v10127 = vadd.f32 %v10084, %v5376
  %v10128 = vadd.f32 %v10087, %v5379
  %v10129 = vadd.f32 %v10090, %v5382
  %v10130 = vadd.f32 %v10093, %v5385
  %v10131 = vadd.f32 %v10096, %v5388
  %v10132 = vadd.f32 %v10099, %v5391
  %v10133 = vadd.f32 %v10102, %v5394
  %v10134 = vadd.f32 %v10105, %v5397
  %v10135 = vadd.f32 %v10108, %v5400
  %v10136 = vadd.f32 %v10111, %v5403
  %v10137 = vadd.f32 %v10114, %v5406
  %v10138 = vadd.f32 %v10117, %v5409
  %v10139 = vmax.f32 %v10119, 0.0
  %v10140 = vmax.f32 %v10120, 0.0
  %v10141 = vmax.f32 %v10121, 0.0
  %v10142 = vmax.f32 %v10122, 0.0
  %v10143 = vmax.f32 %v10123, 0.0
  %v10144 = vmax.f32 %v10124, 0.0
  %v10145 = vmax.f32 %v10125, 0.0
  %v10146 = vmax.f32 %v10126, 0.0
  %v10147 = vmax.f32 %v10127, 0.0
  %v10148 = vmax.f32 %v10128, 0.0
  %v10149 = vmax.f32 %v10129, 0.0
  %v10150 = vmax.f32 %v10130, 0.0
  %v10151 = vmax.f32 %v10131, 0.0
  %v10152 = vmax.f32 %v10132, 0.0
  %v10153 = vmax.f32 %v10133, 0.0
  %v10154 = vmax.f32 %v10134, 0.0
  %v10155 = vmax.f32 %v10135, 0.0
  %v10156 = vmax.f32 %v10136, 0.0
  %v10157 = vmax.f32 %v10137, 0.0
  %v10158 = vmax.f32 %v10138, 0.0
  %10159 = vst [vmem:[%s22] sm:$0xff] %v10139
  %10160 = vst [vmem:[%s22 + $0x8] sm:$0xff] %v10140
  %10161 = vst [vmem:[%s22 + $0x10] sm:$0xff] %v10141
  %10162 = vst [vmem:[%s22 + $0x18] sm:$0xff] %v10142
  %10163 = vst [vmem:[%s22 + $0x20] sm:$0xff] %v10143
  %10164 = vst [vmem:[%s22 + $0x28] sm:$0xff] %v10144
  %10165 = vst [vmem:[%s22 + $0x30] sm:$0xff] %v10145
  %10166 = vst [vmem:[%s22 + $0x38] sm:$0xff] %v10146
  %10167 = vst [vmem:[%s22 + $0x40] sm:$0xff] %v10147
  %10168 = vst [vmem:[%s22 + $0x48] sm:$0xff] %v10148
  %10169 = vst [vmem:[%s22 + $0x50] sm:$0xff] %v10149
  %10170 = vst [vmem:[%s22 + $0x58] sm:$0xff] %v10150
  %10171 = vst [vmem:[%s22 + $0x60] sm:$0xff] %v10151
  %10172 = vst [vmem:[%s22 + $0x68] sm:$0xff] %v10152
  %10173 = vst [vmem:[%s22 + $0x70] sm:$0xff] %v10153
  %10174 = vst [vmem:[%s22 + $0x78] sm:$0xff] %v10154
  %10175 = vst [vmem:[%s22 + $0x80] sm:$0xff] %v10155
  %10176 = vst [vmem:[%s22 + $0x88] sm:$0xff] %v10156
  %10177 = vst [vmem:[%s22 + $0x90] sm:$0xff] %v10157
  %10178 = vst [vmem:[%s22 + $0x98] sm:$0xff] %v10158
  // Predicated region
  $region90: #{graphwavenet_forward.1} parent=0 // pred_check
    _
  $region91: #{graphwavenet_forward.1} parent=0 // pred_check_branch
    %10180 = sbr.rel (0) target = $region93
  $region92: #{graphwavenet_forward.1} parent=0 // pred_region
    _
  $region93: #{graphwavenet_forward.1} parent=0 // pred_fallthru
    _
  // Predicated region
  $region94: #{graphwavenet_forward.1} parent=0 // pred_check
    _
  $region95: #{graphwavenet_forward.1} parent=0 // pred_check_branch
    %10182 = sbr.rel (0) target = $region97
  $region96: #{graphwavenet_forward.1} parent=0 // pred_region
    _
  $region97: #{graphwavenet_forward.1} parent=0 // pred_fallthru
    _

</llo_original>
